<compile_context>
chip_gen: v7x
topology: tpu7x:2x2x1
jax: 0.10.0
libtpu: 0.0.40
codegen_flags: <defaults>
</compile_context>

<pallas_src>
import functools

import jax
import jax.numpy as jnp
from jax.experimental import pallas as pl
from jax.experimental.pallas import tpu as pltpu


def _attention_conv_kernel(xp_ref, w_ref, rel_ref, o_ref, *,
                           strip_h, W, K, pad, Op):
    """One (batch, H-strip) grid cell.

    xp_ref : (1, Hp, Wp, C)   full spatially padded input (NHWC)
    w_ref  : (C, 3*Op)        packed, channel-padded 1x1-conv weights [wk | wv | wq]
    rel_ref: (K*K, Op)        rel_vec[i*K+j] = concat(rel_h[:, i], rel_w[:, j]) (padded)
    o_ref  : (1, strip_h, W, Op)
    """
    s = pl.program_id(1)
    strip_hp = strip_h + 2 * pad                      # rows needed incl. halo
    row0 = s * strip_h                                # top padded row of the strip
    if strip_h % 8 == 0:
        row0 = pl.multiple_of(row0, 8)                # sublane-aligned dynamic slice

    xs = xp_ref[0, pl.ds(row0, strip_hp), :, :]       # (strip_hp, Wp, C)
    Wp = W + 2 * pad
    C = xs.shape[-1]

    # ---- fused q/k/v projection: a single MXU matmul with N = 3*Op ------------
    # Op is a multiple of 128, so the three channel slices below are lane-tile
    # aligned (free views) and the matmul N dim is lane-full.
    kqv = jnp.dot(xs.reshape(strip_hp * Wp, C), w_ref[...],
                  preferred_element_type=jnp.float32)         # (strip_hp*Wp, 3Op) f32
    kqv = kqv.reshape(strip_hp, Wp, 3 * Op)

    k_pad = kqv[:, :, 0:Op]                                    # (strip_hp, Wp, Op)
    v_pad = kqv[:, :, Op:2 * Op]                               # (strip_hp, Wp, Op)
    q = kqv[pad:pad + strip_h, pad:pad + W, 2 * Op:3 * Op]     # (strip_h, W, Op)

    # rel rows hoisted once (broadcast happens inside the add; full (strip_h, W, Op)
    # rel tiles are never materialized).
    rel = rel_ref[...]                                         # (K*K, Op) f32
    rel_rows = [rel[idx][None, None, :] for idx in range(K * K)]

    # ---- two-pass softmax over the K*K window offsets --------------------------
    # dj (width) outer: the Wp-axis sublane slice is done K times per tensor per
    # pass instead of K*K times; the di shift is a free major-dim slice.
    # Fully unrolled: K is a small static constant (LLO scheduler visibility).
    # TODO(synk): realize the dj shift with pltpu.roll (XLU slot) to drop the
    # remaining per-dj sublane relayouts once roll-direction semantics are
    # validated on hardware.

    # Pass 1: running max of the logits (1 vmul + 1 vmax per offset).
    m = None
    for dj in range(K):
        kc = k_pad[:, dj:dj + W, :]                            # (strip_hp, W, Op)
        for di in range(K):
            logit = q * (kc[di:di + strip_h] + rel_rows[di * K + dj])
            m = logit if m is None else jnp.maximum(m, logit)

    # Pass 2: recompute the logit, exponentiate once per offset, accumulate.
    # TODO(synk): on v6e/v7x the EUP is bf16-native; a bf16 exp input/output
    # (f32 accumulation of l/acc) would ~double transcendental throughput, gated
    # by an accuracy check.
    l = jnp.zeros_like(m)
    acc = jnp.zeros_like(m)
    for dj in range(K):
        kc = k_pad[:, dj:dj + W, :]
        vc = v_pad[:, dj:dj + W, :]
        for di in range(K):
            e = jnp.exp(q * (kc[di:di + strip_h] + rel_rows[di * K + dj]) - m)
            l = l + e
            acc = acc + e * vc[di:di + strip_h]

    # Single normalization: approximate reciprocal on the EUP slot, refined with
    # one Newton-Raphson step for f32-level parity with exact softmax.
    r = pl.reciprocal(l, approx=True)
    r = r * (2.0 - l * r)
    o_ref[0] = (acc * r).astype(o_ref.dtype)                   # lane-dense store (Op % 128 == 0)


def _round_up(x, m):
    return ((x + m - 1) // m) * m


def _vmem_capacity_bytes():
    try:
        return int(pltpu.get_tpu_info().vmem_capacity_bytes)
    except Exception:
        return 64 * 1024 * 1024        # conservative default: v7x per-TensorCore VMEM


def _vmem_bytes_estimate(Hp, Wp, C, Op, K, h_strip, W, pad, in_it, out_it):
    """Rough per-core VMEM working-set estimate for one grid step."""
    strip_hp = h_strip + 2 * pad
    blocks = (2 * Hp * Wp * C * in_it            # full padded image (double-buffered)
              + 2 * C * 3 * Op * in_it           # packed weights
              + 2 * K * K * Op * 4               # rel table (f32)
              + 2 * h_strip * W * Op * out_it)   # output block
    work = (strip_hp * Wp * C * in_it            # xs strip copy
            + strip_hp * Wp * 3 * Op * 4         # fused projection kqv (f32)
            + 2 * strip_hp * W * Op * 4          # per-dj k/v column slices
            + 8 * h_strip * W * Op * 4)          # q, m, l, acc, out + temporaries
    return blocks + work


def _pick_h_strip(H, B, fits):
    """Largest divisor of H whose working set fits; keep >= 2 (ideally even)
    strips when batch == 1 so both v7x TensorCores get work."""
    divisors = sorted((d for d in range(1, H + 1) if H % d == 0), reverse=True)
    cands = ([d for d in divisors if d <= 128 and fits(d)]
             or [d for d in divisors if fits(d)]
             or [1])
    if B == 1:
        even = [d for d in cands if (H // d) >= 2 and (H // d) % 2 == 0]
        if even:
            return even[0]
        multi = [d for d in cands if (H // d) >= 2]
        if multi:
            return multi[0]
    return cands[0]


def attention_conv_pallas(x_nchw, wq, wk, wv, rel_h, rel_w, *, kernel_size,
                          stride=1, padding=0, groups=1,
                          h_strip=None, matmul_dtype=None):
    """Pallas implementation of AttentionConv.forward (float mode; Quant/DeQuant
    stubs are identities).

    On v5e (lowest HBM bandwidth, bf16-native MXU) pass matmul_dtype=jnp.bfloat16
    to halve image/weight HBM traffic; softmax math stays f32 either way.
    """
    B, C, H, W = x_nchw.shape
    O = wq.shape[0]
    K = kernel_size
    assert O % groups == 0
    assert O % 2 == 0, "out_channels must be even (rel_h / rel_w split)"
    assert stride == 1, "module's final view requires output H'=H, i.e. stride=1"
    h_out = (H + 2 * padding - K) // stride + 1
    w_out = (W + 2 * padding - K) // stride + 1
    assert h_out == H and w_out == W, "padding must preserve spatial size"

    # Channel padding to a lane-tile multiple: aligned kqv slices, lane-full MXU N,
    # lane-dense output stores.  Padded channels are exact zeros and sliced off.
    Op = _round_up(O, 128)
    Hp, Wp = H + 2 * padding, W + 2 * padding

    compute_dtype = jnp.dtype(matmul_dtype) if matmul_dtype is not None else x_nchw.dtype
    out_dtype = x_nchw.dtype
    in_it = jnp.dtype(compute_dtype).itemsize
    out_it = jnp.dtype(out_dtype).itemsize

    vmem_cap = _vmem_capacity_bytes()
    budget = (vmem_cap // 8) * 7                      # never above physical VMEM

    def fits(hs):
        return _vmem_bytes_estimate(Hp, Wp, C, Op, K, hs, W, padding,
                                    in_it, out_it) * 3 // 2 <= budget

    if h_strip is None:
        h_strip = _pick_h_strip(H, B, fits)
    assert H % h_strip == 0, "h_strip must divide H"
    num_strips = H // h_strip

    est = _vmem_bytes_estimate(Hp, Wp, C, Op, K, h_strip, W, padding, in_it, out_it)
    vmem_limit = int(min(budget, max(est * 3 // 2, 32 * 1024 * 1024)))

    # NCHW -> NHWC, pad spatial dims (glue).  bf16 here halves HBM->VMEM traffic;
    # the matmul accumulates in f32 and all softmax math stays f32.
    x_nhwc = jnp.transpose(x_nchw, (0, 2, 3, 1))
    xp = jnp.pad(x_nhwc, ((0, 0), (padding, padding), (padding, padding), (0, 0)))
    xp = xp.astype(compute_dtype)

    # Conv weights (O, C, 1, 1) -> packed, channel-padded (C, 3*Op) = [wk | wv | wq].
    def pack(w):
        m = w.reshape(O, C).T                         # (C, O)
        return jnp.pad(m, ((0, 0), (0, Op - O)))
    w_all = jnp.concatenate([pack(wk), pack(wv), pack(wq)], axis=1).astype(compute_dtype)

    # Relative-position table: rel_vec[i*K+j] = concat(rel_h[:, i], rel_w[:, j]).
    rh = rel_h.reshape(O // 2, K)                     # from (O/2, 1, 1, K, 1)
    rw = rel_w.reshape(O // 2, K)                     # from (O/2, 1, 1, 1, K)
    rel_vec = jnp.concatenate(
        [jnp.repeat(rh.T, K, axis=0),                 # row i*K+j -> rel_h[:, i]
         jnp.tile(rw.T, (K, 1))],                     # row i*K+j -> rel_w[:, j]
        axis=1)
    rel_vec = jnp.pad(rel_vec, ((0, 0), (0, Op - O))).astype(jnp.float32)   # (K*K, Op)

    kernel = functools.partial(_attention_conv_kernel, strip_h=h_strip, W=W,
                               K=K, pad=padding, Op=Op)

    strip_hp = h_strip + 2 * padding
    cost = pl.CostEstimate(
        flops=2 * B * num_strips * strip_hp * Wp * C * 3 * Op
              + 9 * B * H * W * Op * K * K,
        transcendentals=B * H * W * Op * K * K,
        bytes_accessed=B * Hp * Wp * C * in_it
                       + C * 3 * Op * in_it + K * K * Op * 4
                       + B * H * W * Op * out_it)

    # TODO(synk): for very large images, switch the input to manually DMA'd halo
    # strips (memory_space=pl.ANY + make_async_copy double-buffer) so the full
    # padded image need not reside in VMEM; overlapping strips are not expressible
    # with plain Blocked BlockSpecs.
    out_nhwc = pl.pallas_call(
        kernel,
        out_shape=jax.ShapeDtypeStruct((B, H, W, Op), out_dtype),
        grid_spec=pltpu.PrefetchScalarGridSpec(
            num_scalar_prefetch=0,
            grid=(B, num_strips),
            in_specs=[
                # full padded image; block index constant over the strip axis so it
                # is fetched once per batch element.
                pl.BlockSpec((1, Hp, Wp, C), lambda b, s: (b, 0, 0, 0)),
                pl.BlockSpec((C, 3 * Op), lambda b, s: (0, 0)),
                pl.BlockSpec((K * K, Op), lambda b, s: (0, 0)),
            ],
            out_specs=pl.BlockSpec((1, h_strip, W, Op), lambda b, s: (b, s, 0, 0)),
        ),
        compiler_params=pltpu.CompilerParams(
            dimension_semantics=("parallel", "parallel"),
            vmem_limit_bytes=vmem_limit),
        cost_estimate=cost,
    )(xp, w_all, rel_vec)

    # Drop padded channels, NHWC -> NCHW to match the PyTorch (B, out_channels, H, W).
    # (groups only affects an intermediate view in the reference module; the
    #  per-channel softmax math is identical, so no extra handling is needed.)
    return jnp.transpose(out_nhwc[..., :O], (0, 3, 1, 2))


def attention_conv_reference(x_nchw, wq, wk, wv, rel_h, rel_w, *,
                             kernel_size, padding, matmul_dtype=None):
    """Pure-JAX reference mirroring the PyTorch forward (for validation)."""
    B, C, H, W = x_nchw.shape
    O = wq.shape[0]
    K = kernel_size
    cd = jnp.dtype(matmul_dtype) if matmul_dtype is not None else x_nchw.dtype
    xp = jnp.pad(x_nchw, ((0, 0), (0, 0), (padding, padding), (padding, padding)))
    xp = xp.astype(cd)
    x_c = x_nchw.astype(cd)
    wq2, wk2, wv2 = (w.reshape(O, C).astype(cd) for w in (wq, wk, wv))
    q = jnp.einsum('bchw,oc->bohw', x_c, wq2, preferred_element_type=jnp.float32)
    k = jnp.einsum('bchw,oc->bohw', xp, wk2, preferred_element_type=jnp.float32)
    v = jnp.einsum('bchw,oc->bohw', xp, wv2, preferred_element_type=jnp.float32)

    def unfold(t):
        rows = []
        for i in range(K):
            cols = [t[:, :, i:i + H, j:j + W] for j in range(K)]
            rows.append(jnp.stack(cols, axis=-1))
        return jnp.stack(rows, axis=-2)          # (B, O, H, W, K, K)

    ku, vu = unfold(k), unfold(v)
    rh = rel_h.reshape(O // 2, K)
    rw = rel_w.reshape(O // 2, K)
    kh = ku[:, :O // 2] + rh[None, :, None, None, :, None]
    kw_ = ku[:, O // 2:] + rw[None, :, None, None, None, :]
    ku = jnp.concatenate([kh, kw_], axis=1).reshape(B, O, H, W, K * K)
    vu = vu.reshape(B, O, H, W, K * K)
    logits = q[..., None] * ku
    attn = jax.nn.softmax(logits, axis=-1)
    return jnp.sum(attn * vu, axis=-1)           # (B, O, H, W)


if __name__ == "__main__":
    # Small, module-consistent shapes.
    B, C_in, C_out = 2, 4, 8
    H = W = 16
    K, pad, stride = 3, 1, 1

    key = jax.random.PRNGKey(0)
    kx, kq, kk, kv, krh, krw = jax.random.split(key, 6)

    x = jax.random.normal(kx, (B, C_in, H, W), jnp.float32)

    # kaiming_normal_(mode='fan_out', nonlinearity='relu') for 1x1 conv: std = sqrt(2/O)
    std = (2.0 / C_out) ** 0.5
    wq = jax.random.normal(kq, (C_out, C_in, 1, 1), jnp.float32) * std
    wk = jax.random.normal(kk, (C_out, C_in, 1, 1), jnp.float32) * std
    wv = jax.random.normal(kv, (C_out, C_in, 1, 1), jnp.float32) * std
    # init.normal_(rel_h/rel_w, 0, 1)
    rel_h = jax.random.normal(krh, (C_out // 2, 1, 1, K, 1), jnp.float32)
    rel_w = jax.random.normal(krw, (C_out // 2, 1, 1, 1, K), jnp.float32)

    ref = attention_conv_reference(x, wq, wk, wv, rel_h, rel_w,
                                   kernel_size=K, padding=pad)

    # f32 run, explicit 2 strips of 8 rows -> grid (B, 2) exercises the strip axis.
    # (Error vs the reference is now ~1e-6 after the two-pass softmax + Newton-
    # refined reciprocal; keep a loose tolerance for cross-generation robustness.)
    out = attention_conv_pallas(x, wq, wk, wv, rel_h, rel_w,
                                kernel_size=K, stride=stride, padding=pad,
                                groups=1, h_strip=8)
    out = jax.block_until_ready(out)
    assert out.shape == (B, C_out, H, W), out.shape
    assert jnp.allclose(out, ref, atol=1e-2, rtol=1e-2), \
        float(jnp.max(jnp.abs(out - ref)))

    # groups > 1: a pure intermediate view in the PyTorch module (softmax is
    # per-channel over K*K), so the output must be identical.  Also exercises the
    # VMEM-aware default strip picker.
    out_g = attention_conv_pallas(x, wq, wk, wv, rel_h, rel_w,
                                  kernel_size=K, stride=stride, padding=pad,
                                  groups=2)
    out_g = jax.block_until_ready(out_g)
    assert jnp.allclose(out_g, ref, atol=1e-2, rtol=1e-2), \
        float(jnp.max(jnp.abs(out_g - ref)))

    # bf16 matmul-input run (halved HBM traffic, bf16-native MXU; recommended on
    # v5e).  Softmax/accumulation stay f32.  Compared against a reference with the
    # same bf16 projection precision (expected deviation vs the f32 PyTorch forward
    # is bf16-level in the q/k/v projections).
    out_bf = attention_conv_pallas(x, wq, wk, wv, rel_h, rel_w,
                                   kernel_size=K, stride=stride, padding=pad,
                                   groups=1, h_strip=8,
                                   matmul_dtype=jnp.bfloat16)
    out_bf = jax.block_until_ready(out_bf)
    ref_bf = attention_conv_reference(x, wq, wk, wv, rel_h, rel_w,
                                      kernel_size=K, padding=pad,
                                      matmul_dtype=jnp.bfloat16)
    assert jnp.allclose(out_bf, ref_bf, atol=2e-2, rtol=2e-2), \
        float(jnp.max(jnp.abs(out_bf - ref_bf)))

    print("KERNEL_OK")
</pallas_src>

<mosaic_0001>
module attributes {stable_mosaic.version = 11 : i64} {
  func.func @_attention_conv_kernel(%arg0: i32, %arg1: i32, %arg2: memref<1x18x18x4xf32, #tpu.memory_space<vmem>>, %arg3: memref<4x384xf32, #tpu.memory_space<vmem>>, %arg4: memref<9x128xf32, #tpu.memory_space<vmem>>, %arg5: memref<1x8x16x128xf32, #tpu.memory_space<vmem>>) attributes {dimension_semantics = [#tpu.dimension_semantics<parallel>, #tpu.dimension_semantics<parallel>], iteration_bounds = array<i64: 2, 2>, scalar_prefetch = 0 : i64, scratch_operands = 0 : i64, tpu.core_type = #tpu.core_type<tc>, window_params = [{transform_indices = @transform_0, window_bounds = array<i64: 1, 18, 18, 4>}, {pipeline_mode = #tpu.pipeline_mode<synchronous>, transform_indices = @transform_1, window_bounds = array<i64: 4, 384>}, {pipeline_mode = #tpu.pipeline_mode<synchronous>, transform_indices = @transform_2, window_bounds = array<i64: 9, 128>}, {transform_indices = @transform_3, window_bounds = array<i64: 1, 8, 16, 128>}]} {
    %c8_i32 = arith.constant 8 : i32
    %0 = arith.muli %arg1, %c8_i32 : i32
    %1 = tpu.assume_multiple %0, 8 : i32
    %c0 = arith.constant 0 : index
    %2 = arith.index_cast %1 : i32 to index
    %c0_0 = arith.constant 0 : index
    %c0_1 = arith.constant 0 : index
    %3 = vector.load %arg2[%c0, %2, %c0_0, %c0_1] : memref<1x18x18x4xf32, #tpu.memory_space<vmem>>, vector<1x10x18x4xf32>
    %4 = vector.shape_cast %3 : vector<1x10x18x4xf32> to vector<10x18x4xf32>
    %5 = vector.shape_cast %4 : vector<10x18x4xf32> to vector<180x4xf32>
    %c0_2 = arith.constant 0 : index
    %c0_3 = arith.constant 0 : index
    %6 = vector.load %arg3[%c0_2, %c0_3] : memref<4x384xf32, #tpu.memory_space<vmem>>, vector<4x384xf32>
    %cst = arith.constant dense<0.000000e+00> : vector<180x384xf32>
    %7 = tpu.matmul %5, %6, %cst {dimension_numbers = #tpu.dot_dimension_numbers<[1], [0], [0], [1], [0, 0, 1, 1], [], []>} : vector<180x4xf32>, vector<4x384xf32>, vector<180x384xf32> -> vector<180x384xf32>
    %8 = vector.shape_cast %7 : vector<180x384xf32> to vector<10x18x384xf32>
    %9 = vector.extract_strided_slice %8 {offsets = [0, 0, 0], sizes = [10, 18, 128], strides = [1, 1, 1]} : vector<10x18x384xf32> to vector<10x18x128xf32>
    %10 = vector.extract_strided_slice %8 {offsets = [0, 0, 128], sizes = [10, 18, 128], strides = [1, 1, 1]} : vector<10x18x384xf32> to vector<10x18x128xf32>
    %11 = vector.extract_strided_slice %8 {offsets = [1, 1, 256], sizes = [8, 16, 128], strides = [1, 1, 1]} : vector<10x18x384xf32> to vector<8x16x128xf32>
    %c0_4 = arith.constant 0 : index
    %c0_5 = arith.constant 0 : index
    %12 = vector.load %arg4[%c0_4, %c0_5] : memref<9x128xf32, #tpu.memory_space<vmem>>, vector<9x128xf32>
    %13 = vector.extract_strided_slice %12 {offsets = [0, 0], sizes = [1, 128], strides = [1, 1]} : vector<9x128xf32> to vector<1x128xf32>
    %14 = vector.shape_cast %13 : vector<1x128xf32> to vector<128xf32>
    %15 = vector.shape_cast %14 : vector<128xf32> to vector<1x1x128xf32>
    %16 = vector.extract_strided_slice %12 {offsets = [1, 0], sizes = [1, 128], strides = [1, 1]} : vector<9x128xf32> to vector<1x128xf32>
    %17 = vector.shape_cast %16 : vector<1x128xf32> to vector<128xf32>
    %18 = vector.shape_cast %17 : vector<128xf32> to vector<1x1x128xf32>
    %19 = vector.extract_strided_slice %12 {offsets = [2, 0], sizes = [1, 128], strides = [1, 1]} : vector<9x128xf32> to vector<1x128xf32>
    %20 = vector.shape_cast %19 : vector<1x128xf32> to vector<128xf32>
    %21 = vector.shape_cast %20 : vector<128xf32> to vector<1x1x128xf32>
    %22 = vector.extract_strided_slice %12 {offsets = [3, 0], sizes = [1, 128], strides = [1, 1]} : vector<9x128xf32> to vector<1x128xf32>
    %23 = vector.shape_cast %22 : vector<1x128xf32> to vector<128xf32>
    %24 = vector.shape_cast %23 : vector<128xf32> to vector<1x1x128xf32>
    %25 = vector.extract_strided_slice %12 {offsets = [4, 0], sizes = [1, 128], strides = [1, 1]} : vector<9x128xf32> to vector<1x128xf32>
    %26 = vector.shape_cast %25 : vector<1x128xf32> to vector<128xf32>
    %27 = vector.shape_cast %26 : vector<128xf32> to vector<1x1x128xf32>
    %28 = vector.extract_strided_slice %12 {offsets = [5, 0], sizes = [1, 128], strides = [1, 1]} : vector<9x128xf32> to vector<1x128xf32>
    %29 = vector.shape_cast %28 : vector<1x128xf32> to vector<128xf32>
    %30 = vector.shape_cast %29 : vector<128xf32> to vector<1x1x128xf32>
    %31 = vector.extract_strided_slice %12 {offsets = [6, 0], sizes = [1, 128], strides = [1, 1]} : vector<9x128xf32> to vector<1x128xf32>
    %32 = vector.shape_cast %31 : vector<1x128xf32> to vector<128xf32>
    %33 = vector.shape_cast %32 : vector<128xf32> to vector<1x1x128xf32>
    %34 = vector.extract_strided_slice %12 {offsets = [7, 0], sizes = [1, 128], strides = [1, 1]} : vector<9x128xf32> to vector<1x128xf32>
    %35 = vector.shape_cast %34 : vector<1x128xf32> to vector<128xf32>
    %36 = vector.shape_cast %35 : vector<128xf32> to vector<1x1x128xf32>
    %37 = vector.extract_strided_slice %12 {offsets = [8, 0], sizes = [1, 128], strides = [1, 1]} : vector<9x128xf32> to vector<1x128xf32>
    %38 = vector.shape_cast %37 : vector<1x128xf32> to vector<128xf32>
    %39 = vector.shape_cast %38 : vector<128xf32> to vector<1x1x128xf32>
    %40 = vector.extract_strided_slice %9 {offsets = [0, 0, 0], sizes = [10, 16, 128], strides = [1, 1, 1]} : vector<10x18x128xf32> to vector<10x16x128xf32>
    %41 = vector.extract_strided_slice %40 {offsets = [0, 0, 0], sizes = [8, 16, 128], strides = [1, 1, 1]} : vector<10x16x128xf32> to vector<8x16x128xf32>
    %42 = vector.broadcast %15 : vector<1x1x128xf32> to vector<8x16x128xf32>
    %43 = arith.addf %41, %42 : vector<8x16x128xf32>
    %44 = arith.mulf %11, %43 : vector<8x16x128xf32>
    %45 = vector.extract_strided_slice %40 {offsets = [1, 0, 0], sizes = [8, 16, 128], strides = [1, 1, 1]} : vector<10x16x128xf32> to vector<8x16x128xf32>
    %46 = vector.broadcast %24 : vector<1x1x128xf32> to vector<8x16x128xf32>
    %47 = arith.addf %45, %46 : vector<8x16x128xf32>
    %48 = arith.mulf %11, %47 : vector<8x16x128xf32>
    %49 = arith.maximumf %44, %48 : vector<8x16x128xf32>
    %50 = vector.extract_strided_slice %40 {offsets = [2, 0, 0], sizes = [8, 16, 128], strides = [1, 1, 1]} : vector<10x16x128xf32> to vector<8x16x128xf32>
    %51 = vector.broadcast %33 : vector<1x1x128xf32> to vector<8x16x128xf32>
    %52 = arith.addf %50, %51 : vector<8x16x128xf32>
    %53 = arith.mulf %11, %52 : vector<8x16x128xf32>
    %54 = arith.maximumf %49, %53 : vector<8x16x128xf32>
    %55 = vector.extract_strided_slice %9 {offsets = [0, 1, 0], sizes = [10, 16, 128], strides = [1, 1, 1]} : vector<10x18x128xf32> to vector<10x16x128xf32>
    %56 = vector.extract_strided_slice %55 {offsets = [0, 0, 0], sizes = [8, 16, 128], strides = [1, 1, 1]} : vector<10x16x128xf32> to vector<8x16x128xf32>
    %57 = vector.broadcast %18 : vector<1x1x128xf32> to vector<8x16x128xf32>
    %58 = arith.addf %56, %57 : vector<8x16x128xf32>
    %59 = arith.mulf %11, %58 : vector<8x16x128xf32>
    %60 = arith.maximumf %54, %59 : vector<8x16x128xf32>
    %61 = vector.extract_strided_slice %55 {offsets = [1, 0, 0], sizes = [8, 16, 128], strides = [1, 1, 1]} : vector<10x16x128xf32> to vector<8x16x128xf32>
    %62 = vector.broadcast %27 : vector<1x1x128xf32> to vector<8x16x128xf32>
    %63 = arith.addf %61, %62 : vector<8x16x128xf32>
    %64 = arith.mulf %11, %63 : vector<8x16x128xf32>
    %65 = arith.maximumf %60, %64 : vector<8x16x128xf32>
    %66 = vector.extract_strided_slice %55 {offsets = [2, 0, 0], sizes = [8, 16, 128], strides = [1, 1, 1]} : vector<10x16x128xf32> to vector<8x16x128xf32>
    %67 = vector.broadcast %36 : vector<1x1x128xf32> to vector<8x16x128xf32>
    %68 = arith.addf %66, %67 : vector<8x16x128xf32>
    %69 = arith.mulf %11, %68 : vector<8x16x128xf32>
    %70 = arith.maximumf %65, %69 : vector<8x16x128xf32>
    %71 = vector.extract_strided_slice %9 {offsets = [0, 2, 0], sizes = [10, 16, 128], strides = [1, 1, 1]} : vector<10x18x128xf32> to vector<10x16x128xf32>
    %72 = vector.extract_strided_slice %71 {offsets = [0, 0, 0], sizes = [8, 16, 128], strides = [1, 1, 1]} : vector<10x16x128xf32> to vector<8x16x128xf32>
    %73 = vector.broadcast %21 : vector<1x1x128xf32> to vector<8x16x128xf32>
    %74 = arith.addf %72, %73 : vector<8x16x128xf32>
    %75 = arith.mulf %11, %74 : vector<8x16x128xf32>
    %76 = arith.maximumf %70, %75 : vector<8x16x128xf32>
    %77 = vector.extract_strided_slice %71 {offsets = [1, 0, 0], sizes = [8, 16, 128], strides = [1, 1, 1]} : vector<10x16x128xf32> to vector<8x16x128xf32>
    %78 = vector.broadcast %30 : vector<1x1x128xf32> to vector<8x16x128xf32>
    %79 = arith.addf %77, %78 : vector<8x16x128xf32>
    %80 = arith.mulf %11, %79 : vector<8x16x128xf32>
    %81 = arith.maximumf %76, %80 : vector<8x16x128xf32>
    %82 = vector.extract_strided_slice %71 {offsets = [2, 0, 0], sizes = [8, 16, 128], strides = [1, 1, 1]} : vector<10x16x128xf32> to vector<8x16x128xf32>
    %83 = vector.broadcast %39 : vector<1x1x128xf32> to vector<8x16x128xf32>
    %84 = arith.addf %82, %83 : vector<8x16x128xf32>
    %85 = arith.mulf %11, %84 : vector<8x16x128xf32>
    %86 = arith.maximumf %81, %85 : vector<8x16x128xf32>
    %cst_6 = arith.constant 0.000000e+00 : f32
    %87 = vector.broadcast %cst_6 : f32 to vector<8x16x128xf32>
    %cst_7 = arith.constant 0.000000e+00 : f32
    %88 = vector.broadcast %cst_7 : f32 to vector<8x16x128xf32>
    %89 = vector.extract_strided_slice %9 {offsets = [0, 0, 0], sizes = [10, 16, 128], strides = [1, 1, 1]} : vector<10x18x128xf32> to vector<10x16x128xf32>
    %90 = vector.extract_strided_slice %10 {offsets = [0, 0, 0], sizes = [10, 16, 128], strides = [1, 1, 1]} : vector<10x18x128xf32> to vector<10x16x128xf32>
    %91 = vector.extract_strided_slice %89 {offsets = [0, 0, 0], sizes = [8, 16, 128], strides = [1, 1, 1]} : vector<10x16x128xf32> to vector<8x16x128xf32>
    %92 = vector.broadcast %15 : vector<1x1x128xf32> to vector<8x16x128xf32>
    %93 = arith.addf %91, %92 : vector<8x16x128xf32>
    %94 = arith.mulf %11, %93 : vector<8x16x128xf32>
    %95 = arith.subf %94, %86 : vector<8x16x128xf32>
    %96 = math.exp %95 : vector<8x16x128xf32>
    %97 = arith.addf %87, %96 : vector<8x16x128xf32>
    %98 = vector.extract_strided_slice %90 {offsets = [0, 0, 0], sizes = [8, 16, 128], strides = [1, 1, 1]} : vector<10x16x128xf32> to vector<8x16x128xf32>
    %99 = arith.mulf %96, %98 : vector<8x16x128xf32>
    %100 = arith.addf %88, %99 : vector<8x16x128xf32>
    %101 = vector.extract_strided_slice %89 {offsets = [1, 0, 0], sizes = [8, 16, 128], strides = [1, 1, 1]} : vector<10x16x128xf32> to vector<8x16x128xf32>
    %102 = vector.broadcast %24 : vector<1x1x128xf32> to vector<8x16x128xf32>
    %103 = arith.addf %101, %102 : vector<8x16x128xf32>
    %104 = arith.mulf %11, %103 : vector<8x16x128xf32>
    %105 = arith.subf %104, %86 : vector<8x16x128xf32>
    %106 = math.exp %105 : vector<8x16x128xf32>
    %107 = arith.addf %97, %106 : vector<8x16x128xf32>
    %108 = vector.extract_strided_slice %90 {offsets = [1, 0, 0], sizes = [8, 16, 128], strides = [1, 1, 1]} : vector<10x16x128xf32> to vector<8x16x128xf32>
    %109 = arith.mulf %106, %108 : vector<8x16x128xf32>
    %110 = arith.addf %100, %109 : vector<8x16x128xf32>
    %111 = vector.extract_strided_slice %89 {offsets = [2, 0, 0], sizes = [8, 16, 128], strides = [1, 1, 1]} : vector<10x16x128xf32> to vector<8x16x128xf32>
    %112 = vector.broadcast %33 : vector<1x1x128xf32> to vector<8x16x128xf32>
    %113 = arith.addf %111, %112 : vector<8x16x128xf32>
    %114 = arith.mulf %11, %113 : vector<8x16x128xf32>
    %115 = arith.subf %114, %86 : vector<8x16x128xf32>
    %116 = math.exp %115 : vector<8x16x128xf32>
    %117 = arith.addf %107, %116 : vector<8x16x128xf32>
    %118 = vector.extract_strided_slice %90 {offsets = [2, 0, 0], sizes = [8, 16, 128], strides = [1, 1, 1]} : vector<10x16x128xf32> to vector<8x16x128xf32>
    %119 = arith.mulf %116, %118 : vector<8x16x128xf32>
    %120 = arith.addf %110, %119 : vector<8x16x128xf32>
    %121 = vector.extract_strided_slice %9 {offsets = [0, 1, 0], sizes = [10, 16, 128], strides = [1, 1, 1]} : vector<10x18x128xf32> to vector<10x16x128xf32>
    %122 = vector.extract_strided_slice %10 {offsets = [0, 1, 0], sizes = [10, 16, 128], strides = [1, 1, 1]} : vector<10x18x128xf32> to vector<10x16x128xf32>
    %123 = vector.extract_strided_slice %121 {offsets = [0, 0, 0], sizes = [8, 16, 128], strides = [1, 1, 1]} : vector<10x16x128xf32> to vector<8x16x128xf32>
    %124 = vector.broadcast %18 : vector<1x1x128xf32> to vector<8x16x128xf32>
    %125 = arith.addf %123, %124 : vector<8x16x128xf32>
    %126 = arith.mulf %11, %125 : vector<8x16x128xf32>
    %127 = arith.subf %126, %86 : vector<8x16x128xf32>
    %128 = math.exp %127 : vector<8x16x128xf32>
    %129 = arith.addf %117, %128 : vector<8x16x128xf32>
    %130 = vector.extract_strided_slice %122 {offsets = [0, 0, 0], sizes = [8, 16, 128], strides = [1, 1, 1]} : vector<10x16x128xf32> to vector<8x16x128xf32>
    %131 = arith.mulf %128, %130 : vector<8x16x128xf32>
    %132 = arith.addf %120, %131 : vector<8x16x128xf32>
    %133 = vector.extract_strided_slice %121 {offsets = [1, 0, 0], sizes = [8, 16, 128], strides = [1, 1, 1]} : vector<10x16x128xf32> to vector<8x16x128xf32>
    %134 = vector.broadcast %27 : vector<1x1x128xf32> to vector<8x16x128xf32>
    %135 = arith.addf %133, %134 : vector<8x16x128xf32>
    %136 = arith.mulf %11, %135 : vector<8x16x128xf32>
    %137 = arith.subf %136, %86 : vector<8x16x128xf32>
    %138 = math.exp %137 : vector<8x16x128xf32>
    %139 = arith.addf %129, %138 : vector<8x16x128xf32>
    %140 = vector.extract_strided_slice %122 {offsets = [1, 0, 0], sizes = [8, 16, 128], strides = [1, 1, 1]} : vector<10x16x128xf32> to vector<8x16x128xf32>
    %141 = arith.mulf %138, %140 : vector<8x16x128xf32>
    %142 = arith.addf %132, %141 : vector<8x16x128xf32>
    %143 = vector.extract_strided_slice %121 {offsets = [2, 0, 0], sizes = [8, 16, 128], strides = [1, 1, 1]} : vector<10x16x128xf32> to vector<8x16x128xf32>
    %144 = vector.broadcast %36 : vector<1x1x128xf32> to vector<8x16x128xf32>
    %145 = arith.addf %143, %144 : vector<8x16x128xf32>
    %146 = arith.mulf %11, %145 : vector<8x16x128xf32>
    %147 = arith.subf %146, %86 : vector<8x16x128xf32>
    %148 = math.exp %147 : vector<8x16x128xf32>
    %149 = arith.addf %139, %148 : vector<8x16x128xf32>
    %150 = vector.extract_strided_slice %122 {offsets = [2, 0, 0], sizes = [8, 16, 128], strides = [1, 1, 1]} : vector<10x16x128xf32> to vector<8x16x128xf32>
    %151 = arith.mulf %148, %150 : vector<8x16x128xf32>
    %152 = arith.addf %142, %151 : vector<8x16x128xf32>
    %153 = vector.extract_strided_slice %9 {offsets = [0, 2, 0], sizes = [10, 16, 128], strides = [1, 1, 1]} : vector<10x18x128xf32> to vector<10x16x128xf32>
    %154 = vector.extract_strided_slice %10 {offsets = [0, 2, 0], sizes = [10, 16, 128], strides = [1, 1, 1]} : vector<10x18x128xf32> to vector<10x16x128xf32>
    %155 = vector.extract_strided_slice %153 {offsets = [0, 0, 0], sizes = [8, 16, 128], strides = [1, 1, 1]} : vector<10x16x128xf32> to vector<8x16x128xf32>
    %156 = vector.broadcast %21 : vector<1x1x128xf32> to vector<8x16x128xf32>
    %157 = arith.addf %155, %156 : vector<8x16x128xf32>
    %158 = arith.mulf %11, %157 : vector<8x16x128xf32>
    %159 = arith.subf %158, %86 : vector<8x16x128xf32>
    %160 = math.exp %159 : vector<8x16x128xf32>
    %161 = arith.addf %149, %160 : vector<8x16x128xf32>
    %162 = vector.extract_strided_slice %154 {offsets = [0, 0, 0], sizes = [8, 16, 128], strides = [1, 1, 1]} : vector<10x16x128xf32> to vector<8x16x128xf32>
    %163 = arith.mulf %160, %162 : vector<8x16x128xf32>
    %164 = arith.addf %152, %163 : vector<8x16x128xf32>
    %165 = vector.extract_strided_slice %153 {offsets = [1, 0, 0], sizes = [8, 16, 128], strides = [1, 1, 1]} : vector<10x16x128xf32> to vector<8x16x128xf32>
    %166 = vector.broadcast %30 : vector<1x1x128xf32> to vector<8x16x128xf32>
    %167 = arith.addf %165, %166 : vector<8x16x128xf32>
    %168 = arith.mulf %11, %167 : vector<8x16x128xf32>
    %169 = arith.subf %168, %86 : vector<8x16x128xf32>
    %170 = math.exp %169 : vector<8x16x128xf32>
    %171 = arith.addf %161, %170 : vector<8x16x128xf32>
    %172 = vector.extract_strided_slice %154 {offsets = [1, 0, 0], sizes = [8, 16, 128], strides = [1, 1, 1]} : vector<10x16x128xf32> to vector<8x16x128xf32>
    %173 = arith.mulf %170, %172 : vector<8x16x128xf32>
    %174 = arith.addf %164, %173 : vector<8x16x128xf32>
    %175 = vector.extract_strided_slice %153 {offsets = [2, 0, 0], sizes = [8, 16, 128], strides = [1, 1, 1]} : vector<10x16x128xf32> to vector<8x16x128xf32>
    %176 = vector.broadcast %39 : vector<1x1x128xf32> to vector<8x16x128xf32>
    %177 = arith.addf %175, %176 : vector<8x16x128xf32>
    %178 = arith.mulf %11, %177 : vector<8x16x128xf32>
    %179 = arith.subf %178, %86 : vector<8x16x128xf32>
    %180 = math.exp %179 : vector<8x16x128xf32>
    %181 = arith.addf %171, %180 : vector<8x16x128xf32>
    %182 = vector.extract_strided_slice %154 {offsets = [2, 0, 0], sizes = [8, 16, 128], strides = [1, 1, 1]} : vector<10x16x128xf32> to vector<8x16x128xf32>
    %183 = arith.mulf %180, %182 : vector<8x16x128xf32>
    %184 = arith.addf %174, %183 : vector<8x16x128xf32>
    %185 = tpu.reciprocal %181 {approx = true} : vector<8x16x128xf32> -> vector<8x16x128xf32>
    %186 = arith.mulf %181, %185 : vector<8x16x128xf32>
    %cst_8 = arith.constant 2.000000e+00 : f32
    %187 = vector.broadcast %cst_8 : f32 to vector<8x16x128xf32>
    %188 = arith.subf %187, %186 : vector<8x16x128xf32>
    %189 = arith.mulf %185, %188 : vector<8x16x128xf32>
    %190 = arith.mulf %184, %189 : vector<8x16x128xf32>
    %c0_9 = arith.constant 0 : index
    %c0_10 = arith.constant 0 : index
    %c0_11 = arith.constant 0 : index
    %c0_12 = arith.constant 0 : index
    %191 = vector.load %arg5[%c0_9, %c0_10, %c0_11, %c0_12] : memref<1x8x16x128xf32, #tpu.memory_space<vmem>>, vector<1x8x16x128xf32>
    %192 = vector.shape_cast %191 : vector<1x8x16x128xf32> to vector<8x16x128xf32>
    %193 = vector.shape_cast %190 : vector<8x16x128xf32> to vector<1x8x16x128xf32>
    tpu.vector_store %arg5[%c0_9, %c0_10, %c0_11, %c0_12], %193 {strides = array<i32>} : memref<1x8x16x128xf32, #tpu.memory_space<vmem>>, vector<1x8x16x128xf32>,
    return
  }
  func.func @transform_0(%arg0: i32, %arg1: i32) -> (i32, i32, i32, i32) {
    %c0_i32 = arith.constant 0 : i32
    %c0_i32_0 = arith.constant 0 : i32
    %c0_i32_1 = arith.constant 0 : i32
    %c0_i32_2 = arith.constant 0 : i32
    return %arg0, %c0_i32, %c0_i32_0, %c0_i32_1 : i32, i32, i32, i32
  }
  func.func @transform_1(%arg0: i32, %arg1: i32) -> (i32, i32) {
    %c0_i32 = arith.constant 0 : i32
    %c0_i32_0 = arith.constant 0 : i32
    %c0_i32_1 = arith.constant 0 : i32
    return %c0_i32, %c0_i32_0 : i32, i32
  }
  func.func @transform_2(%arg0: i32, %arg1: i32) -> (i32, i32) {
    %c0_i32 = arith.constant 0 : i32
    %c0_i32_0 = arith.constant 0 : i32
    %c0_i32_1 = arith.constant 0 : i32
    return %c0_i32, %c0_i32_0 : i32, i32
  }
  func.func @transform_3(%arg0: i32, %arg1: i32) -> (i32, i32, i32, i32) {
    %c0_i32 = arith.constant 0 : i32
    %c0_i32_0 = arith.constant 0 : i32
    %c0_i32_1 = arith.constant 0 : i32
    return %arg0, %arg1, %c0_i32, %c0_i32_0 : i32, i32, i32, i32
  }
}

</mosaic_0001>

<llo_original>
// kernel: tpu_custom_call.1
$region0: #{tpu_custom_call.1}
  #allocation0 [shape = 'u32[]', space=smem, size = 0x4, offset = 0x4, fixed_abs, tag = 'smem constant byte address 0x4 - core index']
  #allocation1 [shape = 'u32[144,128]{1,0:T(1,128)}', space=vmem, size = 0x12000, scoped, tag = 'internal scratch']
  %s0 = inlined_call_operand.vmem [shape: f32[2,18,18,4], index: 0, kind: input, shape index: {}]
  %s1 = inlined_call_operand.vmem [shape: f32[4,384], index: 1, kind: input, shape index: {}]
  %s2 = inlined_call_operand.vmem [shape: f32[9,128], index: 2, kind: input, shape index: {}]
  %s3 = inlined_call_operand.hbm [shape: f32[2,16,16,128], index: 3, kind: output, shape index: {}]
  %s4 = sld [smem:[#allocation0]]
  $region45: #{tpu_custom_call.1} parent=0
    _
  %s6 = ssub.s32 1, %s4
  %s7 = scalar_select 0, %s6, %s4
  $region1: #{tpu_custom_call.1} parent=0
    #allocation2 [shape = 'u8[131072]{0}', space=vmem, size = 0x20000, scoped, tag = 'output window, operand 0']
    #allocation3 [shape = 's32[2]{0}', space=sflag, size = 0x8, scoped, tag = 'scoped memory for tpu_custom_call.1']
    %8 = vsyncpa [#allocation3], 0
    %s9 = scalar_lea.sflag [#allocation3], 1
    %10 = vsyncpa %s9, 0
    loop: start=0, step=1, limit=6
    $region2: #{tpu_custom_call.1} parent=1 // loop_pre_header
      _
    $region3: #{tpu_custom_call.1} parent=1 // loop_header
      %s12 = sphi 0, %s16
      %p13 = scmp.ge.s32.totalorder %s12, 6
      %s19 = sphi 0, %s31
      %s20 = sphi 0, %s27
      %s21 = sphi 0, %s19
      %s22 = sphi 0, %s20
      %s23 = sphi 0, %s21
      %s24 = sphi 0, %s22
      %s34 = sphi 0, %s36
      %s37 = sphi 0, %s34
      %s38 = sphi 0, %s37
      %s54 = sphi 0, %s38
      %s58 = sphi 0, %s58
      %s60 = sphi 0, %s58
      %s61 = sphi 0, %s60
      %s75 = sphi 0, %s61
      %s79 = sphi 0, %s79
      %s81 = sphi 0, %s79
      %s82 = sphi 0, %s81
      %s96 = sphi 0, %s82
      %s104 = sphi 0, %s106
      %s107 = sphi 0, %s104
      %s108 = sphi 0, %s107
      %s124 = sphi 0, %s108
    $region4: #{tpu_custom_call.1} parent=1 // loop_header_branch
      %15 = sbr.rel (%p13) target = $region8
    $region5: #{tpu_custom_call.1} parent=1 // loop_body
      %s17 = ssub.s32 %s12, 1
      %s18 = ssub.s32 %s12, 2
      %s25 = sadd.s32 1, %s20
      %p26 = scmp.ge.s32.totalorder %s25, 2
      %s27 = scalar_select %p26, 0, %s25
      %s28 = sadd.s32 1, %s19
      %s29 = scalar_select %p26, %s28, %s19
      %p30 = scmp.ge.s32.totalorder %s29, 2
      %s31 = scalar_select %p30, 0, %s29
      %s32 = ssub.s32 %s19, %s31
      %p33 = scmp.eq.s32.totalorder %s32, 0
      %s35 = sadd.s32 %s34, 1
      %s36 = scalar_select %p33, %s34, %s35
      %p39 = pneg %p33
      %p40 = scmp.eq.s32.totalorder %s12, 3
      %p41 = por %p39, %p40
      %p42 = scmp.ne.s32.totalorder %s34, %s37
      %p43 = scmp.eq.s32.totalorder %s12, 0
      %p44 = por %p42, %p43
      %p45 = scmp.ne.s32.totalorder %s34, %s37
      %p46 = scmp.eq.s32.totalorder %s17, 3
      %p47 = por %p45, %p46
      %p48 = scmp.ne.s32.totalorder %s37, %s38
      %p49 = scmp.eq.s32.totalorder %s17, 0
      %p50 = por %p48, %p49
      %p51 = scmp.ne.s32.totalorder %s37, %s38
      %p52 = scmp.eq.s32.totalorder %s18, 3
      %p53 = por %p51, %p52
      %p55 = scmp.ne.s32.totalorder %s38, %s54
      %p56 = scmp.eq.s32.totalorder %s18, 0
      %p57 = por %p55, %p56
      %s59 = sadd.s32 %s58, 1
      %p62 = scmp.eq.s32.totalorder %s12, 3
      %p63 = scmp.ne.s32.totalorder %s58, %s60
      %p64 = scmp.eq.s32.totalorder %s12, 0
      %p65 = por %p63, %p64
      %p66 = scmp.ne.s32.totalorder %s58, %s60
      %p67 = scmp.eq.s32.totalorder %s17, 3
      %p68 = por %p66, %p67
      %p69 = scmp.ne.s32.totalorder %s60, %s61
      %p70 = scmp.eq.s32.totalorder %s17, 0
      %p71 = por %p69, %p70
      %p72 = scmp.ne.s32.totalorder %s60, %s61
      %p73 = scmp.eq.s32.totalorder %s18, 3
      %p74 = por %p72, %p73
      %p76 = scmp.ne.s32.totalorder %s61, %s75
      %p77 = scmp.eq.s32.totalorder %s18, 0
      %p78 = por %p76, %p77
      %s80 = sadd.s32 %s79, 1
      %p83 = scmp.eq.s32.totalorder %s12, 3
      %p84 = scmp.ne.s32.totalorder %s79, %s81
      %p85 = scmp.eq.s32.totalorder %s12, 0
      %p86 = por %p84, %p85
      %p87 = scmp.ne.s32.totalorder %s79, %s81
      %p88 = scmp.eq.s32.totalorder %s17, 3
      %p89 = por %p87, %p88
      %p90 = scmp.ne.s32.totalorder %s81, %s82
      %p91 = scmp.eq.s32.totalorder %s17, 0
      %p92 = por %p90, %p91
      %p93 = scmp.ne.s32.totalorder %s81, %s82
      %p94 = scmp.eq.s32.totalorder %s18, 3
      %p95 = por %p93, %p94
      %p97 = scmp.ne.s32.totalorder %s82, %s96
      %p98 = scmp.eq.s32.totalorder %s18, 0
      %p99 = por %p97, %p98
      %s100 = ssub.s32 %s19, %s31
      %s101 = ssub.s32 %s20, %s27
      %s102 = sor.u32 %s100, %s101
      %p103 = scmp.eq.s32.totalorder %s102, 0
      %s105 = sadd.s32 %s104, 1
      %s106 = scalar_select %p103, %s104, %s105
      %p109 = pneg %p103
      %p110 = scmp.eq.s32.totalorder %s12, 3
      %p111 = por %p109, %p110
      %p112 = scmp.ne.s32.totalorder %s104, %s107
      %p113 = scmp.eq.s32.totalorder %s12, 0
      %p114 = por %p112, %p113
      %p115 = scmp.ne.s32.totalorder %s104, %s107
      %p116 = scmp.eq.s32.totalorder %s17, 3
      %p117 = por %p115, %p116
      %p118 = scmp.ne.s32.totalorder %s107, %s108
      %p119 = scmp.eq.s32.totalorder %s17, 0
      %p120 = por %p118, %p119
      %p121 = scmp.ne.s32.totalorder %s107, %s108
      %p122 = scmp.eq.s32.totalorder %s18, 3
      %p123 = por %p121, %p122
      %p125 = scmp.ne.s32.totalorder %s108, %s124
      %p126 = scmp.eq.s32.totalorder %s18, 0
      %p127 = por %p125, %p126
      %p128 = scmp.le.s32.totalorder 1, %s12
      %p129 = scmp.lt.s32.totalorder %s12, 5
      %p130 = pnand %p128, %p129
      %p131 = pneg %p130
      // Predicated region
      $region9: #{tpu_custom_call.1} parent=5 // pred_check
        _
      $region10: #{tpu_custom_call.1} parent=5 // pred_check_branch
        %133 = sbr.rel (%p130) target = $region12
      $region11: #{tpu_custom_call.1} parent=5 // pred_region
        %s134 = ssub.s32 %s12, 1
        // Predicated region
        $region13: #{tpu_custom_call.1} parent=11 // pred_check
          %p135 = pneg %p71
        $region14: #{tpu_custom_call.1} parent=11 // pred_check_branch
          %137 = sbr.rel (%p135) target = $region16
        $region15: #{tpu_custom_call.1} parent=11 // pred_region
          _
        $region16: #{tpu_custom_call.1} parent=11 // pred_fallthru
          _
        // Predicated region
        $region17: #{tpu_custom_call.1} parent=11 // pred_check
          %p138 = pneg %p92
        $region18: #{tpu_custom_call.1} parent=11 // pred_check_branch
          %140 = sbr.rel (%p138) target = $region20
        $region19: #{tpu_custom_call.1} parent=11 // pred_region
          _
        $region20: #{tpu_custom_call.1} parent=11 // pred_fallthru
          _
      $region12: #{tpu_custom_call.1} parent=5 // pred_fallthru
        _
      %p141 = scmp.lt.s32.totalorder %s12, 4
      // Predicated region
      $region21: #{tpu_custom_call.1} parent=5 // pred_check
        %p142 = pneg %p141
      $region22: #{tpu_custom_call.1} parent=5 // pred_check_branch
        %144 = sbr.rel (%p142) target = $region24
      $region23: #{tpu_custom_call.1} parent=5 // pred_region
        // Predicated region
        $region25: #{tpu_custom_call.1} parent=23 // pred_check
          %p145 = pneg %p44
        $region26: #{tpu_custom_call.1} parent=23 // pred_check_branch
          %147 = sbr.rel (%p145) target = $region28
        $region27: #{tpu_custom_call.1} parent=23 // pred_region
          %p148 = scmp.lt.s32.totalorder %s19, 1
          %s149 = scalar_select %p148, %s19, 1
          %s150 = smul.addr %s149, 54
          %s151 = smul.addr %s150, 8
          %s152 = scalar_lea.vmem %s0, %s151
        $region28: #{tpu_custom_call.1} parent=23 // pred_fallthru
          _
      $region24: #{tpu_custom_call.1} parent=5 // pred_fallthru
        _
      %p153 = scmp.le.s32.totalorder 1, %s12
      %p154 = scmp.lt.s32.totalorder %s12, 5
      %p155 = pnand %p153, %p154
      %p156 = pneg %p155
      // Predicated region
      $region29: #{tpu_custom_call.1} parent=5 // pred_check
        _
      $region30: #{tpu_custom_call.1} parent=5 // pred_check_branch
        %158 = sbr.rel (%p155) target = $region32
      $region31: #{tpu_custom_call.1} parent=5 // pred_region
        %s159 = ssub.s32 %s12, 1
        %p160 = scmp.lt.s32.totalorder %s21, 1
        %s161 = scalar_select %p160, %s21, 1
        %s162 = smul.addr %s161, 54
        %s163 = smul.addr %s162, 8
        %s164 = scalar_lea.vmem %s0, %s163
        %p165 = pneg %p50
        %p166 = pneg %p47
        %p167 = pneg %p71
        %p168 = pneg %p68
        %p169 = pneg %p92
        %p170 = pneg %p89
        %p171 = pneg %p120
        %p172 = pneg %p117
        %s173 = sand.u32 %s107, 1
        %s174 = scalar_lea.sflag [#allocation3], %s173
        %s175 = sand.u32 %s107, 1
        %s176 = smul.addr %s175, 128
        %s177 = scalar_lea.vmem [#allocation2], %s176
        %p178 = scmp.lt.s32.totalorder %s21, 1
        %s179 = scalar_select %p178, %s21, 1
        %s180 = smul.addr %s179, 54
        %s181 = smul.addr %s180, 8
        %s182 = scalar_lea.vmem %s0, %s181
        %s183 = smul.u32 8, %s22
        %s184 = smul.u32 %s22, 8
        %s185 = smul.u32 %s184, 24
        %s186 = scalar_lea.vmem %s182, %s185
        %v187 = vld [vmem:[%s186] sm:$0xff]
        %v188 = vld [vmem:[%s186 + $0x8] sm:$0xff]
        %v189 = vld [vmem:[%s186 + $0x10] sm:$0x3]
        %v190 = vld [vmem:[%s186 + $0x18] sm:$0xff]
        %v191 = vld [vmem:[%s186 + $0x20] sm:$0xff]
        %v192 = vld [vmem:[%s186 + $0x28] sm:$0x3]
        %v193 = vld [vmem:[%s186 + $0x30] sm:$0xff]
        %v194 = vld [vmem:[%s186 + $0x38] sm:$0xff]
        %v195 = vld [vmem:[%s186 + $0x40] sm:$0x3]
        %v196 = vld [vmem:[%s186 + $0x48] sm:$0xff]
        %v197 = vld [vmem:[%s186 + $0x50] sm:$0xff]
        %v198 = vld [vmem:[%s186 + $0x58] sm:$0x3]
        %v199 = vld [vmem:[%s186 + $0x60] sm:$0xff]
        %v200 = vld [vmem:[%s186 + $0x68] sm:$0xff]
        %v201 = vld [vmem:[%s186 + $0x70] sm:$0x3]
        %v202 = vld [vmem:[%s186 + $0x78] sm:$0xff]
        %v203 = vld [vmem:[%s186 + $0x80] sm:$0xff]
        %v204 = vld [vmem:[%s186 + $0x88] sm:$0x3]
        %v205 = vld [vmem:[%s186 + $0x90] sm:$0xff]
        %v206 = vld [vmem:[%s186 + $0x98] sm:$0xff]
        %v207 = vld [vmem:[%s186 + $0xa0] sm:$0x3]
        %v208 = vld [vmem:[%s186 + $0xa8] sm:$0xff]
        %v209 = vld [vmem:[%s186 + $0xb0] sm:$0xff]
        %v210 = vld [vmem:[%s186 + $0xb8] sm:$0x3]
        %v211 = vld [vmem:[%s186 + $0xc0] sm:$0xff]
        %v212 = vld [vmem:[%s186 + $0xc8] sm:$0xff]
        %v213 = vld [vmem:[%s186 + $0xd0] sm:$0x3]
        %v214 = vld [vmem:[%s186 + $0xd8] sm:$0xff]
        %v215 = vld [vmem:[%s186 + $0xe0] sm:$0xff]
        %v216 = vld [vmem:[%s186 + $0xe8] sm:$0x3]
        %v247 = vcombine.high %v187, %v187
        %v249 = vunpack.c.l.s4 1983009808
        %v250 = vunpack.c.0.s8 %v249
        %v251 = vlaneseq
        %v252 = vshrl.u32 %v251, 7
        %v253 = vsub.s32 %v250, %v252
        %v254 = vrot.slane %v187, %v253
        %v256 = vunpack.c.l.s4 1983009808
        %v257 = vunpack.c.0.s8 %v256
        %v258 = vlaneseq
        %v259 = vshrl.u32 %v258, 7
        %v260 = vsub.s32 %v257, %v259
        %v261 = vrot.slane %v247, %v260
        %v262 = vcombine.high %v254, %v254
        %v263 = vcombine.high %v261, %v261
        %v264 = vcombine.high %v188, %v188
        %v266 = vunpack.c.l.s4 1983009808
        %v267 = vunpack.c.0.s8 %v266
        %v268 = vlaneseq
        %v269 = vshrl.u32 %v268, 7
        %v270 = vsub.s32 %v267, %v269
        %v271 = vrot.slane %v188, %v270
        %v273 = vunpack.c.l.s4 1983009808
        %v274 = vunpack.c.0.s8 %v273
        %v275 = vlaneseq
        %v276 = vshrl.u32 %v275, 7
        %v277 = vsub.s32 %v274, %v276
        %v278 = vrot.slane %v264, %v277
        %v279 = vcombine.high %v271, %v271
        %v280 = vcombine.high %v278, %v278
        %v282 = vunpack.c.l.s4 1983009808
        %v283 = vunpack.c.0.s8 %v282
        %v284 = vlaneseq
        %v285 = vshrl.u32 %v284, 7
        %v286 = vsub.s32 %v283, %v285
        %v287 = vrot.slane %v189, %v286
        %v288 = vcombine.high %v190, %v190
        %v290 = vunpack.c.l.s4 1983009808
        %v291 = vunpack.c.0.s8 %v290
        %v292 = vlaneseq
        %v293 = vshrl.u32 %v292, 7
        %v294 = vsub.s32 %v291, %v293
        %v295 = vrot.slane %v190, %v294
        %v297 = vunpack.c.l.s4 1983009808
        %v298 = vunpack.c.0.s8 %v297
        %v299 = vlaneseq
        %v300 = vshrl.u32 %v299, 7
        %v301 = vsub.s32 %v298, %v300
        %v302 = vrot.slane %v288, %v301
        %v303 = vcombine.high %v295, %v295
        %v304 = vcombine.high %v302, %v302
        %v305 = vcombine.high %v191, %v191
        %v307 = vunpack.c.l.s4 1983009808
        %v308 = vunpack.c.0.s8 %v307
        %v309 = vlaneseq
        %v310 = vshrl.u32 %v309, 7
        %v311 = vsub.s32 %v308, %v310
        %v312 = vrot.slane %v191, %v311
        %v314 = vunpack.c.l.s4 1983009808
        %v315 = vunpack.c.0.s8 %v314
        %v316 = vlaneseq
        %v317 = vshrl.u32 %v316, 7
        %v318 = vsub.s32 %v315, %v317
        %v319 = vrot.slane %v305, %v318
        %v320 = vcombine.high %v312, %v312
        %v321 = vcombine.high %v319, %v319
        %v323 = vunpack.c.l.s4 1983009808
        %v324 = vunpack.c.0.s8 %v323
        %v325 = vlaneseq
        %v326 = vshrl.u32 %v325, 7
        %v327 = vsub.s32 %v324, %v326
        %v328 = vrot.slane %v192, %v327
        %v329 = vcombine.high %v193, %v193
        %v331 = vunpack.c.l.s4 1983009808
        %v332 = vunpack.c.0.s8 %v331
        %v333 = vlaneseq
        %v334 = vshrl.u32 %v333, 7
        %v335 = vsub.s32 %v332, %v334
        %v336 = vrot.slane %v193, %v335
        %v338 = vunpack.c.l.s4 1983009808
        %v339 = vunpack.c.0.s8 %v338
        %v340 = vlaneseq
        %v341 = vshrl.u32 %v340, 7
        %v342 = vsub.s32 %v339, %v341
        %v343 = vrot.slane %v329, %v342
        %v344 = vcombine.high %v336, %v336
        %v345 = vcombine.high %v343, %v343
        %v346 = vcombine.high %v194, %v194
        %v348 = vunpack.c.l.s4 1983009808
        %v349 = vunpack.c.0.s8 %v348
        %v350 = vlaneseq
        %v351 = vshrl.u32 %v350, 7
        %v352 = vsub.s32 %v349, %v351
        %v353 = vrot.slane %v194, %v352
        %v355 = vunpack.c.l.s4 1983009808
        %v356 = vunpack.c.0.s8 %v355
        %v357 = vlaneseq
        %v358 = vshrl.u32 %v357, 7
        %v359 = vsub.s32 %v356, %v358
        %v360 = vrot.slane %v346, %v359
        %v361 = vcombine.high %v353, %v353
        %v362 = vcombine.high %v360, %v360
        %v364 = vunpack.c.l.s4 1983009808
        %v365 = vunpack.c.0.s8 %v364
        %v366 = vlaneseq
        %v367 = vshrl.u32 %v366, 7
        %v368 = vsub.s32 %v365, %v367
        %v369 = vrot.slane %v195, %v368
        %v370 = vcombine.high %v196, %v196
        %v372 = vunpack.c.l.s4 1983009808
        %v373 = vunpack.c.0.s8 %v372
        %v374 = vlaneseq
        %v375 = vshrl.u32 %v374, 7
        %v376 = vsub.s32 %v373, %v375
        %v377 = vrot.slane %v196, %v376
        %v379 = vunpack.c.l.s4 1983009808
        %v380 = vunpack.c.0.s8 %v379
        %v381 = vlaneseq
        %v382 = vshrl.u32 %v381, 7
        %v383 = vsub.s32 %v380, %v382
        %v384 = vrot.slane %v370, %v383
        %v385 = vcombine.high %v377, %v377
        %v386 = vcombine.high %v384, %v384
        %v387 = vcombine.high %v197, %v197
        %v389 = vunpack.c.l.s4 1983009808
        %v390 = vunpack.c.0.s8 %v389
        %v391 = vlaneseq
        %v392 = vshrl.u32 %v391, 7
        %v393 = vsub.s32 %v390, %v392
        %v394 = vrot.slane %v197, %v393
        %v396 = vunpack.c.l.s4 1983009808
        %v397 = vunpack.c.0.s8 %v396
        %v398 = vlaneseq
        %v399 = vshrl.u32 %v398, 7
        %v400 = vsub.s32 %v397, %v399
        %v401 = vrot.slane %v387, %v400
        %v402 = vcombine.high %v394, %v394
        %v403 = vcombine.high %v401, %v401
        %v405 = vunpack.c.l.s4 1983009808
        %v406 = vunpack.c.0.s8 %v405
        %v407 = vlaneseq
        %v408 = vshrl.u32 %v407, 7
        %v409 = vsub.s32 %v406, %v408
        %v410 = vrot.slane %v198, %v409
        %v411 = vcombine.high %v199, %v199
        %v413 = vunpack.c.l.s4 1983009808
        %v414 = vunpack.c.0.s8 %v413
        %v415 = vlaneseq
        %v416 = vshrl.u32 %v415, 7
        %v417 = vsub.s32 %v414, %v416
        %v418 = vrot.slane %v199, %v417
        %v420 = vunpack.c.l.s4 1983009808
        %v421 = vunpack.c.0.s8 %v420
        %v422 = vlaneseq
        %v423 = vshrl.u32 %v422, 7
        %v424 = vsub.s32 %v421, %v423
        %v425 = vrot.slane %v411, %v424
        %v426 = vcombine.high %v418, %v418
        %v427 = vcombine.high %v425, %v425
        %v428 = vcombine.high %v200, %v200
        %v430 = vunpack.c.l.s4 1983009808
        %v431 = vunpack.c.0.s8 %v430
        %v432 = vlaneseq
        %v433 = vshrl.u32 %v432, 7
        %v434 = vsub.s32 %v431, %v433
        %v435 = vrot.slane %v200, %v434
        %v437 = vunpack.c.l.s4 1983009808
        %v438 = vunpack.c.0.s8 %v437
        %v439 = vlaneseq
        %v440 = vshrl.u32 %v439, 7
        %v441 = vsub.s32 %v438, %v440
        %v442 = vrot.slane %v428, %v441
        %v443 = vcombine.high %v435, %v435
        %v444 = vcombine.high %v442, %v442
        %v446 = vunpack.c.l.s4 1983009808
        %v447 = vunpack.c.0.s8 %v446
        %v448 = vlaneseq
        %v449 = vshrl.u32 %v448, 7
        %v450 = vsub.s32 %v447, %v449
        %v451 = vrot.slane %v201, %v450
        %v452 = vcombine.high %v202, %v202
        %v454 = vunpack.c.l.s4 1983009808
        %v455 = vunpack.c.0.s8 %v454
        %v456 = vlaneseq
        %v457 = vshrl.u32 %v456, 7
        %v458 = vsub.s32 %v455, %v457
        %v459 = vrot.slane %v202, %v458
        %v461 = vunpack.c.l.s4 1983009808
        %v462 = vunpack.c.0.s8 %v461
        %v463 = vlaneseq
        %v464 = vshrl.u32 %v463, 7
        %v465 = vsub.s32 %v462, %v464
        %v466 = vrot.slane %v452, %v465
        %v467 = vcombine.high %v459, %v459
        %v468 = vcombine.high %v466, %v466
        %v469 = vcombine.high %v203, %v203
        %v471 = vunpack.c.l.s4 1983009808
        %v472 = vunpack.c.0.s8 %v471
        %v473 = vlaneseq
        %v474 = vshrl.u32 %v473, 7
        %v475 = vsub.s32 %v472, %v474
        %v476 = vrot.slane %v203, %v475
        %v478 = vunpack.c.l.s4 1983009808
        %v479 = vunpack.c.0.s8 %v478
        %v480 = vlaneseq
        %v481 = vshrl.u32 %v480, 7
        %v482 = vsub.s32 %v479, %v481
        %v483 = vrot.slane %v469, %v482
        %v484 = vcombine.high %v476, %v476
        %v485 = vcombine.high %v483, %v483
        %v487 = vunpack.c.l.s4 1983009808
        %v488 = vunpack.c.0.s8 %v487
        %v489 = vlaneseq
        %v490 = vshrl.u32 %v489, 7
        %v491 = vsub.s32 %v488, %v490
        %v492 = vrot.slane %v204, %v491
        %v493 = vcombine.high %v205, %v205
        %v495 = vunpack.c.l.s4 1983009808
        %v496 = vunpack.c.0.s8 %v495
        %v497 = vlaneseq
        %v498 = vshrl.u32 %v497, 7
        %v499 = vsub.s32 %v496, %v498
        %v500 = vrot.slane %v205, %v499
        %v502 = vunpack.c.l.s4 1983009808
        %v503 = vunpack.c.0.s8 %v502
        %v504 = vlaneseq
        %v505 = vshrl.u32 %v504, 7
        %v506 = vsub.s32 %v503, %v505
        %v507 = vrot.slane %v493, %v506
        %v508 = vcombine.high %v500, %v500
        %v509 = vcombine.high %v507, %v507
        %v510 = vcombine.high %v206, %v206
        %v512 = vunpack.c.l.s4 1983009808
        %v513 = vunpack.c.0.s8 %v512
        %v514 = vlaneseq
        %v515 = vshrl.u32 %v514, 7
        %v516 = vsub.s32 %v513, %v515
        %v517 = vrot.slane %v206, %v516
        %v519 = vunpack.c.l.s4 1983009808
        %v520 = vunpack.c.0.s8 %v519
        %v521 = vlaneseq
        %v522 = vshrl.u32 %v521, 7
        %v523 = vsub.s32 %v520, %v522
        %v524 = vrot.slane %v510, %v523
        %v525 = vcombine.high %v517, %v517
        %v526 = vcombine.high %v524, %v524
        %v528 = vunpack.c.l.s4 1983009808
        %v529 = vunpack.c.0.s8 %v528
        %v530 = vlaneseq
        %v531 = vshrl.u32 %v530, 7
        %v532 = vsub.s32 %v529, %v531
        %v533 = vrot.slane %v207, %v532
        %v534 = vcombine.high %v208, %v208
        %v536 = vunpack.c.l.s4 1983009808
        %v537 = vunpack.c.0.s8 %v536
        %v538 = vlaneseq
        %v539 = vshrl.u32 %v538, 7
        %v540 = vsub.s32 %v537, %v539
        %v541 = vrot.slane %v208, %v540
        %v543 = vunpack.c.l.s4 1983009808
        %v544 = vunpack.c.0.s8 %v543
        %v545 = vlaneseq
        %v546 = vshrl.u32 %v545, 7
        %v547 = vsub.s32 %v544, %v546
        %v548 = vrot.slane %v534, %v547
        %v549 = vcombine.high %v541, %v541
        %v550 = vcombine.high %v548, %v548
        %v551 = vcombine.high %v209, %v209
        %v553 = vunpack.c.l.s4 1983009808
        %v554 = vunpack.c.0.s8 %v553
        %v555 = vlaneseq
        %v556 = vshrl.u32 %v555, 7
        %v557 = vsub.s32 %v554, %v556
        %v558 = vrot.slane %v209, %v557
        %v560 = vunpack.c.l.s4 1983009808
        %v561 = vunpack.c.0.s8 %v560
        %v562 = vlaneseq
        %v563 = vshrl.u32 %v562, 7
        %v564 = vsub.s32 %v561, %v563
        %v565 = vrot.slane %v551, %v564
        %v566 = vcombine.high %v558, %v558
        %v567 = vcombine.high %v565, %v565
        %v569 = vunpack.c.l.s4 1983009808
        %v570 = vunpack.c.0.s8 %v569
        %v571 = vlaneseq
        %v572 = vshrl.u32 %v571, 7
        %v573 = vsub.s32 %v570, %v572
        %v574 = vrot.slane %v210, %v573
        %v575 = vcombine.high %v211, %v211
        %v577 = vunpack.c.l.s4 1983009808
        %v578 = vunpack.c.0.s8 %v577
        %v579 = vlaneseq
        %v580 = vshrl.u32 %v579, 7
        %v581 = vsub.s32 %v578, %v580
        %v582 = vrot.slane %v211, %v581
        %v584 = vunpack.c.l.s4 1983009808
        %v585 = vunpack.c.0.s8 %v584
        %v586 = vlaneseq
        %v587 = vshrl.u32 %v586, 7
        %v588 = vsub.s32 %v585, %v587
        %v589 = vrot.slane %v575, %v588
        %v590 = vcombine.high %v582, %v582
        %v591 = vcombine.high %v589, %v589
        %v592 = vcombine.high %v212, %v212
        %v594 = vunpack.c.l.s4 1983009808
        %v595 = vunpack.c.0.s8 %v594
        %v596 = vlaneseq
        %v597 = vshrl.u32 %v596, 7
        %v598 = vsub.s32 %v595, %v597
        %v599 = vrot.slane %v212, %v598
        %v601 = vunpack.c.l.s4 1983009808
        %v602 = vunpack.c.0.s8 %v601
        %v603 = vlaneseq
        %v604 = vshrl.u32 %v603, 7
        %v605 = vsub.s32 %v602, %v604
        %v606 = vrot.slane %v592, %v605
        %v607 = vcombine.high %v599, %v599
        %v608 = vcombine.high %v606, %v606
        %v610 = vunpack.c.l.s4 1983009808
        %v611 = vunpack.c.0.s8 %v610
        %v612 = vlaneseq
        %v613 = vshrl.u32 %v612, 7
        %v614 = vsub.s32 %v611, %v613
        %v615 = vrot.slane %v213, %v614
        %v616 = vcombine.high %v214, %v214
        %v618 = vunpack.c.l.s4 1983009808
        %v619 = vunpack.c.0.s8 %v618
        %v620 = vlaneseq
        %v621 = vshrl.u32 %v620, 7
        %v622 = vsub.s32 %v619, %v621
        %v623 = vrot.slane %v214, %v622
        %v625 = vunpack.c.l.s4 1983009808
        %v626 = vunpack.c.0.s8 %v625
        %v627 = vlaneseq
        %v628 = vshrl.u32 %v627, 7
        %v629 = vsub.s32 %v626, %v628
        %v630 = vrot.slane %v616, %v629
        %v631 = vcombine.high %v623, %v623
        %v632 = vcombine.high %v630, %v630
        %v633 = vcombine.high %v215, %v215
        %v635 = vunpack.c.l.s4 1983009808
        %v636 = vunpack.c.0.s8 %v635
        %v637 = vlaneseq
        %v638 = vshrl.u32 %v637, 7
        %v639 = vsub.s32 %v636, %v638
        %v640 = vrot.slane %v215, %v639
        %v642 = vunpack.c.l.s4 1983009808
        %v643 = vunpack.c.0.s8 %v642
        %v644 = vlaneseq
        %v645 = vshrl.u32 %v644, 7
        %v646 = vsub.s32 %v643, %v645
        %v647 = vrot.slane %v633, %v646
        %v648 = vcombine.high %v640, %v640
        %v649 = vcombine.high %v647, %v647
        %v651 = vunpack.c.l.s4 1983009808
        %v652 = vunpack.c.0.s8 %v651
        %v653 = vlaneseq
        %v654 = vshrl.u32 %v653, 7
        %v655 = vsub.s32 %v652, %v654
        %v656 = vrot.slane %v216, %v655
        %v657 = vld [vmem:[%s1] sm:$0xff]
        %v658 = vld [vmem:[%s1 + $0x8] sm:$0xf]
        %v659 = vcombine.low %v254, %v262
        %v660 = vcombine.low %v261, %v263
        %v662 = vunpack.c.l.s4 1983009808
        %v663 = vunpack.c.0.s8 %v662
        %v664 = vlaneseq
        %v665 = vshrl.u32 %v664, 7
        %v666 = vsub.s32 %v663, %v665
        %v667 = vrot.slane %v659, %v666
        %v669 = vunpack.c.l.s4 1983009808
        %v670 = vunpack.c.0.s8 %v669
        %v671 = vlaneseq
        %v672 = vshrl.u32 %v671, 7
        %v673 = vsub.s32 %v670, %v672
        %v674 = vrot.slane %v660, %v673
        %v675 = vcombine.low %v667, %v674
        %v676 = vcombine.low %v271, %v279
        %v677 = vcombine.low %v278, %v280
        %v679 = vunpack.c.l.s4 1983009808
        %v680 = vunpack.c.0.s8 %v679
        %v681 = vlaneseq
        %v682 = vshrl.u32 %v681, 7
        %v683 = vsub.s32 %v680, %v682
        %v684 = vrot.slane %v676, %v683
        %v686 = vunpack.c.l.s4 1983009808
        %v687 = vunpack.c.0.s8 %v686
        %v688 = vlaneseq
        %v689 = vshrl.u32 %v688, 7
        %v690 = vsub.s32 %v687, %v689
        %v691 = vrot.slane %v677, %v690
        %v692 = vcombine.low %v684, %v691
        %v693 = vcombine.low %v287, %v295
        %v694 = vcombine.low %v303, %v302
        %v696 = vunpack.c.l.s4 1983009808
        %v697 = vunpack.c.0.s8 %v696
        %v698 = vlaneseq
        %v699 = vshrl.u32 %v698, 7
        %v700 = vsub.s32 %v697, %v699
        %v701 = vrot.slane %v693, %v700
        %v703 = vunpack.c.l.s4 1983009808
        %v704 = vunpack.c.0.s8 %v703
        %v705 = vlaneseq
        %v706 = vshrl.u32 %v705, 7
        %v707 = vsub.s32 %v704, %v706
        %v708 = vrot.slane %v694, %v707
        %v709 = vcombine.low %v701, %v708
        %v710 = vcombine.low %v304, %v312
        %v711 = vcombine.low %v320, %v319
        %v713 = vunpack.c.l.s4 1983009808
        %v714 = vunpack.c.0.s8 %v713
        %v715 = vlaneseq
        %v716 = vshrl.u32 %v715, 7
        %v717 = vsub.s32 %v714, %v716
        %v718 = vrot.slane %v710, %v717
        %v720 = vunpack.c.l.s4 1983009808
        %v721 = vunpack.c.0.s8 %v720
        %v722 = vlaneseq
        %v723 = vshrl.u32 %v722, 7
        %v724 = vsub.s32 %v721, %v723
        %v725 = vrot.slane %v711, %v724
        %v726 = vcombine.low %v718, %v725
        %v727 = vcombine.low %v321, %v328
        %v728 = vcombine.low %v336, %v344
        %v730 = vunpack.c.l.s4 1983009808
        %v731 = vunpack.c.0.s8 %v730
        %v732 = vlaneseq
        %v733 = vshrl.u32 %v732, 7
        %v734 = vsub.s32 %v731, %v733
        %v735 = vrot.slane %v727, %v734
        %v737 = vunpack.c.l.s4 1983009808
        %v738 = vunpack.c.0.s8 %v737
        %v739 = vlaneseq
        %v740 = vshrl.u32 %v739, 7
        %v741 = vsub.s32 %v738, %v740
        %v742 = vrot.slane %v728, %v741
        %v743 = vcombine.low %v735, %v742
        %v744 = vcombine.low %v343, %v345
        %v745 = vcombine.low %v353, %v361
        %v747 = vunpack.c.l.s4 1983009808
        %v748 = vunpack.c.0.s8 %v747
        %v749 = vlaneseq
        %v750 = vshrl.u32 %v749, 7
        %v751 = vsub.s32 %v748, %v750
        %v752 = vrot.slane %v744, %v751
        %v754 = vunpack.c.l.s4 1983009808
        %v755 = vunpack.c.0.s8 %v754
        %v756 = vlaneseq
        %v757 = vshrl.u32 %v756, 7
        %v758 = vsub.s32 %v755, %v757
        %v759 = vrot.slane %v745, %v758
        %v760 = vcombine.low %v752, %v759
        %v761 = vcombine.low %v360, %v362
        %v762 = vcombine.low %v369, %v377
        %v764 = vunpack.c.l.s4 1983009808
        %v765 = vunpack.c.0.s8 %v764
        %v766 = vlaneseq
        %v767 = vshrl.u32 %v766, 7
        %v768 = vsub.s32 %v765, %v767
        %v769 = vrot.slane %v761, %v768
        %v771 = vunpack.c.l.s4 1983009808
        %v772 = vunpack.c.0.s8 %v771
        %v773 = vlaneseq
        %v774 = vshrl.u32 %v773, 7
        %v775 = vsub.s32 %v772, %v774
        %v776 = vrot.slane %v762, %v775
        %v777 = vcombine.low %v769, %v776
        %v778 = vcombine.low %v385, %v384
        %v779 = vcombine.low %v386, %v394
        %v781 = vunpack.c.l.s4 1983009808
        %v782 = vunpack.c.0.s8 %v781
        %v783 = vlaneseq
        %v784 = vshrl.u32 %v783, 7
        %v785 = vsub.s32 %v782, %v784
        %v786 = vrot.slane %v778, %v785
        %v788 = vunpack.c.l.s4 1983009808
        %v789 = vunpack.c.0.s8 %v788
        %v790 = vlaneseq
        %v791 = vshrl.u32 %v790, 7
        %v792 = vsub.s32 %v789, %v791
        %v793 = vrot.slane %v779, %v792
        %v794 = vcombine.low %v786, %v793
        %v795 = vcombine.low %v402, %v401
        %v796 = vcombine.low %v403, %v410
        %v798 = vunpack.c.l.s4 1983009808
        %v799 = vunpack.c.0.s8 %v798
        %v800 = vlaneseq
        %v801 = vshrl.u32 %v800, 7
        %v802 = vsub.s32 %v799, %v801
        %v803 = vrot.slane %v795, %v802
        %v805 = vunpack.c.l.s4 1983009808
        %v806 = vunpack.c.0.s8 %v805
        %v807 = vlaneseq
        %v808 = vshrl.u32 %v807, 7
        %v809 = vsub.s32 %v806, %v808
        %v810 = vrot.slane %v796, %v809
        %v811 = vcombine.low %v803, %v810
        %v812 = vcombine.low %v418, %v426
        %v813 = vcombine.low %v425, %v427
        %v815 = vunpack.c.l.s4 1983009808
        %v816 = vunpack.c.0.s8 %v815
        %v817 = vlaneseq
        %v818 = vshrl.u32 %v817, 7
        %v819 = vsub.s32 %v816, %v818
        %v820 = vrot.slane %v812, %v819
        %v822 = vunpack.c.l.s4 1983009808
        %v823 = vunpack.c.0.s8 %v822
        %v824 = vlaneseq
        %v825 = vshrl.u32 %v824, 7
        %v826 = vsub.s32 %v823, %v825
        %v827 = vrot.slane %v813, %v826
        %v828 = vcombine.low %v820, %v827
        %v829 = vcombine.low %v435, %v443
        %v830 = vcombine.low %v442, %v444
        %v832 = vunpack.c.l.s4 1983009808
        %v833 = vunpack.c.0.s8 %v832
        %v834 = vlaneseq
        %v835 = vshrl.u32 %v834, 7
        %v836 = vsub.s32 %v833, %v835
        %v837 = vrot.slane %v829, %v836
        %v839 = vunpack.c.l.s4 1983009808
        %v840 = vunpack.c.0.s8 %v839
        %v841 = vlaneseq
        %v842 = vshrl.u32 %v841, 7
        %v843 = vsub.s32 %v840, %v842
        %v844 = vrot.slane %v830, %v843
        %v845 = vcombine.low %v837, %v844
        %v846 = vcombine.low %v451, %v459
        %v847 = vcombine.low %v467, %v466
        %v849 = vunpack.c.l.s4 1983009808
        %v850 = vunpack.c.0.s8 %v849
        %v851 = vlaneseq
        %v852 = vshrl.u32 %v851, 7
        %v853 = vsub.s32 %v850, %v852
        %v854 = vrot.slane %v846, %v853
        %v856 = vunpack.c.l.s4 1983009808
        %v857 = vunpack.c.0.s8 %v856
        %v858 = vlaneseq
        %v859 = vshrl.u32 %v858, 7
        %v860 = vsub.s32 %v857, %v859
        %v861 = vrot.slane %v847, %v860
        %v862 = vcombine.low %v854, %v861
        %v863 = vcombine.low %v468, %v476
        %v864 = vcombine.low %v484, %v483
        %v866 = vunpack.c.l.s4 1983009808
        %v867 = vunpack.c.0.s8 %v866
        %v868 = vlaneseq
        %v869 = vshrl.u32 %v868, 7
        %v870 = vsub.s32 %v867, %v869
        %v871 = vrot.slane %v863, %v870
        %v873 = vunpack.c.l.s4 1983009808
        %v874 = vunpack.c.0.s8 %v873
        %v875 = vlaneseq
        %v876 = vshrl.u32 %v875, 7
        %v877 = vsub.s32 %v874, %v876
        %v878 = vrot.slane %v864, %v877
        %v879 = vcombine.low %v871, %v878
        %v880 = vcombine.low %v485, %v492
        %v881 = vcombine.low %v500, %v508
        %v883 = vunpack.c.l.s4 1983009808
        %v884 = vunpack.c.0.s8 %v883
        %v885 = vlaneseq
        %v886 = vshrl.u32 %v885, 7
        %v887 = vsub.s32 %v884, %v886
        %v888 = vrot.slane %v880, %v887
        %v890 = vunpack.c.l.s4 1983009808
        %v891 = vunpack.c.0.s8 %v890
        %v892 = vlaneseq
        %v893 = vshrl.u32 %v892, 7
        %v894 = vsub.s32 %v891, %v893
        %v895 = vrot.slane %v881, %v894
        %v896 = vcombine.low %v888, %v895
        %v897 = vcombine.low %v507, %v509
        %v898 = vcombine.low %v517, %v525
        %v900 = vunpack.c.l.s4 1983009808
        %v901 = vunpack.c.0.s8 %v900
        %v902 = vlaneseq
        %v903 = vshrl.u32 %v902, 7
        %v904 = vsub.s32 %v901, %v903
        %v905 = vrot.slane %v897, %v904
        %v907 = vunpack.c.l.s4 1983009808
        %v908 = vunpack.c.0.s8 %v907
        %v909 = vlaneseq
        %v910 = vshrl.u32 %v909, 7
        %v911 = vsub.s32 %v908, %v910
        %v912 = vrot.slane %v898, %v911
        %v913 = vcombine.low %v905, %v912
        %v914 = vcombine.low %v524, %v526
        %v915 = vcombine.low %v533, %v541
        %v917 = vunpack.c.l.s4 1983009808
        %v918 = vunpack.c.0.s8 %v917
        %v919 = vlaneseq
        %v920 = vshrl.u32 %v919, 7
        %v921 = vsub.s32 %v918, %v920
        %v922 = vrot.slane %v914, %v921
        %v924 = vunpack.c.l.s4 1983009808
        %v925 = vunpack.c.0.s8 %v924
        %v926 = vlaneseq
        %v927 = vshrl.u32 %v926, 7
        %v928 = vsub.s32 %v925, %v927
        %v929 = vrot.slane %v915, %v928
        %v930 = vcombine.low %v922, %v929
        %v931 = vcombine.low %v549, %v548
        %v932 = vcombine.low %v550, %v558
        %v934 = vunpack.c.l.s4 1983009808
        %v935 = vunpack.c.0.s8 %v934
        %v936 = vlaneseq
        %v937 = vshrl.u32 %v936, 7
        %v938 = vsub.s32 %v935, %v937
        %v939 = vrot.slane %v931, %v938
        %v941 = vunpack.c.l.s4 1983009808
        %v942 = vunpack.c.0.s8 %v941
        %v943 = vlaneseq
        %v944 = vshrl.u32 %v943, 7
        %v945 = vsub.s32 %v942, %v944
        %v946 = vrot.slane %v932, %v945
        %v947 = vcombine.low %v939, %v946
        %v948 = vcombine.low %v566, %v565
        %v949 = vcombine.low %v567, %v574
        %v951 = vunpack.c.l.s4 1983009808
        %v952 = vunpack.c.0.s8 %v951
        %v953 = vlaneseq
        %v954 = vshrl.u32 %v953, 7
        %v955 = vsub.s32 %v952, %v954
        %v956 = vrot.slane %v948, %v955
        %v958 = vunpack.c.l.s4 1983009808
        %v959 = vunpack.c.0.s8 %v958
        %v960 = vlaneseq
        %v961 = vshrl.u32 %v960, 7
        %v962 = vsub.s32 %v959, %v961
        %v963 = vrot.slane %v949, %v962
        %v964 = vcombine.low %v956, %v963
        %v965 = vcombine.low %v582, %v590
        %v966 = vcombine.low %v589, %v591
        %v968 = vunpack.c.l.s4 1983009808
        %v969 = vunpack.c.0.s8 %v968
        %v970 = vlaneseq
        %v971 = vshrl.u32 %v970, 7
        %v972 = vsub.s32 %v969, %v971
        %v973 = vrot.slane %v965, %v972
        %v975 = vunpack.c.l.s4 1983009808
        %v976 = vunpack.c.0.s8 %v975
        %v977 = vlaneseq
        %v978 = vshrl.u32 %v977, 7
        %v979 = vsub.s32 %v976, %v978
        %v980 = vrot.slane %v966, %v979
        %v981 = vcombine.low %v973, %v980
        %v982 = vcombine.low %v599, %v607
        %v983 = vcombine.low %v606, %v608
        %v985 = vunpack.c.l.s4 1983009808
        %v986 = vunpack.c.0.s8 %v985
        %v987 = vlaneseq
        %v988 = vshrl.u32 %v987, 7
        %v989 = vsub.s32 %v986, %v988
        %v990 = vrot.slane %v982, %v989
        %v992 = vunpack.c.l.s4 1983009808
        %v993 = vunpack.c.0.s8 %v992
        %v994 = vlaneseq
        %v995 = vshrl.u32 %v994, 7
        %v996 = vsub.s32 %v993, %v995
        %v997 = vrot.slane %v983, %v996
        %v998 = vcombine.low %v990, %v997
        %v999 = vcombine.low %v615, %v623
        %v1000 = vcombine.low %v631, %v630
        %v1002 = vunpack.c.l.s4 1983009808
        %v1003 = vunpack.c.0.s8 %v1002
        %v1004 = vlaneseq
        %v1005 = vshrl.u32 %v1004, 7
        %v1006 = vsub.s32 %v1003, %v1005
        %v1007 = vrot.slane %v999, %v1006
        %v1009 = vunpack.c.l.s4 1983009808
        %v1010 = vunpack.c.0.s8 %v1009
        %v1011 = vlaneseq
        %v1012 = vshrl.u32 %v1011, 7
        %v1013 = vsub.s32 %v1010, %v1012
        %v1014 = vrot.slane %v1000, %v1013
        %v1015 = vcombine.low %v1007, %v1014
        %v1016 = vcombine.low %v632, %v640
        %v1017 = vcombine.low %v648, %v647
        %v1019 = vunpack.c.l.s4 1983009808
        %v1020 = vunpack.c.0.s8 %v1019
        %v1021 = vlaneseq
        %v1022 = vshrl.u32 %v1021, 7
        %v1023 = vsub.s32 %v1020, %v1022
        %v1024 = vrot.slane %v1016, %v1023
        %v1026 = vunpack.c.l.s4 1983009808
        %v1027 = vunpack.c.0.s8 %v1026
        %v1028 = vlaneseq
        %v1029 = vshrl.u32 %v1028, 7
        %v1030 = vsub.s32 %v1027, %v1029
        %v1031 = vrot.slane %v1017, %v1030
        %v1032 = vcombine.low %v1024, %v1031
        %v1033 = vcombine.low %v649, %v656
        %v1035 = vunpack.c.l.s4 1983009808
        %v1036 = vunpack.c.0.s8 %v1035
        %v1037 = vlaneseq
        %v1038 = vshrl.u32 %v1037, 7
        %v1039 = vsub.s32 %v1036, %v1038
        %v1040 = vrot.slane %v1033, %v1039
        %v1043 = vcombine.high %v657, %v657
        %vm1044 = vcmask 31744
        %v1045 = vsel %vm1044, %v675, 0
        %v1047 = vsel %vm1044, %v692, 0
        %v1049 = vsel %vm1044, %v709, 0
        %v1051 = vsel %vm1044, %v726, 0
        %v1053 = vsel %vm1044, %v743, 0
        %v1055 = vsel %vm1044, %v760, 0
        %v1057 = vsel %vm1044, %v777, 0
        %v1059 = vsel %vm1044, %v794, 0
        %v1061 = vsel %vm1044, %v811, 0
        %v1063 = vsel %vm1044, %v828, 0
        %v1065 = vsel %vm1044, %v845, 0
        %v1067 = vsel %vm1044, %v862, 0
        %v1069 = vsel %vm1044, %v879, 0
        %v1071 = vsel %vm1044, %v896, 0
        %v1073 = vsel %vm1044, %v913, 0
        %v1075 = vsel %vm1044, %v930, 0
        %v1077 = vsel %vm1044, %v947, 0
        %v1079 = vsel %vm1044, %v964, 0
        %v1081 = vsel %vm1044, %v981, 0
        %v1083 = vsel %vm1044, %v998, 0
        %v1085 = vsel %vm1044, %v1015, 0
        %v1087 = vsel %vm1044, %v1032, 0
        %v1089 = vsel %vm1044, %v1040, 0
        %vm1091 = vcmask 1043456
        %v1092 = vsel %vm1091, %v657, 0
        %v1094 = vsel %vm1091, %v1043, 0
        %v1096 = vsel %vm1091, %v658, 0
        %1098 = vmatprep.subr.mxu0 %v1094
        %1099 = vmatpush1.msra.mxu0 %v1092
        %1100 = vmatprep.subr.mxu0 0.0
        %1101 = vmatpush1.msra.mxu0 0.0
        %1102 = vmatprep.subr.mxu0 0.0
        %1103 = vmatpush1.msra.mxu0 0.0
        %1104 = vmatprep.subr.mxu0 0.0
        %1105 = vmatpush1.msra.mxu0 0.0
        %1106 = vmatprep.subr.mxu0 0.0
        %1107 = vmatpush1.msra.mxu0 0.0
        %1108 = vmatprep.subr.mxu0 0.0
        %1109 = vmatpush1.msra.mxu0 0.0
        %1110 = vmatprep.subr.mxu0 0.0
        %1111 = vmatpush1.msra.mxu0 0.0
        %1112 = vmatprep.subr.mxu0 0.0
        %1113 = vmatpush1.msra.mxu0 0.0
        %1114 = vmatprep.subr.mxu0 0.0
        %1115 = vmatpush1.msra.mxu0 0.0
        %1116 = vmatprep.subr.mxu0 0.0
        %1117 = vmatpush1.msra.mxu0 0.0
        %1118 = vmatprep.subr.mxu0 0.0
        %1119 = vmatpush1.msra.mxu0 0.0
        %1120 = vmatprep.subr.mxu0 0.0
        %1121 = vmatpush1.msra.mxu0 0.0
        %1122 = vmatprep.subr.mxu0 0.0
        %1123 = vmatpush1.msra.mxu0 0.0
        %1124 = vmatprep.subr.mxu0 0.0
        %1125 = vmatpush1.msra.mxu0 0.0
        %1126 = vmatprep.subr.mxu0 0.0
        %1127 = vmatpush1.msra.mxu0 0.0
        %1128 = vmatprep.subr.mxu0 0.0
        %1129 = vmatpush1.msra.mxu0 0.0
        %1130 = vmatprep.subr.mxu0 0.0
        %1131 = vmatpush1.msra.mxu0 0.0
        %1132 = vmatprep.subr.mxu0 0.0
        %1133 = vmatpush1.msra.mxu0 0.0
        %1134 = vmatprep.subr.mxu0 0.0
        %1135 = vmatpush1.msra.mxu0 0.0
        %1136 = vmatprep.subr.mxu0 0.0
        %1137 = vmatpush1.msra.mxu0 0.0
        %1138 = vmatprep.subr.mxu0 0.0
        %1139 = vmatpush1.msra.mxu0 0.0
        %1140 = vmatprep.subr.mxu0 0.0
        %1141 = vmatpush1.msra.mxu0 0.0
        %1142 = vmatprep.subr.mxu0 0.0
        %1143 = vmatpush1.msra.mxu0 0.0
        %1144 = vmatprep.subr.mxu0 0.0
        %1145 = vmatpush1.msra.mxu0 0.0
        %1146 = vmatprep.subr.mxu0 0.0
        %1147 = vmatpush1.msra.mxu0 0.0
        %1148 = vmatprep.subr.mxu0 0.0
        %1149 = vmatpush1.msra.mxu0 0.0
        %1150 = vmatprep.subr.mxu0 0.0
        %1151 = vmatpush1.msra.mxu0 0.0
        %1152 = vmatprep.subr.mxu0 0.0
        %1153 = vmatpush1.msra.mxu0 0.0
        %1154 = vmatprep.subr.mxu0 0.0
        %1155 = vmatpush1.msra.mxu0 0.0
        %1156 = vmatprep.subr.mxu0 0.0
        %1157 = vmatpush1.msra.mxu0 0.0
        %1158 = vmatprep.subr.mxu0 0.0
        %1159 = vmatpush1.msra.mxu0 0.0
        %1160 = vmatprep.subr.mxu0 0.0
        %1161 = vmatpush1.msra.mxu0 0.0
        %1162 = vmatprep.mubr.f32.mxu0 0.0
        %1163 = vmatmul.mubr.f32.gmra.mrb[0].mxu0 %v1045
        %v1164 = vpop.f32.mrb[0].mxu0
        %v1165 = vadd.f32 0.0, %v1164
        %v1166 = vpop.f32.mrb[0].mxu0
        %v1167 = vadd.f32 0.0, %v1166
        %1168 = vmatprep.mubr.f32.mxu0 0.0
        %1169 = vmatmul.mubr.f32.gmra.mrb[0].mxu0 %v1047
        %v1170 = vpop.f32.mrb[0].mxu0
        %v1171 = vadd.f32 0.0, %v1170
        %v1172 = vpop.f32.mrb[0].mxu0
        %v1173 = vadd.f32 0.0, %v1172
        %1174 = vmatprep.mubr.f32.mxu0 0.0
        %1175 = vmatmul.mubr.f32.gmra.mrb[0].mxu0 %v1049
        %v1176 = vpop.f32.mrb[0].mxu0
        %v1177 = vadd.f32 0.0, %v1176
        %v1178 = vpop.f32.mrb[0].mxu0
        %v1179 = vadd.f32 0.0, %v1178
        %1180 = vmatprep.mubr.f32.mxu0 0.0
        %1181 = vmatmul.mubr.f32.gmra.mrb[0].mxu0 %v1051
        %v1182 = vpop.f32.mrb[0].mxu0
        %v1183 = vadd.f32 0.0, %v1182
        %v1184 = vpop.f32.mrb[0].mxu0
        %v1185 = vadd.f32 0.0, %v1184
        %1186 = vmatprep.mubr.f32.mxu0 0.0
        %1187 = vmatmul.mubr.f32.gmra.mrb[0].mxu0 %v1053
        %v1188 = vpop.f32.mrb[0].mxu0
        %v1189 = vadd.f32 0.0, %v1188
        %v1190 = vpop.f32.mrb[0].mxu0
        %v1191 = vadd.f32 0.0, %v1190
        %1192 = vmatprep.mubr.f32.mxu0 0.0
        %1193 = vmatmul.mubr.f32.gmra.mrb[0].mxu0 %v1055
        %v1194 = vpop.f32.mrb[0].mxu0
        %v1195 = vadd.f32 0.0, %v1194
        %v1196 = vpop.f32.mrb[0].mxu0
        %v1197 = vadd.f32 0.0, %v1196
        %1198 = vmatprep.mubr.f32.mxu0 0.0
        %1199 = vmatmul.mubr.f32.gmra.mrb[0].mxu0 %v1057
        %v1200 = vpop.f32.mrb[0].mxu0
        %v1201 = vadd.f32 0.0, %v1200
        %v1202 = vpop.f32.mrb[0].mxu0
        %v1203 = vadd.f32 0.0, %v1202
        %1204 = vmatprep.mubr.f32.mxu0 0.0
        %1205 = vmatmul.mubr.f32.gmra.mrb[0].mxu0 %v1059
        %v1206 = vpop.f32.mrb[0].mxu0
        %v1207 = vadd.f32 0.0, %v1206
        %v1208 = vpop.f32.mrb[0].mxu0
        %v1209 = vadd.f32 0.0, %v1208
        %1210 = vmatprep.mubr.f32.mxu0 0.0
        %1211 = vmatmul.mubr.f32.gmra.mrb[0].mxu0 %v1061
        %v1212 = vpop.f32.mrb[0].mxu0
        %v1213 = vadd.f32 0.0, %v1212
        %v1214 = vpop.f32.mrb[0].mxu0
        %v1215 = vadd.f32 0.0, %v1214
        %1216 = vmatprep.mubr.f32.mxu0 0.0
        %1217 = vmatmul.mubr.f32.gmra.mrb[0].mxu0 %v1063
        %v1218 = vpop.f32.mrb[0].mxu0
        %v1219 = vadd.f32 0.0, %v1218
        %v1220 = vpop.f32.mrb[0].mxu0
        %v1221 = vadd.f32 0.0, %v1220
        %1222 = vmatprep.mubr.f32.mxu0 0.0
        %1223 = vmatmul.mubr.f32.gmra.mrb[0].mxu0 %v1065
        %v1224 = vpop.f32.mrb[0].mxu0
        %v1225 = vadd.f32 0.0, %v1224
        %v1226 = vpop.f32.mrb[0].mxu0
        %v1227 = vadd.f32 0.0, %v1226
        %1228 = vmatprep.mubr.f32.mxu0 0.0
        %1229 = vmatmul.mubr.f32.gmra.mrb[0].mxu0 %v1067
        %v1230 = vpop.f32.mrb[0].mxu0
        %v1231 = vadd.f32 0.0, %v1230
        %v1232 = vpop.f32.mrb[0].mxu0
        %v1233 = vadd.f32 0.0, %v1232
        %1234 = vmatprep.mubr.f32.mxu0 0.0
        %1235 = vmatmul.mubr.f32.gmra.mrb[0].mxu0 %v1069
        %v1236 = vpop.f32.mrb[0].mxu0
        %v1237 = vadd.f32 0.0, %v1236
        %v1238 = vpop.f32.mrb[0].mxu0
        %v1239 = vadd.f32 0.0, %v1238
        %1240 = vmatprep.mubr.f32.mxu0 0.0
        %1241 = vmatmul.mubr.f32.gmra.mrb[0].mxu0 %v1071
        %v1242 = vpop.f32.mrb[0].mxu0
        %v1243 = vadd.f32 0.0, %v1242
        %v1244 = vpop.f32.mrb[0].mxu0
        %v1245 = vadd.f32 0.0, %v1244
        %1246 = vmatprep.mubr.f32.mxu0 0.0
        %1247 = vmatmul.mubr.f32.gmra.mrb[0].mxu0 %v1073
        %v1248 = vpop.f32.mrb[0].mxu0
        %v1249 = vadd.f32 0.0, %v1248
        %v1250 = vpop.f32.mrb[0].mxu0
        %v1251 = vadd.f32 0.0, %v1250
        %1252 = vmatprep.mubr.f32.mxu0 0.0
        %1253 = vmatmul.mubr.f32.gmra.mrb[0].mxu0 %v1075
        %v1254 = vpop.f32.mrb[0].mxu0
        %v1255 = vadd.f32 0.0, %v1254
        %v1256 = vpop.f32.mrb[0].mxu0
        %v1257 = vadd.f32 0.0, %v1256
        %1258 = vmatprep.mubr.f32.mxu0 0.0
        %1259 = vmatmul.mubr.f32.gmra.mrb[0].mxu0 %v1077
        %v1260 = vpop.f32.mrb[0].mxu0
        %v1261 = vadd.f32 0.0, %v1260
        %v1262 = vpop.f32.mrb[0].mxu0
        %v1263 = vadd.f32 0.0, %v1262
        %1264 = vmatprep.mubr.f32.mxu0 0.0
        %1265 = vmatmul.mubr.f32.gmra.mrb[0].mxu0 %v1079
        %v1266 = vpop.f32.mrb[0].mxu0
        %v1267 = vadd.f32 0.0, %v1266
        %v1268 = vpop.f32.mrb[0].mxu0
        %v1269 = vadd.f32 0.0, %v1268
        %1270 = vmatprep.mubr.f32.mxu0 0.0
        %1271 = vmatmul.mubr.f32.gmra.mrb[0].mxu0 %v1081
        %v1272 = vpop.f32.mrb[0].mxu0
        %v1273 = vadd.f32 0.0, %v1272
        %v1274 = vpop.f32.mrb[0].mxu0
        %v1275 = vadd.f32 0.0, %v1274
        %1276 = vmatprep.mubr.f32.mxu0 0.0
        %1277 = vmatmul.mubr.f32.gmra.mrb[0].mxu0 %v1083
        %v1278 = vpop.f32.mrb[0].mxu0
        %v1279 = vadd.f32 0.0, %v1278
        %v1280 = vpop.f32.mrb[0].mxu0
        %v1281 = vadd.f32 0.0, %v1280
        %1282 = vmatprep.mubr.f32.mxu0 0.0
        %1283 = vmatmul.mubr.f32.gmra.mrb[0].mxu0 %v1085
        %v1284 = vpop.f32.mrb[0].mxu0
        %v1285 = vadd.f32 0.0, %v1284
        %v1286 = vpop.f32.mrb[0].mxu0
        %v1287 = vadd.f32 0.0, %v1286
        %1288 = vmatprep.mubr.f32.mxu0 0.0
        %1289 = vmatmul.mubr.f32.gmra.mrb[0].mxu0 %v1087
        %v1290 = vpop.f32.mrb[0].mxu0
        %v1291 = vadd.f32 0.0, %v1290
        %v1292 = vpop.f32.mrb[0].mxu0
        %v1293 = vadd.f32 0.0, %v1292
        %1294 = vmatprep.mubr.f32.mxu0 0.0
        %1295 = vmatmul.mubr.f32.gmra.mrb[0].mxu0 %v1089
        %v1296 = vpop.f32.mrb[0].mxu0
        %v1297 = vadd.f32 0.0, %v1296
        %v1298 = vpop.f32.mrb[0].mxu0
        %v1299 = vadd.f32 0.0, %v1298
        %1300 = vdwg.mxu0
        %1301 = vmatprep.subr.mxu0 0.0
        %1302 = vmatpush1.msra.mxu0 %v1096
        %1303 = vmatprep.subr.mxu0 0.0
        %1304 = vmatpush1.msra.mxu0 0.0
        %1305 = vmatprep.subr.mxu0 0.0
        %1306 = vmatpush1.msra.mxu0 0.0
        %1307 = vmatprep.subr.mxu0 0.0
        %1308 = vmatpush1.msra.mxu0 0.0
        %1309 = vmatprep.subr.mxu0 0.0
        %1310 = vmatpush1.msra.mxu0 0.0
        %1311 = vmatprep.subr.mxu0 0.0
        %1312 = vmatpush1.msra.mxu0 0.0
        %1313 = vmatprep.subr.mxu0 0.0
        %1314 = vmatpush1.msra.mxu0 0.0
        %1315 = vmatprep.subr.mxu0 0.0
        %1316 = vmatpush1.msra.mxu0 0.0
        %1317 = vmatprep.subr.mxu0 0.0
        %1318 = vmatpush1.msra.mxu0 0.0
        %1319 = vmatprep.subr.mxu0 0.0
        %1320 = vmatpush1.msra.mxu0 0.0
        %1321 = vmatprep.subr.mxu0 0.0
        %1322 = vmatpush1.msra.mxu0 0.0
        %1323 = vmatprep.subr.mxu0 0.0
        %1324 = vmatpush1.msra.mxu0 0.0
        %1325 = vmatprep.subr.mxu0 0.0
        %1326 = vmatpush1.msra.mxu0 0.0
        %1327 = vmatprep.subr.mxu0 0.0
        %1328 = vmatpush1.msra.mxu0 0.0
        %1329 = vmatprep.subr.mxu0 0.0
        %1330 = vmatpush1.msra.mxu0 0.0
        %1331 = vmatprep.subr.mxu0 0.0
        %1332 = vmatpush1.msra.mxu0 0.0
        %1333 = vmatprep.subr.mxu0 0.0
        %1334 = vmatpush1.msra.mxu0 0.0
        %1335 = vmatprep.subr.mxu0 0.0
        %1336 = vmatpush1.msra.mxu0 0.0
        %1337 = vmatprep.subr.mxu0 0.0
        %1338 = vmatpush1.msra.mxu0 0.0
        %1339 = vmatprep.subr.mxu0 0.0
        %1340 = vmatpush1.msra.mxu0 0.0
        %1341 = vmatprep.subr.mxu0 0.0
        %1342 = vmatpush1.msra.mxu0 0.0
        %1343 = vmatprep.subr.mxu0 0.0
        %1344 = vmatpush1.msra.mxu0 0.0
        %1345 = vmatprep.subr.mxu0 0.0
        %1346 = vmatpush1.msra.mxu0 0.0
        %1347 = vmatprep.subr.mxu0 0.0
        %1348 = vmatpush1.msra.mxu0 0.0
        %1349 = vmatprep.subr.mxu0 0.0
        %1350 = vmatpush1.msra.mxu0 0.0
        %1351 = vmatprep.subr.mxu0 0.0
        %1352 = vmatpush1.msra.mxu0 0.0
        %1353 = vmatprep.subr.mxu0 0.0
        %1354 = vmatpush1.msra.mxu0 0.0
        %1355 = vmatprep.subr.mxu0 0.0
        %1356 = vmatpush1.msra.mxu0 0.0
        %1357 = vmatprep.subr.mxu0 0.0
        %1358 = vmatpush1.msra.mxu0 0.0
        %1359 = vmatprep.subr.mxu0 0.0
        %1360 = vmatpush1.msra.mxu0 0.0
        %1361 = vmatprep.subr.mxu0 0.0
        %1362 = vmatpush1.msra.mxu0 0.0
        %1363 = vmatprep.subr.mxu0 0.0
        %1364 = vmatpush1.msra.mxu0 0.0
        %1365 = vmatprep.mubr.f32.mxu0 0.0
        %1366 = vmatmul.mubr.f32.gmra.mrb[0].mxu0 %v1045
        %v1367 = vpop.f32.mrb[0].mxu0
        %v1368 = vadd.f32 0.0, %v1367
        %v1369 = vpop.f32.mrb[0].mxu0
        %1370 = vmatprep.mubr.f32.mxu0 0.0
        %1371 = vmatmul.mubr.f32.gmra.mrb[0].mxu0 %v1047
        %v1372 = vpop.f32.mrb[0].mxu0
        %v1373 = vadd.f32 0.0, %v1372
        %v1374 = vpop.f32.mrb[0].mxu0
        %1375 = vmatprep.mubr.f32.mxu0 0.0
        %1376 = vmatmul.mubr.f32.gmra.mrb[0].mxu0 %v1049
        %v1377 = vpop.f32.mrb[0].mxu0
        %v1378 = vadd.f32 0.0, %v1377
        %v1379 = vpop.f32.mrb[0].mxu0
        %1380 = vmatprep.mubr.f32.mxu0 0.0
        %1381 = vmatmul.mubr.f32.gmra.mrb[0].mxu0 %v1051
        %v1382 = vpop.f32.mrb[0].mxu0
        %v1383 = vadd.f32 0.0, %v1382
        %v1384 = vpop.f32.mrb[0].mxu0
        %1385 = vmatprep.mubr.f32.mxu0 0.0
        %1386 = vmatmul.mubr.f32.gmra.mrb[0].mxu0 %v1053
        %v1387 = vpop.f32.mrb[0].mxu0
        %v1388 = vadd.f32 0.0, %v1387
        %v1389 = vpop.f32.mrb[0].mxu0
        %1390 = vmatprep.mubr.f32.mxu0 0.0
        %1391 = vmatmul.mubr.f32.gmra.mrb[0].mxu0 %v1055
        %v1392 = vpop.f32.mrb[0].mxu0
        %v1393 = vadd.f32 0.0, %v1392
        %v1394 = vpop.f32.mrb[0].mxu0
        %1395 = vmatprep.mubr.f32.mxu0 0.0
        %1396 = vmatmul.mubr.f32.gmra.mrb[0].mxu0 %v1057
        %v1397 = vpop.f32.mrb[0].mxu0
        %v1398 = vadd.f32 0.0, %v1397
        %v1399 = vpop.f32.mrb[0].mxu0
        %1400 = vmatprep.mubr.f32.mxu0 0.0
        %1401 = vmatmul.mubr.f32.gmra.mrb[0].mxu0 %v1059
        %v1402 = vpop.f32.mrb[0].mxu0
        %v1403 = vadd.f32 0.0, %v1402
        %v1404 = vpop.f32.mrb[0].mxu0
        %1405 = vmatprep.mubr.f32.mxu0 0.0
        %1406 = vmatmul.mubr.f32.gmra.mrb[0].mxu0 %v1061
        %v1407 = vpop.f32.mrb[0].mxu0
        %v1408 = vadd.f32 0.0, %v1407
        %v1409 = vpop.f32.mrb[0].mxu0
        %1410 = vmatprep.mubr.f32.mxu0 0.0
        %1411 = vmatmul.mubr.f32.gmra.mrb[0].mxu0 %v1063
        %v1412 = vpop.f32.mrb[0].mxu0
        %v1413 = vadd.f32 0.0, %v1412
        %v1414 = vpop.f32.mrb[0].mxu0
        %1415 = vmatprep.mubr.f32.mxu0 0.0
        %1416 = vmatmul.mubr.f32.gmra.mrb[0].mxu0 %v1065
        %v1417 = vpop.f32.mrb[0].mxu0
        %v1418 = vadd.f32 0.0, %v1417
        %v1419 = vpop.f32.mrb[0].mxu0
        %1420 = vmatprep.mubr.f32.mxu0 0.0
        %1421 = vmatmul.mubr.f32.gmra.mrb[0].mxu0 %v1067
        %v1422 = vpop.f32.mrb[0].mxu0
        %v1423 = vadd.f32 0.0, %v1422
        %v1424 = vpop.f32.mrb[0].mxu0
        %1425 = vmatprep.mubr.f32.mxu0 0.0
        %1426 = vmatmul.mubr.f32.gmra.mrb[0].mxu0 %v1069
        %v1427 = vpop.f32.mrb[0].mxu0
        %v1428 = vadd.f32 0.0, %v1427
        %v1429 = vpop.f32.mrb[0].mxu0
        %1430 = vmatprep.mubr.f32.mxu0 0.0
        %1431 = vmatmul.mubr.f32.gmra.mrb[0].mxu0 %v1071
        %v1432 = vpop.f32.mrb[0].mxu0
        %v1433 = vadd.f32 0.0, %v1432
        %v1434 = vpop.f32.mrb[0].mxu0
        %1435 = vmatprep.mubr.f32.mxu0 0.0
        %1436 = vmatmul.mubr.f32.gmra.mrb[0].mxu0 %v1073
        %v1437 = vpop.f32.mrb[0].mxu0
        %v1438 = vadd.f32 0.0, %v1437
        %v1439 = vpop.f32.mrb[0].mxu0
        %1440 = vmatprep.mubr.f32.mxu0 0.0
        %1441 = vmatmul.mubr.f32.gmra.mrb[0].mxu0 %v1075
        %v1442 = vpop.f32.mrb[0].mxu0
        %v1443 = vadd.f32 0.0, %v1442
        %v1444 = vpop.f32.mrb[0].mxu0
        %1445 = vmatprep.mubr.f32.mxu0 0.0
        %1446 = vmatmul.mubr.f32.gmra.mrb[0].mxu0 %v1077
        %v1447 = vpop.f32.mrb[0].mxu0
        %v1448 = vadd.f32 0.0, %v1447
        %v1449 = vpop.f32.mrb[0].mxu0
        %1450 = vmatprep.mubr.f32.mxu0 0.0
        %1451 = vmatmul.mubr.f32.gmra.mrb[0].mxu0 %v1079
        %v1452 = vpop.f32.mrb[0].mxu0
        %v1453 = vadd.f32 0.0, %v1452
        %v1454 = vpop.f32.mrb[0].mxu0
        %1455 = vmatprep.mubr.f32.mxu0 0.0
        %1456 = vmatmul.mubr.f32.gmra.mrb[0].mxu0 %v1081
        %v1457 = vpop.f32.mrb[0].mxu0
        %v1458 = vadd.f32 0.0, %v1457
        %v1459 = vpop.f32.mrb[0].mxu0
        %1460 = vmatprep.mubr.f32.mxu0 0.0
        %1461 = vmatmul.mubr.f32.gmra.mrb[0].mxu0 %v1083
        %v1462 = vpop.f32.mrb[0].mxu0
        %v1463 = vadd.f32 0.0, %v1462
        %v1464 = vpop.f32.mrb[0].mxu0
        %1465 = vmatprep.mubr.f32.mxu0 0.0
        %1466 = vmatmul.mubr.f32.gmra.mrb[0].mxu0 %v1085
        %v1467 = vpop.f32.mrb[0].mxu0
        %v1468 = vadd.f32 0.0, %v1467
        %v1469 = vpop.f32.mrb[0].mxu0
        %1470 = vmatprep.mubr.f32.mxu0 0.0
        %1471 = vmatmul.mubr.f32.gmra.mrb[0].mxu0 %v1087
        %v1472 = vpop.f32.mrb[0].mxu0
        %v1473 = vadd.f32 0.0, %v1472
        %v1474 = vpop.f32.mrb[0].mxu0
        %1475 = vmatprep.mubr.f32.mxu0 0.0
        %1476 = vmatmul.mubr.f32.gmra.mrb[0].mxu0 %v1089
        %v1477 = vpop.f32.mrb[0].mxu0
        %v1478 = vadd.f32 0.0, %v1477
        %v1479 = vpop.f32.mrb[0].mxu0
        %1480 = vdwg.mxu0
        %v1550 = vcombine.low %v1165, %v1167
        %v1551 = vcombine.high %v1165, %v1167
        %v1552 = vcombine.high %v1368, %v1368
        %v1554 = vunpack.c.l.s4 1983009808
        %v1555 = vunpack.c.0.s8 %v1554
        %v1556 = vlaneseq
        %v1557 = vshrl.u32 %v1556, 7
        %v1558 = vsub.s32 %v1555, %v1557
        %v1559 = vrot.slane %v1550, %v1558
        %v1561 = vunpack.c.l.s4 1983009808
        %v1562 = vunpack.c.0.s8 %v1561
        %v1563 = vlaneseq
        %v1564 = vshrl.u32 %v1563, 7
        %v1565 = vsub.s32 %v1562, %v1564
        %v1566 = vrot.slane %v1551, %v1565
        %v1568 = vunpack.c.l.s4 1983009808
        %v1569 = vunpack.c.0.s8 %v1568
        %v1570 = vlaneseq
        %v1571 = vshrl.u32 %v1570, 7
        %v1572 = vsub.s32 %v1569, %v1571
        %v1573 = vrot.slane %v1368, %v1572
        %v1575 = vunpack.c.l.s4 1983009808
        %v1576 = vunpack.c.0.s8 %v1575
        %v1577 = vlaneseq
        %v1578 = vshrl.u32 %v1577, 7
        %v1579 = vsub.s32 %v1576, %v1578
        %v1580 = vrot.slane %v1552, %v1579
        %v1581 = vcombine.low %v1559, %v1573
        %v1582 = vcombine.high %v1559, %v1573
        %v1583 = vcombine.low %v1566, %v1580
        %v1584 = vcombine.high %v1566, %v1580
        %v1585 = vcombine.low %v1171, %v1173
        %v1586 = vcombine.high %v1171, %v1173
        %v1587 = vcombine.high %v1373, %v1373
        %v1589 = vunpack.c.l.s4 1983009808
        %v1590 = vunpack.c.0.s8 %v1589
        %v1591 = vlaneseq
        %v1592 = vshrl.u32 %v1591, 7
        %v1593 = vsub.s32 %v1590, %v1592
        %v1594 = vrot.slane %v1585, %v1593
        %v1596 = vunpack.c.l.s4 1983009808
        %v1597 = vunpack.c.0.s8 %v1596
        %v1598 = vlaneseq
        %v1599 = vshrl.u32 %v1598, 7
        %v1600 = vsub.s32 %v1597, %v1599
        %v1601 = vrot.slane %v1586, %v1600
        %v1603 = vunpack.c.l.s4 1983009808
        %v1604 = vunpack.c.0.s8 %v1603
        %v1605 = vlaneseq
        %v1606 = vshrl.u32 %v1605, 7
        %v1607 = vsub.s32 %v1604, %v1606
        %v1608 = vrot.slane %v1373, %v1607
        %v1610 = vunpack.c.l.s4 1983009808
        %v1611 = vunpack.c.0.s8 %v1610
        %v1612 = vlaneseq
        %v1613 = vshrl.u32 %v1612, 7
        %v1614 = vsub.s32 %v1611, %v1613
        %v1615 = vrot.slane %v1587, %v1614
        %v1616 = vcombine.low %v1594, %v1608
        %v1617 = vcombine.high %v1594, %v1608
        %v1618 = vcombine.low %v1601, %v1615
        %v1619 = vcombine.high %v1601, %v1615
        %v1620 = vcombine.low %v1177, %v1179
        %v1621 = vcombine.high %v1177, %v1179
        %v1622 = vcombine.high %v1378, %v1378
        %v1624 = vunpack.c.l.s4 1983009808
        %v1625 = vunpack.c.0.s8 %v1624
        %v1626 = vlaneseq
        %v1627 = vshrl.u32 %v1626, 7
        %v1628 = vsub.s32 %v1625, %v1627
        %v1629 = vrot.slane %v1620, %v1628
        %v1631 = vunpack.c.l.s4 1983009808
        %v1632 = vunpack.c.0.s8 %v1631
        %v1633 = vlaneseq
        %v1634 = vshrl.u32 %v1633, 7
        %v1635 = vsub.s32 %v1632, %v1634
        %v1636 = vrot.slane %v1621, %v1635
        %v1638 = vunpack.c.l.s4 1983009808
        %v1639 = vunpack.c.0.s8 %v1638
        %v1640 = vlaneseq
        %v1641 = vshrl.u32 %v1640, 7
        %v1642 = vsub.s32 %v1639, %v1641
        %v1643 = vrot.slane %v1378, %v1642
        %v1645 = vunpack.c.l.s4 1983009808
        %v1646 = vunpack.c.0.s8 %v1645
        %v1647 = vlaneseq
        %v1648 = vshrl.u32 %v1647, 7
        %v1649 = vsub.s32 %v1646, %v1648
        %v1650 = vrot.slane %v1622, %v1649
        %v1651 = vcombine.low %v1629, %v1643
        %v1652 = vcombine.high %v1629, %v1643
        %v1653 = vcombine.low %v1636, %v1650
        %v1654 = vcombine.high %v1636, %v1650
        %v1655 = vcombine.low %v1183, %v1185
        %v1656 = vcombine.high %v1183, %v1185
        %v1657 = vcombine.high %v1383, %v1383
        %v1659 = vunpack.c.l.s4 1983009808
        %v1660 = vunpack.c.0.s8 %v1659
        %v1661 = vlaneseq
        %v1662 = vshrl.u32 %v1661, 7
        %v1663 = vsub.s32 %v1660, %v1662
        %v1664 = vrot.slane %v1655, %v1663
        %v1666 = vunpack.c.l.s4 1983009808
        %v1667 = vunpack.c.0.s8 %v1666
        %v1668 = vlaneseq
        %v1669 = vshrl.u32 %v1668, 7
        %v1670 = vsub.s32 %v1667, %v1669
        %v1671 = vrot.slane %v1656, %v1670
        %v1673 = vunpack.c.l.s4 1983009808
        %v1674 = vunpack.c.0.s8 %v1673
        %v1675 = vlaneseq
        %v1676 = vshrl.u32 %v1675, 7
        %v1677 = vsub.s32 %v1674, %v1676
        %v1678 = vrot.slane %v1383, %v1677
        %v1680 = vunpack.c.l.s4 1983009808
        %v1681 = vunpack.c.0.s8 %v1680
        %v1682 = vlaneseq
        %v1683 = vshrl.u32 %v1682, 7
        %v1684 = vsub.s32 %v1681, %v1683
        %v1685 = vrot.slane %v1657, %v1684
        %v1686 = vcombine.low %v1664, %v1678
        %v1687 = vcombine.high %v1664, %v1678
        %v1688 = vcombine.low %v1671, %v1685
        %v1689 = vcombine.high %v1671, %v1685
        %v1690 = vcombine.low %v1189, %v1191
        %v1691 = vcombine.high %v1189, %v1191
        %v1692 = vcombine.high %v1388, %v1388
        %v1694 = vunpack.c.l.s4 1983009808
        %v1695 = vunpack.c.0.s8 %v1694
        %v1696 = vlaneseq
        %v1697 = vshrl.u32 %v1696, 7
        %v1698 = vsub.s32 %v1695, %v1697
        %v1699 = vrot.slane %v1690, %v1698
        %v1701 = vunpack.c.l.s4 1983009808
        %v1702 = vunpack.c.0.s8 %v1701
        %v1703 = vlaneseq
        %v1704 = vshrl.u32 %v1703, 7
        %v1705 = vsub.s32 %v1702, %v1704
        %v1706 = vrot.slane %v1691, %v1705
        %v1708 = vunpack.c.l.s4 1983009808
        %v1709 = vunpack.c.0.s8 %v1708
        %v1710 = vlaneseq
        %v1711 = vshrl.u32 %v1710, 7
        %v1712 = vsub.s32 %v1709, %v1711
        %v1713 = vrot.slane %v1388, %v1712
        %v1715 = vunpack.c.l.s4 1983009808
        %v1716 = vunpack.c.0.s8 %v1715
        %v1717 = vlaneseq
        %v1718 = vshrl.u32 %v1717, 7
        %v1719 = vsub.s32 %v1716, %v1718
        %v1720 = vrot.slane %v1692, %v1719
        %v1721 = vcombine.low %v1699, %v1713
        %v1722 = vcombine.high %v1699, %v1713
        %v1723 = vcombine.low %v1706, %v1720
        %v1724 = vcombine.high %v1706, %v1720
        %v1725 = vcombine.low %v1195, %v1197
        %v1726 = vcombine.high %v1195, %v1197
        %v1727 = vcombine.high %v1393, %v1393
        %v1729 = vunpack.c.l.s4 1983009808
        %v1730 = vunpack.c.0.s8 %v1729
        %v1731 = vlaneseq
        %v1732 = vshrl.u32 %v1731, 7
        %v1733 = vsub.s32 %v1730, %v1732
        %v1734 = vrot.slane %v1725, %v1733
        %v1736 = vunpack.c.l.s4 1983009808
        %v1737 = vunpack.c.0.s8 %v1736
        %v1738 = vlaneseq
        %v1739 = vshrl.u32 %v1738, 7
        %v1740 = vsub.s32 %v1737, %v1739
        %v1741 = vrot.slane %v1726, %v1740
        %v1743 = vunpack.c.l.s4 1983009808
        %v1744 = vunpack.c.0.s8 %v1743
        %v1745 = vlaneseq
        %v1746 = vshrl.u32 %v1745, 7
        %v1747 = vsub.s32 %v1744, %v1746
        %v1748 = vrot.slane %v1393, %v1747
        %v1750 = vunpack.c.l.s4 1983009808
        %v1751 = vunpack.c.0.s8 %v1750
        %v1752 = vlaneseq
        %v1753 = vshrl.u32 %v1752, 7
        %v1754 = vsub.s32 %v1751, %v1753
        %v1755 = vrot.slane %v1727, %v1754
        %v1756 = vcombine.low %v1734, %v1748
        %v1757 = vcombine.high %v1734, %v1748
        %v1758 = vcombine.low %v1741, %v1755
        %v1759 = vcombine.high %v1741, %v1755
        %v1760 = vcombine.low %v1201, %v1203
        %v1761 = vcombine.high %v1201, %v1203
        %v1762 = vcombine.high %v1398, %v1398
        %v1764 = vunpack.c.l.s4 1983009808
        %v1765 = vunpack.c.0.s8 %v1764
        %v1766 = vlaneseq
        %v1767 = vshrl.u32 %v1766, 7
        %v1768 = vsub.s32 %v1765, %v1767
        %v1769 = vrot.slane %v1760, %v1768
        %v1771 = vunpack.c.l.s4 1983009808
        %v1772 = vunpack.c.0.s8 %v1771
        %v1773 = vlaneseq
        %v1774 = vshrl.u32 %v1773, 7
        %v1775 = vsub.s32 %v1772, %v1774
        %v1776 = vrot.slane %v1761, %v1775
        %v1778 = vunpack.c.l.s4 1983009808
        %v1779 = vunpack.c.0.s8 %v1778
        %v1780 = vlaneseq
        %v1781 = vshrl.u32 %v1780, 7
        %v1782 = vsub.s32 %v1779, %v1781
        %v1783 = vrot.slane %v1398, %v1782
        %v1785 = vunpack.c.l.s4 1983009808
        %v1786 = vunpack.c.0.s8 %v1785
        %v1787 = vlaneseq
        %v1788 = vshrl.u32 %v1787, 7
        %v1789 = vsub.s32 %v1786, %v1788
        %v1790 = vrot.slane %v1762, %v1789
        %v1791 = vcombine.low %v1769, %v1783
        %v1792 = vcombine.high %v1769, %v1783
        %v1793 = vcombine.low %v1776, %v1790
        %v1794 = vcombine.high %v1776, %v1790
        %v1795 = vcombine.low %v1207, %v1209
        %v1796 = vcombine.high %v1207, %v1209
        %v1797 = vcombine.high %v1403, %v1403
        %v1799 = vunpack.c.l.s4 1983009808
        %v1800 = vunpack.c.0.s8 %v1799
        %v1801 = vlaneseq
        %v1802 = vshrl.u32 %v1801, 7
        %v1803 = vsub.s32 %v1800, %v1802
        %v1804 = vrot.slane %v1795, %v1803
        %v1806 = vunpack.c.l.s4 1983009808
        %v1807 = vunpack.c.0.s8 %v1806
        %v1808 = vlaneseq
        %v1809 = vshrl.u32 %v1808, 7
        %v1810 = vsub.s32 %v1807, %v1809
        %v1811 = vrot.slane %v1796, %v1810
        %v1813 = vunpack.c.l.s4 1983009808
        %v1814 = vunpack.c.0.s8 %v1813
        %v1815 = vlaneseq
        %v1816 = vshrl.u32 %v1815, 7
        %v1817 = vsub.s32 %v1814, %v1816
        %v1818 = vrot.slane %v1403, %v1817
        %v1820 = vunpack.c.l.s4 1983009808
        %v1821 = vunpack.c.0.s8 %v1820
        %v1822 = vlaneseq
        %v1823 = vshrl.u32 %v1822, 7
        %v1824 = vsub.s32 %v1821, %v1823
        %v1825 = vrot.slane %v1797, %v1824
        %v1826 = vcombine.low %v1804, %v1818
        %v1827 = vcombine.high %v1804, %v1818
        %v1828 = vcombine.low %v1811, %v1825
        %v1829 = vcombine.high %v1811, %v1825
        %v1830 = vcombine.low %v1213, %v1215
        %v1831 = vcombine.high %v1213, %v1215
        %v1832 = vcombine.high %v1408, %v1408
        %v1834 = vunpack.c.l.s4 1983009808
        %v1835 = vunpack.c.0.s8 %v1834
        %v1836 = vlaneseq
        %v1837 = vshrl.u32 %v1836, 7
        %v1838 = vsub.s32 %v1835, %v1837
        %v1839 = vrot.slane %v1830, %v1838
        %v1841 = vunpack.c.l.s4 1983009808
        %v1842 = vunpack.c.0.s8 %v1841
        %v1843 = vlaneseq
        %v1844 = vshrl.u32 %v1843, 7
        %v1845 = vsub.s32 %v1842, %v1844
        %v1846 = vrot.slane %v1831, %v1845
        %v1848 = vunpack.c.l.s4 1983009808
        %v1849 = vunpack.c.0.s8 %v1848
        %v1850 = vlaneseq
        %v1851 = vshrl.u32 %v1850, 7
        %v1852 = vsub.s32 %v1849, %v1851
        %v1853 = vrot.slane %v1408, %v1852
        %v1855 = vunpack.c.l.s4 1983009808
        %v1856 = vunpack.c.0.s8 %v1855
        %v1857 = vlaneseq
        %v1858 = vshrl.u32 %v1857, 7
        %v1859 = vsub.s32 %v1856, %v1858
        %v1860 = vrot.slane %v1832, %v1859
        %v1861 = vcombine.low %v1839, %v1853
        %v1862 = vcombine.high %v1839, %v1853
        %v1863 = vcombine.low %v1846, %v1860
        %v1864 = vcombine.high %v1846, %v1860
        %v1865 = vcombine.low %v1219, %v1221
        %v1866 = vcombine.high %v1219, %v1221
        %v1867 = vcombine.high %v1413, %v1413
        %v1869 = vunpack.c.l.s4 1983009808
        %v1870 = vunpack.c.0.s8 %v1869
        %v1871 = vlaneseq
        %v1872 = vshrl.u32 %v1871, 7
        %v1873 = vsub.s32 %v1870, %v1872
        %v1874 = vrot.slane %v1865, %v1873
        %v1876 = vunpack.c.l.s4 1983009808
        %v1877 = vunpack.c.0.s8 %v1876
        %v1878 = vlaneseq
        %v1879 = vshrl.u32 %v1878, 7
        %v1880 = vsub.s32 %v1877, %v1879
        %v1881 = vrot.slane %v1866, %v1880
        %v1883 = vunpack.c.l.s4 1983009808
        %v1884 = vunpack.c.0.s8 %v1883
        %v1885 = vlaneseq
        %v1886 = vshrl.u32 %v1885, 7
        %v1887 = vsub.s32 %v1884, %v1886
        %v1888 = vrot.slane %v1413, %v1887
        %v1890 = vunpack.c.l.s4 1983009808
        %v1891 = vunpack.c.0.s8 %v1890
        %v1892 = vlaneseq
        %v1893 = vshrl.u32 %v1892, 7
        %v1894 = vsub.s32 %v1891, %v1893
        %v1895 = vrot.slane %v1867, %v1894
        %v1896 = vcombine.low %v1874, %v1888
        %v1897 = vcombine.high %v1874, %v1888
        %v1898 = vcombine.low %v1881, %v1895
        %v1899 = vcombine.high %v1881, %v1895
        %v1900 = vcombine.low %v1225, %v1227
        %v1901 = vcombine.high %v1225, %v1227
        %v1902 = vcombine.high %v1418, %v1418
        %v1904 = vunpack.c.l.s4 1983009808
        %v1905 = vunpack.c.0.s8 %v1904
        %v1906 = vlaneseq
        %v1907 = vshrl.u32 %v1906, 7
        %v1908 = vsub.s32 %v1905, %v1907
        %v1909 = vrot.slane %v1900, %v1908
        %v1911 = vunpack.c.l.s4 1983009808
        %v1912 = vunpack.c.0.s8 %v1911
        %v1913 = vlaneseq
        %v1914 = vshrl.u32 %v1913, 7
        %v1915 = vsub.s32 %v1912, %v1914
        %v1916 = vrot.slane %v1901, %v1915
        %v1918 = vunpack.c.l.s4 1983009808
        %v1919 = vunpack.c.0.s8 %v1918
        %v1920 = vlaneseq
        %v1921 = vshrl.u32 %v1920, 7
        %v1922 = vsub.s32 %v1919, %v1921
        %v1923 = vrot.slane %v1418, %v1922
        %v1925 = vunpack.c.l.s4 1983009808
        %v1926 = vunpack.c.0.s8 %v1925
        %v1927 = vlaneseq
        %v1928 = vshrl.u32 %v1927, 7
        %v1929 = vsub.s32 %v1926, %v1928
        %v1930 = vrot.slane %v1902, %v1929
        %v1931 = vcombine.low %v1909, %v1923
        %v1932 = vcombine.high %v1909, %v1923
        %v1933 = vcombine.low %v1916, %v1930
        %v1934 = vcombine.high %v1916, %v1930
        %v1935 = vcombine.low %v1231, %v1233
        %v1936 = vcombine.high %v1231, %v1233
        %v1937 = vcombine.high %v1423, %v1423
        %v1939 = vunpack.c.l.s4 1983009808
        %v1940 = vunpack.c.0.s8 %v1939
        %v1941 = vlaneseq
        %v1942 = vshrl.u32 %v1941, 7
        %v1943 = vsub.s32 %v1940, %v1942
        %v1944 = vrot.slane %v1935, %v1943
        %v1946 = vunpack.c.l.s4 1983009808
        %v1947 = vunpack.c.0.s8 %v1946
        %v1948 = vlaneseq
        %v1949 = vshrl.u32 %v1948, 7
        %v1950 = vsub.s32 %v1947, %v1949
        %v1951 = vrot.slane %v1936, %v1950
        %v1953 = vunpack.c.l.s4 1983009808
        %v1954 = vunpack.c.0.s8 %v1953
        %v1955 = vlaneseq
        %v1956 = vshrl.u32 %v1955, 7
        %v1957 = vsub.s32 %v1954, %v1956
        %v1958 = vrot.slane %v1423, %v1957
        %v1960 = vunpack.c.l.s4 1983009808
        %v1961 = vunpack.c.0.s8 %v1960
        %v1962 = vlaneseq
        %v1963 = vshrl.u32 %v1962, 7
        %v1964 = vsub.s32 %v1961, %v1963
        %v1965 = vrot.slane %v1937, %v1964
        %v1966 = vcombine.low %v1944, %v1958
        %v1967 = vcombine.high %v1944, %v1958
        %v1968 = vcombine.low %v1951, %v1965
        %v1969 = vcombine.high %v1951, %v1965
        %v1970 = vcombine.low %v1237, %v1239
        %v1971 = vcombine.high %v1237, %v1239
        %v1972 = vcombine.high %v1428, %v1428
        %v1974 = vunpack.c.l.s4 1983009808
        %v1975 = vunpack.c.0.s8 %v1974
        %v1976 = vlaneseq
        %v1977 = vshrl.u32 %v1976, 7
        %v1978 = vsub.s32 %v1975, %v1977
        %v1979 = vrot.slane %v1970, %v1978
        %v1981 = vunpack.c.l.s4 1983009808
        %v1982 = vunpack.c.0.s8 %v1981
        %v1983 = vlaneseq
        %v1984 = vshrl.u32 %v1983, 7
        %v1985 = vsub.s32 %v1982, %v1984
        %v1986 = vrot.slane %v1971, %v1985
        %v1988 = vunpack.c.l.s4 1983009808
        %v1989 = vunpack.c.0.s8 %v1988
        %v1990 = vlaneseq
        %v1991 = vshrl.u32 %v1990, 7
        %v1992 = vsub.s32 %v1989, %v1991
        %v1993 = vrot.slane %v1428, %v1992
        %v1995 = vunpack.c.l.s4 1983009808
        %v1996 = vunpack.c.0.s8 %v1995
        %v1997 = vlaneseq
        %v1998 = vshrl.u32 %v1997, 7
        %v1999 = vsub.s32 %v1996, %v1998
        %v2000 = vrot.slane %v1972, %v1999
        %v2001 = vcombine.low %v1979, %v1993
        %v2002 = vcombine.high %v1979, %v1993
        %v2003 = vcombine.low %v1986, %v2000
        %v2004 = vcombine.high %v1986, %v2000
        %v2005 = vcombine.low %v1243, %v1245
        %v2006 = vcombine.high %v1243, %v1245
        %v2007 = vcombine.high %v1433, %v1433
        %v2009 = vunpack.c.l.s4 1983009808
        %v2010 = vunpack.c.0.s8 %v2009
        %v2011 = vlaneseq
        %v2012 = vshrl.u32 %v2011, 7
        %v2013 = vsub.s32 %v2010, %v2012
        %v2014 = vrot.slane %v2005, %v2013
        %v2016 = vunpack.c.l.s4 1983009808
        %v2017 = vunpack.c.0.s8 %v2016
        %v2018 = vlaneseq
        %v2019 = vshrl.u32 %v2018, 7
        %v2020 = vsub.s32 %v2017, %v2019
        %v2021 = vrot.slane %v2006, %v2020
        %v2023 = vunpack.c.l.s4 1983009808
        %v2024 = vunpack.c.0.s8 %v2023
        %v2025 = vlaneseq
        %v2026 = vshrl.u32 %v2025, 7
        %v2027 = vsub.s32 %v2024, %v2026
        %v2028 = vrot.slane %v1433, %v2027
        %v2030 = vunpack.c.l.s4 1983009808
        %v2031 = vunpack.c.0.s8 %v2030
        %v2032 = vlaneseq
        %v2033 = vshrl.u32 %v2032, 7
        %v2034 = vsub.s32 %v2031, %v2033
        %v2035 = vrot.slane %v2007, %v2034
        %v2036 = vcombine.low %v2014, %v2028
        %v2037 = vcombine.high %v2014, %v2028
        %v2038 = vcombine.low %v2021, %v2035
        %v2039 = vcombine.high %v2021, %v2035
        %v2040 = vcombine.low %v1249, %v1251
        %v2041 = vcombine.high %v1249, %v1251
        %v2042 = vcombine.high %v1438, %v1438
        %v2044 = vunpack.c.l.s4 1983009808
        %v2045 = vunpack.c.0.s8 %v2044
        %v2046 = vlaneseq
        %v2047 = vshrl.u32 %v2046, 7
        %v2048 = vsub.s32 %v2045, %v2047
        %v2049 = vrot.slane %v2040, %v2048
        %v2051 = vunpack.c.l.s4 1983009808
        %v2052 = vunpack.c.0.s8 %v2051
        %v2053 = vlaneseq
        %v2054 = vshrl.u32 %v2053, 7
        %v2055 = vsub.s32 %v2052, %v2054
        %v2056 = vrot.slane %v2041, %v2055
        %v2058 = vunpack.c.l.s4 1983009808
        %v2059 = vunpack.c.0.s8 %v2058
        %v2060 = vlaneseq
        %v2061 = vshrl.u32 %v2060, 7
        %v2062 = vsub.s32 %v2059, %v2061
        %v2063 = vrot.slane %v1438, %v2062
        %v2065 = vunpack.c.l.s4 1983009808
        %v2066 = vunpack.c.0.s8 %v2065
        %v2067 = vlaneseq
        %v2068 = vshrl.u32 %v2067, 7
        %v2069 = vsub.s32 %v2066, %v2068
        %v2070 = vrot.slane %v2042, %v2069
        %v2071 = vcombine.low %v2049, %v2063
        %v2072 = vcombine.high %v2049, %v2063
        %v2073 = vcombine.low %v2056, %v2070
        %v2074 = vcombine.high %v2056, %v2070
        %v2075 = vcombine.low %v1255, %v1257
        %v2076 = vcombine.high %v1255, %v1257
        %v2077 = vcombine.high %v1443, %v1443
        %v2079 = vunpack.c.l.s4 1983009808
        %v2080 = vunpack.c.0.s8 %v2079
        %v2081 = vlaneseq
        %v2082 = vshrl.u32 %v2081, 7
        %v2083 = vsub.s32 %v2080, %v2082
        %v2084 = vrot.slane %v2075, %v2083
        %v2086 = vunpack.c.l.s4 1983009808
        %v2087 = vunpack.c.0.s8 %v2086
        %v2088 = vlaneseq
        %v2089 = vshrl.u32 %v2088, 7
        %v2090 = vsub.s32 %v2087, %v2089
        %v2091 = vrot.slane %v2076, %v2090
        %v2093 = vunpack.c.l.s4 1983009808
        %v2094 = vunpack.c.0.s8 %v2093
        %v2095 = vlaneseq
        %v2096 = vshrl.u32 %v2095, 7
        %v2097 = vsub.s32 %v2094, %v2096
        %v2098 = vrot.slane %v1443, %v2097
        %v2100 = vunpack.c.l.s4 1983009808
        %v2101 = vunpack.c.0.s8 %v2100
        %v2102 = vlaneseq
        %v2103 = vshrl.u32 %v2102, 7
        %v2104 = vsub.s32 %v2101, %v2103
        %v2105 = vrot.slane %v2077, %v2104
        %v2106 = vcombine.low %v2084, %v2098
        %v2107 = vcombine.high %v2084, %v2098
        %v2108 = vcombine.low %v2091, %v2105
        %v2109 = vcombine.high %v2091, %v2105
        %v2110 = vcombine.low %v1261, %v1263
        %v2111 = vcombine.high %v1261, %v1263
        %v2112 = vcombine.high %v1448, %v1448
        %v2114 = vunpack.c.l.s4 1983009808
        %v2115 = vunpack.c.0.s8 %v2114
        %v2116 = vlaneseq
        %v2117 = vshrl.u32 %v2116, 7
        %v2118 = vsub.s32 %v2115, %v2117
        %v2119 = vrot.slane %v2110, %v2118
        %v2121 = vunpack.c.l.s4 1983009808
        %v2122 = vunpack.c.0.s8 %v2121
        %v2123 = vlaneseq
        %v2124 = vshrl.u32 %v2123, 7
        %v2125 = vsub.s32 %v2122, %v2124
        %v2126 = vrot.slane %v2111, %v2125
        %v2128 = vunpack.c.l.s4 1983009808
        %v2129 = vunpack.c.0.s8 %v2128
        %v2130 = vlaneseq
        %v2131 = vshrl.u32 %v2130, 7
        %v2132 = vsub.s32 %v2129, %v2131
        %v2133 = vrot.slane %v1448, %v2132
        %v2135 = vunpack.c.l.s4 1983009808
        %v2136 = vunpack.c.0.s8 %v2135
        %v2137 = vlaneseq
        %v2138 = vshrl.u32 %v2137, 7
        %v2139 = vsub.s32 %v2136, %v2138
        %v2140 = vrot.slane %v2112, %v2139
        %v2141 = vcombine.low %v2119, %v2133
        %v2142 = vcombine.high %v2119, %v2133
        %v2143 = vcombine.low %v2126, %v2140
        %v2144 = vcombine.high %v2126, %v2140
        %v2145 = vcombine.low %v1267, %v1269
        %v2146 = vcombine.high %v1267, %v1269
        %v2147 = vcombine.high %v1453, %v1453
        %v2149 = vunpack.c.l.s4 1983009808
        %v2150 = vunpack.c.0.s8 %v2149
        %v2151 = vlaneseq
        %v2152 = vshrl.u32 %v2151, 7
        %v2153 = vsub.s32 %v2150, %v2152
        %v2154 = vrot.slane %v2145, %v2153
        %v2156 = vunpack.c.l.s4 1983009808
        %v2157 = vunpack.c.0.s8 %v2156
        %v2158 = vlaneseq
        %v2159 = vshrl.u32 %v2158, 7
        %v2160 = vsub.s32 %v2157, %v2159
        %v2161 = vrot.slane %v2146, %v2160
        %v2163 = vunpack.c.l.s4 1983009808
        %v2164 = vunpack.c.0.s8 %v2163
        %v2165 = vlaneseq
        %v2166 = vshrl.u32 %v2165, 7
        %v2167 = vsub.s32 %v2164, %v2166
        %v2168 = vrot.slane %v1453, %v2167
        %v2170 = vunpack.c.l.s4 1983009808
        %v2171 = vunpack.c.0.s8 %v2170
        %v2172 = vlaneseq
        %v2173 = vshrl.u32 %v2172, 7
        %v2174 = vsub.s32 %v2171, %v2173
        %v2175 = vrot.slane %v2147, %v2174
        %v2176 = vcombine.low %v2154, %v2168
        %v2177 = vcombine.high %v2154, %v2168
        %v2178 = vcombine.low %v2161, %v2175
        %v2179 = vcombine.high %v2161, %v2175
        %v2180 = vcombine.low %v1273, %v1275
        %v2181 = vcombine.high %v1273, %v1275
        %v2182 = vcombine.high %v1458, %v1458
        %v2184 = vunpack.c.l.s4 1983009808
        %v2185 = vunpack.c.0.s8 %v2184
        %v2186 = vlaneseq
        %v2187 = vshrl.u32 %v2186, 7
        %v2188 = vsub.s32 %v2185, %v2187
        %v2189 = vrot.slane %v2180, %v2188
        %v2191 = vunpack.c.l.s4 1983009808
        %v2192 = vunpack.c.0.s8 %v2191
        %v2193 = vlaneseq
        %v2194 = vshrl.u32 %v2193, 7
        %v2195 = vsub.s32 %v2192, %v2194
        %v2196 = vrot.slane %v2181, %v2195
        %v2198 = vunpack.c.l.s4 1983009808
        %v2199 = vunpack.c.0.s8 %v2198
        %v2200 = vlaneseq
        %v2201 = vshrl.u32 %v2200, 7
        %v2202 = vsub.s32 %v2199, %v2201
        %v2203 = vrot.slane %v1458, %v2202
        %v2205 = vunpack.c.l.s4 1983009808
        %v2206 = vunpack.c.0.s8 %v2205
        %v2207 = vlaneseq
        %v2208 = vshrl.u32 %v2207, 7
        %v2209 = vsub.s32 %v2206, %v2208
        %v2210 = vrot.slane %v2182, %v2209
        %v2211 = vcombine.low %v2189, %v2203
        %v2212 = vcombine.high %v2189, %v2203
        %v2213 = vcombine.low %v2196, %v2210
        %v2214 = vcombine.high %v2196, %v2210
        %v2215 = vcombine.low %v1279, %v1281
        %v2216 = vcombine.high %v1279, %v1281
        %v2217 = vcombine.high %v1463, %v1463
        %v2219 = vunpack.c.l.s4 1983009808
        %v2220 = vunpack.c.0.s8 %v2219
        %v2221 = vlaneseq
        %v2222 = vshrl.u32 %v2221, 7
        %v2223 = vsub.s32 %v2220, %v2222
        %v2224 = vrot.slane %v2215, %v2223
        %v2226 = vunpack.c.l.s4 1983009808
        %v2227 = vunpack.c.0.s8 %v2226
        %v2228 = vlaneseq
        %v2229 = vshrl.u32 %v2228, 7
        %v2230 = vsub.s32 %v2227, %v2229
        %v2231 = vrot.slane %v2216, %v2230
        %v2233 = vunpack.c.l.s4 1983009808
        %v2234 = vunpack.c.0.s8 %v2233
        %v2235 = vlaneseq
        %v2236 = vshrl.u32 %v2235, 7
        %v2237 = vsub.s32 %v2234, %v2236
        %v2238 = vrot.slane %v1463, %v2237
        %v2240 = vunpack.c.l.s4 1983009808
        %v2241 = vunpack.c.0.s8 %v2240
        %v2242 = vlaneseq
        %v2243 = vshrl.u32 %v2242, 7
        %v2244 = vsub.s32 %v2241, %v2243
        %v2245 = vrot.slane %v2217, %v2244
        %v2246 = vcombine.low %v2224, %v2238
        %v2247 = vcombine.high %v2224, %v2238
        %v2248 = vcombine.low %v2231, %v2245
        %v2249 = vcombine.high %v2231, %v2245
        %v2250 = vcombine.low %v1285, %v1287
        %v2251 = vcombine.high %v1285, %v1287
        %v2252 = vcombine.high %v1468, %v1468
        %v2254 = vunpack.c.l.s4 1983009808
        %v2255 = vunpack.c.0.s8 %v2254
        %v2256 = vlaneseq
        %v2257 = vshrl.u32 %v2256, 7
        %v2258 = vsub.s32 %v2255, %v2257
        %v2259 = vrot.slane %v2250, %v2258
        %v2261 = vunpack.c.l.s4 1983009808
        %v2262 = vunpack.c.0.s8 %v2261
        %v2263 = vlaneseq
        %v2264 = vshrl.u32 %v2263, 7
        %v2265 = vsub.s32 %v2262, %v2264
        %v2266 = vrot.slane %v2251, %v2265
        %v2268 = vunpack.c.l.s4 1983009808
        %v2269 = vunpack.c.0.s8 %v2268
        %v2270 = vlaneseq
        %v2271 = vshrl.u32 %v2270, 7
        %v2272 = vsub.s32 %v2269, %v2271
        %v2273 = vrot.slane %v1468, %v2272
        %v2275 = vunpack.c.l.s4 1983009808
        %v2276 = vunpack.c.0.s8 %v2275
        %v2277 = vlaneseq
        %v2278 = vshrl.u32 %v2277, 7
        %v2279 = vsub.s32 %v2276, %v2278
        %v2280 = vrot.slane %v2252, %v2279
        %v2281 = vcombine.low %v2259, %v2273
        %v2282 = vcombine.high %v2259, %v2273
        %v2283 = vcombine.low %v2266, %v2280
        %v2284 = vcombine.high %v2266, %v2280
        %v2285 = vcombine.low %v1291, %v1293
        %v2286 = vcombine.high %v1291, %v1293
        %v2287 = vcombine.high %v1473, %v1473
        %v2289 = vunpack.c.l.s4 1983009808
        %v2290 = vunpack.c.0.s8 %v2289
        %v2291 = vlaneseq
        %v2292 = vshrl.u32 %v2291, 7
        %v2293 = vsub.s32 %v2290, %v2292
        %v2294 = vrot.slane %v2285, %v2293
        %v2296 = vunpack.c.l.s4 1983009808
        %v2297 = vunpack.c.0.s8 %v2296
        %v2298 = vlaneseq
        %v2299 = vshrl.u32 %v2298, 7
        %v2300 = vsub.s32 %v2297, %v2299
        %v2301 = vrot.slane %v2286, %v2300
        %v2303 = vunpack.c.l.s4 1983009808
        %v2304 = vunpack.c.0.s8 %v2303
        %v2305 = vlaneseq
        %v2306 = vshrl.u32 %v2305, 7
        %v2307 = vsub.s32 %v2304, %v2306
        %v2308 = vrot.slane %v1473, %v2307
        %v2310 = vunpack.c.l.s4 1983009808
        %v2311 = vunpack.c.0.s8 %v2310
        %v2312 = vlaneseq
        %v2313 = vshrl.u32 %v2312, 7
        %v2314 = vsub.s32 %v2311, %v2313
        %v2315 = vrot.slane %v2287, %v2314
        %v2316 = vcombine.low %v2294, %v2308
        %v2317 = vcombine.high %v2294, %v2308
        %v2318 = vcombine.low %v2301, %v2315
        %v2319 = vcombine.high %v2301, %v2315
        %v2320 = vcombine.low %v1297, %v1299
        %v2322 = vunpack.c.l.s4 1983009808
        %v2323 = vunpack.c.0.s8 %v2322
        %v2324 = vlaneseq
        %v2325 = vshrl.u32 %v2324, 7
        %v2326 = vsub.s32 %v2323, %v2325
        %v2327 = vrot.slane %v2320, %v2326
        %v2329 = vunpack.c.l.s4 1983009808
        %v2330 = vunpack.c.0.s8 %v2329
        %v2331 = vlaneseq
        %v2332 = vshrl.u32 %v2331, 7
        %v2333 = vsub.s32 %v2330, %v2332
        %v2334 = vrot.slane %v1478, %v2333
        %v2335 = vcombine.low %v2327, %v2334
        %v2336 = vcombine.high %v2327, %v2334
        %v2427 = vld [vmem:[%s2] sm:$0xff]
        %v2428 = vld [vmem:[%s2 + $0x8] sm:$0x1]
        %v2429 = vlaneseq
        %v2430 = vshrl.u32 %v2429, 7
        %v2431 = vsub.s32 0, %v2430
        %v2432 = vrot.slane %v2427, %v2431
        %v2434 = vcombine.high %v2432, %v2432
        %v2436 = vunpack.c.l.s4 1983009808
        %v2437 = vunpack.c.0.s8 %v2436
        %v2438 = vlaneseq
        %v2439 = vshrl.u32 %v2438, 7
        %v2440 = vsub.s32 %v2437, %v2439
        %v2441 = vrot.slane %v2432, %v2440
        %v2443 = vunpack.c.l.s4 1983009808
        %v2444 = vunpack.c.0.s8 %v2443
        %v2445 = vlaneseq
        %v2446 = vshrl.u32 %v2445, 7
        %v2447 = vsub.s32 %v2444, %v2446
        %v2448 = vrot.slane %v2434, %v2447
        %v2449 = vcombine.high %v2441, %v2441
        %v2450 = vcombine.high %v2448, %v2448
        %v2455 = vadd.f32 %v1581, %v2441
        %v2456 = vadd.f32 %v1582, %v2449
        %v2457 = vadd.f32 %v1583, %v2448
        %v2458 = vadd.f32 %v1584, %v2450
        %v2459 = vadd.f32 %v1616, %v2441
        %v2460 = vadd.f32 %v1617, %v2449
        %v2461 = vadd.f32 %v1618, %v2448
        %v2462 = vadd.f32 %v1619, %v2450
        %v2463 = vadd.f32 %v1652, %v2441
        %v2464 = vadd.f32 %v1653, %v2449
        %v2465 = vadd.f32 %v1654, %v2448
        %v2466 = vadd.f32 %v1686, %v2450
        %v2467 = vadd.f32 %v1687, %v2441
        %v2468 = vadd.f32 %v1688, %v2449
        %v2469 = vadd.f32 %v1689, %v2448
        %v2470 = vadd.f32 %v1721, %v2450
        %v2471 = vadd.f32 %v1723, %v2441
        %v2472 = vadd.f32 %v1724, %v2449
        %v2473 = vadd.f32 %v1756, %v2448
        %v2474 = vadd.f32 %v1757, %v2450
        %v2475 = vadd.f32 %v1758, %v2441
        %v2476 = vadd.f32 %v1759, %v2449
        %v2477 = vadd.f32 %v1791, %v2448
        %v2478 = vadd.f32 %v1792, %v2450
        %v2479 = vadd.f32 %v1794, %v2441
        %v2480 = vadd.f32 %v1826, %v2449
        %v2481 = vadd.f32 %v1827, %v2448
        %v2482 = vadd.f32 %v1828, %v2450
        %v2483 = vadd.f32 %v1829, %v2441
        %v2484 = vadd.f32 %v1861, %v2449
        %v2485 = vadd.f32 %v1862, %v2448
        %v2486 = vadd.f32 %v1863, %v2450
        %v2487 = vadd.f32 %v1896, %v2441
        %v2488 = vadd.f32 %v1897, %v2449
        %v2489 = vadd.f32 %v1898, %v2448
        %v2490 = vadd.f32 %v1899, %v2450
        %v2491 = vadd.f32 %v1931, %v2441
        %v2492 = vadd.f32 %v1932, %v2449
        %v2493 = vadd.f32 %v1933, %v2448
        %v2494 = vadd.f32 %v1934, %v2450
        %v2495 = vadd.f32 %v1967, %v2441
        %v2496 = vadd.f32 %v1968, %v2449
        %v2497 = vadd.f32 %v1969, %v2448
        %v2498 = vadd.f32 %v2001, %v2450
        %v2499 = vadd.f32 %v2002, %v2441
        %v2500 = vadd.f32 %v2003, %v2449
        %v2501 = vadd.f32 %v2004, %v2448
        %v2502 = vadd.f32 %v2036, %v2450
        %v2503 = vadd.f32 %v2038, %v2441
        %v2504 = vadd.f32 %v2039, %v2449
        %v2505 = vadd.f32 %v2071, %v2448
        %v2506 = vadd.f32 %v2072, %v2450
        %v2507 = vadd.f32 %v2073, %v2441
        %v2508 = vadd.f32 %v2074, %v2449
        %v2509 = vadd.f32 %v2106, %v2448
        %v2510 = vadd.f32 %v2107, %v2450
        %v2511 = vadd.f32 %v2109, %v2441
        %v2512 = vadd.f32 %v2141, %v2449
        %v2513 = vadd.f32 %v2142, %v2448
        %v2514 = vadd.f32 %v2143, %v2450
        %v2515 = vadd.f32 %v2144, %v2441
        %v2516 = vadd.f32 %v2176, %v2449
        %v2517 = vadd.f32 %v2177, %v2448
        %v2518 = vadd.f32 %v2178, %v2450
        %v2519 = vrot.slane %v1652, 4
        %v2520 = vrot.slane %v1653, 4
        %v2521 = vrot.slane %v1654, 4
        %v2522 = vrot.slane %v1686, 4
        %v2523 = vrot.slane %v1687, 4
        %v2524 = vrot.slane %v1688, 4
        %v2525 = vrot.slane %v1689, 4
        %v2526 = vrot.slane %v1721, 4
        %v2527 = vrot.slane %v1722, 4
        %v2528 = vrot.slane %v1723, 4
        %v2529 = vrot.slane %v1724, 4
        %v2530 = vrot.slane %v1756, 4
        %v2531 = vrot.slane %v1757, 4
        %v2532 = vrot.slane %v1758, 4
        %v2533 = vrot.slane %v1759, 4
        %v2534 = vrot.slane %v1791, 4
        %v2535 = vrot.slane %v1792, 4
        %v2536 = vrot.slane %v1793, 4
        %v2537 = vrot.slane %v1794, 4
        %v2538 = vrot.slane %v1826, 4
        %v2539 = vrot.slane %v1827, 4
        %v2540 = vrot.slane %v1828, 4
        %v2541 = vrot.slane %v1829, 4
        %v2542 = vrot.slane %v1861, 4
        %v2543 = vrot.slane %v1862, 4
        %v2544 = vrot.slane %v1863, 4
        %v2545 = vrot.slane %v1864, 4
        %v2546 = vrot.slane %v1896, 4
        %v2547 = vrot.slane %v1897, 4
        %v2548 = vrot.slane %v1898, 4
        %v2549 = vrot.slane %v1899, 4
        %v2550 = vrot.slane %v1931, 4
        %v2551 = vrot.slane %v1932, 4
        %v2552 = vrot.slane %v1933, 4
        %v2553 = vrot.slane %v1934, 4
        %v2554 = vrot.slane %v1966, 4
        %v2555 = vrot.slane %v1967, 4
        %v2556 = vrot.slane %v1968, 4
        %v2557 = vrot.slane %v1969, 4
        %v2558 = vrot.slane %v2001, 4
        %v2559 = vrot.slane %v2002, 4
        %v2560 = vrot.slane %v2003, 4
        %v2561 = vrot.slane %v2004, 4
        %v2562 = vrot.slane %v2036, 4
        %v2563 = vrot.slane %v2037, 4
        %v2564 = vrot.slane %v2038, 4
        %v2565 = vrot.slane %v2039, 4
        %v2566 = vrot.slane %v2071, 4
        %v2567 = vrot.slane %v2072, 4
        %v2568 = vrot.slane %v2073, 4
        %v2569 = vrot.slane %v2074, 4
        %v2570 = vrot.slane %v2106, 4
        %v2571 = vrot.slane %v2107, 4
        %v2572 = vrot.slane %v2108, 4
        %v2573 = vrot.slane %v2109, 4
        %v2574 = vrot.slane %v2141, 4
        %v2575 = vrot.slane %v2142, 4
        %v2576 = vrot.slane %v2143, 4
        %v2577 = vrot.slane %v2144, 4
        %v2578 = vrot.slane %v2176, 4
        %v2579 = vrot.slane %v2177, 4
        %v2580 = vrot.slane %v2178, 4
        %v2581 = vrot.slane %v2179, 4
        %v2582 = vrot.slane %v2211, 4
        %v2583 = vrot.slane %v2212, 4
        %v2584 = vrot.slane %v2213, 4
        %v2585 = vrot.slane %v2214, 4
        %v2586 = vrot.slane %v2246, 4
        %v2587 = vrot.slane %v2247, 4
        %v2588 = vrot.slane %v2248, 4
        %v2589 = vrot.slane %v2249, 4
        %v2590 = vrot.slane %v2281, 4
        %vm2727 = vcmask 1040384
        %vm2728 = vcmask 1042434
        %vm2729 = vmor %vm2727, %vm2728
        %vm2730 = vcmask 1044484
        %vm2731 = vmor %vm2729, %vm2730
        %vm2732 = vcmask 1046534
        %vm2733 = vmor %vm2731, %vm2732
        %v2734 = vrot.slane %v2455, 7
        %v2735 = vrot.slane %v2734, 2
        %v2736 = vrot.slane %v2456, 7
        %v2737 = vsel %vm2733, %v2735, %v2736
        %v2738 = vrot.slane %v2736, 2
        %v2739 = vrot.slane %v2457, 7
        %v2740 = vsel %vm2733, %v2738, %v2739
        %v2741 = vrot.slane %v2739, 2
        %v2742 = vrot.slane %v2458, 7
        %v2743 = vsel %vm2733, %v2741, %v2742
        %v2744 = vrot.slane %v2742, 2
        %v2745 = vrot.slane %v2459, 7
        %v2746 = vsel %vm2733, %v2744, %v2745
        %v2747 = vrot.slane %v2745, 2
        %v2748 = vrot.slane %v2460, 7
        %v2749 = vsel %vm2733, %v2747, %v2748
        %v2750 = vrot.slane %v2748, 2
        %v2751 = vrot.slane %v2461, 7
        %v2752 = vsel %vm2733, %v2750, %v2751
        %v2753 = vrot.slane %v2751, 2
        %v2754 = vrot.slane %v2462, 7
        %v2755 = vsel %vm2733, %v2753, %v2754
        %v2756 = vrot.slane %v2754, 2
        %v2757 = vrot.slane %v2463, 7
        %v2758 = vrot.slane %v2757, 2
        %v2759 = vrot.slane %v2464, 7
        %v2760 = vsel %vm2733, %v2758, %v2759
        %v2761 = vrot.slane %v2759, 2
        %v2762 = vrot.slane %v2465, 7
        %v2763 = vsel %vm2733, %v2761, %v2762
        %v2764 = vrot.slane %v2762, 2
        %v2765 = vrot.slane %v2466, 7
        %v2766 = vsel %vm2733, %v2764, %v2765
        %v2767 = vrot.slane %v2765, 2
        %v2768 = vrot.slane %v2467, 7
        %v2769 = vsel %vm2733, %v2767, %v2768
        %v2770 = vrot.slane %v2768, 2
        %v2771 = vrot.slane %v2468, 7
        %v2772 = vsel %vm2733, %v2770, %v2771
        %v2773 = vrot.slane %v2771, 2
        %v2774 = vrot.slane %v2469, 7
        %v2775 = vsel %vm2733, %v2773, %v2774
        %v2776 = vrot.slane %v2774, 2
        %v2777 = vrot.slane %v2470, 7
        %v2778 = vsel %vm2733, %v2776, %v2777
        %v2779 = vrot.slane %v2777, 2
        %v2780 = vrot.slane %v2471, 7
        %v2781 = vrot.slane %v2780, 2
        %v2782 = vrot.slane %v2472, 7
        %v2783 = vsel %vm2733, %v2781, %v2782
        %v2784 = vrot.slane %v2782, 2
        %v2785 = vrot.slane %v2473, 7
        %v2786 = vsel %vm2733, %v2784, %v2785
        %v2787 = vrot.slane %v2785, 2
        %v2788 = vrot.slane %v2474, 7
        %v2789 = vsel %vm2733, %v2787, %v2788
        %v2790 = vrot.slane %v2788, 2
        %v2791 = vrot.slane %v2475, 7
        %v2792 = vsel %vm2733, %v2790, %v2791
        %v2793 = vrot.slane %v2791, 2
        %v2794 = vrot.slane %v2476, 7
        %v2795 = vsel %vm2733, %v2793, %v2794
        %v2796 = vrot.slane %v2794, 2
        %v2797 = vrot.slane %v2477, 7
        %v2798 = vsel %vm2733, %v2796, %v2797
        %v2799 = vrot.slane %v2797, 2
        %v2800 = vrot.slane %v2478, 7
        %v2801 = vsel %vm2733, %v2799, %v2800
        %v2802 = vrot.slane %v2800, 2
        %v2803 = vrot.slane %v2479, 7
        %v2804 = vrot.slane %v2803, 2
        %v2805 = vrot.slane %v2480, 7
        %v2806 = vsel %vm2733, %v2804, %v2805
        %v2807 = vrot.slane %v2805, 2
        %v2808 = vrot.slane %v2481, 7
        %v2809 = vsel %vm2733, %v2807, %v2808
        %v2810 = vrot.slane %v2808, 2
        %v2811 = vrot.slane %v2482, 7
        %v2812 = vsel %vm2733, %v2810, %v2811
        %v2813 = vrot.slane %v2811, 2
        %v2814 = vrot.slane %v2483, 7
        %v2815 = vsel %vm2733, %v2813, %v2814
        %v2816 = vrot.slane %v2814, 2
        %v2817 = vrot.slane %v2484, 7
        %v2818 = vsel %vm2733, %v2816, %v2817
        %v2819 = vrot.slane %v2817, 2
        %v2820 = vrot.slane %v2485, 7
        %v2821 = vsel %vm2733, %v2819, %v2820
        %v2822 = vrot.slane %v2820, 2
        %v2823 = vrot.slane %v2486, 7
        %v2824 = vsel %vm2733, %v2822, %v2823
        %v2825 = vrot.slane %v2823, 2
        %v2826 = vrot.slane %v2487, 7
        %v2827 = vrot.slane %v2826, 2
        %v2828 = vrot.slane %v2488, 7
        %v2829 = vsel %vm2733, %v2827, %v2828
        %v2830 = vrot.slane %v2828, 2
        %v2831 = vrot.slane %v2489, 7
        %v2832 = vsel %vm2733, %v2830, %v2831
        %v2833 = vrot.slane %v2831, 2
        %v2834 = vrot.slane %v2490, 7
        %v2835 = vsel %vm2733, %v2833, %v2834
        %v2836 = vrot.slane %v2834, 2
        %v2837 = vrot.slane %v2491, 7
        %v2838 = vsel %vm2733, %v2836, %v2837
        %v2839 = vrot.slane %v2837, 2
        %v2840 = vrot.slane %v2492, 7
        %v2841 = vsel %vm2733, %v2839, %v2840
        %v2842 = vrot.slane %v2840, 2
        %v2843 = vrot.slane %v2493, 7
        %v2844 = vsel %vm2733, %v2842, %v2843
        %v2845 = vrot.slane %v2843, 2
        %v2846 = vrot.slane %v2494, 7
        %v2847 = vsel %vm2733, %v2845, %v2846
        %v2848 = vrot.slane %v2846, 2
        %v2849 = vrot.slane %v2495, 7
        %v2850 = vrot.slane %v2849, 2
        %v2851 = vrot.slane %v2496, 7
        %v2852 = vsel %vm2733, %v2850, %v2851
        %v2853 = vrot.slane %v2851, 2
        %v2854 = vrot.slane %v2497, 7
        %v2855 = vsel %vm2733, %v2853, %v2854
        %v2856 = vrot.slane %v2854, 2
        %v2857 = vrot.slane %v2498, 7
        %v2858 = vsel %vm2733, %v2856, %v2857
        %v2859 = vrot.slane %v2857, 2
        %v2860 = vrot.slane %v2499, 7
        %v2861 = vsel %vm2733, %v2859, %v2860
        %v2862 = vrot.slane %v2860, 2
        %v2863 = vrot.slane %v2500, 7
        %v2864 = vsel %vm2733, %v2862, %v2863
        %v2865 = vrot.slane %v2863, 2
        %v2866 = vrot.slane %v2501, 7
        %v2867 = vsel %vm2733, %v2865, %v2866
        %v2868 = vrot.slane %v2866, 2
        %v2869 = vrot.slane %v2502, 7
        %v2870 = vsel %vm2733, %v2868, %v2869
        %v2871 = vrot.slane %v2869, 2
        %v2872 = vrot.slane %v2503, 7
        %v2873 = vrot.slane %v2872, 2
        %v2874 = vrot.slane %v2504, 7
        %v2875 = vsel %vm2733, %v2873, %v2874
        %v2876 = vrot.slane %v2874, 2
        %v2877 = vrot.slane %v2505, 7
        %v2878 = vsel %vm2733, %v2876, %v2877
        %v2879 = vrot.slane %v2877, 2
        %v2880 = vrot.slane %v2506, 7
        %v2881 = vsel %vm2733, %v2879, %v2880
        %v2882 = vrot.slane %v2880, 2
        %v2883 = vrot.slane %v2507, 7
        %v2884 = vsel %vm2733, %v2882, %v2883
        %v2885 = vrot.slane %v2883, 2
        %v2886 = vrot.slane %v2508, 7
        %v2887 = vsel %vm2733, %v2885, %v2886
        %v2888 = vrot.slane %v2886, 2
        %v2889 = vrot.slane %v2509, 7
        %v2890 = vsel %vm2733, %v2888, %v2889
        %v2891 = vrot.slane %v2889, 2
        %v2892 = vrot.slane %v2510, 7
        %v2893 = vsel %vm2733, %v2891, %v2892
        %v2894 = vrot.slane %v2892, 2
        %v2895 = vrot.slane %v2511, 7
        %v2896 = vrot.slane %v2895, 2
        %v2897 = vrot.slane %v2512, 7
        %v2898 = vsel %vm2733, %v2896, %v2897
        %v2899 = vrot.slane %v2897, 2
        %v2900 = vrot.slane %v2513, 7
        %v2901 = vsel %vm2733, %v2899, %v2900
        %v2902 = vrot.slane %v2900, 2
        %v2903 = vrot.slane %v2514, 7
        %v2904 = vsel %vm2733, %v2902, %v2903
        %v2905 = vrot.slane %v2903, 2
        %v2906 = vrot.slane %v2515, 7
        %v2907 = vsel %vm2733, %v2905, %v2906
        %v2908 = vrot.slane %v2906, 2
        %v2909 = vrot.slane %v2516, 7
        %v2910 = vsel %vm2733, %v2908, %v2909
        %v2911 = vrot.slane %v2909, 2
        %v2912 = vrot.slane %v2517, 7
        %v2913 = vsel %vm2733, %v2911, %v2912
        %v2914 = vrot.slane %v2912, 2
        %v2915 = vrot.slane %v2518, 7
        %v2916 = vsel %vm2733, %v2914, %v2915
        %v2917 = vrot.slane %v2915, 2
        %v2990 = vmul.f32 %v2519, %v2734
        %v2991 = vmul.f32 %v2520, %v2737
        %v2992 = vmul.f32 %v2521, %v2740
        %v2993 = vmul.f32 %v2522, %v2743
        %v2994 = vmul.f32 %v2523, %v2746
        %v2995 = vmul.f32 %v2524, %v2749
        %v2996 = vmul.f32 %v2525, %v2752
        %v2997 = vmul.f32 %v2526, %v2755
        %v2998 = vmul.f32 %v2527, %v2756
        %v2999 = vmul.f32 %v2528, %v2757
        %v3000 = vmul.f32 %v2529, %v2760
        %v3001 = vmul.f32 %v2530, %v2763
        %v3002 = vmul.f32 %v2531, %v2766
        %v3003 = vmul.f32 %v2532, %v2769
        %v3004 = vmul.f32 %v2533, %v2772
        %v3005 = vmul.f32 %v2534, %v2775
        %v3006 = vmul.f32 %v2535, %v2778
        %v3007 = vmul.f32 %v2536, %v2779
        %v3008 = vmul.f32 %v2537, %v2780
        %v3009 = vmul.f32 %v2538, %v2783
        %v3010 = vmul.f32 %v2539, %v2786
        %v3011 = vmul.f32 %v2540, %v2789
        %v3012 = vmul.f32 %v2541, %v2792
        %v3013 = vmul.f32 %v2542, %v2795
        %v3014 = vmul.f32 %v2543, %v2798
        %v3015 = vmul.f32 %v2544, %v2801
        %v3016 = vmul.f32 %v2545, %v2802
        %v3017 = vmul.f32 %v2546, %v2803
        %v3018 = vmul.f32 %v2547, %v2806
        %v3019 = vmul.f32 %v2548, %v2809
        %v3020 = vmul.f32 %v2549, %v2812
        %v3021 = vmul.f32 %v2550, %v2815
        %v3022 = vmul.f32 %v2551, %v2818
        %v3023 = vmul.f32 %v2552, %v2821
        %v3024 = vmul.f32 %v2553, %v2824
        %v3025 = vmul.f32 %v2554, %v2825
        %v3026 = vmul.f32 %v2555, %v2826
        %v3027 = vmul.f32 %v2556, %v2829
        %v3028 = vmul.f32 %v2557, %v2832
        %v3029 = vmul.f32 %v2558, %v2835
        %v3030 = vmul.f32 %v2559, %v2838
        %v3031 = vmul.f32 %v2560, %v2841
        %v3032 = vmul.f32 %v2561, %v2844
        %v3033 = vmul.f32 %v2562, %v2847
        %v3034 = vmul.f32 %v2563, %v2848
        %v3035 = vmul.f32 %v2564, %v2849
        %v3036 = vmul.f32 %v2565, %v2852
        %v3037 = vmul.f32 %v2566, %v2855
        %v3038 = vmul.f32 %v2567, %v2858
        %v3039 = vmul.f32 %v2568, %v2861
        %v3040 = vmul.f32 %v2569, %v2864
        %v3041 = vmul.f32 %v2570, %v2867
        %v3042 = vmul.f32 %v2571, %v2870
        %v3043 = vmul.f32 %v2572, %v2871
        %v3044 = vmul.f32 %v2573, %v2872
        %v3045 = vmul.f32 %v2574, %v2875
        %v3046 = vmul.f32 %v2575, %v2878
        %v3047 = vmul.f32 %v2576, %v2881
        %v3048 = vmul.f32 %v2577, %v2884
        %v3049 = vmul.f32 %v2578, %v2887
        %v3050 = vmul.f32 %v2579, %v2890
        %v3051 = vmul.f32 %v2580, %v2893
        %v3052 = vmul.f32 %v2581, %v2894
        %v3053 = vmul.f32 %v2582, %v2895
        %v3054 = vmul.f32 %v2583, %v2898
        %v3055 = vmul.f32 %v2584, %v2901
        %v3056 = vmul.f32 %v2585, %v2904
        %v3057 = vmul.f32 %v2586, %v2907
        %v3058 = vmul.f32 %v2587, %v2910
        %v3059 = vmul.f32 %v2588, %v2913
        %v3060 = vmul.f32 %v2589, %v2916
        %v3061 = vmul.f32 %v2590, %v2917
        %v3062 = vlaneseq
        %v3063 = vshrl.u32 %v3062, 7
        %v3064 = vsub.s32 3, %v3063
        %v3065 = vrot.slane %v2427, %v3064
        %v3067 = vcombine.high %v3065, %v3065
        %v3069 = vunpack.c.l.s4 1983009808
        %v3070 = vunpack.c.0.s8 %v3069
        %v3071 = vlaneseq
        %v3072 = vshrl.u32 %v3071, 7
        %v3073 = vsub.s32 %v3070, %v3072
        %v3074 = vrot.slane %v3065, %v3073
        %v3076 = vunpack.c.l.s4 1983009808
        %v3077 = vunpack.c.0.s8 %v3076
        %v3078 = vlaneseq
        %v3079 = vshrl.u32 %v3078, 7
        %v3080 = vsub.s32 %v3077, %v3079
        %v3081 = vrot.slane %v3067, %v3080
        %v3082 = vcombine.high %v3074, %v3074
        %v3083 = vcombine.high %v3081, %v3081
        %v3088 = vadd.f32 %v1652, %v3074
        %v3089 = vadd.f32 %v1653, %v3082
        %v3090 = vadd.f32 %v1654, %v3081
        %v3091 = vadd.f32 %v1686, %v3083
        %v3092 = vadd.f32 %v1687, %v3074
        %v3093 = vadd.f32 %v1688, %v3082
        %v3094 = vadd.f32 %v1689, %v3081
        %v3095 = vadd.f32 %v1721, %v3083
        %v3096 = vadd.f32 %v1723, %v3074
        %v3097 = vadd.f32 %v1724, %v3082
        %v3098 = vadd.f32 %v1756, %v3081
        %v3099 = vadd.f32 %v1757, %v3083
        %v3100 = vadd.f32 %v1758, %v3074
        %v3101 = vadd.f32 %v1759, %v3082
        %v3102 = vadd.f32 %v1791, %v3081
        %v3103 = vadd.f32 %v1792, %v3083
        %v3104 = vadd.f32 %v1794, %v3074
        %v3105 = vadd.f32 %v1826, %v3082
        %v3106 = vadd.f32 %v1827, %v3081
        %v3107 = vadd.f32 %v1828, %v3083
        %v3108 = vadd.f32 %v1829, %v3074
        %v3109 = vadd.f32 %v1861, %v3082
        %v3110 = vadd.f32 %v1862, %v3081
        %v3111 = vadd.f32 %v1863, %v3083
        %v3112 = vadd.f32 %v1896, %v3074
        %v3113 = vadd.f32 %v1897, %v3082
        %v3114 = vadd.f32 %v1898, %v3081
        %v3115 = vadd.f32 %v1899, %v3083
        %v3116 = vadd.f32 %v1931, %v3074
        %v3117 = vadd.f32 %v1932, %v3082
        %v3118 = vadd.f32 %v1933, %v3081
        %v3119 = vadd.f32 %v1934, %v3083
        %v3120 = vadd.f32 %v1967, %v3074
        %v3121 = vadd.f32 %v1968, %v3082
        %v3122 = vadd.f32 %v1969, %v3081
        %v3123 = vadd.f32 %v2001, %v3083
        %v3124 = vadd.f32 %v2002, %v3074
        %v3125 = vadd.f32 %v2003, %v3082
        %v3126 = vadd.f32 %v2004, %v3081
        %v3127 = vadd.f32 %v2036, %v3083
        %v3128 = vadd.f32 %v2038, %v3074
        %v3129 = vadd.f32 %v2039, %v3082
        %v3130 = vadd.f32 %v2071, %v3081
        %v3131 = vadd.f32 %v2072, %v3083
        %v3132 = vadd.f32 %v2073, %v3074
        %v3133 = vadd.f32 %v2074, %v3082
        %v3134 = vadd.f32 %v2106, %v3081
        %v3135 = vadd.f32 %v2107, %v3083
        %v3136 = vadd.f32 %v2109, %v3074
        %v3137 = vadd.f32 %v2141, %v3082
        %v3138 = vadd.f32 %v2142, %v3081
        %v3139 = vadd.f32 %v2143, %v3083
        %v3140 = vadd.f32 %v2144, %v3074
        %v3141 = vadd.f32 %v2176, %v3082
        %v3142 = vadd.f32 %v2177, %v3081
        %v3143 = vadd.f32 %v2178, %v3083
        %v3144 = vadd.f32 %v2211, %v3074
        %v3145 = vadd.f32 %v2212, %v3082
        %v3146 = vadd.f32 %v2213, %v3081
        %v3147 = vadd.f32 %v2214, %v3083
        %v3148 = vadd.f32 %v2246, %v3074
        %v3149 = vadd.f32 %v2247, %v3082
        %v3150 = vadd.f32 %v2248, %v3081
        %v3151 = vadd.f32 %v2249, %v3083
        %v3216 = vrot.slane %v3088, 7
        %v3217 = vrot.slane %v3216, 2
        %v3218 = vrot.slane %v3089, 7
        %v3219 = vsel %vm2733, %v3217, %v3218
        %v3220 = vrot.slane %v3218, 2
        %v3221 = vrot.slane %v3090, 7
        %v3222 = vsel %vm2733, %v3220, %v3221
        %v3223 = vrot.slane %v3221, 2
        %v3224 = vrot.slane %v3091, 7
        %v3225 = vsel %vm2733, %v3223, %v3224
        %v3226 = vrot.slane %v3224, 2
        %v3227 = vrot.slane %v3092, 7
        %v3228 = vsel %vm2733, %v3226, %v3227
        %v3229 = vrot.slane %v3227, 2
        %v3230 = vrot.slane %v3093, 7
        %v3231 = vsel %vm2733, %v3229, %v3230
        %v3232 = vrot.slane %v3230, 2
        %v3233 = vrot.slane %v3094, 7
        %v3234 = vsel %vm2733, %v3232, %v3233
        %v3235 = vrot.slane %v3233, 2
        %v3236 = vrot.slane %v3095, 7
        %v3237 = vsel %vm2733, %v3235, %v3236
        %v3238 = vrot.slane %v3236, 2
        %v3239 = vrot.slane %v3096, 7
        %v3240 = vrot.slane %v3239, 2
        %v3241 = vrot.slane %v3097, 7
        %v3242 = vsel %vm2733, %v3240, %v3241
        %v3243 = vrot.slane %v3241, 2
        %v3244 = vrot.slane %v3098, 7
        %v3245 = vsel %vm2733, %v3243, %v3244
        %v3246 = vrot.slane %v3244, 2
        %v3247 = vrot.slane %v3099, 7
        %v3248 = vsel %vm2733, %v3246, %v3247
        %v3249 = vrot.slane %v3247, 2
        %v3250 = vrot.slane %v3100, 7
        %v3251 = vsel %vm2733, %v3249, %v3250
        %v3252 = vrot.slane %v3250, 2
        %v3253 = vrot.slane %v3101, 7
        %v3254 = vsel %vm2733, %v3252, %v3253
        %v3255 = vrot.slane %v3253, 2
        %v3256 = vrot.slane %v3102, 7
        %v3257 = vsel %vm2733, %v3255, %v3256
        %v3258 = vrot.slane %v3256, 2
        %v3259 = vrot.slane %v3103, 7
        %v3260 = vsel %vm2733, %v3258, %v3259
        %v3261 = vrot.slane %v3259, 2
        %v3262 = vrot.slane %v3104, 7
        %v3263 = vrot.slane %v3262, 2
        %v3264 = vrot.slane %v3105, 7
        %v3265 = vsel %vm2733, %v3263, %v3264
        %v3266 = vrot.slane %v3264, 2
        %v3267 = vrot.slane %v3106, 7
        %v3268 = vsel %vm2733, %v3266, %v3267
        %v3269 = vrot.slane %v3267, 2
        %v3270 = vrot.slane %v3107, 7
        %v3271 = vsel %vm2733, %v3269, %v3270
        %v3272 = vrot.slane %v3270, 2
        %v3273 = vrot.slane %v3108, 7
        %v3274 = vsel %vm2733, %v3272, %v3273
        %v3275 = vrot.slane %v3273, 2
        %v3276 = vrot.slane %v3109, 7
        %v3277 = vsel %vm2733, %v3275, %v3276
        %v3278 = vrot.slane %v3276, 2
        %v3279 = vrot.slane %v3110, 7
        %v3280 = vsel %vm2733, %v3278, %v3279
        %v3281 = vrot.slane %v3279, 2
        %v3282 = vrot.slane %v3111, 7
        %v3283 = vsel %vm2733, %v3281, %v3282
        %v3284 = vrot.slane %v3282, 2
        %v3285 = vrot.slane %v3112, 7
        %v3286 = vrot.slane %v3285, 2
        %v3287 = vrot.slane %v3113, 7
        %v3288 = vsel %vm2733, %v3286, %v3287
        %v3289 = vrot.slane %v3287, 2
        %v3290 = vrot.slane %v3114, 7
        %v3291 = vsel %vm2733, %v3289, %v3290
        %v3292 = vrot.slane %v3290, 2
        %v3293 = vrot.slane %v3115, 7
        %v3294 = vsel %vm2733, %v3292, %v3293
        %v3295 = vrot.slane %v3293, 2
        %v3296 = vrot.slane %v3116, 7
        %v3297 = vsel %vm2733, %v3295, %v3296
        %v3298 = vrot.slane %v3296, 2
        %v3299 = vrot.slane %v3117, 7
        %v3300 = vsel %vm2733, %v3298, %v3299
        %v3301 = vrot.slane %v3299, 2
        %v3302 = vrot.slane %v3118, 7
        %v3303 = vsel %vm2733, %v3301, %v3302
        %v3304 = vrot.slane %v3302, 2
        %v3305 = vrot.slane %v3119, 7
        %v3306 = vsel %vm2733, %v3304, %v3305
        %v3307 = vrot.slane %v3305, 2
        %v3308 = vrot.slane %v3120, 7
        %v3309 = vrot.slane %v3308, 2
        %v3310 = vrot.slane %v3121, 7
        %v3311 = vsel %vm2733, %v3309, %v3310
        %v3312 = vrot.slane %v3310, 2
        %v3313 = vrot.slane %v3122, 7
        %v3314 = vsel %vm2733, %v3312, %v3313
        %v3315 = vrot.slane %v3313, 2
        %v3316 = vrot.slane %v3123, 7
        %v3317 = vsel %vm2733, %v3315, %v3316
        %v3318 = vrot.slane %v3316, 2
        %v3319 = vrot.slane %v3124, 7
        %v3320 = vsel %vm2733, %v3318, %v3319
        %v3321 = vrot.slane %v3319, 2
        %v3322 = vrot.slane %v3125, 7
        %v3323 = vsel %vm2733, %v3321, %v3322
        %v3324 = vrot.slane %v3322, 2
        %v3325 = vrot.slane %v3126, 7
        %v3326 = vsel %vm2733, %v3324, %v3325
        %v3327 = vrot.slane %v3325, 2
        %v3328 = vrot.slane %v3127, 7
        %v3329 = vsel %vm2733, %v3327, %v3328
        %v3330 = vrot.slane %v3328, 2
        %v3331 = vrot.slane %v3128, 7
        %v3332 = vrot.slane %v3331, 2
        %v3333 = vrot.slane %v3129, 7
        %v3334 = vsel %vm2733, %v3332, %v3333
        %v3335 = vrot.slane %v3333, 2
        %v3336 = vrot.slane %v3130, 7
        %v3337 = vsel %vm2733, %v3335, %v3336
        %v3338 = vrot.slane %v3336, 2
        %v3339 = vrot.slane %v3131, 7
        %v3340 = vsel %vm2733, %v3338, %v3339
        %v3341 = vrot.slane %v3339, 2
        %v3342 = vrot.slane %v3132, 7
        %v3343 = vsel %vm2733, %v3341, %v3342
        %v3344 = vrot.slane %v3342, 2
        %v3345 = vrot.slane %v3133, 7
        %v3346 = vsel %vm2733, %v3344, %v3345
        %v3347 = vrot.slane %v3345, 2
        %v3348 = vrot.slane %v3134, 7
        %v3349 = vsel %vm2733, %v3347, %v3348
        %v3350 = vrot.slane %v3348, 2
        %v3351 = vrot.slane %v3135, 7
        %v3352 = vsel %vm2733, %v3350, %v3351
        %v3353 = vrot.slane %v3351, 2
        %v3354 = vrot.slane %v3136, 7
        %v3355 = vrot.slane %v3354, 2
        %v3356 = vrot.slane %v3137, 7
        %v3357 = vsel %vm2733, %v3355, %v3356
        %v3358 = vrot.slane %v3356, 2
        %v3359 = vrot.slane %v3138, 7
        %v3360 = vsel %vm2733, %v3358, %v3359
        %v3361 = vrot.slane %v3359, 2
        %v3362 = vrot.slane %v3139, 7
        %v3363 = vsel %vm2733, %v3361, %v3362
        %v3364 = vrot.slane %v3362, 2
        %v3365 = vrot.slane %v3140, 7
        %v3366 = vsel %vm2733, %v3364, %v3365
        %v3367 = vrot.slane %v3365, 2
        %v3368 = vrot.slane %v3141, 7
        %v3369 = vsel %vm2733, %v3367, %v3368
        %v3370 = vrot.slane %v3368, 2
        %v3371 = vrot.slane %v3142, 7
        %v3372 = vsel %vm2733, %v3370, %v3371
        %v3373 = vrot.slane %v3371, 2
        %v3374 = vrot.slane %v3143, 7
        %v3375 = vsel %vm2733, %v3373, %v3374
        %v3376 = vrot.slane %v3374, 2
        %v3377 = vrot.slane %v3144, 7
        %v3378 = vrot.slane %v3377, 2
        %v3379 = vrot.slane %v3145, 7
        %v3380 = vsel %vm2733, %v3378, %v3379
        %v3381 = vrot.slane %v3379, 2
        %v3382 = vrot.slane %v3146, 7
        %v3383 = vsel %vm2733, %v3381, %v3382
        %v3384 = vrot.slane %v3382, 2
        %v3385 = vrot.slane %v3147, 7
        %v3386 = vsel %vm2733, %v3384, %v3385
        %v3387 = vrot.slane %v3385, 2
        %v3388 = vrot.slane %v3148, 7
        %v3389 = vsel %vm2733, %v3387, %v3388
        %v3390 = vrot.slane %v3388, 2
        %v3391 = vrot.slane %v3149, 7
        %v3392 = vsel %vm2733, %v3390, %v3391
        %v3393 = vrot.slane %v3391, 2
        %v3394 = vrot.slane %v3150, 7
        %v3395 = vsel %vm2733, %v3393, %v3394
        %v3396 = vrot.slane %v3394, 2
        %v3397 = vrot.slane %v3151, 7
        %v3398 = vsel %vm2733, %v3396, %v3397
        %v3399 = vrot.slane %v3397, 2
        %v3472 = vmul.f32 %v2519, %v3216
        %v3473 = vmul.f32 %v2520, %v3219
        %v3474 = vmul.f32 %v2521, %v3222
        %v3475 = vmul.f32 %v2522, %v3225
        %v3476 = vmul.f32 %v2523, %v3228
        %v3477 = vmul.f32 %v2524, %v3231
        %v3478 = vmul.f32 %v2525, %v3234
        %v3479 = vmul.f32 %v2526, %v3237
        %v3480 = vmul.f32 %v2527, %v3238
        %v3481 = vmul.f32 %v2528, %v3239
        %v3482 = vmul.f32 %v2529, %v3242
        %v3483 = vmul.f32 %v2530, %v3245
        %v3484 = vmul.f32 %v2531, %v3248
        %v3485 = vmul.f32 %v2532, %v3251
        %v3486 = vmul.f32 %v2533, %v3254
        %v3487 = vmul.f32 %v2534, %v3257
        %v3488 = vmul.f32 %v2535, %v3260
        %v3489 = vmul.f32 %v2536, %v3261
        %v3490 = vmul.f32 %v2537, %v3262
        %v3491 = vmul.f32 %v2538, %v3265
        %v3492 = vmul.f32 %v2539, %v3268
        %v3493 = vmul.f32 %v2540, %v3271
        %v3494 = vmul.f32 %v2541, %v3274
        %v3495 = vmul.f32 %v2542, %v3277
        %v3496 = vmul.f32 %v2543, %v3280
        %v3497 = vmul.f32 %v2544, %v3283
        %v3498 = vmul.f32 %v2545, %v3284
        %v3499 = vmul.f32 %v2546, %v3285
        %v3500 = vmul.f32 %v2547, %v3288
        %v3501 = vmul.f32 %v2548, %v3291
        %v3502 = vmul.f32 %v2549, %v3294
        %v3503 = vmul.f32 %v2550, %v3297
        %v3504 = vmul.f32 %v2551, %v3300
        %v3505 = vmul.f32 %v2552, %v3303
        %v3506 = vmul.f32 %v2553, %v3306
        %v3507 = vmul.f32 %v2554, %v3307
        %v3508 = vmul.f32 %v2555, %v3308
        %v3509 = vmul.f32 %v2556, %v3311
        %v3510 = vmul.f32 %v2557, %v3314
        %v3511 = vmul.f32 %v2558, %v3317
        %v3512 = vmul.f32 %v2559, %v3320
        %v3513 = vmul.f32 %v2560, %v3323
        %v3514 = vmul.f32 %v2561, %v3326
        %v3515 = vmul.f32 %v2562, %v3329
        %v3516 = vmul.f32 %v2563, %v3330
        %v3517 = vmul.f32 %v2564, %v3331
        %v3518 = vmul.f32 %v2565, %v3334
        %v3519 = vmul.f32 %v2566, %v3337
        %v3520 = vmul.f32 %v2567, %v3340
        %v3521 = vmul.f32 %v2568, %v3343
        %v3522 = vmul.f32 %v2569, %v3346
        %v3523 = vmul.f32 %v2570, %v3349
        %v3524 = vmul.f32 %v2571, %v3352
        %v3525 = vmul.f32 %v2572, %v3353
        %v3526 = vmul.f32 %v2573, %v3354
        %v3527 = vmul.f32 %v2574, %v3357
        %v3528 = vmul.f32 %v2575, %v3360
        %v3529 = vmul.f32 %v2576, %v3363
        %v3530 = vmul.f32 %v2577, %v3366
        %v3531 = vmul.f32 %v2578, %v3369
        %v3532 = vmul.f32 %v2579, %v3372
        %v3533 = vmul.f32 %v2580, %v3375
        %v3534 = vmul.f32 %v2581, %v3376
        %v3535 = vmul.f32 %v2582, %v3377
        %v3536 = vmul.f32 %v2583, %v3380
        %v3537 = vmul.f32 %v2584, %v3383
        %v3538 = vmul.f32 %v2585, %v3386
        %v3539 = vmul.f32 %v2586, %v3389
        %v3540 = vmul.f32 %v2587, %v3392
        %v3541 = vmul.f32 %v2588, %v3395
        %v3542 = vmul.f32 %v2589, %v3398
        %v3543 = vmul.f32 %v2590, %v3399
        %v3544 = vmax.f32 %v2990, %v3472
        %v3545 = vmax.f32 %v2991, %v3473
        %v3546 = vmax.f32 %v2992, %v3474
        %v3547 = vmax.f32 %v2993, %v3475
        %v3548 = vmax.f32 %v2994, %v3476
        %v3549 = vmax.f32 %v2995, %v3477
        %v3550 = vmax.f32 %v2996, %v3478
        %v3551 = vmax.f32 %v2997, %v3479
        %v3552 = vmax.f32 %v2998, %v3480
        %v3553 = vmax.f32 %v2999, %v3481
        %v3554 = vmax.f32 %v3000, %v3482
        %v3555 = vmax.f32 %v3001, %v3483
        %v3556 = vmax.f32 %v3002, %v3484
        %v3557 = vmax.f32 %v3003, %v3485
        %v3558 = vmax.f32 %v3004, %v3486
        %v3559 = vmax.f32 %v3005, %v3487
        %v3560 = vmax.f32 %v3006, %v3488
        %v3561 = vmax.f32 %v3007, %v3489
        %v3562 = vmax.f32 %v3008, %v3490
        %v3563 = vmax.f32 %v3009, %v3491
        %v3564 = vmax.f32 %v3010, %v3492
        %v3565 = vmax.f32 %v3011, %v3493
        %v3566 = vmax.f32 %v3012, %v3494
        %v3567 = vmax.f32 %v3013, %v3495
        %v3568 = vmax.f32 %v3014, %v3496
        %v3569 = vmax.f32 %v3015, %v3497
        %v3570 = vmax.f32 %v3016, %v3498
        %v3571 = vmax.f32 %v3017, %v3499
        %v3572 = vmax.f32 %v3018, %v3500
        %v3573 = vmax.f32 %v3019, %v3501
        %v3574 = vmax.f32 %v3020, %v3502
        %v3575 = vmax.f32 %v3021, %v3503
        %v3576 = vmax.f32 %v3022, %v3504
        %v3577 = vmax.f32 %v3023, %v3505
        %v3578 = vmax.f32 %v3024, %v3506
        %v3579 = vmax.f32 %v3025, %v3507
        %v3580 = vmax.f32 %v3026, %v3508
        %v3581 = vmax.f32 %v3027, %v3509
        %v3582 = vmax.f32 %v3028, %v3510
        %v3583 = vmax.f32 %v3029, %v3511
        %v3584 = vmax.f32 %v3030, %v3512
        %v3585 = vmax.f32 %v3031, %v3513
        %v3586 = vmax.f32 %v3032, %v3514
        %v3587 = vmax.f32 %v3033, %v3515
        %v3588 = vmax.f32 %v3034, %v3516
        %v3589 = vmax.f32 %v3035, %v3517
        %v3590 = vmax.f32 %v3036, %v3518
        %v3591 = vmax.f32 %v3037, %v3519
        %v3592 = vmax.f32 %v3038, %v3520
        %v3593 = vmax.f32 %v3039, %v3521
        %v3594 = vmax.f32 %v3040, %v3522
        %v3595 = vmax.f32 %v3041, %v3523
        %v3596 = vmax.f32 %v3042, %v3524
        %v3597 = vmax.f32 %v3043, %v3525
        %v3598 = vmax.f32 %v3044, %v3526
        %v3599 = vmax.f32 %v3045, %v3527
        %v3600 = vmax.f32 %v3046, %v3528
        %v3601 = vmax.f32 %v3047, %v3529
        %v3602 = vmax.f32 %v3048, %v3530
        %v3603 = vmax.f32 %v3049, %v3531
        %v3604 = vmax.f32 %v3050, %v3532
        %v3605 = vmax.f32 %v3051, %v3533
        %v3606 = vmax.f32 %v3052, %v3534
        %v3607 = vmax.f32 %v3053, %v3535
        %v3608 = vmax.f32 %v3054, %v3536
        %v3609 = vmax.f32 %v3055, %v3537
        %v3610 = vmax.f32 %v3056, %v3538
        %v3611 = vmax.f32 %v3057, %v3539
        %v3612 = vmax.f32 %v3058, %v3540
        %v3613 = vmax.f32 %v3059, %v3541
        %v3614 = vmax.f32 %v3060, %v3542
        %v3615 = vmax.f32 %v3061, %v3543
        %v3616 = vlaneseq
        %v3617 = vshrl.u32 %v3616, 7
        %v3618 = vsub.s32 6, %v3617
        %v3619 = vrot.slane %v2427, %v3618
        %v3621 = vcombine.high %v3619, %v3619
        %v3623 = vunpack.c.l.s4 1983009808
        %v3624 = vunpack.c.0.s8 %v3623
        %v3625 = vlaneseq
        %v3626 = vshrl.u32 %v3625, 7
        %v3627 = vsub.s32 %v3624, %v3626
        %v3628 = vrot.slane %v3619, %v3627
        %v3630 = vunpack.c.l.s4 1983009808
        %v3631 = vunpack.c.0.s8 %v3630
        %v3632 = vlaneseq
        %v3633 = vshrl.u32 %v3632, 7
        %v3634 = vsub.s32 %v3631, %v3633
        %v3635 = vrot.slane %v3621, %v3634
        %v3636 = vcombine.high %v3628, %v3628
        %v3637 = vcombine.high %v3635, %v3635
        %v3642 = vadd.f32 %v1723, %v3628
        %v3643 = vadd.f32 %v1724, %v3636
        %v3644 = vadd.f32 %v1756, %v3635
        %v3645 = vadd.f32 %v1757, %v3637
        %v3646 = vadd.f32 %v1758, %v3628
        %v3647 = vadd.f32 %v1759, %v3636
        %v3648 = vadd.f32 %v1791, %v3635
        %v3649 = vadd.f32 %v1792, %v3637
        %v3650 = vadd.f32 %v1794, %v3628
        %v3651 = vadd.f32 %v1826, %v3636
        %v3652 = vadd.f32 %v1827, %v3635
        %v3653 = vadd.f32 %v1828, %v3637
        %v3654 = vadd.f32 %v1829, %v3628
        %v3655 = vadd.f32 %v1861, %v3636
        %v3656 = vadd.f32 %v1862, %v3635
        %v3657 = vadd.f32 %v1863, %v3637
        %v3658 = vadd.f32 %v1896, %v3628
        %v3659 = vadd.f32 %v1897, %v3636
        %v3660 = vadd.f32 %v1898, %v3635
        %v3661 = vadd.f32 %v1899, %v3637
        %v3662 = vadd.f32 %v1931, %v3628
        %v3663 = vadd.f32 %v1932, %v3636
        %v3664 = vadd.f32 %v1933, %v3635
        %v3665 = vadd.f32 %v1934, %v3637
        %v3666 = vadd.f32 %v1967, %v3628
        %v3667 = vadd.f32 %v1968, %v3636
        %v3668 = vadd.f32 %v1969, %v3635
        %v3669 = vadd.f32 %v2001, %v3637
        %v3670 = vadd.f32 %v2002, %v3628
        %v3671 = vadd.f32 %v2003, %v3636
        %v3672 = vadd.f32 %v2004, %v3635
        %v3673 = vadd.f32 %v2036, %v3637
        %v3674 = vadd.f32 %v2038, %v3628
        %v3675 = vadd.f32 %v2039, %v3636
        %v3676 = vadd.f32 %v2071, %v3635
        %v3677 = vadd.f32 %v2072, %v3637
        %v3678 = vadd.f32 %v2073, %v3628
        %v3679 = vadd.f32 %v2074, %v3636
        %v3680 = vadd.f32 %v2106, %v3635
        %v3681 = vadd.f32 %v2107, %v3637
        %v3682 = vadd.f32 %v2109, %v3628
        %v3683 = vadd.f32 %v2141, %v3636
        %v3684 = vadd.f32 %v2142, %v3635
        %v3685 = vadd.f32 %v2143, %v3637
        %v3686 = vadd.f32 %v2144, %v3628
        %v3687 = vadd.f32 %v2176, %v3636
        %v3688 = vadd.f32 %v2177, %v3635
        %v3689 = vadd.f32 %v2178, %v3637
        %v3690 = vadd.f32 %v2211, %v3628
        %v3691 = vadd.f32 %v2212, %v3636
        %v3692 = vadd.f32 %v2213, %v3635
        %v3693 = vadd.f32 %v2214, %v3637
        %v3694 = vadd.f32 %v2246, %v3628
        %v3695 = vadd.f32 %v2247, %v3636
        %v3696 = vadd.f32 %v2248, %v3635
        %v3697 = vadd.f32 %v2249, %v3637
        %v3698 = vadd.f32 %v2282, %v3628
        %v3699 = vadd.f32 %v2283, %v3636
        %v3700 = vadd.f32 %v2284, %v3635
        %v3701 = vadd.f32 %v2316, %v3637
        %v3702 = vadd.f32 %v2317, %v3628
        %v3703 = vadd.f32 %v2318, %v3636
        %v3704 = vadd.f32 %v2319, %v3635
        %v3705 = vadd.f32 %v2335, %v3637
        %v3770 = vrot.slane %v3642, 7
        %v3771 = vrot.slane %v3770, 2
        %v3772 = vrot.slane %v3643, 7
        %v3773 = vsel %vm2733, %v3771, %v3772
        %v3774 = vrot.slane %v3772, 2
        %v3775 = vrot.slane %v3644, 7
        %v3776 = vsel %vm2733, %v3774, %v3775
        %v3777 = vrot.slane %v3775, 2
        %v3778 = vrot.slane %v3645, 7
        %v3779 = vsel %vm2733, %v3777, %v3778
        %v3780 = vrot.slane %v3778, 2
        %v3781 = vrot.slane %v3646, 7
        %v3782 = vsel %vm2733, %v3780, %v3781
        %v3783 = vrot.slane %v3781, 2
        %v3784 = vrot.slane %v3647, 7
        %v3785 = vsel %vm2733, %v3783, %v3784
        %v3786 = vrot.slane %v3784, 2
        %v3787 = vrot.slane %v3648, 7
        %v3788 = vsel %vm2733, %v3786, %v3787
        %v3789 = vrot.slane %v3787, 2
        %v3790 = vrot.slane %v3649, 7
        %v3791 = vsel %vm2733, %v3789, %v3790
        %v3792 = vrot.slane %v3790, 2
        %v3793 = vrot.slane %v3650, 7
        %v3794 = vrot.slane %v3793, 2
        %v3795 = vrot.slane %v3651, 7
        %v3796 = vsel %vm2733, %v3794, %v3795
        %v3797 = vrot.slane %v3795, 2
        %v3798 = vrot.slane %v3652, 7
        %v3799 = vsel %vm2733, %v3797, %v3798
        %v3800 = vrot.slane %v3798, 2
        %v3801 = vrot.slane %v3653, 7
        %v3802 = vsel %vm2733, %v3800, %v3801
        %v3803 = vrot.slane %v3801, 2
        %v3804 = vrot.slane %v3654, 7
        %v3805 = vsel %vm2733, %v3803, %v3804
        %v3806 = vrot.slane %v3804, 2
        %v3807 = vrot.slane %v3655, 7
        %v3808 = vsel %vm2733, %v3806, %v3807
        %v3809 = vrot.slane %v3807, 2
        %v3810 = vrot.slane %v3656, 7
        %v3811 = vsel %vm2733, %v3809, %v3810
        %v3812 = vrot.slane %v3810, 2
        %v3813 = vrot.slane %v3657, 7
        %v3814 = vsel %vm2733, %v3812, %v3813
        %v3815 = vrot.slane %v3813, 2
        %v3816 = vrot.slane %v3658, 7
        %v3817 = vrot.slane %v3816, 2
        %v3818 = vrot.slane %v3659, 7
        %v3819 = vsel %vm2733, %v3817, %v3818
        %v3820 = vrot.slane %v3818, 2
        %v3821 = vrot.slane %v3660, 7
        %v3822 = vsel %vm2733, %v3820, %v3821
        %v3823 = vrot.slane %v3821, 2
        %v3824 = vrot.slane %v3661, 7
        %v3825 = vsel %vm2733, %v3823, %v3824
        %v3826 = vrot.slane %v3824, 2
        %v3827 = vrot.slane %v3662, 7
        %v3828 = vsel %vm2733, %v3826, %v3827
        %v3829 = vrot.slane %v3827, 2
        %v3830 = vrot.slane %v3663, 7
        %v3831 = vsel %vm2733, %v3829, %v3830
        %v3832 = vrot.slane %v3830, 2
        %v3833 = vrot.slane %v3664, 7
        %v3834 = vsel %vm2733, %v3832, %v3833
        %v3835 = vrot.slane %v3833, 2
        %v3836 = vrot.slane %v3665, 7
        %v3837 = vsel %vm2733, %v3835, %v3836
        %v3838 = vrot.slane %v3836, 2
        %v3839 = vrot.slane %v3666, 7
        %v3840 = vrot.slane %v3839, 2
        %v3841 = vrot.slane %v3667, 7
        %v3842 = vsel %vm2733, %v3840, %v3841
        %v3843 = vrot.slane %v3841, 2
        %v3844 = vrot.slane %v3668, 7
        %v3845 = vsel %vm2733, %v3843, %v3844
        %v3846 = vrot.slane %v3844, 2
        %v3847 = vrot.slane %v3669, 7
        %v3848 = vsel %vm2733, %v3846, %v3847
        %v3849 = vrot.slane %v3847, 2
        %v3850 = vrot.slane %v3670, 7
        %v3851 = vsel %vm2733, %v3849, %v3850
        %v3852 = vrot.slane %v3850, 2
        %v3853 = vrot.slane %v3671, 7
        %v3854 = vsel %vm2733, %v3852, %v3853
        %v3855 = vrot.slane %v3853, 2
        %v3856 = vrot.slane %v3672, 7
        %v3857 = vsel %vm2733, %v3855, %v3856
        %v3858 = vrot.slane %v3856, 2
        %v3859 = vrot.slane %v3673, 7
        %v3860 = vsel %vm2733, %v3858, %v3859
        %v3861 = vrot.slane %v3859, 2
        %v3862 = vrot.slane %v3674, 7
        %v3863 = vrot.slane %v3862, 2
        %v3864 = vrot.slane %v3675, 7
        %v3865 = vsel %vm2733, %v3863, %v3864
        %v3866 = vrot.slane %v3864, 2
        %v3867 = vrot.slane %v3676, 7
        %v3868 = vsel %vm2733, %v3866, %v3867
        %v3869 = vrot.slane %v3867, 2
        %v3870 = vrot.slane %v3677, 7
        %v3871 = vsel %vm2733, %v3869, %v3870
        %v3872 = vrot.slane %v3870, 2
        %v3873 = vrot.slane %v3678, 7
        %v3874 = vsel %vm2733, %v3872, %v3873
        %v3875 = vrot.slane %v3873, 2
        %v3876 = vrot.slane %v3679, 7
        %v3877 = vsel %vm2733, %v3875, %v3876
        %v3878 = vrot.slane %v3876, 2
        %v3879 = vrot.slane %v3680, 7
        %v3880 = vsel %vm2733, %v3878, %v3879
        %v3881 = vrot.slane %v3879, 2
        %v3882 = vrot.slane %v3681, 7
        %v3883 = vsel %vm2733, %v3881, %v3882
        %v3884 = vrot.slane %v3882, 2
        %v3885 = vrot.slane %v3682, 7
        %v3886 = vrot.slane %v3885, 2
        %v3887 = vrot.slane %v3683, 7
        %v3888 = vsel %vm2733, %v3886, %v3887
        %v3889 = vrot.slane %v3887, 2
        %v3890 = vrot.slane %v3684, 7
        %v3891 = vsel %vm2733, %v3889, %v3890
        %v3892 = vrot.slane %v3890, 2
        %v3893 = vrot.slane %v3685, 7
        %v3894 = vsel %vm2733, %v3892, %v3893
        %v3895 = vrot.slane %v3893, 2
        %v3896 = vrot.slane %v3686, 7
        %v3897 = vsel %vm2733, %v3895, %v3896
        %v3898 = vrot.slane %v3896, 2
        %v3899 = vrot.slane %v3687, 7
        %v3900 = vsel %vm2733, %v3898, %v3899
        %v3901 = vrot.slane %v3899, 2
        %v3902 = vrot.slane %v3688, 7
        %v3903 = vsel %vm2733, %v3901, %v3902
        %v3904 = vrot.slane %v3902, 2
        %v3905 = vrot.slane %v3689, 7
        %v3906 = vsel %vm2733, %v3904, %v3905
        %v3907 = vrot.slane %v3905, 2
        %v3908 = vrot.slane %v3690, 7
        %v3909 = vrot.slane %v3908, 2
        %v3910 = vrot.slane %v3691, 7
        %v3911 = vsel %vm2733, %v3909, %v3910
        %v3912 = vrot.slane %v3910, 2
        %v3913 = vrot.slane %v3692, 7
        %v3914 = vsel %vm2733, %v3912, %v3913
        %v3915 = vrot.slane %v3913, 2
        %v3916 = vrot.slane %v3693, 7
        %v3917 = vsel %vm2733, %v3915, %v3916
        %v3918 = vrot.slane %v3916, 2
        %v3919 = vrot.slane %v3694, 7
        %v3920 = vsel %vm2733, %v3918, %v3919
        %v3921 = vrot.slane %v3919, 2
        %v3922 = vrot.slane %v3695, 7
        %v3923 = vsel %vm2733, %v3921, %v3922
        %v3924 = vrot.slane %v3922, 2
        %v3925 = vrot.slane %v3696, 7
        %v3926 = vsel %vm2733, %v3924, %v3925
        %v3927 = vrot.slane %v3925, 2
        %v3928 = vrot.slane %v3697, 7
        %v3929 = vsel %vm2733, %v3927, %v3928
        %v3930 = vrot.slane %v3928, 2
        %v3931 = vrot.slane %v3698, 7
        %v3932 = vrot.slane %v3931, 2
        %v3933 = vrot.slane %v3699, 7
        %v3934 = vsel %vm2733, %v3932, %v3933
        %v3935 = vrot.slane %v3933, 2
        %v3936 = vrot.slane %v3700, 7
        %v3937 = vsel %vm2733, %v3935, %v3936
        %v3938 = vrot.slane %v3936, 2
        %v3939 = vrot.slane %v3701, 7
        %v3940 = vsel %vm2733, %v3938, %v3939
        %v3941 = vrot.slane %v3939, 2
        %v3942 = vrot.slane %v3702, 7
        %v3943 = vsel %vm2733, %v3941, %v3942
        %v3944 = vrot.slane %v3942, 2
        %v3945 = vrot.slane %v3703, 7
        %v3946 = vsel %vm2733, %v3944, %v3945
        %v3947 = vrot.slane %v3945, 2
        %v3948 = vrot.slane %v3704, 7
        %v3949 = vsel %vm2733, %v3947, %v3948
        %v3950 = vrot.slane %v3948, 2
        %v3951 = vrot.slane %v3705, 7
        %v3952 = vsel %vm2733, %v3950, %v3951
        %v3953 = vrot.slane %v3951, 2
        %v4026 = vmul.f32 %v2519, %v3770
        %v4027 = vmul.f32 %v2520, %v3773
        %v4028 = vmul.f32 %v2521, %v3776
        %v4029 = vmul.f32 %v2522, %v3779
        %v4030 = vmul.f32 %v2523, %v3782
        %v4031 = vmul.f32 %v2524, %v3785
        %v4032 = vmul.f32 %v2525, %v3788
        %v4033 = vmul.f32 %v2526, %v3791
        %v4034 = vmul.f32 %v2527, %v3792
        %v4035 = vmul.f32 %v2528, %v3793
        %v4036 = vmul.f32 %v2529, %v3796
        %v4037 = vmul.f32 %v2530, %v3799
        %v4038 = vmul.f32 %v2531, %v3802
        %v4039 = vmul.f32 %v2532, %v3805
        %v4040 = vmul.f32 %v2533, %v3808
        %v4041 = vmul.f32 %v2534, %v3811
        %v4042 = vmul.f32 %v2535, %v3814
        %v4043 = vmul.f32 %v2536, %v3815
        %v4044 = vmul.f32 %v2537, %v3816
        %v4045 = vmul.f32 %v2538, %v3819
        %v4046 = vmul.f32 %v2539, %v3822
        %v4047 = vmul.f32 %v2540, %v3825
        %v4048 = vmul.f32 %v2541, %v3828
        %v4049 = vmul.f32 %v2542, %v3831
        %v4050 = vmul.f32 %v2543, %v3834
        %v4051 = vmul.f32 %v2544, %v3837
        %v4052 = vmul.f32 %v2545, %v3838
        %v4053 = vmul.f32 %v2546, %v3839
        %v4054 = vmul.f32 %v2547, %v3842
        %v4055 = vmul.f32 %v2548, %v3845
        %v4056 = vmul.f32 %v2549, %v3848
        %v4057 = vmul.f32 %v2550, %v3851
        %v4058 = vmul.f32 %v2551, %v3854
        %v4059 = vmul.f32 %v2552, %v3857
        %v4060 = vmul.f32 %v2553, %v3860
        %v4061 = vmul.f32 %v2554, %v3861
        %v4062 = vmul.f32 %v2555, %v3862
        %v4063 = vmul.f32 %v2556, %v3865
        %v4064 = vmul.f32 %v2557, %v3868
        %v4065 = vmul.f32 %v2558, %v3871
        %v4066 = vmul.f32 %v2559, %v3874
        %v4067 = vmul.f32 %v2560, %v3877
        %v4068 = vmul.f32 %v2561, %v3880
        %v4069 = vmul.f32 %v2562, %v3883
        %v4070 = vmul.f32 %v2563, %v3884
        %v4071 = vmul.f32 %v2564, %v3885
        %v4072 = vmul.f32 %v2565, %v3888
        %v4073 = vmul.f32 %v2566, %v3891
        %v4074 = vmul.f32 %v2567, %v3894
        %v4075 = vmul.f32 %v2568, %v3897
        %v4076 = vmul.f32 %v2569, %v3900
        %v4077 = vmul.f32 %v2570, %v3903
        %v4078 = vmul.f32 %v2571, %v3906
        %v4079 = vmul.f32 %v2572, %v3907
        %v4080 = vmul.f32 %v2573, %v3908
        %v4081 = vmul.f32 %v2574, %v3911
        %v4082 = vmul.f32 %v2575, %v3914
        %v4083 = vmul.f32 %v2576, %v3917
        %v4084 = vmul.f32 %v2577, %v3920
        %v4085 = vmul.f32 %v2578, %v3923
        %v4086 = vmul.f32 %v2579, %v3926
        %v4087 = vmul.f32 %v2580, %v3929
        %v4088 = vmul.f32 %v2581, %v3930
        %v4089 = vmul.f32 %v2582, %v3931
        %v4090 = vmul.f32 %v2583, %v3934
        %v4091 = vmul.f32 %v2584, %v3937
        %v4092 = vmul.f32 %v2585, %v3940
        %v4093 = vmul.f32 %v2586, %v3943
        %v4094 = vmul.f32 %v2587, %v3946
        %v4095 = vmul.f32 %v2588, %v3949
        %v4096 = vmul.f32 %v2589, %v3952
        %v4097 = vmul.f32 %v2590, %v3953
        %v4098 = vmax.f32 %v3544, %v4026
        %v4099 = vmax.f32 %v3545, %v4027
        %v4100 = vmax.f32 %v3546, %v4028
        %v4101 = vmax.f32 %v3547, %v4029
        %v4102 = vmax.f32 %v3548, %v4030
        %v4103 = vmax.f32 %v3549, %v4031
        %v4104 = vmax.f32 %v3550, %v4032
        %v4105 = vmax.f32 %v3551, %v4033
        %v4106 = vmax.f32 %v3552, %v4034
        %v4107 = vmax.f32 %v3553, %v4035
        %v4108 = vmax.f32 %v3554, %v4036
        %v4109 = vmax.f32 %v3555, %v4037
        %v4110 = vmax.f32 %v3556, %v4038
        %v4111 = vmax.f32 %v3557, %v4039
        %v4112 = vmax.f32 %v3558, %v4040
        %v4113 = vmax.f32 %v3559, %v4041
        %v4114 = vmax.f32 %v3560, %v4042
        %v4115 = vmax.f32 %v3561, %v4043
        %v4116 = vmax.f32 %v3562, %v4044
        %v4117 = vmax.f32 %v3563, %v4045
        %v4118 = vmax.f32 %v3564, %v4046
        %v4119 = vmax.f32 %v3565, %v4047
        %v4120 = vmax.f32 %v3566, %v4048
        %v4121 = vmax.f32 %v3567, %v4049
        %v4122 = vmax.f32 %v3568, %v4050
        %v4123 = vmax.f32 %v3569, %v4051
        %v4124 = vmax.f32 %v3570, %v4052
        %v4125 = vmax.f32 %v3571, %v4053
        %v4126 = vmax.f32 %v3572, %v4054
        %v4127 = vmax.f32 %v3573, %v4055
        %v4128 = vmax.f32 %v3574, %v4056
        %v4129 = vmax.f32 %v3575, %v4057
        %v4130 = vmax.f32 %v3576, %v4058
        %v4131 = vmax.f32 %v3577, %v4059
        %v4132 = vmax.f32 %v3578, %v4060
        %v4133 = vmax.f32 %v3579, %v4061
        %v4134 = vmax.f32 %v3580, %v4062
        %v4135 = vmax.f32 %v3581, %v4063
        %v4136 = vmax.f32 %v3582, %v4064
        %v4137 = vmax.f32 %v3583, %v4065
        %v4138 = vmax.f32 %v3584, %v4066
        %v4139 = vmax.f32 %v3585, %v4067
        %v4140 = vmax.f32 %v3586, %v4068
        %v4141 = vmax.f32 %v3587, %v4069
        %v4142 = vmax.f32 %v3588, %v4070
        %v4143 = vmax.f32 %v3589, %v4071
        %v4144 = vmax.f32 %v3590, %v4072
        %v4145 = vmax.f32 %v3591, %v4073
        %v4146 = vmax.f32 %v3592, %v4074
        %v4147 = vmax.f32 %v3593, %v4075
        %v4148 = vmax.f32 %v3594, %v4076
        %v4149 = vmax.f32 %v3595, %v4077
        %v4150 = vmax.f32 %v3596, %v4078
        %v4151 = vmax.f32 %v3597, %v4079
        %v4152 = vmax.f32 %v3598, %v4080
        %v4153 = vmax.f32 %v3599, %v4081
        %v4154 = vmax.f32 %v3600, %v4082
        %v4155 = vmax.f32 %v3601, %v4083
        %v4156 = vmax.f32 %v3602, %v4084
        %v4157 = vmax.f32 %v3603, %v4085
        %v4158 = vmax.f32 %v3604, %v4086
        %v4159 = vmax.f32 %v3605, %v4087
        %v4160 = vmax.f32 %v3606, %v4088
        %v4161 = vmax.f32 %v3607, %v4089
        %v4162 = vmax.f32 %v3608, %v4090
        %v4163 = vmax.f32 %v3609, %v4091
        %v4164 = vmax.f32 %v3610, %v4092
        %v4165 = vmax.f32 %v3611, %v4093
        %v4166 = vmax.f32 %v3612, %v4094
        %v4167 = vmax.f32 %v3613, %v4095
        %v4168 = vmax.f32 %v3614, %v4096
        %v4169 = vmax.f32 %v3615, %v4097
        %v4170 = vlaneseq
        %v4171 = vshrl.u32 %v4170, 7
        %v4172 = vsub.s32 1, %v4171
        %v4173 = vrot.slane %v2427, %v4172
        %v4175 = vcombine.high %v4173, %v4173
        %v4177 = vunpack.c.l.s4 1983009808
        %v4178 = vunpack.c.0.s8 %v4177
        %v4179 = vlaneseq
        %v4180 = vshrl.u32 %v4179, 7
        %v4181 = vsub.s32 %v4178, %v4180
        %v4182 = vrot.slane %v4173, %v4181
        %v4184 = vunpack.c.l.s4 1983009808
        %v4185 = vunpack.c.0.s8 %v4184
        %v4186 = vlaneseq
        %v4187 = vshrl.u32 %v4186, 7
        %v4188 = vsub.s32 %v4185, %v4187
        %v4189 = vrot.slane %v4175, %v4188
        %v4190 = vcombine.high %v4182, %v4182
        %v4191 = vcombine.high %v4189, %v4189
        %v4192 = vrot.slane %v4182, 7
        %v4193 = vrot.slane %v4192, 2
        %v4194 = vrot.slane %v4190, 7
        %v4195 = vsel %vm2733, %v4193, %v4194
        %v4196 = vrot.slane %v4194, 2
        %v4197 = vrot.slane %v4189, 7
        %v4198 = vsel %vm2733, %v4196, %v4197
        %v4199 = vrot.slane %v4197, 2
        %v4200 = vrot.slane %v4191, 7
        %v4201 = vsel %vm2733, %v4199, %v4200
        %v4202 = vrot.slane %v4200, 2
        %v4203 = vsel %vm2733, %v4202, %v4192
        %v4210 = vadd.f32 %v1581, %v4192
        %v4211 = vadd.f32 %v1582, %v4195
        %v4212 = vadd.f32 %v1583, %v4198
        %v4213 = vadd.f32 %v1584, %v4201
        %v4214 = vadd.f32 %v1616, %v4203
        %v4215 = vadd.f32 %v1617, %v4195
        %v4216 = vadd.f32 %v1618, %v4198
        %v4217 = vadd.f32 %v1619, %v4201
        %v4218 = vadd.f32 %v1651, %v4202
        %v4219 = vadd.f32 %v1652, %v4192
        %v4220 = vadd.f32 %v1653, %v4195
        %v4221 = vadd.f32 %v1654, %v4198
        %v4222 = vadd.f32 %v1686, %v4201
        %v4223 = vadd.f32 %v1687, %v4203
        %v4224 = vadd.f32 %v1688, %v4195
        %v4225 = vadd.f32 %v1689, %v4198
        %v4226 = vadd.f32 %v1721, %v4201
        %v4227 = vadd.f32 %v1722, %v4202
        %v4228 = vadd.f32 %v1723, %v4192
        %v4229 = vadd.f32 %v1724, %v4195
        %v4230 = vadd.f32 %v1756, %v4198
        %v4231 = vadd.f32 %v1757, %v4201
        %v4232 = vadd.f32 %v1758, %v4203
        %v4233 = vadd.f32 %v1759, %v4195
        %v4234 = vadd.f32 %v1791, %v4198
        %v4235 = vadd.f32 %v1792, %v4201
        %v4236 = vadd.f32 %v1793, %v4202
        %v4237 = vadd.f32 %v1794, %v4192
        %v4238 = vadd.f32 %v1826, %v4195
        %v4239 = vadd.f32 %v1827, %v4198
        %v4240 = vadd.f32 %v1828, %v4201
        %v4241 = vadd.f32 %v1829, %v4203
        %v4242 = vadd.f32 %v1861, %v4195
        %v4243 = vadd.f32 %v1862, %v4198
        %v4244 = vadd.f32 %v1863, %v4201
        %v4245 = vadd.f32 %v1864, %v4202
        %v4246 = vadd.f32 %v1896, %v4192
        %v4247 = vadd.f32 %v1897, %v4195
        %v4248 = vadd.f32 %v1898, %v4198
        %v4249 = vadd.f32 %v1899, %v4201
        %v4250 = vadd.f32 %v1931, %v4203
        %v4251 = vadd.f32 %v1932, %v4195
        %v4252 = vadd.f32 %v1933, %v4198
        %v4253 = vadd.f32 %v1934, %v4201
        %v4254 = vadd.f32 %v1966, %v4202
        %v4255 = vadd.f32 %v1967, %v4192
        %v4256 = vadd.f32 %v1968, %v4195
        %v4257 = vadd.f32 %v1969, %v4198
        %v4258 = vadd.f32 %v2001, %v4201
        %v4259 = vadd.f32 %v2002, %v4203
        %v4260 = vadd.f32 %v2003, %v4195
        %v4261 = vadd.f32 %v2004, %v4198
        %v4262 = vadd.f32 %v2036, %v4201
        %v4263 = vadd.f32 %v2037, %v4202
        %v4264 = vadd.f32 %v2038, %v4192
        %v4265 = vadd.f32 %v2039, %v4195
        %v4266 = vadd.f32 %v2071, %v4198
        %v4267 = vadd.f32 %v2072, %v4201
        %v4268 = vadd.f32 %v2073, %v4203
        %v4269 = vadd.f32 %v2074, %v4195
        %v4270 = vadd.f32 %v2106, %v4198
        %v4271 = vadd.f32 %v2107, %v4201
        %v4272 = vadd.f32 %v2108, %v4202
        %v4273 = vadd.f32 %v2109, %v4192
        %v4274 = vadd.f32 %v2141, %v4195
        %v4275 = vadd.f32 %v2142, %v4198
        %v4276 = vadd.f32 %v2143, %v4201
        %v4277 = vadd.f32 %v2144, %v4203
        %v4278 = vadd.f32 %v2176, %v4195
        %v4279 = vadd.f32 %v2177, %v4198
        %v4280 = vadd.f32 %v2178, %v4201
        %v4281 = vadd.f32 %v2179, %v4202
        %v4282 = vmul.f32 %v2519, %v4210
        %v4283 = vmul.f32 %v2520, %v4211
        %v4284 = vmul.f32 %v2521, %v4212
        %v4285 = vmul.f32 %v2522, %v4213
        %v4286 = vmul.f32 %v2523, %v4214
        %v4287 = vmul.f32 %v2524, %v4215
        %v4288 = vmul.f32 %v2525, %v4216
        %v4289 = vmul.f32 %v2526, %v4217
        %v4290 = vmul.f32 %v2527, %v4218
        %v4291 = vmul.f32 %v2528, %v4219
        %v4292 = vmul.f32 %v2529, %v4220
        %v4293 = vmul.f32 %v2530, %v4221
        %v4294 = vmul.f32 %v2531, %v4222
        %v4295 = vmul.f32 %v2532, %v4223
        %v4296 = vmul.f32 %v2533, %v4224
        %v4297 = vmul.f32 %v2534, %v4225
        %v4298 = vmul.f32 %v2535, %v4226
        %v4299 = vmul.f32 %v2536, %v4227
        %v4300 = vmul.f32 %v2537, %v4228
        %v4301 = vmul.f32 %v2538, %v4229
        %v4302 = vmul.f32 %v2539, %v4230
        %v4303 = vmul.f32 %v2540, %v4231
        %v4304 = vmul.f32 %v2541, %v4232
        %v4305 = vmul.f32 %v2542, %v4233
        %v4306 = vmul.f32 %v2543, %v4234
        %v4307 = vmul.f32 %v2544, %v4235
        %v4308 = vmul.f32 %v2545, %v4236
        %v4309 = vmul.f32 %v2546, %v4237
        %v4310 = vmul.f32 %v2547, %v4238
        %v4311 = vmul.f32 %v2548, %v4239
        %v4312 = vmul.f32 %v2549, %v4240
        %v4313 = vmul.f32 %v2550, %v4241
        %v4314 = vmul.f32 %v2551, %v4242
        %v4315 = vmul.f32 %v2552, %v4243
        %v4316 = vmul.f32 %v2553, %v4244
        %v4317 = vmul.f32 %v2554, %v4245
        %v4318 = vmul.f32 %v2555, %v4246
        %v4319 = vmul.f32 %v2556, %v4247
        %v4320 = vmul.f32 %v2557, %v4248
        %v4321 = vmul.f32 %v2558, %v4249
        %v4322 = vmul.f32 %v2559, %v4250
        %v4323 = vmul.f32 %v2560, %v4251
        %v4324 = vmul.f32 %v2561, %v4252
        %v4325 = vmul.f32 %v2562, %v4253
        %v4326 = vmul.f32 %v2563, %v4254
        %v4327 = vmul.f32 %v2564, %v4255
        %v4328 = vmul.f32 %v2565, %v4256
        %v4329 = vmul.f32 %v2566, %v4257
        %v4330 = vmul.f32 %v2567, %v4258
        %v4331 = vmul.f32 %v2568, %v4259
        %v4332 = vmul.f32 %v2569, %v4260
        %v4333 = vmul.f32 %v2570, %v4261
        %v4334 = vmul.f32 %v2571, %v4262
        %v4335 = vmul.f32 %v2572, %v4263
        %v4336 = vmul.f32 %v2573, %v4264
        %v4337 = vmul.f32 %v2574, %v4265
        %v4338 = vmul.f32 %v2575, %v4266
        %v4339 = vmul.f32 %v2576, %v4267
        %v4340 = vmul.f32 %v2577, %v4268
        %v4341 = vmul.f32 %v2578, %v4269
        %v4342 = vmul.f32 %v2579, %v4270
        %v4343 = vmul.f32 %v2580, %v4271
        %v4344 = vmul.f32 %v2581, %v4272
        %v4345 = vmul.f32 %v2582, %v4273
        %v4346 = vmul.f32 %v2583, %v4274
        %v4347 = vmul.f32 %v2584, %v4275
        %v4348 = vmul.f32 %v2585, %v4276
        %v4349 = vmul.f32 %v2586, %v4277
        %v4350 = vmul.f32 %v2587, %v4278
        %v4351 = vmul.f32 %v2588, %v4279
        %v4352 = vmul.f32 %v2589, %v4280
        %v4353 = vmul.f32 %v2590, %v4281
        %v4354 = vmax.f32 %v4098, %v4282
        %v4355 = vmax.f32 %v4099, %v4283
        %v4356 = vmax.f32 %v4100, %v4284
        %v4357 = vmax.f32 %v4101, %v4285
        %v4358 = vmax.f32 %v4102, %v4286
        %v4359 = vmax.f32 %v4103, %v4287
        %v4360 = vmax.f32 %v4104, %v4288
        %v4361 = vmax.f32 %v4105, %v4289
        %v4362 = vmax.f32 %v4106, %v4290
        %v4363 = vmax.f32 %v4107, %v4291
        %v4364 = vmax.f32 %v4108, %v4292
        %v4365 = vmax.f32 %v4109, %v4293
        %v4366 = vmax.f32 %v4110, %v4294
        %v4367 = vmax.f32 %v4111, %v4295
        %v4368 = vmax.f32 %v4112, %v4296
        %v4369 = vmax.f32 %v4113, %v4297
        %v4370 = vmax.f32 %v4114, %v4298
        %v4371 = vmax.f32 %v4115, %v4299
        %v4372 = vmax.f32 %v4116, %v4300
        %v4373 = vmax.f32 %v4117, %v4301
        %v4374 = vmax.f32 %v4118, %v4302
        %v4375 = vmax.f32 %v4119, %v4303
        %v4376 = vmax.f32 %v4120, %v4304
        %v4377 = vmax.f32 %v4121, %v4305
        %v4378 = vmax.f32 %v4122, %v4306
        %v4379 = vmax.f32 %v4123, %v4307
        %v4380 = vmax.f32 %v4124, %v4308
        %v4381 = vmax.f32 %v4125, %v4309
        %v4382 = vmax.f32 %v4126, %v4310
        %v4383 = vmax.f32 %v4127, %v4311
        %v4384 = vmax.f32 %v4128, %v4312
        %v4385 = vmax.f32 %v4129, %v4313
        %v4386 = vmax.f32 %v4130, %v4314
        %v4387 = vmax.f32 %v4131, %v4315
        %v4388 = vmax.f32 %v4132, %v4316
        %v4389 = vmax.f32 %v4133, %v4317
        %v4390 = vmax.f32 %v4134, %v4318
        %v4391 = vmax.f32 %v4135, %v4319
        %v4392 = vmax.f32 %v4136, %v4320
        %v4393 = vmax.f32 %v4137, %v4321
        %v4394 = vmax.f32 %v4138, %v4322
        %v4395 = vmax.f32 %v4139, %v4323
        %v4396 = vmax.f32 %v4140, %v4324
        %v4397 = vmax.f32 %v4141, %v4325
        %v4398 = vmax.f32 %v4142, %v4326
        %v4399 = vmax.f32 %v4143, %v4327
        %v4400 = vmax.f32 %v4144, %v4328
        %v4401 = vmax.f32 %v4145, %v4329
        %v4402 = vmax.f32 %v4146, %v4330
        %v4403 = vmax.f32 %v4147, %v4331
        %v4404 = vmax.f32 %v4148, %v4332
        %v4405 = vmax.f32 %v4149, %v4333
        %v4406 = vmax.f32 %v4150, %v4334
        %v4407 = vmax.f32 %v4151, %v4335
        %v4408 = vmax.f32 %v4152, %v4336
        %v4409 = vmax.f32 %v4153, %v4337
        %v4410 = vmax.f32 %v4154, %v4338
        %v4411 = vmax.f32 %v4155, %v4339
        %v4412 = vmax.f32 %v4156, %v4340
        %v4413 = vmax.f32 %v4157, %v4341
        %v4414 = vmax.f32 %v4158, %v4342
        %v4415 = vmax.f32 %v4159, %v4343
        %v4416 = vmax.f32 %v4160, %v4344
        %v4417 = vmax.f32 %v4161, %v4345
        %v4418 = vmax.f32 %v4162, %v4346
        %v4419 = vmax.f32 %v4163, %v4347
        %v4420 = vmax.f32 %v4164, %v4348
        %v4421 = vmax.f32 %v4165, %v4349
        %v4422 = vmax.f32 %v4166, %v4350
        %v4423 = vmax.f32 %v4167, %v4351
        %v4424 = vmax.f32 %v4168, %v4352
        %v4425 = vmax.f32 %v4169, %v4353
        %v4426 = vlaneseq
        %v4427 = vshrl.u32 %v4426, 7
        %v4428 = vsub.s32 4, %v4427
        %v4429 = vrot.slane %v2427, %v4428
        %v4431 = vcombine.high %v4429, %v4429
        %v4433 = vunpack.c.l.s4 1983009808
        %v4434 = vunpack.c.0.s8 %v4433
        %v4435 = vlaneseq
        %v4436 = vshrl.u32 %v4435, 7
        %v4437 = vsub.s32 %v4434, %v4436
        %v4438 = vrot.slane %v4429, %v4437
        %v4440 = vunpack.c.l.s4 1983009808
        %v4441 = vunpack.c.0.s8 %v4440
        %v4442 = vlaneseq
        %v4443 = vshrl.u32 %v4442, 7
        %v4444 = vsub.s32 %v4441, %v4443
        %v4445 = vrot.slane %v4431, %v4444
        %v4446 = vcombine.high %v4438, %v4438
        %v4447 = vcombine.high %v4445, %v4445
        %v4448 = vrot.slane %v4438, 7
        %v4449 = vrot.slane %v4448, 2
        %v4450 = vrot.slane %v4446, 7
        %v4451 = vsel %vm2733, %v4449, %v4450
        %v4452 = vrot.slane %v4450, 2
        %v4453 = vrot.slane %v4445, 7
        %v4454 = vsel %vm2733, %v4452, %v4453
        %v4455 = vrot.slane %v4453, 2
        %v4456 = vrot.slane %v4447, 7
        %v4457 = vsel %vm2733, %v4455, %v4456
        %v4458 = vrot.slane %v4456, 2
        %v4459 = vsel %vm2733, %v4458, %v4448
        %v4466 = vadd.f32 %v1652, %v4448
        %v4467 = vadd.f32 %v1653, %v4451
        %v4468 = vadd.f32 %v1654, %v4454
        %v4469 = vadd.f32 %v1686, %v4457
        %v4470 = vadd.f32 %v1687, %v4459
        %v4471 = vadd.f32 %v1688, %v4451
        %v4472 = vadd.f32 %v1689, %v4454
        %v4473 = vadd.f32 %v1721, %v4457
        %v4474 = vadd.f32 %v1722, %v4458
        %v4475 = vadd.f32 %v1723, %v4448
        %v4476 = vadd.f32 %v1724, %v4451
        %v4477 = vadd.f32 %v1756, %v4454
        %v4478 = vadd.f32 %v1757, %v4457
        %v4479 = vadd.f32 %v1758, %v4459
        %v4480 = vadd.f32 %v1759, %v4451
        %v4481 = vadd.f32 %v1791, %v4454
        %v4482 = vadd.f32 %v1792, %v4457
        %v4483 = vadd.f32 %v1793, %v4458
        %v4484 = vadd.f32 %v1794, %v4448
        %v4485 = vadd.f32 %v1826, %v4451
        %v4486 = vadd.f32 %v1827, %v4454
        %v4487 = vadd.f32 %v1828, %v4457
        %v4488 = vadd.f32 %v1829, %v4459
        %v4489 = vadd.f32 %v1861, %v4451
        %v4490 = vadd.f32 %v1862, %v4454
        %v4491 = vadd.f32 %v1863, %v4457
        %v4492 = vadd.f32 %v1864, %v4458
        %v4493 = vadd.f32 %v1896, %v4448
        %v4494 = vadd.f32 %v1897, %v4451
        %v4495 = vadd.f32 %v1898, %v4454
        %v4496 = vadd.f32 %v1899, %v4457
        %v4497 = vadd.f32 %v1931, %v4459
        %v4498 = vadd.f32 %v1932, %v4451
        %v4499 = vadd.f32 %v1933, %v4454
        %v4500 = vadd.f32 %v1934, %v4457
        %v4501 = vadd.f32 %v1966, %v4458
        %v4502 = vadd.f32 %v1967, %v4448
        %v4503 = vadd.f32 %v1968, %v4451
        %v4504 = vadd.f32 %v1969, %v4454
        %v4505 = vadd.f32 %v2001, %v4457
        %v4506 = vadd.f32 %v2002, %v4459
        %v4507 = vadd.f32 %v2003, %v4451
        %v4508 = vadd.f32 %v2004, %v4454
        %v4509 = vadd.f32 %v2036, %v4457
        %v4510 = vadd.f32 %v2037, %v4458
        %v4511 = vadd.f32 %v2038, %v4448
        %v4512 = vadd.f32 %v2039, %v4451
        %v4513 = vadd.f32 %v2071, %v4454
        %v4514 = vadd.f32 %v2072, %v4457
        %v4515 = vadd.f32 %v2073, %v4459
        %v4516 = vadd.f32 %v2074, %v4451
        %v4517 = vadd.f32 %v2106, %v4454
        %v4518 = vadd.f32 %v2107, %v4457
        %v4519 = vadd.f32 %v2108, %v4458
        %v4520 = vadd.f32 %v2109, %v4448
        %v4521 = vadd.f32 %v2141, %v4451
        %v4522 = vadd.f32 %v2142, %v4454
        %v4523 = vadd.f32 %v2143, %v4457
        %v4524 = vadd.f32 %v2144, %v4459
        %v4525 = vadd.f32 %v2176, %v4451
        %v4526 = vadd.f32 %v2177, %v4454
        %v4527 = vadd.f32 %v2178, %v4457
        %v4528 = vadd.f32 %v2179, %v4458
        %v4529 = vadd.f32 %v2211, %v4448
        %v4530 = vadd.f32 %v2212, %v4451
        %v4531 = vadd.f32 %v2213, %v4454
        %v4532 = vadd.f32 %v2214, %v4457
        %v4533 = vadd.f32 %v2246, %v4459
        %v4534 = vadd.f32 %v2247, %v4451
        %v4535 = vadd.f32 %v2248, %v4454
        %v4536 = vadd.f32 %v2249, %v4457
        %v4537 = vadd.f32 %v2281, %v4458
        %v4538 = vmul.f32 %v2519, %v4466
        %v4539 = vmul.f32 %v2520, %v4467
        %v4540 = vmul.f32 %v2521, %v4468
        %v4541 = vmul.f32 %v2522, %v4469
        %v4542 = vmul.f32 %v2523, %v4470
        %v4543 = vmul.f32 %v2524, %v4471
        %v4544 = vmul.f32 %v2525, %v4472
        %v4545 = vmul.f32 %v2526, %v4473
        %v4546 = vmul.f32 %v2527, %v4474
        %v4547 = vmul.f32 %v2528, %v4475
        %v4548 = vmul.f32 %v2529, %v4476
        %v4549 = vmul.f32 %v2530, %v4477
        %v4550 = vmul.f32 %v2531, %v4478
        %v4551 = vmul.f32 %v2532, %v4479
        %v4552 = vmul.f32 %v2533, %v4480
        %v4553 = vmul.f32 %v2534, %v4481
        %v4554 = vmul.f32 %v2535, %v4482
        %v4555 = vmul.f32 %v2536, %v4483
        %v4556 = vmul.f32 %v2537, %v4484
        %v4557 = vmul.f32 %v2538, %v4485
        %v4558 = vmul.f32 %v2539, %v4486
        %v4559 = vmul.f32 %v2540, %v4487
        %v4560 = vmul.f32 %v2541, %v4488
        %v4561 = vmul.f32 %v2542, %v4489
        %v4562 = vmul.f32 %v2543, %v4490
        %v4563 = vmul.f32 %v2544, %v4491
        %v4564 = vmul.f32 %v2545, %v4492
        %v4565 = vmul.f32 %v2546, %v4493
        %v4566 = vmul.f32 %v2547, %v4494
        %v4567 = vmul.f32 %v2548, %v4495
        %v4568 = vmul.f32 %v2549, %v4496
        %v4569 = vmul.f32 %v2550, %v4497
        %v4570 = vmul.f32 %v2551, %v4498
        %v4571 = vmul.f32 %v2552, %v4499
        %v4572 = vmul.f32 %v2553, %v4500
        %v4573 = vmul.f32 %v2554, %v4501
        %v4574 = vmul.f32 %v2555, %v4502
        %v4575 = vmul.f32 %v2556, %v4503
        %v4576 = vmul.f32 %v2557, %v4504
        %v4577 = vmul.f32 %v2558, %v4505
        %v4578 = vmul.f32 %v2559, %v4506
        %v4579 = vmul.f32 %v2560, %v4507
        %v4580 = vmul.f32 %v2561, %v4508
        %v4581 = vmul.f32 %v2562, %v4509
        %v4582 = vmul.f32 %v2563, %v4510
        %v4583 = vmul.f32 %v2564, %v4511
        %v4584 = vmul.f32 %v2565, %v4512
        %v4585 = vmul.f32 %v2566, %v4513
        %v4586 = vmul.f32 %v2567, %v4514
        %v4587 = vmul.f32 %v2568, %v4515
        %v4588 = vmul.f32 %v2569, %v4516
        %v4589 = vmul.f32 %v2570, %v4517
        %v4590 = vmul.f32 %v2571, %v4518
        %v4591 = vmul.f32 %v2572, %v4519
        %v4592 = vmul.f32 %v2573, %v4520
        %v4593 = vmul.f32 %v2574, %v4521
        %v4594 = vmul.f32 %v2575, %v4522
        %v4595 = vmul.f32 %v2576, %v4523
        %v4596 = vmul.f32 %v2577, %v4524
        %v4597 = vmul.f32 %v2578, %v4525
        %v4598 = vmul.f32 %v2579, %v4526
        %v4599 = vmul.f32 %v2580, %v4527
        %v4600 = vmul.f32 %v2581, %v4528
        %v4601 = vmul.f32 %v2582, %v4529
        %v4602 = vmul.f32 %v2583, %v4530
        %v4603 = vmul.f32 %v2584, %v4531
        %v4604 = vmul.f32 %v2585, %v4532
        %v4605 = vmul.f32 %v2586, %v4533
        %v4606 = vmul.f32 %v2587, %v4534
        %v4607 = vmul.f32 %v2588, %v4535
        %v4608 = vmul.f32 %v2589, %v4536
        %v4609 = vmul.f32 %v2590, %v4537
        %v4610 = vmax.f32 %v4354, %v4538
        %v4611 = vmax.f32 %v4355, %v4539
        %v4612 = vmax.f32 %v4356, %v4540
        %v4613 = vmax.f32 %v4357, %v4541
        %v4614 = vmax.f32 %v4358, %v4542
        %v4615 = vmax.f32 %v4359, %v4543
        %v4616 = vmax.f32 %v4360, %v4544
        %v4617 = vmax.f32 %v4361, %v4545
        %v4618 = vmax.f32 %v4362, %v4546
        %v4619 = vmax.f32 %v4363, %v4547
        %v4620 = vmax.f32 %v4364, %v4548
        %v4621 = vmax.f32 %v4365, %v4549
        %v4622 = vmax.f32 %v4366, %v4550
        %v4623 = vmax.f32 %v4367, %v4551
        %v4624 = vmax.f32 %v4368, %v4552
        %v4625 = vmax.f32 %v4369, %v4553
        %v4626 = vmax.f32 %v4370, %v4554
        %v4627 = vmax.f32 %v4371, %v4555
        %v4628 = vmax.f32 %v4372, %v4556
        %v4629 = vmax.f32 %v4373, %v4557
        %v4630 = vmax.f32 %v4374, %v4558
        %v4631 = vmax.f32 %v4375, %v4559
        %v4632 = vmax.f32 %v4376, %v4560
        %v4633 = vmax.f32 %v4377, %v4561
        %v4634 = vmax.f32 %v4378, %v4562
        %v4635 = vmax.f32 %v4379, %v4563
        %v4636 = vmax.f32 %v4380, %v4564
        %v4637 = vmax.f32 %v4381, %v4565
        %v4638 = vmax.f32 %v4382, %v4566
        %v4639 = vmax.f32 %v4383, %v4567
        %v4640 = vmax.f32 %v4384, %v4568
        %v4641 = vmax.f32 %v4385, %v4569
        %v4642 = vmax.f32 %v4386, %v4570
        %v4643 = vmax.f32 %v4387, %v4571
        %v4644 = vmax.f32 %v4388, %v4572
        %v4645 = vmax.f32 %v4389, %v4573
        %v4646 = vmax.f32 %v4390, %v4574
        %v4647 = vmax.f32 %v4391, %v4575
        %v4648 = vmax.f32 %v4392, %v4576
        %v4649 = vmax.f32 %v4393, %v4577
        %v4650 = vmax.f32 %v4394, %v4578
        %v4651 = vmax.f32 %v4395, %v4579
        %v4652 = vmax.f32 %v4396, %v4580
        %v4653 = vmax.f32 %v4397, %v4581
        %v4654 = vmax.f32 %v4398, %v4582
        %v4655 = vmax.f32 %v4399, %v4583
        %v4656 = vmax.f32 %v4400, %v4584
        %v4657 = vmax.f32 %v4401, %v4585
        %v4658 = vmax.f32 %v4402, %v4586
        %v4659 = vmax.f32 %v4403, %v4587
        %v4660 = vmax.f32 %v4404, %v4588
        %v4661 = vmax.f32 %v4405, %v4589
        %v4662 = vmax.f32 %v4406, %v4590
        %v4663 = vmax.f32 %v4407, %v4591
        %v4664 = vmax.f32 %v4408, %v4592
        %v4665 = vmax.f32 %v4409, %v4593
        %v4666 = vmax.f32 %v4410, %v4594
        %v4667 = vmax.f32 %v4411, %v4595
        %v4668 = vmax.f32 %v4412, %v4596
        %v4669 = vmax.f32 %v4413, %v4597
        %v4670 = vmax.f32 %v4414, %v4598
        %v4671 = vmax.f32 %v4415, %v4599
        %v4672 = vmax.f32 %v4416, %v4600
        %v4673 = vmax.f32 %v4417, %v4601
        %v4674 = vmax.f32 %v4418, %v4602
        %v4675 = vmax.f32 %v4419, %v4603
        %v4676 = vmax.f32 %v4420, %v4604
        %v4677 = vmax.f32 %v4421, %v4605
        %v4678 = vmax.f32 %v4422, %v4606
        %v4679 = vmax.f32 %v4423, %v4607
        %v4680 = vmax.f32 %v4424, %v4608
        %v4681 = vmax.f32 %v4425, %v4609
        %v4682 = vlaneseq
        %v4683 = vshrl.u32 %v4682, 7
        %v4684 = vsub.s32 7, %v4683
        %v4685 = vrot.slane %v2427, %v4684
        %v4687 = vcombine.high %v4685, %v4685
        %v4689 = vunpack.c.l.s4 1983009808
        %v4690 = vunpack.c.0.s8 %v4689
        %v4691 = vlaneseq
        %v4692 = vshrl.u32 %v4691, 7
        %v4693 = vsub.s32 %v4690, %v4692
        %v4694 = vrot.slane %v4685, %v4693
        %v4696 = vunpack.c.l.s4 1983009808
        %v4697 = vunpack.c.0.s8 %v4696
        %v4698 = vlaneseq
        %v4699 = vshrl.u32 %v4698, 7
        %v4700 = vsub.s32 %v4697, %v4699
        %v4701 = vrot.slane %v4687, %v4700
        %v4702 = vcombine.high %v4694, %v4694
        %v4703 = vcombine.high %v4701, %v4701
        %v4704 = vrot.slane %v4694, 7
        %v4705 = vrot.slane %v4704, 2
        %v4706 = vrot.slane %v4702, 7
        %v4707 = vsel %vm2733, %v4705, %v4706
        %v4708 = vrot.slane %v4706, 2
        %v4709 = vrot.slane %v4701, 7
        %v4710 = vsel %vm2733, %v4708, %v4709
        %v4711 = vrot.slane %v4709, 2
        %v4712 = vrot.slane %v4703, 7
        %v4713 = vsel %vm2733, %v4711, %v4712
        %v4714 = vrot.slane %v4712, 2
        %v4715 = vsel %vm2733, %v4714, %v4704
        %v4722 = vadd.f32 %v1723, %v4704
        %v4723 = vadd.f32 %v1724, %v4707
        %v4724 = vadd.f32 %v1756, %v4710
        %v4725 = vadd.f32 %v1757, %v4713
        %v4726 = vadd.f32 %v1758, %v4715
        %v4727 = vadd.f32 %v1759, %v4707
        %v4728 = vadd.f32 %v1791, %v4710
        %v4729 = vadd.f32 %v1792, %v4713
        %v4730 = vadd.f32 %v1793, %v4714
        %v4731 = vadd.f32 %v1794, %v4704
        %v4732 = vadd.f32 %v1826, %v4707
        %v4733 = vadd.f32 %v1827, %v4710
        %v4734 = vadd.f32 %v1828, %v4713
        %v4735 = vadd.f32 %v1829, %v4715
        %v4736 = vadd.f32 %v1861, %v4707
        %v4737 = vadd.f32 %v1862, %v4710
        %v4738 = vadd.f32 %v1863, %v4713
        %v4739 = vadd.f32 %v1864, %v4714
        %v4740 = vadd.f32 %v1896, %v4704
        %v4741 = vadd.f32 %v1897, %v4707
        %v4742 = vadd.f32 %v1898, %v4710
        %v4743 = vadd.f32 %v1899, %v4713
        %v4744 = vadd.f32 %v1931, %v4715
        %v4745 = vadd.f32 %v1932, %v4707
        %v4746 = vadd.f32 %v1933, %v4710
        %v4747 = vadd.f32 %v1934, %v4713
        %v4748 = vadd.f32 %v1966, %v4714
        %v4749 = vadd.f32 %v1967, %v4704
        %v4750 = vadd.f32 %v1968, %v4707
        %v4751 = vadd.f32 %v1969, %v4710
        %v4752 = vadd.f32 %v2001, %v4713
        %v4753 = vadd.f32 %v2002, %v4715
        %v4754 = vadd.f32 %v2003, %v4707
        %v4755 = vadd.f32 %v2004, %v4710
        %v4756 = vadd.f32 %v2036, %v4713
        %v4757 = vadd.f32 %v2037, %v4714
        %v4758 = vadd.f32 %v2038, %v4704
        %v4759 = vadd.f32 %v2039, %v4707
        %v4760 = vadd.f32 %v2071, %v4710
        %v4761 = vadd.f32 %v2072, %v4713
        %v4762 = vadd.f32 %v2073, %v4715
        %v4763 = vadd.f32 %v2074, %v4707
        %v4764 = vadd.f32 %v2106, %v4710
        %v4765 = vadd.f32 %v2107, %v4713
        %v4766 = vadd.f32 %v2108, %v4714
        %v4767 = vadd.f32 %v2109, %v4704
        %v4768 = vadd.f32 %v2141, %v4707
        %v4769 = vadd.f32 %v2142, %v4710
        %v4770 = vadd.f32 %v2143, %v4713
        %v4771 = vadd.f32 %v2144, %v4715
        %v4772 = vadd.f32 %v2176, %v4707
        %v4773 = vadd.f32 %v2177, %v4710
        %v4774 = vadd.f32 %v2178, %v4713
        %v4775 = vadd.f32 %v2179, %v4714
        %v4776 = vadd.f32 %v2211, %v4704
        %v4777 = vadd.f32 %v2212, %v4707
        %v4778 = vadd.f32 %v2213, %v4710
        %v4779 = vadd.f32 %v2214, %v4713
        %v4780 = vadd.f32 %v2246, %v4715
        %v4781 = vadd.f32 %v2247, %v4707
        %v4782 = vadd.f32 %v2248, %v4710
        %v4783 = vadd.f32 %v2249, %v4713
        %v4784 = vadd.f32 %v2281, %v4714
        %v4785 = vadd.f32 %v2282, %v4704
        %v4786 = vadd.f32 %v2283, %v4707
        %v4787 = vadd.f32 %v2284, %v4710
        %v4788 = vadd.f32 %v2316, %v4713
        %v4789 = vadd.f32 %v2317, %v4715
        %v4790 = vadd.f32 %v2318, %v4707
        %v4791 = vadd.f32 %v2319, %v4710
        %v4792 = vadd.f32 %v2335, %v4713
        %v4793 = vadd.f32 %v2336, %v4714
        %v4794 = vmul.f32 %v2519, %v4722
        %v4795 = vmul.f32 %v2520, %v4723
        %v4796 = vmul.f32 %v2521, %v4724
        %v4797 = vmul.f32 %v2522, %v4725
        %v4798 = vmul.f32 %v2523, %v4726
        %v4799 = vmul.f32 %v2524, %v4727
        %v4800 = vmul.f32 %v2525, %v4728
        %v4801 = vmul.f32 %v2526, %v4729
        %v4802 = vmul.f32 %v2527, %v4730
        %v4803 = vmul.f32 %v2528, %v4731
        %v4804 = vmul.f32 %v2529, %v4732
        %v4805 = vmul.f32 %v2530, %v4733
        %v4806 = vmul.f32 %v2531, %v4734
        %v4807 = vmul.f32 %v2532, %v4735
        %v4808 = vmul.f32 %v2533, %v4736
        %v4809 = vmul.f32 %v2534, %v4737
        %v4810 = vmul.f32 %v2535, %v4738
        %v4811 = vmul.f32 %v2536, %v4739
        %v4812 = vmul.f32 %v2537, %v4740
        %v4813 = vmul.f32 %v2538, %v4741
        %v4814 = vmul.f32 %v2539, %v4742
        %v4815 = vmul.f32 %v2540, %v4743
        %v4816 = vmul.f32 %v2541, %v4744
        %v4817 = vmul.f32 %v2542, %v4745
        %v4818 = vmul.f32 %v2543, %v4746
        %v4819 = vmul.f32 %v2544, %v4747
        %v4820 = vmul.f32 %v2545, %v4748
        %v4821 = vmul.f32 %v2546, %v4749
        %v4822 = vmul.f32 %v2547, %v4750
        %v4823 = vmul.f32 %v2548, %v4751
        %v4824 = vmul.f32 %v2549, %v4752
        %v4825 = vmul.f32 %v2550, %v4753
        %v4826 = vmul.f32 %v2551, %v4754
        %v4827 = vmul.f32 %v2552, %v4755
        %v4828 = vmul.f32 %v2553, %v4756
        %v4829 = vmul.f32 %v2554, %v4757
        %v4830 = vmul.f32 %v2555, %v4758
        %v4831 = vmul.f32 %v2556, %v4759
        %v4832 = vmul.f32 %v2557, %v4760
        %v4833 = vmul.f32 %v2558, %v4761
        %v4834 = vmul.f32 %v2559, %v4762
        %v4835 = vmul.f32 %v2560, %v4763
        %v4836 = vmul.f32 %v2561, %v4764
        %v4837 = vmul.f32 %v2562, %v4765
        %v4838 = vmul.f32 %v2563, %v4766
        %v4839 = vmul.f32 %v2564, %v4767
        %v4840 = vmul.f32 %v2565, %v4768
        %v4841 = vmul.f32 %v2566, %v4769
        %v4842 = vmul.f32 %v2567, %v4770
        %v4843 = vmul.f32 %v2568, %v4771
        %v4844 = vmul.f32 %v2569, %v4772
        %v4845 = vmul.f32 %v2570, %v4773
        %v4846 = vmul.f32 %v2571, %v4774
        %v4847 = vmul.f32 %v2572, %v4775
        %v4848 = vmul.f32 %v2573, %v4776
        %v4849 = vmul.f32 %v2574, %v4777
        %v4850 = vmul.f32 %v2575, %v4778
        %v4851 = vmul.f32 %v2576, %v4779
        %v4852 = vmul.f32 %v2577, %v4780
        %v4853 = vmul.f32 %v2578, %v4781
        %v4854 = vmul.f32 %v2579, %v4782
        %v4855 = vmul.f32 %v2580, %v4783
        %v4856 = vmul.f32 %v2581, %v4784
        %v4857 = vmul.f32 %v2582, %v4785
        %v4858 = vmul.f32 %v2583, %v4786
        %v4859 = vmul.f32 %v2584, %v4787
        %v4860 = vmul.f32 %v2585, %v4788
        %v4861 = vmul.f32 %v2586, %v4789
        %v4862 = vmul.f32 %v2587, %v4790
        %v4863 = vmul.f32 %v2588, %v4791
        %v4864 = vmul.f32 %v2589, %v4792
        %v4865 = vmul.f32 %v2590, %v4793
        %v4866 = vmax.f32 %v4610, %v4794
        %v4867 = vmax.f32 %v4611, %v4795
        %v4868 = vmax.f32 %v4612, %v4796
        %v4869 = vmax.f32 %v4613, %v4797
        %v4870 = vmax.f32 %v4614, %v4798
        %v4871 = vmax.f32 %v4615, %v4799
        %v4872 = vmax.f32 %v4616, %v4800
        %v4873 = vmax.f32 %v4617, %v4801
        %v4874 = vmax.f32 %v4618, %v4802
        %v4875 = vmax.f32 %v4619, %v4803
        %v4876 = vmax.f32 %v4620, %v4804
        %v4877 = vmax.f32 %v4621, %v4805
        %v4878 = vmax.f32 %v4622, %v4806
        %v4879 = vmax.f32 %v4623, %v4807
        %v4880 = vmax.f32 %v4624, %v4808
        %v4881 = vmax.f32 %v4625, %v4809
        %v4882 = vmax.f32 %v4626, %v4810
        %v4883 = vmax.f32 %v4627, %v4811
        %v4884 = vmax.f32 %v4628, %v4812
        %v4885 = vmax.f32 %v4629, %v4813
        %v4886 = vmax.f32 %v4630, %v4814
        %v4887 = vmax.f32 %v4631, %v4815
        %v4888 = vmax.f32 %v4632, %v4816
        %v4889 = vmax.f32 %v4633, %v4817
        %v4890 = vmax.f32 %v4634, %v4818
        %v4891 = vmax.f32 %v4635, %v4819
        %v4892 = vmax.f32 %v4636, %v4820
        %v4893 = vmax.f32 %v4637, %v4821
        %v4894 = vmax.f32 %v4638, %v4822
        %v4895 = vmax.f32 %v4639, %v4823
        %v4896 = vmax.f32 %v4640, %v4824
        %v4897 = vmax.f32 %v4641, %v4825
        %v4898 = vmax.f32 %v4642, %v4826
        %v4899 = vmax.f32 %v4643, %v4827
        %v4900 = vmax.f32 %v4644, %v4828
        %v4901 = vmax.f32 %v4645, %v4829
        %v4902 = vmax.f32 %v4646, %v4830
        %v4903 = vmax.f32 %v4647, %v4831
        %v4904 = vmax.f32 %v4648, %v4832
        %v4905 = vmax.f32 %v4649, %v4833
        %v4906 = vmax.f32 %v4650, %v4834
        %v4907 = vmax.f32 %v4651, %v4835
        %v4908 = vmax.f32 %v4652, %v4836
        %v4909 = vmax.f32 %v4653, %v4837
        %v4910 = vmax.f32 %v4654, %v4838
        %v4911 = vmax.f32 %v4655, %v4839
        %v4912 = vmax.f32 %v4656, %v4840
        %v4913 = vmax.f32 %v4657, %v4841
        %v4914 = vmax.f32 %v4658, %v4842
        %v4915 = vmax.f32 %v4659, %v4843
        %v4916 = vmax.f32 %v4660, %v4844
        %v4917 = vmax.f32 %v4661, %v4845
        %v4918 = vmax.f32 %v4662, %v4846
        %v4919 = vmax.f32 %v4663, %v4847
        %v4920 = vmax.f32 %v4664, %v4848
        %v4921 = vmax.f32 %v4665, %v4849
        %v4922 = vmax.f32 %v4666, %v4850
        %v4923 = vmax.f32 %v4667, %v4851
        %v4924 = vmax.f32 %v4668, %v4852
        %v4925 = vmax.f32 %v4669, %v4853
        %v4926 = vmax.f32 %v4670, %v4854
        %v4927 = vmax.f32 %v4671, %v4855
        %v4928 = vmax.f32 %v4672, %v4856
        %v4929 = vmax.f32 %v4673, %v4857
        %v4930 = vmax.f32 %v4674, %v4858
        %v4931 = vmax.f32 %v4675, %v4859
        %v4932 = vmax.f32 %v4676, %v4860
        %v4933 = vmax.f32 %v4677, %v4861
        %v4934 = vmax.f32 %v4678, %v4862
        %v4935 = vmax.f32 %v4679, %v4863
        %v4936 = vmax.f32 %v4680, %v4864
        %v4937 = vmax.f32 %v4681, %v4865
        %v4938 = vlaneseq
        %v4939 = vshrl.u32 %v4938, 7
        %v4940 = vsub.s32 2, %v4939
        %v4941 = vrot.slane %v2427, %v4940
        %v4943 = vcombine.high %v4941, %v4941
        %v4945 = vunpack.c.l.s4 1983009808
        %v4946 = vunpack.c.0.s8 %v4945
        %v4947 = vlaneseq
        %v4948 = vshrl.u32 %v4947, 7
        %v4949 = vsub.s32 %v4946, %v4948
        %v4950 = vrot.slane %v4941, %v4949
        %v4952 = vunpack.c.l.s4 1983009808
        %v4953 = vunpack.c.0.s8 %v4952
        %v4954 = vlaneseq
        %v4955 = vshrl.u32 %v4954, 7
        %v4956 = vsub.s32 %v4953, %v4955
        %v4957 = vrot.slane %v4943, %v4956
        %v4958 = vcombine.high %v4950, %v4950
        %v4959 = vcombine.high %v4957, %v4957
        %v4964 = vadd.f32 %v1582, %v4950
        %v4965 = vadd.f32 %v1583, %v4958
        %v4966 = vadd.f32 %v1584, %v4957
        %v4967 = vadd.f32 %v1616, %v4959
        %v4968 = vadd.f32 %v1617, %v4950
        %v4969 = vadd.f32 %v1618, %v4958
        %v4970 = vadd.f32 %v1619, %v4957
        %v4971 = vadd.f32 %v1651, %v4959
        %v4972 = vadd.f32 %v1653, %v4950
        %v4973 = vadd.f32 %v1654, %v4958
        %v4974 = vadd.f32 %v1686, %v4957
        %v4975 = vadd.f32 %v1687, %v4959
        %v4976 = vadd.f32 %v1688, %v4950
        %v4977 = vadd.f32 %v1689, %v4958
        %v4978 = vadd.f32 %v1721, %v4957
        %v4979 = vadd.f32 %v1722, %v4959
        %v4980 = vadd.f32 %v1724, %v4950
        %v4981 = vadd.f32 %v1756, %v4958
        %v4982 = vadd.f32 %v1757, %v4957
        %v4983 = vadd.f32 %v1758, %v4959
        %v4984 = vadd.f32 %v1759, %v4950
        %v4985 = vadd.f32 %v1791, %v4958
        %v4986 = vadd.f32 %v1792, %v4957
        %v4987 = vadd.f32 %v1793, %v4959
        %v4988 = vadd.f32 %v1826, %v4950
        %v4989 = vadd.f32 %v1827, %v4958
        %v4990 = vadd.f32 %v1828, %v4957
        %v4991 = vadd.f32 %v1829, %v4959
        %v4992 = vadd.f32 %v1861, %v4950
        %v4993 = vadd.f32 %v1862, %v4958
        %v4994 = vadd.f32 %v1863, %v4957
        %v4995 = vadd.f32 %v1864, %v4959
        %v4996 = vadd.f32 %v1897, %v4950
        %v4997 = vadd.f32 %v1898, %v4958
        %v4998 = vadd.f32 %v1899, %v4957
        %v4999 = vadd.f32 %v1931, %v4959
        %v5000 = vadd.f32 %v1932, %v4950
        %v5001 = vadd.f32 %v1933, %v4958
        %v5002 = vadd.f32 %v1934, %v4957
        %v5003 = vadd.f32 %v1966, %v4959
        %v5004 = vadd.f32 %v1968, %v4950
        %v5005 = vadd.f32 %v1969, %v4958
        %v5006 = vadd.f32 %v2001, %v4957
        %v5007 = vadd.f32 %v2002, %v4959
        %v5008 = vadd.f32 %v2003, %v4950
        %v5009 = vadd.f32 %v2004, %v4958
        %v5010 = vadd.f32 %v2036, %v4957
        %v5011 = vadd.f32 %v2037, %v4959
        %v5012 = vadd.f32 %v2039, %v4950
        %v5013 = vadd.f32 %v2071, %v4958
        %v5014 = vadd.f32 %v2072, %v4957
        %v5015 = vadd.f32 %v2073, %v4959
        %v5016 = vadd.f32 %v2074, %v4950
        %v5017 = vadd.f32 %v2106, %v4958
        %v5018 = vadd.f32 %v2107, %v4957
        %v5019 = vadd.f32 %v2108, %v4959
        %v5020 = vadd.f32 %v2141, %v4950
        %v5021 = vadd.f32 %v2142, %v4958
        %v5022 = vadd.f32 %v2143, %v4957
        %v5023 = vadd.f32 %v2144, %v4959
        %v5024 = vadd.f32 %v2176, %v4950
        %v5025 = vadd.f32 %v2177, %v4958
        %v5026 = vadd.f32 %v2178, %v4957
        %v5027 = vadd.f32 %v2179, %v4959
        %v5092 = vrot.slane %v4964, 7
        %v5093 = vrot.slane %v5092, 2
        %v5094 = vrot.slane %v4965, 7
        %v5095 = vsel %vm2733, %v5093, %v5094
        %v5096 = vrot.slane %v5094, 2
        %v5097 = vrot.slane %v4966, 7
        %v5098 = vsel %vm2733, %v5096, %v5097
        %v5099 = vrot.slane %v5097, 2
        %v5100 = vrot.slane %v4967, 7
        %v5101 = vsel %vm2733, %v5099, %v5100
        %v5102 = vrot.slane %v5100, 2
        %v5103 = vrot.slane %v4968, 7
        %v5104 = vsel %vm2733, %v5102, %v5103
        %v5105 = vrot.slane %v5103, 2
        %v5106 = vrot.slane %v4969, 7
        %v5107 = vsel %vm2733, %v5105, %v5106
        %v5108 = vrot.slane %v5106, 2
        %v5109 = vrot.slane %v4970, 7
        %v5110 = vsel %vm2733, %v5108, %v5109
        %v5111 = vrot.slane %v5109, 2
        %v5112 = vrot.slane %v4971, 7
        %v5113 = vsel %vm2733, %v5111, %v5112
        %v5114 = vrot.slane %v5112, 2
        %v5115 = vrot.slane %v4972, 7
        %v5116 = vrot.slane %v5115, 2
        %v5117 = vrot.slane %v4973, 7
        %v5118 = vsel %vm2733, %v5116, %v5117
        %v5119 = vrot.slane %v5117, 2
        %v5120 = vrot.slane %v4974, 7
        %v5121 = vsel %vm2733, %v5119, %v5120
        %v5122 = vrot.slane %v5120, 2
        %v5123 = vrot.slane %v4975, 7
        %v5124 = vsel %vm2733, %v5122, %v5123
        %v5125 = vrot.slane %v5123, 2
        %v5126 = vrot.slane %v4976, 7
        %v5127 = vsel %vm2733, %v5125, %v5126
        %v5128 = vrot.slane %v5126, 2
        %v5129 = vrot.slane %v4977, 7
        %v5130 = vsel %vm2733, %v5128, %v5129
        %v5131 = vrot.slane %v5129, 2
        %v5132 = vrot.slane %v4978, 7
        %v5133 = vsel %vm2733, %v5131, %v5132
        %v5134 = vrot.slane %v5132, 2
        %v5135 = vrot.slane %v4979, 7
        %v5136 = vsel %vm2733, %v5134, %v5135
        %v5137 = vrot.slane %v5135, 2
        %v5138 = vrot.slane %v4980, 7
        %v5139 = vrot.slane %v5138, 2
        %v5140 = vrot.slane %v4981, 7
        %v5141 = vsel %vm2733, %v5139, %v5140
        %v5142 = vrot.slane %v5140, 2
        %v5143 = vrot.slane %v4982, 7
        %v5144 = vsel %vm2733, %v5142, %v5143
        %v5145 = vrot.slane %v5143, 2
        %v5146 = vrot.slane %v4983, 7
        %v5147 = vsel %vm2733, %v5145, %v5146
        %v5148 = vrot.slane %v5146, 2
        %v5149 = vrot.slane %v4984, 7
        %v5150 = vsel %vm2733, %v5148, %v5149
        %v5151 = vrot.slane %v5149, 2
        %v5152 = vrot.slane %v4985, 7
        %v5153 = vsel %vm2733, %v5151, %v5152
        %v5154 = vrot.slane %v5152, 2
        %v5155 = vrot.slane %v4986, 7
        %v5156 = vsel %vm2733, %v5154, %v5155
        %v5157 = vrot.slane %v5155, 2
        %v5158 = vrot.slane %v4987, 7
        %v5159 = vsel %vm2733, %v5157, %v5158
        %v5160 = vrot.slane %v5158, 2
        %v5161 = vrot.slane %v4988, 7
        %v5162 = vrot.slane %v5161, 2
        %v5163 = vrot.slane %v4989, 7
        %v5164 = vsel %vm2733, %v5162, %v5163
        %v5165 = vrot.slane %v5163, 2
        %v5166 = vrot.slane %v4990, 7
        %v5167 = vsel %vm2733, %v5165, %v5166
        %v5168 = vrot.slane %v5166, 2
        %v5169 = vrot.slane %v4991, 7
        %v5170 = vsel %vm2733, %v5168, %v5169
        %v5171 = vrot.slane %v5169, 2
        %v5172 = vrot.slane %v4992, 7
        %v5173 = vsel %vm2733, %v5171, %v5172
        %v5174 = vrot.slane %v5172, 2
        %v5175 = vrot.slane %v4993, 7
        %v5176 = vsel %vm2733, %v5174, %v5175
        %v5177 = vrot.slane %v5175, 2
        %v5178 = vrot.slane %v4994, 7
        %v5179 = vsel %vm2733, %v5177, %v5178
        %v5180 = vrot.slane %v5178, 2
        %v5181 = vrot.slane %v4995, 7
        %v5182 = vsel %vm2733, %v5180, %v5181
        %v5183 = vrot.slane %v5181, 2
        %v5184 = vrot.slane %v4996, 7
        %v5185 = vrot.slane %v5184, 2
        %v5186 = vrot.slane %v4997, 7
        %v5187 = vsel %vm2733, %v5185, %v5186
        %v5188 = vrot.slane %v5186, 2
        %v5189 = vrot.slane %v4998, 7
        %v5190 = vsel %vm2733, %v5188, %v5189
        %v5191 = vrot.slane %v5189, 2
        %v5192 = vrot.slane %v4999, 7
        %v5193 = vsel %vm2733, %v5191, %v5192
        %v5194 = vrot.slane %v5192, 2
        %v5195 = vrot.slane %v5000, 7
        %v5196 = vsel %vm2733, %v5194, %v5195
        %v5197 = vrot.slane %v5195, 2
        %v5198 = vrot.slane %v5001, 7
        %v5199 = vsel %vm2733, %v5197, %v5198
        %v5200 = vrot.slane %v5198, 2
        %v5201 = vrot.slane %v5002, 7
        %v5202 = vsel %vm2733, %v5200, %v5201
        %v5203 = vrot.slane %v5201, 2
        %v5204 = vrot.slane %v5003, 7
        %v5205 = vsel %vm2733, %v5203, %v5204
        %v5206 = vrot.slane %v5204, 2
        %v5207 = vrot.slane %v5004, 7
        %v5208 = vrot.slane %v5207, 2
        %v5209 = vrot.slane %v5005, 7
        %v5210 = vsel %vm2733, %v5208, %v5209
        %v5211 = vrot.slane %v5209, 2
        %v5212 = vrot.slane %v5006, 7
        %v5213 = vsel %vm2733, %v5211, %v5212
        %v5214 = vrot.slane %v5212, 2
        %v5215 = vrot.slane %v5007, 7
        %v5216 = vsel %vm2733, %v5214, %v5215
        %v5217 = vrot.slane %v5215, 2
        %v5218 = vrot.slane %v5008, 7
        %v5219 = vsel %vm2733, %v5217, %v5218
        %v5220 = vrot.slane %v5218, 2
        %v5221 = vrot.slane %v5009, 7
        %v5222 = vsel %vm2733, %v5220, %v5221
        %v5223 = vrot.slane %v5221, 2
        %v5224 = vrot.slane %v5010, 7
        %v5225 = vsel %vm2733, %v5223, %v5224
        %v5226 = vrot.slane %v5224, 2
        %v5227 = vrot.slane %v5011, 7
        %v5228 = vsel %vm2733, %v5226, %v5227
        %v5229 = vrot.slane %v5227, 2
        %v5230 = vrot.slane %v5012, 7
        %v5231 = vrot.slane %v5230, 2
        %v5232 = vrot.slane %v5013, 7
        %v5233 = vsel %vm2733, %v5231, %v5232
        %v5234 = vrot.slane %v5232, 2
        %v5235 = vrot.slane %v5014, 7
        %v5236 = vsel %vm2733, %v5234, %v5235
        %v5237 = vrot.slane %v5235, 2
        %v5238 = vrot.slane %v5015, 7
        %v5239 = vsel %vm2733, %v5237, %v5238
        %v5240 = vrot.slane %v5238, 2
        %v5241 = vrot.slane %v5016, 7
        %v5242 = vsel %vm2733, %v5240, %v5241
        %v5243 = vrot.slane %v5241, 2
        %v5244 = vrot.slane %v5017, 7
        %v5245 = vsel %vm2733, %v5243, %v5244
        %v5246 = vrot.slane %v5244, 2
        %v5247 = vrot.slane %v5018, 7
        %v5248 = vsel %vm2733, %v5246, %v5247
        %v5249 = vrot.slane %v5247, 2
        %v5250 = vrot.slane %v5019, 7
        %v5251 = vsel %vm2733, %v5249, %v5250
        %v5252 = vrot.slane %v5250, 2
        %v5253 = vrot.slane %v5020, 7
        %v5254 = vrot.slane %v5253, 2
        %v5255 = vrot.slane %v5021, 7
        %v5256 = vsel %vm2733, %v5254, %v5255
        %v5257 = vrot.slane %v5255, 2
        %v5258 = vrot.slane %v5022, 7
        %v5259 = vsel %vm2733, %v5257, %v5258
        %v5260 = vrot.slane %v5258, 2
        %v5261 = vrot.slane %v5023, 7
        %v5262 = vsel %vm2733, %v5260, %v5261
        %v5263 = vrot.slane %v5261, 2
        %v5264 = vrot.slane %v5024, 7
        %v5265 = vsel %vm2733, %v5263, %v5264
        %v5266 = vrot.slane %v5264, 2
        %v5267 = vrot.slane %v5025, 7
        %v5268 = vsel %vm2733, %v5266, %v5267
        %v5269 = vrot.slane %v5267, 2
        %v5270 = vrot.slane %v5026, 7
        %v5271 = vsel %vm2733, %v5269, %v5270
        %v5272 = vrot.slane %v5270, 2
        %v5273 = vrot.slane %v5027, 7
        %v5274 = vsel %vm2733, %v5272, %v5273
        %v5275 = vrot.slane %v5273, 2
        %v5348 = vmul.f32 %v2519, %v5092
        %v5349 = vmul.f32 %v2520, %v5095
        %v5350 = vmul.f32 %v2521, %v5098
        %v5351 = vmul.f32 %v2522, %v5101
        %v5352 = vmul.f32 %v2523, %v5104
        %v5353 = vmul.f32 %v2524, %v5107
        %v5354 = vmul.f32 %v2525, %v5110
        %v5355 = vmul.f32 %v2526, %v5113
        %v5356 = vmul.f32 %v2527, %v5114
        %v5357 = vmul.f32 %v2528, %v5115
        %v5358 = vmul.f32 %v2529, %v5118
        %v5359 = vmul.f32 %v2530, %v5121
        %v5360 = vmul.f32 %v2531, %v5124
        %v5361 = vmul.f32 %v2532, %v5127
        %v5362 = vmul.f32 %v2533, %v5130
        %v5363 = vmul.f32 %v2534, %v5133
        %v5364 = vmul.f32 %v2535, %v5136
        %v5365 = vmul.f32 %v2536, %v5137
        %v5366 = vmul.f32 %v2537, %v5138
        %v5367 = vmul.f32 %v2538, %v5141
        %v5368 = vmul.f32 %v2539, %v5144
        %v5369 = vmul.f32 %v2540, %v5147
        %v5370 = vmul.f32 %v2541, %v5150
        %v5371 = vmul.f32 %v2542, %v5153
        %v5372 = vmul.f32 %v2543, %v5156
        %v5373 = vmul.f32 %v2544, %v5159
        %v5374 = vmul.f32 %v2545, %v5160
        %v5375 = vmul.f32 %v2546, %v5161
        %v5376 = vmul.f32 %v2547, %v5164
        %v5377 = vmul.f32 %v2548, %v5167
        %v5378 = vmul.f32 %v2549, %v5170
        %v5379 = vmul.f32 %v2550, %v5173
        %v5380 = vmul.f32 %v2551, %v5176
        %v5381 = vmul.f32 %v2552, %v5179
        %v5382 = vmul.f32 %v2553, %v5182
        %v5383 = vmul.f32 %v2554, %v5183
        %v5384 = vmul.f32 %v2555, %v5184
        %v5385 = vmul.f32 %v2556, %v5187
        %v5386 = vmul.f32 %v2557, %v5190
        %v5387 = vmul.f32 %v2558, %v5193
        %v5388 = vmul.f32 %v2559, %v5196
        %v5389 = vmul.f32 %v2560, %v5199
        %v5390 = vmul.f32 %v2561, %v5202
        %v5391 = vmul.f32 %v2562, %v5205
        %v5392 = vmul.f32 %v2563, %v5206
        %v5393 = vmul.f32 %v2564, %v5207
        %v5394 = vmul.f32 %v2565, %v5210
        %v5395 = vmul.f32 %v2566, %v5213
        %v5396 = vmul.f32 %v2567, %v5216
        %v5397 = vmul.f32 %v2568, %v5219
        %v5398 = vmul.f32 %v2569, %v5222
        %v5399 = vmul.f32 %v2570, %v5225
        %v5400 = vmul.f32 %v2571, %v5228
        %v5401 = vmul.f32 %v2572, %v5229
        %v5402 = vmul.f32 %v2573, %v5230
        %v5403 = vmul.f32 %v2574, %v5233
        %v5404 = vmul.f32 %v2575, %v5236
        %v5405 = vmul.f32 %v2576, %v5239
        %v5406 = vmul.f32 %v2577, %v5242
        %v5407 = vmul.f32 %v2578, %v5245
        %v5408 = vmul.f32 %v2579, %v5248
        %v5409 = vmul.f32 %v2580, %v5251
        %v5410 = vmul.f32 %v2581, %v5252
        %v5411 = vmul.f32 %v2582, %v5253
        %v5412 = vmul.f32 %v2583, %v5256
        %v5413 = vmul.f32 %v2584, %v5259
        %v5414 = vmul.f32 %v2585, %v5262
        %v5415 = vmul.f32 %v2586, %v5265
        %v5416 = vmul.f32 %v2587, %v5268
        %v5417 = vmul.f32 %v2588, %v5271
        %v5418 = vmul.f32 %v2589, %v5274
        %v5419 = vmul.f32 %v2590, %v5275
        %v5420 = vmax.f32 %v4866, %v5348
        %v5421 = vmax.f32 %v4867, %v5349
        %v5422 = vmax.f32 %v4868, %v5350
        %v5423 = vmax.f32 %v4869, %v5351
        %v5424 = vmax.f32 %v4870, %v5352
        %v5425 = vmax.f32 %v4871, %v5353
        %v5426 = vmax.f32 %v4872, %v5354
        %v5427 = vmax.f32 %v4873, %v5355
        %v5428 = vmax.f32 %v4874, %v5356
        %v5429 = vmax.f32 %v4875, %v5357
        %v5430 = vmax.f32 %v4876, %v5358
        %v5431 = vmax.f32 %v4877, %v5359
        %v5432 = vmax.f32 %v4878, %v5360
        %v5433 = vmax.f32 %v4879, %v5361
        %v5434 = vmax.f32 %v4880, %v5362
        %v5435 = vmax.f32 %v4881, %v5363
        %v5436 = vmax.f32 %v4882, %v5364
        %v5437 = vmax.f32 %v4883, %v5365
        %v5438 = vmax.f32 %v4884, %v5366
        %v5439 = vmax.f32 %v4885, %v5367
        %v5440 = vmax.f32 %v4886, %v5368
        %v5441 = vmax.f32 %v4887, %v5369
        %v5442 = vmax.f32 %v4888, %v5370
        %v5443 = vmax.f32 %v4889, %v5371
        %v5444 = vmax.f32 %v4890, %v5372
        %v5445 = vmax.f32 %v4891, %v5373
        %v5446 = vmax.f32 %v4892, %v5374
        %v5447 = vmax.f32 %v4893, %v5375
        %v5448 = vmax.f32 %v4894, %v5376
        %v5449 = vmax.f32 %v4895, %v5377
        %v5450 = vmax.f32 %v4896, %v5378
        %v5451 = vmax.f32 %v4897, %v5379
        %v5452 = vmax.f32 %v4898, %v5380
        %v5453 = vmax.f32 %v4899, %v5381
        %v5454 = vmax.f32 %v4900, %v5382
        %v5455 = vmax.f32 %v4901, %v5383
        %v5456 = vmax.f32 %v4902, %v5384
        %v5457 = vmax.f32 %v4903, %v5385
        %v5458 = vmax.f32 %v4904, %v5386
        %v5459 = vmax.f32 %v4905, %v5387
        %v5460 = vmax.f32 %v4906, %v5388
        %v5461 = vmax.f32 %v4907, %v5389
        %v5462 = vmax.f32 %v4908, %v5390
        %v5463 = vmax.f32 %v4909, %v5391
        %v5464 = vmax.f32 %v4910, %v5392
        %v5465 = vmax.f32 %v4911, %v5393
        %v5466 = vmax.f32 %v4912, %v5394
        %v5467 = vmax.f32 %v4913, %v5395
        %v5468 = vmax.f32 %v4914, %v5396
        %v5469 = vmax.f32 %v4915, %v5397
        %v5470 = vmax.f32 %v4916, %v5398
        %v5471 = vmax.f32 %v4917, %v5399
        %v5472 = vmax.f32 %v4918, %v5400
        %v5473 = vmax.f32 %v4919, %v5401
        %v5474 = vmax.f32 %v4920, %v5402
        %v5475 = vmax.f32 %v4921, %v5403
        %v5476 = vmax.f32 %v4922, %v5404
        %v5477 = vmax.f32 %v4923, %v5405
        %v5478 = vmax.f32 %v4924, %v5406
        %v5479 = vmax.f32 %v4925, %v5407
        %v5480 = vmax.f32 %v4926, %v5408
        %v5481 = vmax.f32 %v4927, %v5409
        %v5482 = vmax.f32 %v4928, %v5410
        %v5483 = vmax.f32 %v4929, %v5411
        %v5484 = vmax.f32 %v4930, %v5412
        %v5485 = vmax.f32 %v4931, %v5413
        %v5486 = vmax.f32 %v4932, %v5414
        %v5487 = vmax.f32 %v4933, %v5415
        %v5488 = vmax.f32 %v4934, %v5416
        %v5489 = vmax.f32 %v4935, %v5417
        %v5490 = vmax.f32 %v4936, %v5418
        %v5491 = vmax.f32 %v4937, %v5419
        %v5492 = vlaneseq
        %v5493 = vshrl.u32 %v5492, 7
        %v5494 = vsub.s32 5, %v5493
        %v5495 = vrot.slane %v2427, %v5494
        %v5497 = vcombine.high %v5495, %v5495
        %v5499 = vunpack.c.l.s4 1983009808
        %v5500 = vunpack.c.0.s8 %v5499
        %v5501 = vlaneseq
        %v5502 = vshrl.u32 %v5501, 7
        %v5503 = vsub.s32 %v5500, %v5502
        %v5504 = vrot.slane %v5495, %v5503
        %v5506 = vunpack.c.l.s4 1983009808
        %v5507 = vunpack.c.0.s8 %v5506
        %v5508 = vlaneseq
        %v5509 = vshrl.u32 %v5508, 7
        %v5510 = vsub.s32 %v5507, %v5509
        %v5511 = vrot.slane %v5497, %v5510
        %v5512 = vcombine.high %v5504, %v5504
        %v5513 = vcombine.high %v5511, %v5511
        %v5518 = vadd.f32 %v1653, %v5504
        %v5519 = vadd.f32 %v1654, %v5512
        %v5520 = vadd.f32 %v1686, %v5511
        %v5521 = vadd.f32 %v1687, %v5513
        %v5522 = vadd.f32 %v1688, %v5504
        %v5523 = vadd.f32 %v1689, %v5512
        %v5524 = vadd.f32 %v1721, %v5511
        %v5525 = vadd.f32 %v1722, %v5513
        %v5526 = vadd.f32 %v1724, %v5504
        %v5527 = vadd.f32 %v1756, %v5512
        %v5528 = vadd.f32 %v1757, %v5511
        %v5529 = vadd.f32 %v1758, %v5513
        %v5530 = vadd.f32 %v1759, %v5504
        %v5531 = vadd.f32 %v1791, %v5512
        %v5532 = vadd.f32 %v1792, %v5511
        %v5533 = vadd.f32 %v1793, %v5513
        %v5534 = vadd.f32 %v1826, %v5504
        %v5535 = vadd.f32 %v1827, %v5512
        %v5536 = vadd.f32 %v1828, %v5511
        %v5537 = vadd.f32 %v1829, %v5513
        %v5538 = vadd.f32 %v1861, %v5504
        %v5539 = vadd.f32 %v1862, %v5512
        %v5540 = vadd.f32 %v1863, %v5511
        %v5541 = vadd.f32 %v1864, %v5513
        %v5542 = vadd.f32 %v1897, %v5504
        %v5543 = vadd.f32 %v1898, %v5512
        %v5544 = vadd.f32 %v1899, %v5511
        %v5545 = vadd.f32 %v1931, %v5513
        %v5546 = vadd.f32 %v1932, %v5504
        %v5547 = vadd.f32 %v1933, %v5512
        %v5548 = vadd.f32 %v1934, %v5511
        %v5549 = vadd.f32 %v1966, %v5513
        %v5550 = vadd.f32 %v1968, %v5504
        %v5551 = vadd.f32 %v1969, %v5512
        %v5552 = vadd.f32 %v2001, %v5511
        %v5553 = vadd.f32 %v2002, %v5513
        %v5554 = vadd.f32 %v2003, %v5504
        %v5555 = vadd.f32 %v2004, %v5512
        %v5556 = vadd.f32 %v2036, %v5511
        %v5557 = vadd.f32 %v2037, %v5513
        %v5558 = vadd.f32 %v2039, %v5504
        %v5559 = vadd.f32 %v2071, %v5512
        %v5560 = vadd.f32 %v2072, %v5511
        %v5561 = vadd.f32 %v2073, %v5513
        %v5562 = vadd.f32 %v2074, %v5504
        %v5563 = vadd.f32 %v2106, %v5512
        %v5564 = vadd.f32 %v2107, %v5511
        %v5565 = vadd.f32 %v2108, %v5513
        %v5566 = vadd.f32 %v2141, %v5504
        %v5567 = vadd.f32 %v2142, %v5512
        %v5568 = vadd.f32 %v2143, %v5511
        %v5569 = vadd.f32 %v2144, %v5513
        %v5570 = vadd.f32 %v2176, %v5504
        %v5571 = vadd.f32 %v2177, %v5512
        %v5572 = vadd.f32 %v2178, %v5511
        %v5573 = vadd.f32 %v2179, %v5513
        %v5574 = vadd.f32 %v2212, %v5504
        %v5575 = vadd.f32 %v2213, %v5512
        %v5576 = vadd.f32 %v2214, %v5511
        %v5577 = vadd.f32 %v2246, %v5513
        %v5578 = vadd.f32 %v2247, %v5504
        %v5579 = vadd.f32 %v2248, %v5512
        %v5580 = vadd.f32 %v2249, %v5511
        %v5581 = vadd.f32 %v2281, %v5513
        %v5646 = vrot.slane %v5518, 7
        %v5647 = vrot.slane %v5646, 2
        %v5648 = vrot.slane %v5519, 7
        %v5649 = vsel %vm2733, %v5647, %v5648
        %v5650 = vrot.slane %v5648, 2
        %v5651 = vrot.slane %v5520, 7
        %v5652 = vsel %vm2733, %v5650, %v5651
        %v5653 = vrot.slane %v5651, 2
        %v5654 = vrot.slane %v5521, 7
        %v5655 = vsel %vm2733, %v5653, %v5654
        %v5656 = vrot.slane %v5654, 2
        %v5657 = vrot.slane %v5522, 7
        %v5658 = vsel %vm2733, %v5656, %v5657
        %v5659 = vrot.slane %v5657, 2
        %v5660 = vrot.slane %v5523, 7
        %v5661 = vsel %vm2733, %v5659, %v5660
        %v5662 = vrot.slane %v5660, 2
        %v5663 = vrot.slane %v5524, 7
        %v5664 = vsel %vm2733, %v5662, %v5663
        %v5665 = vrot.slane %v5663, 2
        %v5666 = vrot.slane %v5525, 7
        %v5667 = vsel %vm2733, %v5665, %v5666
        %v5668 = vrot.slane %v5666, 2
        %v5669 = vrot.slane %v5526, 7
        %v5670 = vrot.slane %v5669, 2
        %v5671 = vrot.slane %v5527, 7
        %v5672 = vsel %vm2733, %v5670, %v5671
        %v5673 = vrot.slane %v5671, 2
        %v5674 = vrot.slane %v5528, 7
        %v5675 = vsel %vm2733, %v5673, %v5674
        %v5676 = vrot.slane %v5674, 2
        %v5677 = vrot.slane %v5529, 7
        %v5678 = vsel %vm2733, %v5676, %v5677
        %v5679 = vrot.slane %v5677, 2
        %v5680 = vrot.slane %v5530, 7
        %v5681 = vsel %vm2733, %v5679, %v5680
        %v5682 = vrot.slane %v5680, 2
        %v5683 = vrot.slane %v5531, 7
        %v5684 = vsel %vm2733, %v5682, %v5683
        %v5685 = vrot.slane %v5683, 2
        %v5686 = vrot.slane %v5532, 7
        %v5687 = vsel %vm2733, %v5685, %v5686
        %v5688 = vrot.slane %v5686, 2
        %v5689 = vrot.slane %v5533, 7
        %v5690 = vsel %vm2733, %v5688, %v5689
        %v5691 = vrot.slane %v5689, 2
        %v5692 = vrot.slane %v5534, 7
        %v5693 = vrot.slane %v5692, 2
        %v5694 = vrot.slane %v5535, 7
        %v5695 = vsel %vm2733, %v5693, %v5694
        %v5696 = vrot.slane %v5694, 2
        %v5697 = vrot.slane %v5536, 7
        %v5698 = vsel %vm2733, %v5696, %v5697
        %v5699 = vrot.slane %v5697, 2
        %v5700 = vrot.slane %v5537, 7
        %v5701 = vsel %vm2733, %v5699, %v5700
        %v5702 = vrot.slane %v5700, 2
        %v5703 = vrot.slane %v5538, 7
        %v5704 = vsel %vm2733, %v5702, %v5703
        %v5705 = vrot.slane %v5703, 2
        %v5706 = vrot.slane %v5539, 7
        %v5707 = vsel %vm2733, %v5705, %v5706
        %v5708 = vrot.slane %v5706, 2
        %v5709 = vrot.slane %v5540, 7
        %v5710 = vsel %vm2733, %v5708, %v5709
        %v5711 = vrot.slane %v5709, 2
        %v5712 = vrot.slane %v5541, 7
        %v5713 = vsel %vm2733, %v5711, %v5712
        %v5714 = vrot.slane %v5712, 2
        %v5715 = vrot.slane %v5542, 7
        %v5716 = vrot.slane %v5715, 2
        %v5717 = vrot.slane %v5543, 7
        %v5718 = vsel %vm2733, %v5716, %v5717
        %v5719 = vrot.slane %v5717, 2
        %v5720 = vrot.slane %v5544, 7
        %v5721 = vsel %vm2733, %v5719, %v5720
        %v5722 = vrot.slane %v5720, 2
        %v5723 = vrot.slane %v5545, 7
        %v5724 = vsel %vm2733, %v5722, %v5723
        %v5725 = vrot.slane %v5723, 2
        %v5726 = vrot.slane %v5546, 7
        %v5727 = vsel %vm2733, %v5725, %v5726
        %v5728 = vrot.slane %v5726, 2
        %v5729 = vrot.slane %v5547, 7
        %v5730 = vsel %vm2733, %v5728, %v5729
        %v5731 = vrot.slane %v5729, 2
        %v5732 = vrot.slane %v5548, 7
        %v5733 = vsel %vm2733, %v5731, %v5732
        %v5734 = vrot.slane %v5732, 2
        %v5735 = vrot.slane %v5549, 7
        %v5736 = vsel %vm2733, %v5734, %v5735
        %v5737 = vrot.slane %v5735, 2
        %v5738 = vrot.slane %v5550, 7
        %v5739 = vrot.slane %v5738, 2
        %v5740 = vrot.slane %v5551, 7
        %v5741 = vsel %vm2733, %v5739, %v5740
        %v5742 = vrot.slane %v5740, 2
        %v5743 = vrot.slane %v5552, 7
        %v5744 = vsel %vm2733, %v5742, %v5743
        %v5745 = vrot.slane %v5743, 2
        %v5746 = vrot.slane %v5553, 7
        %v5747 = vsel %vm2733, %v5745, %v5746
        %v5748 = vrot.slane %v5746, 2
        %v5749 = vrot.slane %v5554, 7
        %v5750 = vsel %vm2733, %v5748, %v5749
        %v5751 = vrot.slane %v5749, 2
        %v5752 = vrot.slane %v5555, 7
        %v5753 = vsel %vm2733, %v5751, %v5752
        %v5754 = vrot.slane %v5752, 2
        %v5755 = vrot.slane %v5556, 7
        %v5756 = vsel %vm2733, %v5754, %v5755
        %v5757 = vrot.slane %v5755, 2
        %v5758 = vrot.slane %v5557, 7
        %v5759 = vsel %vm2733, %v5757, %v5758
        %v5760 = vrot.slane %v5758, 2
        %v5761 = vrot.slane %v5558, 7
        %v5762 = vrot.slane %v5761, 2
        %v5763 = vrot.slane %v5559, 7
        %v5764 = vsel %vm2733, %v5762, %v5763
        %v5765 = vrot.slane %v5763, 2
        %v5766 = vrot.slane %v5560, 7
        %v5767 = vsel %vm2733, %v5765, %v5766
        %v5768 = vrot.slane %v5766, 2
        %v5769 = vrot.slane %v5561, 7
        %v5770 = vsel %vm2733, %v5768, %v5769
        %v5771 = vrot.slane %v5769, 2
        %v5772 = vrot.slane %v5562, 7
        %v5773 = vsel %vm2733, %v5771, %v5772
        %v5774 = vrot.slane %v5772, 2
        %v5775 = vrot.slane %v5563, 7
        %v5776 = vsel %vm2733, %v5774, %v5775
        %v5777 = vrot.slane %v5775, 2
        %v5778 = vrot.slane %v5564, 7
        %v5779 = vsel %vm2733, %v5777, %v5778
        %v5780 = vrot.slane %v5778, 2
        %v5781 = vrot.slane %v5565, 7
        %v5782 = vsel %vm2733, %v5780, %v5781
        %v5783 = vrot.slane %v5781, 2
        %v5784 = vrot.slane %v5566, 7
        %v5785 = vrot.slane %v5784, 2
        %v5786 = vrot.slane %v5567, 7
        %v5787 = vsel %vm2733, %v5785, %v5786
        %v5788 = vrot.slane %v5786, 2
        %v5789 = vrot.slane %v5568, 7
        %v5790 = vsel %vm2733, %v5788, %v5789
        %v5791 = vrot.slane %v5789, 2
        %v5792 = vrot.slane %v5569, 7
        %v5793 = vsel %vm2733, %v5791, %v5792
        %v5794 = vrot.slane %v5792, 2
        %v5795 = vrot.slane %v5570, 7
        %v5796 = vsel %vm2733, %v5794, %v5795
        %v5797 = vrot.slane %v5795, 2
        %v5798 = vrot.slane %v5571, 7
        %v5799 = vsel %vm2733, %v5797, %v5798
        %v5800 = vrot.slane %v5798, 2
        %v5801 = vrot.slane %v5572, 7
        %v5802 = vsel %vm2733, %v5800, %v5801
        %v5803 = vrot.slane %v5801, 2
        %v5804 = vrot.slane %v5573, 7
        %v5805 = vsel %vm2733, %v5803, %v5804
        %v5806 = vrot.slane %v5804, 2
        %v5807 = vrot.slane %v5574, 7
        %v5808 = vrot.slane %v5807, 2
        %v5809 = vrot.slane %v5575, 7
        %v5810 = vsel %vm2733, %v5808, %v5809
        %v5811 = vrot.slane %v5809, 2
        %v5812 = vrot.slane %v5576, 7
        %v5813 = vsel %vm2733, %v5811, %v5812
        %v5814 = vrot.slane %v5812, 2
        %v5815 = vrot.slane %v5577, 7
        %v5816 = vsel %vm2733, %v5814, %v5815
        %v5817 = vrot.slane %v5815, 2
        %v5818 = vrot.slane %v5578, 7
        %v5819 = vsel %vm2733, %v5817, %v5818
        %v5820 = vrot.slane %v5818, 2
        %v5821 = vrot.slane %v5579, 7
        %v5822 = vsel %vm2733, %v5820, %v5821
        %v5823 = vrot.slane %v5821, 2
        %v5824 = vrot.slane %v5580, 7
        %v5825 = vsel %vm2733, %v5823, %v5824
        %v5826 = vrot.slane %v5824, 2
        %v5827 = vrot.slane %v5581, 7
        %v5828 = vsel %vm2733, %v5826, %v5827
        %v5829 = vrot.slane %v5827, 2
        %v5902 = vmul.f32 %v2519, %v5646
        %v5903 = vmul.f32 %v2520, %v5649
        %v5904 = vmul.f32 %v2521, %v5652
        %v5905 = vmul.f32 %v2522, %v5655
        %v5906 = vmul.f32 %v2523, %v5658
        %v5907 = vmul.f32 %v2524, %v5661
        %v5908 = vmul.f32 %v2525, %v5664
        %v5909 = vmul.f32 %v2526, %v5667
        %v5910 = vmul.f32 %v2527, %v5668
        %v5911 = vmul.f32 %v2528, %v5669
        %v5912 = vmul.f32 %v2529, %v5672
        %v5913 = vmul.f32 %v2530, %v5675
        %v5914 = vmul.f32 %v2531, %v5678
        %v5915 = vmul.f32 %v2532, %v5681
        %v5916 = vmul.f32 %v2533, %v5684
        %v5917 = vmul.f32 %v2534, %v5687
        %v5918 = vmul.f32 %v2535, %v5690
        %v5919 = vmul.f32 %v2536, %v5691
        %v5920 = vmul.f32 %v2537, %v5692
        %v5921 = vmul.f32 %v2538, %v5695
        %v5922 = vmul.f32 %v2539, %v5698
        %v5923 = vmul.f32 %v2540, %v5701
        %v5924 = vmul.f32 %v2541, %v5704
        %v5925 = vmul.f32 %v2542, %v5707
        %v5926 = vmul.f32 %v2543, %v5710
        %v5927 = vmul.f32 %v2544, %v5713
        %v5928 = vmul.f32 %v2545, %v5714
        %v5929 = vmul.f32 %v2546, %v5715
        %v5930 = vmul.f32 %v2547, %v5718
        %v5931 = vmul.f32 %v2548, %v5721
        %v5932 = vmul.f32 %v2549, %v5724
        %v5933 = vmul.f32 %v2550, %v5727
        %v5934 = vmul.f32 %v2551, %v5730
        %v5935 = vmul.f32 %v2552, %v5733
        %v5936 = vmul.f32 %v2553, %v5736
        %v5937 = vmul.f32 %v2554, %v5737
        %v5938 = vmul.f32 %v2555, %v5738
        %v5939 = vmul.f32 %v2556, %v5741
        %v5940 = vmul.f32 %v2557, %v5744
        %v5941 = vmul.f32 %v2558, %v5747
        %v5942 = vmul.f32 %v2559, %v5750
        %v5943 = vmul.f32 %v2560, %v5753
        %v5944 = vmul.f32 %v2561, %v5756
        %v5945 = vmul.f32 %v2562, %v5759
        %v5946 = vmul.f32 %v2563, %v5760
        %v5947 = vmul.f32 %v2564, %v5761
        %v5948 = vmul.f32 %v2565, %v5764
        %v5949 = vmul.f32 %v2566, %v5767
        %v5950 = vmul.f32 %v2567, %v5770
        %v5951 = vmul.f32 %v2568, %v5773
        %v5952 = vmul.f32 %v2569, %v5776
        %v5953 = vmul.f32 %v2570, %v5779
        %v5954 = vmul.f32 %v2571, %v5782
        %v5955 = vmul.f32 %v2572, %v5783
        %v5956 = vmul.f32 %v2573, %v5784
        %v5957 = vmul.f32 %v2574, %v5787
        %v5958 = vmul.f32 %v2575, %v5790
        %v5959 = vmul.f32 %v2576, %v5793
        %v5960 = vmul.f32 %v2577, %v5796
        %v5961 = vmul.f32 %v2578, %v5799
        %v5962 = vmul.f32 %v2579, %v5802
        %v5963 = vmul.f32 %v2580, %v5805
        %v5964 = vmul.f32 %v2581, %v5806
        %v5965 = vmul.f32 %v2582, %v5807
        %v5966 = vmul.f32 %v2583, %v5810
        %v5967 = vmul.f32 %v2584, %v5813
        %v5968 = vmul.f32 %v2585, %v5816
        %v5969 = vmul.f32 %v2586, %v5819
        %v5970 = vmul.f32 %v2587, %v5822
        %v5971 = vmul.f32 %v2588, %v5825
        %v5972 = vmul.f32 %v2589, %v5828
        %v5973 = vmul.f32 %v2590, %v5829
        %v5974 = vmax.f32 %v5420, %v5902
        %v5975 = vmax.f32 %v5421, %v5903
        %v5976 = vmax.f32 %v5422, %v5904
        %v5977 = vmax.f32 %v5423, %v5905
        %v5978 = vmax.f32 %v5424, %v5906
        %v5979 = vmax.f32 %v5425, %v5907
        %v5980 = vmax.f32 %v5426, %v5908
        %v5981 = vmax.f32 %v5427, %v5909
        %v5982 = vmax.f32 %v5428, %v5910
        %v5983 = vmax.f32 %v5429, %v5911
        %v5984 = vmax.f32 %v5430, %v5912
        %v5985 = vmax.f32 %v5431, %v5913
        %v5986 = vmax.f32 %v5432, %v5914
        %v5987 = vmax.f32 %v5433, %v5915
        %v5988 = vmax.f32 %v5434, %v5916
        %v5989 = vmax.f32 %v5435, %v5917
        %v5990 = vmax.f32 %v5436, %v5918
        %v5991 = vmax.f32 %v5437, %v5919
        %v5992 = vmax.f32 %v5438, %v5920
        %v5993 = vmax.f32 %v5439, %v5921
        %v5994 = vmax.f32 %v5440, %v5922
        %v5995 = vmax.f32 %v5441, %v5923
        %v5996 = vmax.f32 %v5442, %v5924
        %v5997 = vmax.f32 %v5443, %v5925
        %v5998 = vmax.f32 %v5444, %v5926
        %v5999 = vmax.f32 %v5445, %v5927
        %v6000 = vmax.f32 %v5446, %v5928
        %v6001 = vmax.f32 %v5447, %v5929
        %v6002 = vmax.f32 %v5448, %v5930
        %v6003 = vmax.f32 %v5449, %v5931
        %v6004 = vmax.f32 %v5450, %v5932
        %v6005 = vmax.f32 %v5451, %v5933
        %v6006 = vmax.f32 %v5452, %v5934
        %v6007 = vmax.f32 %v5453, %v5935
        %v6008 = vmax.f32 %v5454, %v5936
        %v6009 = vmax.f32 %v5455, %v5937
        %v6010 = vmax.f32 %v5456, %v5938
        %v6011 = vmax.f32 %v5457, %v5939
        %v6012 = vmax.f32 %v5458, %v5940
        %v6013 = vmax.f32 %v5459, %v5941
        %v6014 = vmax.f32 %v5460, %v5942
        %v6015 = vmax.f32 %v5461, %v5943
        %v6016 = vmax.f32 %v5462, %v5944
        %v6017 = vmax.f32 %v5463, %v5945
        %v6018 = vmax.f32 %v5464, %v5946
        %v6019 = vmax.f32 %v5465, %v5947
        %v6020 = vmax.f32 %v5466, %v5948
        %v6021 = vmax.f32 %v5467, %v5949
        %v6022 = vmax.f32 %v5468, %v5950
        %v6023 = vmax.f32 %v5469, %v5951
        %v6024 = vmax.f32 %v5470, %v5952
        %v6025 = vmax.f32 %v5471, %v5953
        %v6026 = vmax.f32 %v5472, %v5954
        %v6027 = vmax.f32 %v5473, %v5955
        %v6028 = vmax.f32 %v5474, %v5956
        %v6029 = vmax.f32 %v5475, %v5957
        %v6030 = vmax.f32 %v5476, %v5958
        %v6031 = vmax.f32 %v5477, %v5959
        %v6032 = vmax.f32 %v5478, %v5960
        %v6033 = vmax.f32 %v5479, %v5961
        %v6034 = vmax.f32 %v5480, %v5962
        %v6035 = vmax.f32 %v5481, %v5963
        %v6036 = vmax.f32 %v5482, %v5964
        %v6037 = vmax.f32 %v5483, %v5965
        %v6038 = vmax.f32 %v5484, %v5966
        %v6039 = vmax.f32 %v5485, %v5967
        %v6040 = vmax.f32 %v5486, %v5968
        %v6041 = vmax.f32 %v5487, %v5969
        %v6042 = vmax.f32 %v5488, %v5970
        %v6043 = vmax.f32 %v5489, %v5971
        %v6044 = vmax.f32 %v5490, %v5972
        %v6045 = vmax.f32 %v5491, %v5973
        %v6046 = vlaneseq
        %v6047 = vshrl.u32 %v6046, 7
        %v6048 = vsub.s32 0, %v6047
        %v6049 = vrot.slane %v2428, %v6048
        %v6051 = vcombine.high %v6049, %v6049
        %v6053 = vunpack.c.l.s4 1983009808
        %v6054 = vunpack.c.0.s8 %v6053
        %v6055 = vlaneseq
        %v6056 = vshrl.u32 %v6055, 7
        %v6057 = vsub.s32 %v6054, %v6056
        %v6058 = vrot.slane %v6049, %v6057
        %v6060 = vunpack.c.l.s4 1983009808
        %v6061 = vunpack.c.0.s8 %v6060
        %v6062 = vlaneseq
        %v6063 = vshrl.u32 %v6062, 7
        %v6064 = vsub.s32 %v6061, %v6063
        %v6065 = vrot.slane %v6051, %v6064
        %v6066 = vcombine.high %v6058, %v6058
        %v6067 = vcombine.high %v6065, %v6065
        %v6072 = vadd.f32 %v1724, %v6058
        %v6073 = vadd.f32 %v1756, %v6066
        %v6074 = vadd.f32 %v1757, %v6065
        %v6075 = vadd.f32 %v1758, %v6067
        %v6076 = vadd.f32 %v1759, %v6058
        %v6077 = vadd.f32 %v1791, %v6066
        %v6078 = vadd.f32 %v1792, %v6065
        %v6079 = vadd.f32 %v1793, %v6067
        %v6080 = vadd.f32 %v1826, %v6058
        %v6081 = vadd.f32 %v1827, %v6066
        %v6082 = vadd.f32 %v1828, %v6065
        %v6083 = vadd.f32 %v1829, %v6067
        %v6084 = vadd.f32 %v1861, %v6058
        %v6085 = vadd.f32 %v1862, %v6066
        %v6086 = vadd.f32 %v1863, %v6065
        %v6087 = vadd.f32 %v1864, %v6067
        %v6088 = vadd.f32 %v1897, %v6058
        %v6089 = vadd.f32 %v1898, %v6066
        %v6090 = vadd.f32 %v1899, %v6065
        %v6091 = vadd.f32 %v1931, %v6067
        %v6092 = vadd.f32 %v1932, %v6058
        %v6093 = vadd.f32 %v1933, %v6066
        %v6094 = vadd.f32 %v1934, %v6065
        %v6095 = vadd.f32 %v1966, %v6067
        %v6096 = vadd.f32 %v1968, %v6058
        %v6097 = vadd.f32 %v1969, %v6066
        %v6098 = vadd.f32 %v2001, %v6065
        %v6099 = vadd.f32 %v2002, %v6067
        %v6100 = vadd.f32 %v2003, %v6058
        %v6101 = vadd.f32 %v2004, %v6066
        %v6102 = vadd.f32 %v2036, %v6065
        %v6103 = vadd.f32 %v2037, %v6067
        %v6104 = vadd.f32 %v2039, %v6058
        %v6105 = vadd.f32 %v2071, %v6066
        %v6106 = vadd.f32 %v2072, %v6065
        %v6107 = vadd.f32 %v2073, %v6067
        %v6108 = vadd.f32 %v2074, %v6058
        %v6109 = vadd.f32 %v2106, %v6066
        %v6110 = vadd.f32 %v2107, %v6065
        %v6111 = vadd.f32 %v2108, %v6067
        %v6112 = vadd.f32 %v2141, %v6058
        %v6113 = vadd.f32 %v2142, %v6066
        %v6114 = vadd.f32 %v2143, %v6065
        %v6115 = vadd.f32 %v2144, %v6067
        %v6116 = vadd.f32 %v2176, %v6058
        %v6117 = vadd.f32 %v2177, %v6066
        %v6118 = vadd.f32 %v2178, %v6065
        %v6119 = vadd.f32 %v2179, %v6067
        %v6120 = vadd.f32 %v2212, %v6058
        %v6121 = vadd.f32 %v2213, %v6066
        %v6122 = vadd.f32 %v2214, %v6065
        %v6123 = vadd.f32 %v2246, %v6067
        %v6124 = vadd.f32 %v2247, %v6058
        %v6125 = vadd.f32 %v2248, %v6066
        %v6126 = vadd.f32 %v2249, %v6065
        %v6127 = vadd.f32 %v2281, %v6067
        %v6128 = vadd.f32 %v2283, %v6058
        %v6129 = vadd.f32 %v2284, %v6066
        %v6130 = vadd.f32 %v2316, %v6065
        %v6131 = vadd.f32 %v2317, %v6067
        %v6132 = vadd.f32 %v2318, %v6058
        %v6133 = vadd.f32 %v2319, %v6066
        %v6134 = vadd.f32 %v2335, %v6065
        %v6135 = vadd.f32 %v2336, %v6067
        %v6200 = vrot.slane %v6072, 7
        %v6201 = vrot.slane %v6200, 2
        %v6202 = vrot.slane %v6073, 7
        %v6203 = vsel %vm2733, %v6201, %v6202
        %v6204 = vrot.slane %v6202, 2
        %v6205 = vrot.slane %v6074, 7
        %v6206 = vsel %vm2733, %v6204, %v6205
        %v6207 = vrot.slane %v6205, 2
        %v6208 = vrot.slane %v6075, 7
        %v6209 = vsel %vm2733, %v6207, %v6208
        %v6210 = vrot.slane %v6208, 2
        %v6211 = vrot.slane %v6076, 7
        %v6212 = vsel %vm2733, %v6210, %v6211
        %v6213 = vrot.slane %v6211, 2
        %v6214 = vrot.slane %v6077, 7
        %v6215 = vsel %vm2733, %v6213, %v6214
        %v6216 = vrot.slane %v6214, 2
        %v6217 = vrot.slane %v6078, 7
        %v6218 = vsel %vm2733, %v6216, %v6217
        %v6219 = vrot.slane %v6217, 2
        %v6220 = vrot.slane %v6079, 7
        %v6221 = vsel %vm2733, %v6219, %v6220
        %v6222 = vrot.slane %v6220, 2
        %v6223 = vrot.slane %v6080, 7
        %v6224 = vrot.slane %v6223, 2
        %v6225 = vrot.slane %v6081, 7
        %v6226 = vsel %vm2733, %v6224, %v6225
        %v6227 = vrot.slane %v6225, 2
        %v6228 = vrot.slane %v6082, 7
        %v6229 = vsel %vm2733, %v6227, %v6228
        %v6230 = vrot.slane %v6228, 2
        %v6231 = vrot.slane %v6083, 7
        %v6232 = vsel %vm2733, %v6230, %v6231
        %v6233 = vrot.slane %v6231, 2
        %v6234 = vrot.slane %v6084, 7
        %v6235 = vsel %vm2733, %v6233, %v6234
        %v6236 = vrot.slane %v6234, 2
        %v6237 = vrot.slane %v6085, 7
        %v6238 = vsel %vm2733, %v6236, %v6237
        %v6239 = vrot.slane %v6237, 2
        %v6240 = vrot.slane %v6086, 7
        %v6241 = vsel %vm2733, %v6239, %v6240
        %v6242 = vrot.slane %v6240, 2
        %v6243 = vrot.slane %v6087, 7
        %v6244 = vsel %vm2733, %v6242, %v6243
        %v6245 = vrot.slane %v6243, 2
        %v6246 = vrot.slane %v6088, 7
        %v6247 = vrot.slane %v6246, 2
        %v6248 = vrot.slane %v6089, 7
        %v6249 = vsel %vm2733, %v6247, %v6248
        %v6250 = vrot.slane %v6248, 2
        %v6251 = vrot.slane %v6090, 7
        %v6252 = vsel %vm2733, %v6250, %v6251
        %v6253 = vrot.slane %v6251, 2
        %v6254 = vrot.slane %v6091, 7
        %v6255 = vsel %vm2733, %v6253, %v6254
        %v6256 = vrot.slane %v6254, 2
        %v6257 = vrot.slane %v6092, 7
        %v6258 = vsel %vm2733, %v6256, %v6257
        %v6259 = vrot.slane %v6257, 2
        %v6260 = vrot.slane %v6093, 7
        %v6261 = vsel %vm2733, %v6259, %v6260
        %v6262 = vrot.slane %v6260, 2
        %v6263 = vrot.slane %v6094, 7
        %v6264 = vsel %vm2733, %v6262, %v6263
        %v6265 = vrot.slane %v6263, 2
        %v6266 = vrot.slane %v6095, 7
        %v6267 = vsel %vm2733, %v6265, %v6266
        %v6268 = vrot.slane %v6266, 2
        %v6269 = vrot.slane %v6096, 7
        %v6270 = vrot.slane %v6269, 2
        %v6271 = vrot.slane %v6097, 7
        %v6272 = vsel %vm2733, %v6270, %v6271
        %v6273 = vrot.slane %v6271, 2
        %v6274 = vrot.slane %v6098, 7
        %v6275 = vsel %vm2733, %v6273, %v6274
        %v6276 = vrot.slane %v6274, 2
        %v6277 = vrot.slane %v6099, 7
        %v6278 = vsel %vm2733, %v6276, %v6277
        %v6279 = vrot.slane %v6277, 2
        %v6280 = vrot.slane %v6100, 7
        %v6281 = vsel %vm2733, %v6279, %v6280
        %v6282 = vrot.slane %v6280, 2
        %v6283 = vrot.slane %v6101, 7
        %v6284 = vsel %vm2733, %v6282, %v6283
        %v6285 = vrot.slane %v6283, 2
        %v6286 = vrot.slane %v6102, 7
        %v6287 = vsel %vm2733, %v6285, %v6286
        %v6288 = vrot.slane %v6286, 2
        %v6289 = vrot.slane %v6103, 7
        %v6290 = vsel %vm2733, %v6288, %v6289
        %v6291 = vrot.slane %v6289, 2
        %v6292 = vrot.slane %v6104, 7
        %v6293 = vrot.slane %v6292, 2
        %v6294 = vrot.slane %v6105, 7
        %v6295 = vsel %vm2733, %v6293, %v6294
        %v6296 = vrot.slane %v6294, 2
        %v6297 = vrot.slane %v6106, 7
        %v6298 = vsel %vm2733, %v6296, %v6297
        %v6299 = vrot.slane %v6297, 2
        %v6300 = vrot.slane %v6107, 7
        %v6301 = vsel %vm2733, %v6299, %v6300
        %v6302 = vrot.slane %v6300, 2
        %v6303 = vrot.slane %v6108, 7
        %v6304 = vsel %vm2733, %v6302, %v6303
        %v6305 = vrot.slane %v6303, 2
        %v6306 = vrot.slane %v6109, 7
        %v6307 = vsel %vm2733, %v6305, %v6306
        %v6308 = vrot.slane %v6306, 2
        %v6309 = vrot.slane %v6110, 7
        %v6310 = vsel %vm2733, %v6308, %v6309
        %v6311 = vrot.slane %v6309, 2
        %v6312 = vrot.slane %v6111, 7
        %v6313 = vsel %vm2733, %v6311, %v6312
        %v6314 = vrot.slane %v6312, 2
        %v6315 = vrot.slane %v6112, 7
        %v6316 = vrot.slane %v6315, 2
        %v6317 = vrot.slane %v6113, 7
        %v6318 = vsel %vm2733, %v6316, %v6317
        %v6319 = vrot.slane %v6317, 2
        %v6320 = vrot.slane %v6114, 7
        %v6321 = vsel %vm2733, %v6319, %v6320
        %v6322 = vrot.slane %v6320, 2
        %v6323 = vrot.slane %v6115, 7
        %v6324 = vsel %vm2733, %v6322, %v6323
        %v6325 = vrot.slane %v6323, 2
        %v6326 = vrot.slane %v6116, 7
        %v6327 = vsel %vm2733, %v6325, %v6326
        %v6328 = vrot.slane %v6326, 2
        %v6329 = vrot.slane %v6117, 7
        %v6330 = vsel %vm2733, %v6328, %v6329
        %v6331 = vrot.slane %v6329, 2
        %v6332 = vrot.slane %v6118, 7
        %v6333 = vsel %vm2733, %v6331, %v6332
        %v6334 = vrot.slane %v6332, 2
        %v6335 = vrot.slane %v6119, 7
        %v6336 = vsel %vm2733, %v6334, %v6335
        %v6337 = vrot.slane %v6335, 2
        %v6338 = vrot.slane %v6120, 7
        %v6339 = vrot.slane %v6338, 2
        %v6340 = vrot.slane %v6121, 7
        %v6341 = vsel %vm2733, %v6339, %v6340
        %v6342 = vrot.slane %v6340, 2
        %v6343 = vrot.slane %v6122, 7
        %v6344 = vsel %vm2733, %v6342, %v6343
        %v6345 = vrot.slane %v6343, 2
        %v6346 = vrot.slane %v6123, 7
        %v6347 = vsel %vm2733, %v6345, %v6346
        %v6348 = vrot.slane %v6346, 2
        %v6349 = vrot.slane %v6124, 7
        %v6350 = vsel %vm2733, %v6348, %v6349
        %v6351 = vrot.slane %v6349, 2
        %v6352 = vrot.slane %v6125, 7
        %v6353 = vsel %vm2733, %v6351, %v6352
        %v6354 = vrot.slane %v6352, 2
        %v6355 = vrot.slane %v6126, 7
        %v6356 = vsel %vm2733, %v6354, %v6355
        %v6357 = vrot.slane %v6355, 2
        %v6358 = vrot.slane %v6127, 7
        %v6359 = vsel %vm2733, %v6357, %v6358
        %v6360 = vrot.slane %v6358, 2
        %v6361 = vrot.slane %v6128, 7
        %v6362 = vrot.slane %v6361, 2
        %v6363 = vrot.slane %v6129, 7
        %v6364 = vsel %vm2733, %v6362, %v6363
        %v6365 = vrot.slane %v6363, 2
        %v6366 = vrot.slane %v6130, 7
        %v6367 = vsel %vm2733, %v6365, %v6366
        %v6368 = vrot.slane %v6366, 2
        %v6369 = vrot.slane %v6131, 7
        %v6370 = vsel %vm2733, %v6368, %v6369
        %v6371 = vrot.slane %v6369, 2
        %v6372 = vrot.slane %v6132, 7
        %v6373 = vsel %vm2733, %v6371, %v6372
        %v6374 = vrot.slane %v6372, 2
        %v6375 = vrot.slane %v6133, 7
        %v6376 = vsel %vm2733, %v6374, %v6375
        %v6377 = vrot.slane %v6375, 2
        %v6378 = vrot.slane %v6134, 7
        %v6379 = vsel %vm2733, %v6377, %v6378
        %v6380 = vrot.slane %v6378, 2
        %v6381 = vrot.slane %v6135, 7
        %v6382 = vsel %vm2733, %v6380, %v6381
        %v6383 = vrot.slane %v6381, 2
        %v6456 = vmul.f32 %v2519, %v6200
        %v6457 = vmul.f32 %v2520, %v6203
        %v6458 = vmul.f32 %v2521, %v6206
        %v6459 = vmul.f32 %v2522, %v6209
        %v6460 = vmul.f32 %v2523, %v6212
        %v6461 = vmul.f32 %v2524, %v6215
        %v6462 = vmul.f32 %v2525, %v6218
        %v6463 = vmul.f32 %v2526, %v6221
        %v6464 = vmul.f32 %v2527, %v6222
        %v6465 = vmul.f32 %v2528, %v6223
        %v6466 = vmul.f32 %v2529, %v6226
        %v6467 = vmul.f32 %v2530, %v6229
        %v6468 = vmul.f32 %v2531, %v6232
        %v6469 = vmul.f32 %v2532, %v6235
        %v6470 = vmul.f32 %v2533, %v6238
        %v6471 = vmul.f32 %v2534, %v6241
        %v6472 = vmul.f32 %v2535, %v6244
        %v6473 = vmul.f32 %v2536, %v6245
        %v6474 = vmul.f32 %v2537, %v6246
        %v6475 = vmul.f32 %v2538, %v6249
        %v6476 = vmul.f32 %v2539, %v6252
        %v6477 = vmul.f32 %v2540, %v6255
        %v6478 = vmul.f32 %v2541, %v6258
        %v6479 = vmul.f32 %v2542, %v6261
        %v6480 = vmul.f32 %v2543, %v6264
        %v6481 = vmul.f32 %v2544, %v6267
        %v6482 = vmul.f32 %v2545, %v6268
        %v6483 = vmul.f32 %v2546, %v6269
        %v6484 = vmul.f32 %v2547, %v6272
        %v6485 = vmul.f32 %v2548, %v6275
        %v6486 = vmul.f32 %v2549, %v6278
        %v6487 = vmul.f32 %v2550, %v6281
        %v6488 = vmul.f32 %v2551, %v6284
        %v6489 = vmul.f32 %v2552, %v6287
        %v6490 = vmul.f32 %v2553, %v6290
        %v6491 = vmul.f32 %v2554, %v6291
        %v6492 = vmul.f32 %v2555, %v6292
        %v6493 = vmul.f32 %v2556, %v6295
        %v6494 = vmul.f32 %v2557, %v6298
        %v6495 = vmul.f32 %v2558, %v6301
        %v6496 = vmul.f32 %v2559, %v6304
        %v6497 = vmul.f32 %v2560, %v6307
        %v6498 = vmul.f32 %v2561, %v6310
        %v6499 = vmul.f32 %v2562, %v6313
        %v6500 = vmul.f32 %v2563, %v6314
        %v6501 = vmul.f32 %v2564, %v6315
        %v6502 = vmul.f32 %v2565, %v6318
        %v6503 = vmul.f32 %v2566, %v6321
        %v6504 = vmul.f32 %v2567, %v6324
        %v6505 = vmul.f32 %v2568, %v6327
        %v6506 = vmul.f32 %v2569, %v6330
        %v6507 = vmul.f32 %v2570, %v6333
        %v6508 = vmul.f32 %v2571, %v6336
        %v6509 = vmul.f32 %v2572, %v6337
        %v6510 = vmul.f32 %v2573, %v6338
        %v6511 = vmul.f32 %v2574, %v6341
        %v6512 = vmul.f32 %v2575, %v6344
        %v6513 = vmul.f32 %v2576, %v6347
        %v6514 = vmul.f32 %v2577, %v6350
        %v6515 = vmul.f32 %v2578, %v6353
        %v6516 = vmul.f32 %v2579, %v6356
        %v6517 = vmul.f32 %v2580, %v6359
        %v6518 = vmul.f32 %v2581, %v6360
        %v6519 = vmul.f32 %v2582, %v6361
        %v6520 = vmul.f32 %v2583, %v6364
        %v6521 = vmul.f32 %v2584, %v6367
        %v6522 = vmul.f32 %v2585, %v6370
        %v6523 = vmul.f32 %v2586, %v6373
        %v6524 = vmul.f32 %v2587, %v6376
        %v6525 = vmul.f32 %v2588, %v6379
        %v6526 = vmul.f32 %v2589, %v6382
        %v6527 = vmul.f32 %v2590, %v6383
        %v6528 = vmax.f32 %v5974, %v6456
        %v6529 = vmax.f32 %v5975, %v6457
        %v6530 = vmax.f32 %v5976, %v6458
        %v6531 = vmax.f32 %v5977, %v6459
        %v6532 = vmax.f32 %v5978, %v6460
        %v6533 = vmax.f32 %v5979, %v6461
        %v6534 = vmax.f32 %v5980, %v6462
        %v6535 = vmax.f32 %v5981, %v6463
        %v6536 = vmax.f32 %v5982, %v6464
        %v6537 = vmax.f32 %v5983, %v6465
        %v6538 = vmax.f32 %v5984, %v6466
        %v6539 = vmax.f32 %v5985, %v6467
        %v6540 = vmax.f32 %v5986, %v6468
        %v6541 = vmax.f32 %v5987, %v6469
        %v6542 = vmax.f32 %v5988, %v6470
        %v6543 = vmax.f32 %v5989, %v6471
        %v6544 = vmax.f32 %v5990, %v6472
        %v6545 = vmax.f32 %v5991, %v6473
        %v6546 = vmax.f32 %v5992, %v6474
        %v6547 = vmax.f32 %v5993, %v6475
        %v6548 = vmax.f32 %v5994, %v6476
        %v6549 = vmax.f32 %v5995, %v6477
        %v6550 = vmax.f32 %v5996, %v6478
        %v6551 = vmax.f32 %v5997, %v6479
        %v6552 = vmax.f32 %v5998, %v6480
        %v6553 = vmax.f32 %v5999, %v6481
        %v6554 = vmax.f32 %v6000, %v6482
        %v6555 = vmax.f32 %v6001, %v6483
        %v6556 = vmax.f32 %v6002, %v6484
        %v6557 = vmax.f32 %v6003, %v6485
        %v6558 = vmax.f32 %v6004, %v6486
        %v6559 = vmax.f32 %v6005, %v6487
        %v6560 = vmax.f32 %v6006, %v6488
        %v6561 = vmax.f32 %v6007, %v6489
        %v6562 = vmax.f32 %v6008, %v6490
        %v6563 = vmax.f32 %v6009, %v6491
        %v6564 = vmax.f32 %v6010, %v6492
        %v6565 = vmax.f32 %v6011, %v6493
        %v6566 = vmax.f32 %v6012, %v6494
        %v6567 = vmax.f32 %v6013, %v6495
        %v6568 = vmax.f32 %v6014, %v6496
        %v6569 = vmax.f32 %v6015, %v6497
        %v6570 = vmax.f32 %v6016, %v6498
        %v6571 = vmax.f32 %v6017, %v6499
        %v6572 = vmax.f32 %v6018, %v6500
        %v6573 = vmax.f32 %v6019, %v6501
        %v6574 = vmax.f32 %v6020, %v6502
        %v6575 = vmax.f32 %v6021, %v6503
        %v6576 = vmax.f32 %v6022, %v6504
        %v6577 = vmax.f32 %v6023, %v6505
        %v6578 = vmax.f32 %v6024, %v6506
        %v6579 = vmax.f32 %v6025, %v6507
        %v6580 = vmax.f32 %v6026, %v6508
        %v6581 = vmax.f32 %v6027, %v6509
        %v6582 = vmax.f32 %v6028, %v6510
        %v6583 = vmax.f32 %v6029, %v6511
        %v6584 = vmax.f32 %v6030, %v6512
        %v6585 = vmax.f32 %v6031, %v6513
        %v6586 = vmax.f32 %v6032, %v6514
        %v6587 = vmax.f32 %v6033, %v6515
        %v6588 = vmax.f32 %v6034, %v6516
        %v6589 = vmax.f32 %v6035, %v6517
        %v6590 = vmax.f32 %v6036, %v6518
        %v6591 = vmax.f32 %v6037, %v6519
        %v6592 = vmax.f32 %v6038, %v6520
        %v6593 = vmax.f32 %v6039, %v6521
        %v6594 = vmax.f32 %v6040, %v6522
        %v6595 = vmax.f32 %v6041, %v6523
        %v6596 = vmax.f32 %v6042, %v6524
        %v6597 = vmax.f32 %v6043, %v6525
        %v6598 = vmax.f32 %v6044, %v6526
        %v6599 = vmax.f32 %v6045, %v6527
        %v6600 = vsub.f32 %v2990, %v6528
        %v6601 = vsub.f32 %v2991, %v6529
        %v6602 = vsub.f32 %v2992, %v6530
        %v6603 = vsub.f32 %v2993, %v6531
        %v6604 = vsub.f32 %v2994, %v6532
        %v6605 = vsub.f32 %v2995, %v6533
        %v6606 = vsub.f32 %v2996, %v6534
        %v6607 = vsub.f32 %v2997, %v6535
        %v6608 = vsub.f32 %v2998, %v6536
        %v6609 = vsub.f32 %v2999, %v6537
        %v6610 = vsub.f32 %v3000, %v6538
        %v6611 = vsub.f32 %v3001, %v6539
        %v6612 = vsub.f32 %v3002, %v6540
        %v6613 = vsub.f32 %v3003, %v6541
        %v6614 = vsub.f32 %v3004, %v6542
        %v6615 = vsub.f32 %v3005, %v6543
        %v6616 = vsub.f32 %v3006, %v6544
        %v6617 = vsub.f32 %v3007, %v6545
        %v6618 = vsub.f32 %v3008, %v6546
        %v6619 = vsub.f32 %v3009, %v6547
        %v6620 = vsub.f32 %v3010, %v6548
        %v6621 = vsub.f32 %v3011, %v6549
        %v6622 = vsub.f32 %v3012, %v6550
        %v6623 = vsub.f32 %v3013, %v6551
        %v6624 = vsub.f32 %v3014, %v6552
        %v6625 = vsub.f32 %v3015, %v6553
        %v6626 = vsub.f32 %v3016, %v6554
        %v6627 = vsub.f32 %v3017, %v6555
        %v6628 = vsub.f32 %v3018, %v6556
        %v6629 = vsub.f32 %v3019, %v6557
        %v6630 = vsub.f32 %v3020, %v6558
        %v6631 = vsub.f32 %v3021, %v6559
        %v6632 = vsub.f32 %v3022, %v6560
        %v6633 = vsub.f32 %v3023, %v6561
        %v6634 = vsub.f32 %v3024, %v6562
        %v6635 = vsub.f32 %v3025, %v6563
        %v6636 = vsub.f32 %v3026, %v6564
        %v6637 = vsub.f32 %v3027, %v6565
        %v6638 = vsub.f32 %v3028, %v6566
        %v6639 = vsub.f32 %v3029, %v6567
        %v6640 = vsub.f32 %v3030, %v6568
        %v6641 = vsub.f32 %v3031, %v6569
        %v6642 = vsub.f32 %v3032, %v6570
        %v6643 = vsub.f32 %v3033, %v6571
        %v6644 = vsub.f32 %v3034, %v6572
        %v6645 = vsub.f32 %v3035, %v6573
        %v6646 = vsub.f32 %v3036, %v6574
        %v6647 = vsub.f32 %v3037, %v6575
        %v6648 = vsub.f32 %v3038, %v6576
        %v6649 = vsub.f32 %v3039, %v6577
        %v6650 = vsub.f32 %v3040, %v6578
        %v6651 = vsub.f32 %v3041, %v6579
        %v6652 = vsub.f32 %v3042, %v6580
        %v6653 = vsub.f32 %v3043, %v6581
        %v6654 = vsub.f32 %v3044, %v6582
        %v6655 = vsub.f32 %v3045, %v6583
        %v6656 = vsub.f32 %v3046, %v6584
        %v6657 = vsub.f32 %v3047, %v6585
        %v6658 = vsub.f32 %v3048, %v6586
        %v6659 = vsub.f32 %v3049, %v6587
        %v6660 = vsub.f32 %v3050, %v6588
        %v6661 = vsub.f32 %v3051, %v6589
        %v6662 = vsub.f32 %v3052, %v6590
        %v6663 = vsub.f32 %v3053, %v6591
        %v6664 = vsub.f32 %v3054, %v6592
        %v6665 = vsub.f32 %v3055, %v6593
        %v6666 = vsub.f32 %v3056, %v6594
        %v6667 = vsub.f32 %v3057, %v6595
        %v6668 = vsub.f32 %v3058, %v6596
        %v6669 = vsub.f32 %v3059, %v6597
        %v6670 = vsub.f32 %v3060, %v6598
        %v6671 = vsub.f32 %v3061, %v6599
        %v6672 = vmul.f32 %v6600, 1.442695
        %v6673 = vpow.pop %v6672
        %v6674 = vmul.f32 %v6601, 1.442695
        %v6675 = vpow.pop %v6674
        %v6676 = vmul.f32 %v6602, 1.442695
        %v6677 = vpow.pop %v6676
        %v6678 = vmul.f32 %v6603, 1.442695
        %v6679 = vpow.pop %v6678
        %v6680 = vmul.f32 %v6604, 1.442695
        %v6681 = vpow.pop %v6680
        %v6682 = vmul.f32 %v6605, 1.442695
        %v6683 = vpow.pop %v6682
        %v6684 = vmul.f32 %v6606, 1.442695
        %v6685 = vpow.pop %v6684
        %v6686 = vmul.f32 %v6607, 1.442695
        %v6687 = vpow.pop %v6686
        %v6688 = vmul.f32 %v6608, 1.442695
        %v6689 = vpow.pop %v6688
        %v6690 = vmul.f32 %v6609, 1.442695
        %v6691 = vpow.pop %v6690
        %v6692 = vmul.f32 %v6610, 1.442695
        %v6693 = vpow.pop %v6692
        %v6694 = vmul.f32 %v6611, 1.442695
        %v6695 = vpow.pop %v6694
        %v6696 = vmul.f32 %v6612, 1.442695
        %v6697 = vpow.pop %v6696
        %v6698 = vmul.f32 %v6613, 1.442695
        %v6699 = vpow.pop %v6698
        %v6700 = vmul.f32 %v6614, 1.442695
        %v6701 = vpow.pop %v6700
        %v6702 = vmul.f32 %v6615, 1.442695
        %v6703 = vpow.pop %v6702
        %v6704 = vmul.f32 %v6616, 1.442695
        %v6705 = vpow.pop %v6704
        %v6706 = vmul.f32 %v6617, 1.442695
        %v6707 = vpow.pop %v6706
        %v6708 = vmul.f32 %v6618, 1.442695
        %v6709 = vpow.pop %v6708
        %v6710 = vmul.f32 %v6619, 1.442695
        %v6711 = vpow.pop %v6710
        %v6712 = vmul.f32 %v6620, 1.442695
        %v6713 = vpow.pop %v6712
        %v6714 = vmul.f32 %v6621, 1.442695
        %v6715 = vpow.pop %v6714
        %v6716 = vmul.f32 %v6622, 1.442695
        %v6717 = vpow.pop %v6716
        %v6718 = vmul.f32 %v6623, 1.442695
        %v6719 = vpow.pop %v6718
        %v6720 = vmul.f32 %v6624, 1.442695
        %v6721 = vpow.pop %v6720
        %v6722 = vmul.f32 %v6625, 1.442695
        %v6723 = vpow.pop %v6722
        %v6724 = vmul.f32 %v6626, 1.442695
        %v6725 = vpow.pop %v6724
        %v6726 = vmul.f32 %v6627, 1.442695
        %v6727 = vpow.pop %v6726
        %v6728 = vmul.f32 %v6628, 1.442695
        %v6729 = vpow.pop %v6728
        %v6730 = vmul.f32 %v6629, 1.442695
        %v6731 = vpow.pop %v6730
        %v6732 = vmul.f32 %v6630, 1.442695
        %v6733 = vpow.pop %v6732
        %v6734 = vmul.f32 %v6631, 1.442695
        %v6735 = vpow.pop %v6734
        %v6736 = vmul.f32 %v6632, 1.442695
        %v6737 = vpow.pop %v6736
        %v6738 = vmul.f32 %v6633, 1.442695
        %v6739 = vpow.pop %v6738
        %v6740 = vmul.f32 %v6634, 1.442695
        %v6741 = vpow.pop %v6740
        %v6742 = vmul.f32 %v6635, 1.442695
        %v6743 = vpow.pop %v6742
        %v6744 = vmul.f32 %v6636, 1.442695
        %v6745 = vpow.pop %v6744
        %v6746 = vmul.f32 %v6637, 1.442695
        %v6747 = vpow.pop %v6746
        %v6748 = vmul.f32 %v6638, 1.442695
        %v6749 = vpow.pop %v6748
        %v6750 = vmul.f32 %v6639, 1.442695
        %v6751 = vpow.pop %v6750
        %v6752 = vmul.f32 %v6640, 1.442695
        %v6753 = vpow.pop %v6752
        %v6754 = vmul.f32 %v6641, 1.442695
        %v6755 = vpow.pop %v6754
        %v6756 = vmul.f32 %v6642, 1.442695
        %v6757 = vpow.pop %v6756
        %v6758 = vmul.f32 %v6643, 1.442695
        %v6759 = vpow.pop %v6758
        %v6760 = vmul.f32 %v6644, 1.442695
        %v6761 = vpow.pop %v6760
        %v6762 = vmul.f32 %v6645, 1.442695
        %v6763 = vpow.pop %v6762
        %v6764 = vmul.f32 %v6646, 1.442695
        %v6765 = vpow.pop %v6764
        %v6766 = vmul.f32 %v6647, 1.442695
        %v6767 = vpow.pop %v6766
        %v6768 = vmul.f32 %v6648, 1.442695
        %v6769 = vpow.pop %v6768
        %v6770 = vmul.f32 %v6649, 1.442695
        %v6771 = vpow.pop %v6770
        %v6772 = vmul.f32 %v6650, 1.442695
        %v6773 = vpow.pop %v6772
        %v6774 = vmul.f32 %v6651, 1.442695
        %v6775 = vpow.pop %v6774
        %v6776 = vmul.f32 %v6652, 1.442695
        %v6777 = vpow.pop %v6776
        %v6778 = vmul.f32 %v6653, 1.442695
        %v6779 = vpow.pop %v6778
        %v6780 = vmul.f32 %v6654, 1.442695
        %v6781 = vpow.pop %v6780
        %v6782 = vmul.f32 %v6655, 1.442695
        %v6783 = vpow.pop %v6782
        %v6784 = vmul.f32 %v6656, 1.442695
        %v6785 = vpow.pop %v6784
        %v6786 = vmul.f32 %v6657, 1.442695
        %v6787 = vpow.pop %v6786
        %v6788 = vmul.f32 %v6658, 1.442695
        %v6789 = vpow.pop %v6788
        %v6790 = vmul.f32 %v6659, 1.442695
        %v6791 = vpow.pop %v6790
        %v6792 = vmul.f32 %v6660, 1.442695
        %v6793 = vpow.pop %v6792
        %v6794 = vmul.f32 %v6661, 1.442695
        %v6795 = vpow.pop %v6794
        %v6796 = vmul.f32 %v6662, 1.442695
        %v6797 = vpow.pop %v6796
        %v6798 = vmul.f32 %v6663, 1.442695
        %v6799 = vpow.pop %v6798
        %v6800 = vmul.f32 %v6664, 1.442695
        %v6801 = vpow.pop %v6800
        %v6802 = vmul.f32 %v6665, 1.442695
        %v6803 = vpow.pop %v6802
        %v6804 = vmul.f32 %v6666, 1.442695
        %v6805 = vpow.pop %v6804
        %v6806 = vmul.f32 %v6667, 1.442695
        %v6807 = vpow.pop %v6806
        %v6808 = vmul.f32 %v6668, 1.442695
        %v6809 = vpow.pop %v6808
        %v6810 = vmul.f32 %v6669, 1.442695
        %v6811 = vpow.pop %v6810
        %v6812 = vmul.f32 %v6670, 1.442695
        %v6813 = vpow.pop %v6812
        %v6814 = vmul.f32 %v6671, 1.442695
        %v6815 = vpow.pop %v6814
        %v6816 = vadd.f32 %v6673, 0.0
        %v6817 = vadd.f32 %v6675, 0.0
        %v6818 = vadd.f32 %v6677, 0.0
        %v6819 = vadd.f32 %v6679, 0.0
        %v6820 = vadd.f32 %v6681, 0.0
        %v6821 = vadd.f32 %v6683, 0.0
        %v6822 = vadd.f32 %v6685, 0.0
        %v6823 = vadd.f32 %v6687, 0.0
        %v6824 = vadd.f32 %v6689, 0.0
        %v6825 = vadd.f32 %v6691, 0.0
        %v6826 = vadd.f32 %v6693, 0.0
        %v6827 = vadd.f32 %v6695, 0.0
        %v6828 = vadd.f32 %v6697, 0.0
        %v6829 = vadd.f32 %v6699, 0.0
        %v6830 = vadd.f32 %v6701, 0.0
        %v6831 = vadd.f32 %v6703, 0.0
        %v6832 = vadd.f32 %v6705, 0.0
        %v6833 = vadd.f32 %v6707, 0.0
        %v6834 = vadd.f32 %v6709, 0.0
        %v6835 = vadd.f32 %v6711, 0.0
        %v6836 = vadd.f32 %v6713, 0.0
        %v6837 = vadd.f32 %v6715, 0.0
        %v6838 = vadd.f32 %v6717, 0.0
        %v6839 = vadd.f32 %v6719, 0.0
        %v6840 = vadd.f32 %v6721, 0.0
        %v6841 = vadd.f32 %v6723, 0.0
        %v6842 = vadd.f32 %v6725, 0.0
        %v6843 = vadd.f32 %v6727, 0.0
        %v6844 = vadd.f32 %v6729, 0.0
        %v6845 = vadd.f32 %v6731, 0.0
        %v6846 = vadd.f32 %v6733, 0.0
        %v6847 = vadd.f32 %v6735, 0.0
        %v6848 = vadd.f32 %v6737, 0.0
        %v6849 = vadd.f32 %v6739, 0.0
        %v6850 = vadd.f32 %v6741, 0.0
        %v6851 = vadd.f32 %v6743, 0.0
        %v6852 = vadd.f32 %v6745, 0.0
        %v6853 = vadd.f32 %v6747, 0.0
        %v6854 = vadd.f32 %v6749, 0.0
        %v6855 = vadd.f32 %v6751, 0.0
        %v6856 = vadd.f32 %v6753, 0.0
        %v6857 = vadd.f32 %v6755, 0.0
        %v6858 = vadd.f32 %v6757, 0.0
        %v6859 = vadd.f32 %v6759, 0.0
        %v6860 = vadd.f32 %v6761, 0.0
        %v6861 = vadd.f32 %v6763, 0.0
        %v6862 = vadd.f32 %v6765, 0.0
        %v6863 = vadd.f32 %v6767, 0.0
        %v6864 = vadd.f32 %v6769, 0.0
        %v6865 = vadd.f32 %v6771, 0.0
        %v6866 = vadd.f32 %v6773, 0.0
        %v6867 = vadd.f32 %v6775, 0.0
        %v6868 = vadd.f32 %v6777, 0.0
        %v6869 = vadd.f32 %v6779, 0.0
        %v6870 = vadd.f32 %v6781, 0.0
        %v6871 = vadd.f32 %v6783, 0.0
        %v6872 = vadd.f32 %v6785, 0.0
        %v6873 = vadd.f32 %v6787, 0.0
        %v6874 = vadd.f32 %v6789, 0.0
        %v6875 = vadd.f32 %v6791, 0.0
        %v6876 = vadd.f32 %v6793, 0.0
        %v6877 = vadd.f32 %v6795, 0.0
        %v6878 = vadd.f32 %v6797, 0.0
        %v6879 = vadd.f32 %v6799, 0.0
        %v6880 = vadd.f32 %v6801, 0.0
        %v6881 = vadd.f32 %v6803, 0.0
        %v6882 = vadd.f32 %v6805, 0.0
        %v6883 = vadd.f32 %v6807, 0.0
        %v6884 = vadd.f32 %v6809, 0.0
        %v6885 = vadd.f32 %v6811, 0.0
        %v6886 = vadd.f32 %v6813, 0.0
        %v6887 = vadd.f32 %v6815, 0.0
        %v6888 = vrot.slane %v1581, 7
        %v6889 = vrot.slane %v6888, 2
        %v6890 = vrot.slane %v1582, 7
        %v6891 = vsel %vm2733, %v6889, %v6890
        %v6892 = vrot.slane %v6890, 2
        %v6893 = vrot.slane %v1583, 7
        %v6894 = vsel %vm2733, %v6892, %v6893
        %v6895 = vrot.slane %v6893, 2
        %v6896 = vrot.slane %v1584, 7
        %v6897 = vsel %vm2733, %v6895, %v6896
        %v6898 = vrot.slane %v6896, 2
        %v6899 = vrot.slane %v1616, 7
        %v6900 = vsel %vm2733, %v6898, %v6899
        %v6901 = vrot.slane %v6899, 2
        %v6902 = vrot.slane %v1617, 7
        %v6903 = vsel %vm2733, %v6901, %v6902
        %v6904 = vrot.slane %v6902, 2
        %v6905 = vrot.slane %v1618, 7
        %v6906 = vsel %vm2733, %v6904, %v6905
        %v6907 = vrot.slane %v6905, 2
        %v6908 = vrot.slane %v1619, 7
        %v6909 = vsel %vm2733, %v6907, %v6908
        %v6910 = vrot.slane %v6908, 2
        %v6911 = vrot.slane %v1652, 7
        %v6912 = vrot.slane %v6911, 2
        %v6913 = vrot.slane %v1653, 7
        %v6914 = vsel %vm2733, %v6912, %v6913
        %v6915 = vrot.slane %v6913, 2
        %v6916 = vrot.slane %v1654, 7
        %v6917 = vsel %vm2733, %v6915, %v6916
        %v6918 = vrot.slane %v6916, 2
        %v6919 = vrot.slane %v1686, 7
        %v6920 = vsel %vm2733, %v6918, %v6919
        %v6921 = vrot.slane %v6919, 2
        %v6922 = vrot.slane %v1687, 7
        %v6923 = vsel %vm2733, %v6921, %v6922
        %v6924 = vrot.slane %v6922, 2
        %v6925 = vrot.slane %v1688, 7
        %v6926 = vsel %vm2733, %v6924, %v6925
        %v6927 = vrot.slane %v6925, 2
        %v6928 = vrot.slane %v1689, 7
        %v6929 = vsel %vm2733, %v6927, %v6928
        %v6930 = vrot.slane %v6928, 2
        %v6931 = vrot.slane %v1721, 7
        %v6932 = vsel %vm2733, %v6930, %v6931
        %v6933 = vrot.slane %v6931, 2
        %v6934 = vrot.slane %v1723, 7
        %v6935 = vrot.slane %v6934, 2
        %v6936 = vrot.slane %v1724, 7
        %v6937 = vsel %vm2733, %v6935, %v6936
        %v6938 = vrot.slane %v6936, 2
        %v6939 = vrot.slane %v1756, 7
        %v6940 = vsel %vm2733, %v6938, %v6939
        %v6941 = vrot.slane %v6939, 2
        %v6942 = vrot.slane %v1757, 7
        %v6943 = vsel %vm2733, %v6941, %v6942
        %v6944 = vrot.slane %v6942, 2
        %v6945 = vrot.slane %v1758, 7
        %v6946 = vsel %vm2733, %v6944, %v6945
        %v6947 = vrot.slane %v6945, 2
        %v6948 = vrot.slane %v1759, 7
        %v6949 = vsel %vm2733, %v6947, %v6948
        %v6950 = vrot.slane %v6948, 2
        %v6951 = vrot.slane %v1791, 7
        %v6952 = vsel %vm2733, %v6950, %v6951
        %v6953 = vrot.slane %v6951, 2
        %v6954 = vrot.slane %v1792, 7
        %v6955 = vsel %vm2733, %v6953, %v6954
        %v6956 = vrot.slane %v6954, 2
        %v6957 = vrot.slane %v1794, 7
        %v6958 = vrot.slane %v6957, 2
        %v6959 = vrot.slane %v1826, 7
        %v6960 = vsel %vm2733, %v6958, %v6959
        %v6961 = vrot.slane %v6959, 2
        %v6962 = vrot.slane %v1827, 7
        %v6963 = vsel %vm2733, %v6961, %v6962
        %v6964 = vrot.slane %v6962, 2
        %v6965 = vrot.slane %v1828, 7
        %v6966 = vsel %vm2733, %v6964, %v6965
        %v6967 = vrot.slane %v6965, 2
        %v6968 = vrot.slane %v1829, 7
        %v6969 = vsel %vm2733, %v6967, %v6968
        %v6970 = vrot.slane %v6968, 2
        %v6971 = vrot.slane %v1861, 7
        %v6972 = vsel %vm2733, %v6970, %v6971
        %v6973 = vrot.slane %v6971, 2
        %v6974 = vrot.slane %v1862, 7
        %v6975 = vsel %vm2733, %v6973, %v6974
        %v6976 = vrot.slane %v6974, 2
        %v6977 = vrot.slane %v1863, 7
        %v6978 = vsel %vm2733, %v6976, %v6977
        %v6979 = vrot.slane %v6977, 2
        %v6980 = vrot.slane %v1896, 7
        %v6981 = vrot.slane %v6980, 2
        %v6982 = vrot.slane %v1897, 7
        %v6983 = vsel %vm2733, %v6981, %v6982
        %v6984 = vrot.slane %v6982, 2
        %v6985 = vrot.slane %v1898, 7
        %v6986 = vsel %vm2733, %v6984, %v6985
        %v6987 = vrot.slane %v6985, 2
        %v6988 = vrot.slane %v1899, 7
        %v6989 = vsel %vm2733, %v6987, %v6988
        %v6990 = vrot.slane %v6988, 2
        %v6991 = vrot.slane %v1931, 7
        %v6992 = vsel %vm2733, %v6990, %v6991
        %v6993 = vrot.slane %v6991, 2
        %v6994 = vrot.slane %v1932, 7
        %v6995 = vsel %vm2733, %v6993, %v6994
        %v6996 = vrot.slane %v6994, 2
        %v6997 = vrot.slane %v1933, 7
        %v6998 = vsel %vm2733, %v6996, %v6997
        %v6999 = vrot.slane %v6997, 2
        %v7000 = vrot.slane %v1934, 7
        %v7001 = vsel %vm2733, %v6999, %v7000
        %v7002 = vrot.slane %v7000, 2
        %v7003 = vrot.slane %v1967, 7
        %v7004 = vrot.slane %v7003, 2
        %v7005 = vrot.slane %v1968, 7
        %v7006 = vsel %vm2733, %v7004, %v7005
        %v7007 = vrot.slane %v7005, 2
        %v7008 = vrot.slane %v1969, 7
        %v7009 = vsel %vm2733, %v7007, %v7008
        %v7010 = vrot.slane %v7008, 2
        %v7011 = vrot.slane %v2001, 7
        %v7012 = vsel %vm2733, %v7010, %v7011
        %v7013 = vrot.slane %v7011, 2
        %v7014 = vrot.slane %v2002, 7
        %v7015 = vsel %vm2733, %v7013, %v7014
        %v7016 = vrot.slane %v7014, 2
        %v7017 = vrot.slane %v2003, 7
        %v7018 = vsel %vm2733, %v7016, %v7017
        %v7019 = vrot.slane %v7017, 2
        %v7020 = vrot.slane %v2004, 7
        %v7021 = vsel %vm2733, %v7019, %v7020
        %v7022 = vrot.slane %v7020, 2
        %v7023 = vrot.slane %v2036, 7
        %v7024 = vsel %vm2733, %v7022, %v7023
        %v7025 = vrot.slane %v7023, 2
        %v7026 = vrot.slane %v2038, 7
        %v7027 = vrot.slane %v7026, 2
        %v7028 = vrot.slane %v2039, 7
        %v7029 = vsel %vm2733, %v7027, %v7028
        %v7030 = vrot.slane %v7028, 2
        %v7031 = vrot.slane %v2071, 7
        %v7032 = vsel %vm2733, %v7030, %v7031
        %v7033 = vrot.slane %v7031, 2
        %v7034 = vrot.slane %v2072, 7
        %v7035 = vsel %vm2733, %v7033, %v7034
        %v7036 = vrot.slane %v7034, 2
        %v7037 = vrot.slane %v2073, 7
        %v7038 = vsel %vm2733, %v7036, %v7037
        %v7039 = vrot.slane %v7037, 2
        %v7040 = vrot.slane %v2074, 7
        %v7041 = vsel %vm2733, %v7039, %v7040
        %v7042 = vrot.slane %v7040, 2
        %v7043 = vrot.slane %v2106, 7
        %v7044 = vsel %vm2733, %v7042, %v7043
        %v7045 = vrot.slane %v7043, 2
        %v7046 = vrot.slane %v2107, 7
        %v7047 = vsel %vm2733, %v7045, %v7046
        %v7048 = vrot.slane %v7046, 2
        %v7049 = vrot.slane %v2109, 7
        %v7050 = vrot.slane %v7049, 2
        %v7051 = vrot.slane %v2141, 7
        %v7052 = vsel %vm2733, %v7050, %v7051
        %v7053 = vrot.slane %v7051, 2
        %v7054 = vrot.slane %v2142, 7
        %v7055 = vsel %vm2733, %v7053, %v7054
        %v7056 = vrot.slane %v7054, 2
        %v7057 = vrot.slane %v2143, 7
        %v7058 = vsel %vm2733, %v7056, %v7057
        %v7059 = vrot.slane %v7057, 2
        %v7060 = vrot.slane %v2144, 7
        %v7061 = vsel %vm2733, %v7059, %v7060
        %v7062 = vrot.slane %v7060, 2
        %v7063 = vrot.slane %v2176, 7
        %v7064 = vsel %vm2733, %v7062, %v7063
        %v7065 = vrot.slane %v7063, 2
        %v7066 = vrot.slane %v2177, 7
        %v7067 = vsel %vm2733, %v7065, %v7066
        %v7068 = vrot.slane %v7066, 2
        %v7069 = vrot.slane %v2178, 7
        %v7070 = vsel %vm2733, %v7068, %v7069
        %v7071 = vrot.slane %v7069, 2
        %v7072 = vrot.slane %v6891, 2
        %v7073 = vrot.slane %v6894, 2
        %v7074 = vrot.slane %v6897, 2
        %v7075 = vrot.slane %v6900, 2
        %v7076 = vrot.slane %v6903, 2
        %v7077 = vrot.slane %v6906, 2
        %v7078 = vrot.slane %v6909, 2
        %v7079 = vrot.slane %v6910, 2
        %v7080 = vrot.slane %v6914, 2
        %v7081 = vrot.slane %v6917, 2
        %v7082 = vrot.slane %v6920, 2
        %v7083 = vrot.slane %v6923, 2
        %v7084 = vrot.slane %v6926, 2
        %v7085 = vrot.slane %v6929, 2
        %v7086 = vrot.slane %v6932, 2
        %v7087 = vrot.slane %v6933, 2
        %v7088 = vrot.slane %v6937, 2
        %v7089 = vrot.slane %v6940, 2
        %v7090 = vrot.slane %v6943, 2
        %v7091 = vrot.slane %v6946, 2
        %v7092 = vrot.slane %v6949, 2
        %v7093 = vrot.slane %v6952, 2
        %v7094 = vrot.slane %v6955, 2
        %v7095 = vrot.slane %v6956, 2
        %v7096 = vrot.slane %v6960, 2
        %v7097 = vrot.slane %v6963, 2
        %v7098 = vrot.slane %v6966, 2
        %v7099 = vrot.slane %v6969, 2
        %v7100 = vrot.slane %v6972, 2
        %v7101 = vrot.slane %v6975, 2
        %v7102 = vrot.slane %v6978, 2
        %v7103 = vrot.slane %v6979, 2
        %v7104 = vrot.slane %v6983, 2
        %v7105 = vrot.slane %v6986, 2
        %v7106 = vrot.slane %v6989, 2
        %v7107 = vrot.slane %v6992, 2
        %v7108 = vrot.slane %v6995, 2
        %v7109 = vrot.slane %v6998, 2
        %v7110 = vrot.slane %v7001, 2
        %v7111 = vrot.slane %v7002, 2
        %v7112 = vrot.slane %v7006, 2
        %v7113 = vrot.slane %v7009, 2
        %v7114 = vrot.slane %v7012, 2
        %v7115 = vrot.slane %v7015, 2
        %v7116 = vrot.slane %v7018, 2
        %v7117 = vrot.slane %v7021, 2
        %v7118 = vrot.slane %v7024, 2
        %v7119 = vrot.slane %v7025, 2
        %v7120 = vrot.slane %v7029, 2
        %v7121 = vrot.slane %v7032, 2
        %v7122 = vrot.slane %v7035, 2
        %v7123 = vrot.slane %v7038, 2
        %v7124 = vrot.slane %v7041, 2
        %v7125 = vrot.slane %v7044, 2
        %v7126 = vrot.slane %v7047, 2
        %v7127 = vrot.slane %v7048, 2
        %v7128 = vrot.slane %v7052, 2
        %v7129 = vrot.slane %v7055, 2
        %v7130 = vrot.slane %v7058, 2
        %v7131 = vrot.slane %v7061, 2
        %v7132 = vrot.slane %v7064, 2
        %v7133 = vrot.slane %v7067, 2
        %v7134 = vrot.slane %v7070, 2
        %v7135 = vrot.slane %v7071, 2
        %v7208 = vmul.f32 %v6673, %v6889
        %v7209 = vmul.f32 %v6675, %v7072
        %v7210 = vmul.f32 %v6677, %v7073
        %v7211 = vmul.f32 %v6679, %v7074
        %v7212 = vmul.f32 %v6681, %v7075
        %v7213 = vmul.f32 %v6683, %v7076
        %v7214 = vmul.f32 %v6685, %v7077
        %v7215 = vmul.f32 %v6687, %v7078
        %v7216 = vmul.f32 %v6689, %v7079
        %v7217 = vmul.f32 %v6691, %v6912
        %v7218 = vmul.f32 %v6693, %v7080
        %v7219 = vmul.f32 %v6695, %v7081
        %v7220 = vmul.f32 %v6697, %v7082
        %v7221 = vmul.f32 %v6699, %v7083
        %v7222 = vmul.f32 %v6701, %v7084
        %v7223 = vmul.f32 %v6703, %v7085
        %v7224 = vmul.f32 %v6705, %v7086
        %v7225 = vmul.f32 %v6707, %v7087
        %v7226 = vmul.f32 %v6709, %v6935
        %v7227 = vmul.f32 %v6711, %v7088
        %v7228 = vmul.f32 %v6713, %v7089
        %v7229 = vmul.f32 %v6715, %v7090
        %v7230 = vmul.f32 %v6717, %v7091
        %v7231 = vmul.f32 %v6719, %v7092
        %v7232 = vmul.f32 %v6721, %v7093
        %v7233 = vmul.f32 %v6723, %v7094
        %v7234 = vmul.f32 %v6725, %v7095
        %v7235 = vmul.f32 %v6727, %v6958
        %v7236 = vmul.f32 %v6729, %v7096
        %v7237 = vmul.f32 %v6731, %v7097
        %v7238 = vmul.f32 %v6733, %v7098
        %v7239 = vmul.f32 %v6735, %v7099
        %v7240 = vmul.f32 %v6737, %v7100
        %v7241 = vmul.f32 %v6739, %v7101
        %v7242 = vmul.f32 %v6741, %v7102
        %v7243 = vmul.f32 %v6743, %v7103
        %v7244 = vmul.f32 %v6745, %v6981
        %v7245 = vmul.f32 %v6747, %v7104
        %v7246 = vmul.f32 %v6749, %v7105
        %v7247 = vmul.f32 %v6751, %v7106
        %v7248 = vmul.f32 %v6753, %v7107
        %v7249 = vmul.f32 %v6755, %v7108
        %v7250 = vmul.f32 %v6757, %v7109
        %v7251 = vmul.f32 %v6759, %v7110
        %v7252 = vmul.f32 %v6761, %v7111
        %v7253 = vmul.f32 %v6763, %v7004
        %v7254 = vmul.f32 %v6765, %v7112
        %v7255 = vmul.f32 %v6767, %v7113
        %v7256 = vmul.f32 %v6769, %v7114
        %v7257 = vmul.f32 %v6771, %v7115
        %v7258 = vmul.f32 %v6773, %v7116
        %v7259 = vmul.f32 %v6775, %v7117
        %v7260 = vmul.f32 %v6777, %v7118
        %v7261 = vmul.f32 %v6779, %v7119
        %v7262 = vmul.f32 %v6781, %v7027
        %v7263 = vmul.f32 %v6783, %v7120
        %v7264 = vmul.f32 %v6785, %v7121
        %v7265 = vmul.f32 %v6787, %v7122
        %v7266 = vmul.f32 %v6789, %v7123
        %v7267 = vmul.f32 %v6791, %v7124
        %v7268 = vmul.f32 %v6793, %v7125
        %v7269 = vmul.f32 %v6795, %v7126
        %v7270 = vmul.f32 %v6797, %v7127
        %v7271 = vmul.f32 %v6799, %v7050
        %v7272 = vmul.f32 %v6801, %v7128
        %v7273 = vmul.f32 %v6803, %v7129
        %v7274 = vmul.f32 %v6805, %v7130
        %v7275 = vmul.f32 %v6807, %v7131
        %v7276 = vmul.f32 %v6809, %v7132
        %v7277 = vmul.f32 %v6811, %v7133
        %v7278 = vmul.f32 %v6813, %v7134
        %v7279 = vmul.f32 %v6815, %v7135
        %v7280 = vadd.f32 %v7208, 0.0
        %v7281 = vadd.f32 %v7209, 0.0
        %v7282 = vadd.f32 %v7210, 0.0
        %v7283 = vadd.f32 %v7211, 0.0
        %v7284 = vadd.f32 %v7212, 0.0
        %v7285 = vadd.f32 %v7213, 0.0
        %v7286 = vadd.f32 %v7214, 0.0
        %v7287 = vadd.f32 %v7215, 0.0
        %v7288 = vadd.f32 %v7216, 0.0
        %v7289 = vadd.f32 %v7217, 0.0
        %v7290 = vadd.f32 %v7218, 0.0
        %v7291 = vadd.f32 %v7219, 0.0
        %v7292 = vadd.f32 %v7220, 0.0
        %v7293 = vadd.f32 %v7221, 0.0
        %v7294 = vadd.f32 %v7222, 0.0
        %v7295 = vadd.f32 %v7223, 0.0
        %v7296 = vadd.f32 %v7224, 0.0
        %v7297 = vadd.f32 %v7225, 0.0
        %v7298 = vadd.f32 %v7226, 0.0
        %v7299 = vadd.f32 %v7227, 0.0
        %v7300 = vadd.f32 %v7228, 0.0
        %v7301 = vadd.f32 %v7229, 0.0
        %v7302 = vadd.f32 %v7230, 0.0
        %v7303 = vadd.f32 %v7231, 0.0
        %v7304 = vadd.f32 %v7232, 0.0
        %v7305 = vadd.f32 %v7233, 0.0
        %v7306 = vadd.f32 %v7234, 0.0
        %v7307 = vadd.f32 %v7235, 0.0
        %v7308 = vadd.f32 %v7236, 0.0
        %v7309 = vadd.f32 %v7237, 0.0
        %v7310 = vadd.f32 %v7238, 0.0
        %v7311 = vadd.f32 %v7239, 0.0
        %v7312 = vadd.f32 %v7240, 0.0
        %v7313 = vadd.f32 %v7241, 0.0
        %v7314 = vadd.f32 %v7242, 0.0
        %v7315 = vadd.f32 %v7243, 0.0
        %v7316 = vadd.f32 %v7244, 0.0
        %v7317 = vadd.f32 %v7245, 0.0
        %v7318 = vadd.f32 %v7246, 0.0
        %v7319 = vadd.f32 %v7247, 0.0
        %v7320 = vadd.f32 %v7248, 0.0
        %v7321 = vadd.f32 %v7249, 0.0
        %v7322 = vadd.f32 %v7250, 0.0
        %v7323 = vadd.f32 %v7251, 0.0
        %v7324 = vadd.f32 %v7252, 0.0
        %v7325 = vadd.f32 %v7253, 0.0
        %v7326 = vadd.f32 %v7254, 0.0
        %v7327 = vadd.f32 %v7255, 0.0
        %v7328 = vadd.f32 %v7256, 0.0
        %v7329 = vadd.f32 %v7257, 0.0
        %v7330 = vadd.f32 %v7258, 0.0
        %v7331 = vadd.f32 %v7259, 0.0
        %v7332 = vadd.f32 %v7260, 0.0
        %v7333 = vadd.f32 %v7261, 0.0
        %v7334 = vadd.f32 %v7262, 0.0
        %v7335 = vadd.f32 %v7263, 0.0
        %v7336 = vadd.f32 %v7264, 0.0
        %v7337 = vadd.f32 %v7265, 0.0
        %v7338 = vadd.f32 %v7266, 0.0
        %v7339 = vadd.f32 %v7267, 0.0
        %v7340 = vadd.f32 %v7268, 0.0
        %v7341 = vadd.f32 %v7269, 0.0
        %v7342 = vadd.f32 %v7270, 0.0
        %v7343 = vadd.f32 %v7271, 0.0
        %v7344 = vadd.f32 %v7272, 0.0
        %v7345 = vadd.f32 %v7273, 0.0
        %v7346 = vadd.f32 %v7274, 0.0
        %v7347 = vadd.f32 %v7275, 0.0
        %v7348 = vadd.f32 %v7276, 0.0
        %v7349 = vadd.f32 %v7277, 0.0
        %v7350 = vadd.f32 %v7278, 0.0
        %v7351 = vadd.f32 %v7279, 0.0
        %v7352 = vsub.f32 %v3472, %v6528
        %v7353 = vsub.f32 %v3473, %v6529
        %v7354 = vsub.f32 %v3474, %v6530
        %v7355 = vsub.f32 %v3475, %v6531
        %v7356 = vsub.f32 %v3476, %v6532
        %v7357 = vsub.f32 %v3477, %v6533
        %v7358 = vsub.f32 %v3478, %v6534
        %v7359 = vsub.f32 %v3479, %v6535
        %v7360 = vsub.f32 %v3480, %v6536
        %v7361 = vsub.f32 %v3481, %v6537
        %v7362 = vsub.f32 %v3482, %v6538
        %v7363 = vsub.f32 %v3483, %v6539
        %v7364 = vsub.f32 %v3484, %v6540
        %v7365 = vsub.f32 %v3485, %v6541
        %v7366 = vsub.f32 %v3486, %v6542
        %v7367 = vsub.f32 %v3487, %v6543
        %v7368 = vsub.f32 %v3488, %v6544
        %v7369 = vsub.f32 %v3489, %v6545
        %v7370 = vsub.f32 %v3490, %v6546
        %v7371 = vsub.f32 %v3491, %v6547
        %v7372 = vsub.f32 %v3492, %v6548
        %v7373 = vsub.f32 %v3493, %v6549
        %v7374 = vsub.f32 %v3494, %v6550
        %v7375 = vsub.f32 %v3495, %v6551
        %v7376 = vsub.f32 %v3496, %v6552
        %v7377 = vsub.f32 %v3497, %v6553
        %v7378 = vsub.f32 %v3498, %v6554
        %v7379 = vsub.f32 %v3499, %v6555
        %v7380 = vsub.f32 %v3500, %v6556
        %v7381 = vsub.f32 %v3501, %v6557
        %v7382 = vsub.f32 %v3502, %v6558
        %v7383 = vsub.f32 %v3503, %v6559
        %v7384 = vsub.f32 %v3504, %v6560
        %v7385 = vsub.f32 %v3505, %v6561
        %v7386 = vsub.f32 %v3506, %v6562
        %v7387 = vsub.f32 %v3507, %v6563
        %v7388 = vsub.f32 %v3508, %v6564
        %v7389 = vsub.f32 %v3509, %v6565
        %v7390 = vsub.f32 %v3510, %v6566
        %v7391 = vsub.f32 %v3511, %v6567
        %v7392 = vsub.f32 %v3512, %v6568
        %v7393 = vsub.f32 %v3513, %v6569
        %v7394 = vsub.f32 %v3514, %v6570
        %v7395 = vsub.f32 %v3515, %v6571
        %v7396 = vsub.f32 %v3516, %v6572
        %v7397 = vsub.f32 %v3517, %v6573
        %v7398 = vsub.f32 %v3518, %v6574
        %v7399 = vsub.f32 %v3519, %v6575
        %v7400 = vsub.f32 %v3520, %v6576
        %v7401 = vsub.f32 %v3521, %v6577
        %v7402 = vsub.f32 %v3522, %v6578
        %v7403 = vsub.f32 %v3523, %v6579
        %v7404 = vsub.f32 %v3524, %v6580
        %v7405 = vsub.f32 %v3525, %v6581
        %v7406 = vsub.f32 %v3526, %v6582
        %v7407 = vsub.f32 %v3527, %v6583
        %v7408 = vsub.f32 %v3528, %v6584
        %v7409 = vsub.f32 %v3529, %v6585
        %v7410 = vsub.f32 %v3530, %v6586
        %v7411 = vsub.f32 %v3531, %v6587
        %v7412 = vsub.f32 %v3532, %v6588
        %v7413 = vsub.f32 %v3533, %v6589
        %v7414 = vsub.f32 %v3534, %v6590
        %v7415 = vsub.f32 %v3535, %v6591
        %v7416 = vsub.f32 %v3536, %v6592
        %v7417 = vsub.f32 %v3537, %v6593
        %v7418 = vsub.f32 %v3538, %v6594
        %v7419 = vsub.f32 %v3539, %v6595
        %v7420 = vsub.f32 %v3540, %v6596
        %v7421 = vsub.f32 %v3541, %v6597
        %v7422 = vsub.f32 %v3542, %v6598
        %v7423 = vsub.f32 %v3543, %v6599
        %v7424 = vmul.f32 %v7352, 1.442695
        %v7425 = vpow.pop %v7424
        %v7426 = vmul.f32 %v7353, 1.442695
        %v7427 = vpow.pop %v7426
        %v7428 = vmul.f32 %v7354, 1.442695
        %v7429 = vpow.pop %v7428
        %v7430 = vmul.f32 %v7355, 1.442695
        %v7431 = vpow.pop %v7430
        %v7432 = vmul.f32 %v7356, 1.442695
        %v7433 = vpow.pop %v7432
        %v7434 = vmul.f32 %v7357, 1.442695
        %v7435 = vpow.pop %v7434
        %v7436 = vmul.f32 %v7358, 1.442695
        %v7437 = vpow.pop %v7436
        %v7438 = vmul.f32 %v7359, 1.442695
        %v7439 = vpow.pop %v7438
        %v7440 = vmul.f32 %v7360, 1.442695
        %v7441 = vpow.pop %v7440
        %v7442 = vmul.f32 %v7361, 1.442695
        %v7443 = vpow.pop %v7442
        %v7444 = vmul.f32 %v7362, 1.442695
        %v7445 = vpow.pop %v7444
        %v7446 = vmul.f32 %v7363, 1.442695
        %v7447 = vpow.pop %v7446
        %v7448 = vmul.f32 %v7364, 1.442695
        %v7449 = vpow.pop %v7448
        %v7450 = vmul.f32 %v7365, 1.442695
        %v7451 = vpow.pop %v7450
        %v7452 = vmul.f32 %v7366, 1.442695
        %v7453 = vpow.pop %v7452
        %v7454 = vmul.f32 %v7367, 1.442695
        %v7455 = vpow.pop %v7454
        %v7456 = vmul.f32 %v7368, 1.442695
        %v7457 = vpow.pop %v7456
        %v7458 = vmul.f32 %v7369, 1.442695
        %v7459 = vpow.pop %v7458
        %v7460 = vmul.f32 %v7370, 1.442695
        %v7461 = vpow.pop %v7460
        %v7462 = vmul.f32 %v7371, 1.442695
        %v7463 = vpow.pop %v7462
        %v7464 = vmul.f32 %v7372, 1.442695
        %v7465 = vpow.pop %v7464
        %v7466 = vmul.f32 %v7373, 1.442695
        %v7467 = vpow.pop %v7466
        %v7468 = vmul.f32 %v7374, 1.442695
        %v7469 = vpow.pop %v7468
        %v7470 = vmul.f32 %v7375, 1.442695
        %v7471 = vpow.pop %v7470
        %v7472 = vmul.f32 %v7376, 1.442695
        %v7473 = vpow.pop %v7472
        %v7474 = vmul.f32 %v7377, 1.442695
        %v7475 = vpow.pop %v7474
        %v7476 = vmul.f32 %v7378, 1.442695
        %v7477 = vpow.pop %v7476
        %v7478 = vmul.f32 %v7379, 1.442695
        %v7479 = vpow.pop %v7478
        %v7480 = vmul.f32 %v7380, 1.442695
        %v7481 = vpow.pop %v7480
        %v7482 = vmul.f32 %v7381, 1.442695
        %v7483 = vpow.pop %v7482
        %v7484 = vmul.f32 %v7382, 1.442695
        %v7485 = vpow.pop %v7484
        %v7486 = vmul.f32 %v7383, 1.442695
        %v7487 = vpow.pop %v7486
        %v7488 = vmul.f32 %v7384, 1.442695
        %v7489 = vpow.pop %v7488
        %v7490 = vmul.f32 %v7385, 1.442695
        %v7491 = vpow.pop %v7490
        %v7492 = vmul.f32 %v7386, 1.442695
        %v7493 = vpow.pop %v7492
        %v7494 = vmul.f32 %v7387, 1.442695
        %v7495 = vpow.pop %v7494
        %v7496 = vmul.f32 %v7388, 1.442695
        %v7497 = vpow.pop %v7496
        %v7498 = vmul.f32 %v7389, 1.442695
        %v7499 = vpow.pop %v7498
        %v7500 = vmul.f32 %v7390, 1.442695
        %v7501 = vpow.pop %v7500
        %v7502 = vmul.f32 %v7391, 1.442695
        %v7503 = vpow.pop %v7502
        %v7504 = vmul.f32 %v7392, 1.442695
        %v7505 = vpow.pop %v7504
        %v7506 = vmul.f32 %v7393, 1.442695
        %v7507 = vpow.pop %v7506
        %v7508 = vmul.f32 %v7394, 1.442695
        %v7509 = vpow.pop %v7508
        %v7510 = vmul.f32 %v7395, 1.442695
        %v7511 = vpow.pop %v7510
        %v7512 = vmul.f32 %v7396, 1.442695
        %v7513 = vpow.pop %v7512
        %v7514 = vmul.f32 %v7397, 1.442695
        %v7515 = vpow.pop %v7514
        %v7516 = vmul.f32 %v7398, 1.442695
        %v7517 = vpow.pop %v7516
        %v7518 = vmul.f32 %v7399, 1.442695
        %v7519 = vpow.pop %v7518
        %v7520 = vmul.f32 %v7400, 1.442695
        %v7521 = vpow.pop %v7520
        %v7522 = vmul.f32 %v7401, 1.442695
        %v7523 = vpow.pop %v7522
        %v7524 = vmul.f32 %v7402, 1.442695
        %v7525 = vpow.pop %v7524
        %v7526 = vmul.f32 %v7403, 1.442695
        %v7527 = vpow.pop %v7526
        %v7528 = vmul.f32 %v7404, 1.442695
        %v7529 = vpow.pop %v7528
        %v7530 = vmul.f32 %v7405, 1.442695
        %v7531 = vpow.pop %v7530
        %v7532 = vmul.f32 %v7406, 1.442695
        %v7533 = vpow.pop %v7532
        %v7534 = vmul.f32 %v7407, 1.442695
        %v7535 = vpow.pop %v7534
        %v7536 = vmul.f32 %v7408, 1.442695
        %v7537 = vpow.pop %v7536
        %v7538 = vmul.f32 %v7409, 1.442695
        %v7539 = vpow.pop %v7538
        %v7540 = vmul.f32 %v7410, 1.442695
        %v7541 = vpow.pop %v7540
        %v7542 = vmul.f32 %v7411, 1.442695
        %v7543 = vpow.pop %v7542
        %v7544 = vmul.f32 %v7412, 1.442695
        %v7545 = vpow.pop %v7544
        %v7546 = vmul.f32 %v7413, 1.442695
        %v7547 = vpow.pop %v7546
        %v7548 = vmul.f32 %v7414, 1.442695
        %v7549 = vpow.pop %v7548
        %v7550 = vmul.f32 %v7415, 1.442695
        %v7551 = vpow.pop %v7550
        %v7552 = vmul.f32 %v7416, 1.442695
        %v7553 = vpow.pop %v7552
        %v7554 = vmul.f32 %v7417, 1.442695
        %v7555 = vpow.pop %v7554
        %v7556 = vmul.f32 %v7418, 1.442695
        %v7557 = vpow.pop %v7556
        %v7558 = vmul.f32 %v7419, 1.442695
        %v7559 = vpow.pop %v7558
        %v7560 = vmul.f32 %v7420, 1.442695
        %v7561 = vpow.pop %v7560
        %v7562 = vmul.f32 %v7421, 1.442695
        %v7563 = vpow.pop %v7562
        %v7564 = vmul.f32 %v7422, 1.442695
        %v7565 = vpow.pop %v7564
        %v7566 = vmul.f32 %v7423, 1.442695
        %v7567 = vpow.pop %v7566
        %v7568 = vadd.f32 %v6816, %v7425
        %v7569 = vadd.f32 %v6817, %v7427
        %v7570 = vadd.f32 %v6818, %v7429
        %v7571 = vadd.f32 %v6819, %v7431
        %v7572 = vadd.f32 %v6820, %v7433
        %v7573 = vadd.f32 %v6821, %v7435
        %v7574 = vadd.f32 %v6822, %v7437
        %v7575 = vadd.f32 %v6823, %v7439
        %v7576 = vadd.f32 %v6824, %v7441
        %v7577 = vadd.f32 %v6825, %v7443
        %v7578 = vadd.f32 %v6826, %v7445
        %v7579 = vadd.f32 %v6827, %v7447
        %v7580 = vadd.f32 %v6828, %v7449
        %v7581 = vadd.f32 %v6829, %v7451
        %v7582 = vadd.f32 %v6830, %v7453
        %v7583 = vadd.f32 %v6831, %v7455
        %v7584 = vadd.f32 %v6832, %v7457
        %v7585 = vadd.f32 %v6833, %v7459
        %v7586 = vadd.f32 %v6834, %v7461
        %v7587 = vadd.f32 %v6835, %v7463
        %v7588 = vadd.f32 %v6836, %v7465
        %v7589 = vadd.f32 %v6837, %v7467
        %v7590 = vadd.f32 %v6838, %v7469
        %v7591 = vadd.f32 %v6839, %v7471
        %v7592 = vadd.f32 %v6840, %v7473
        %v7593 = vadd.f32 %v6841, %v7475
        %v7594 = vadd.f32 %v6842, %v7477
        %v7595 = vadd.f32 %v6843, %v7479
        %v7596 = vadd.f32 %v6844, %v7481
        %v7597 = vadd.f32 %v6845, %v7483
        %v7598 = vadd.f32 %v6846, %v7485
        %v7599 = vadd.f32 %v6847, %v7487
        %v7600 = vadd.f32 %v6848, %v7489
        %v7601 = vadd.f32 %v6849, %v7491
        %v7602 = vadd.f32 %v6850, %v7493
        %v7603 = vadd.f32 %v6851, %v7495
        %v7604 = vadd.f32 %v6852, %v7497
        %v7605 = vadd.f32 %v6853, %v7499
        %v7606 = vadd.f32 %v6854, %v7501
        %v7607 = vadd.f32 %v6855, %v7503
        %v7608 = vadd.f32 %v6856, %v7505
        %v7609 = vadd.f32 %v6857, %v7507
        %v7610 = vadd.f32 %v6858, %v7509
        %v7611 = vadd.f32 %v6859, %v7511
        %v7612 = vadd.f32 %v6860, %v7513
        %v7613 = vadd.f32 %v6861, %v7515
        %v7614 = vadd.f32 %v6862, %v7517
        %v7615 = vadd.f32 %v6863, %v7519
        %v7616 = vadd.f32 %v6864, %v7521
        %v7617 = vadd.f32 %v6865, %v7523
        %v7618 = vadd.f32 %v6866, %v7525
        %v7619 = vadd.f32 %v6867, %v7527
        %v7620 = vadd.f32 %v6868, %v7529
        %v7621 = vadd.f32 %v6869, %v7531
        %v7622 = vadd.f32 %v6870, %v7533
        %v7623 = vadd.f32 %v6871, %v7535
        %v7624 = vadd.f32 %v6872, %v7537
        %v7625 = vadd.f32 %v6873, %v7539
        %v7626 = vadd.f32 %v6874, %v7541
        %v7627 = vadd.f32 %v6875, %v7543
        %v7628 = vadd.f32 %v6876, %v7545
        %v7629 = vadd.f32 %v6877, %v7547
        %v7630 = vadd.f32 %v6878, %v7549
        %v7631 = vadd.f32 %v6879, %v7551
        %v7632 = vadd.f32 %v6880, %v7553
        %v7633 = vadd.f32 %v6881, %v7555
        %v7634 = vadd.f32 %v6882, %v7557
        %v7635 = vadd.f32 %v6883, %v7559
        %v7636 = vadd.f32 %v6884, %v7561
        %v7637 = vadd.f32 %v6885, %v7563
        %v7638 = vadd.f32 %v6886, %v7565
        %v7639 = vadd.f32 %v6887, %v7567
        %v7640 = vrot.slane %v2211, 7
        %v7641 = vrot.slane %v7640, 2
        %v7642 = vrot.slane %v2212, 7
        %v7643 = vsel %vm2733, %v7641, %v7642
        %v7644 = vrot.slane %v7642, 2
        %v7645 = vrot.slane %v2213, 7
        %v7646 = vsel %vm2733, %v7644, %v7645
        %v7647 = vrot.slane %v7645, 2
        %v7648 = vrot.slane %v2214, 7
        %v7649 = vsel %vm2733, %v7647, %v7648
        %v7650 = vrot.slane %v7648, 2
        %v7651 = vrot.slane %v2246, 7
        %v7652 = vsel %vm2733, %v7650, %v7651
        %v7653 = vrot.slane %v7651, 2
        %v7654 = vrot.slane %v2247, 7
        %v7655 = vsel %vm2733, %v7653, %v7654
        %v7656 = vrot.slane %v7654, 2
        %v7657 = vrot.slane %v2248, 7
        %v7658 = vsel %vm2733, %v7656, %v7657
        %v7659 = vrot.slane %v7657, 2
        %v7660 = vrot.slane %v2249, 7
        %v7661 = vsel %vm2733, %v7659, %v7660
        %v7662 = vrot.slane %v7660, 2
        %v7663 = vrot.slane %v7643, 2
        %v7664 = vrot.slane %v7646, 2
        %v7665 = vrot.slane %v7649, 2
        %v7666 = vrot.slane %v7652, 2
        %v7667 = vrot.slane %v7655, 2
        %v7668 = vrot.slane %v7658, 2
        %v7669 = vrot.slane %v7661, 2
        %v7670 = vrot.slane %v7662, 2
        %v7680 = vmul.f32 %v7425, %v6912
        %v7681 = vmul.f32 %v7427, %v7080
        %v7682 = vmul.f32 %v7429, %v7081
        %v7683 = vmul.f32 %v7431, %v7082
        %v7684 = vmul.f32 %v7433, %v7083
        %v7685 = vmul.f32 %v7435, %v7084
        %v7686 = vmul.f32 %v7437, %v7085
        %v7687 = vmul.f32 %v7439, %v7086
        %v7688 = vmul.f32 %v7441, %v7087
        %v7689 = vmul.f32 %v7443, %v6935
        %v7690 = vmul.f32 %v7445, %v7088
        %v7691 = vmul.f32 %v7447, %v7089
        %v7692 = vmul.f32 %v7449, %v7090
        %v7693 = vmul.f32 %v7451, %v7091
        %v7694 = vmul.f32 %v7453, %v7092
        %v7695 = vmul.f32 %v7455, %v7093
        %v7696 = vmul.f32 %v7457, %v7094
        %v7697 = vmul.f32 %v7459, %v7095
        %v7698 = vmul.f32 %v7461, %v6958
        %v7699 = vmul.f32 %v7463, %v7096
        %v7700 = vmul.f32 %v7465, %v7097
        %v7701 = vmul.f32 %v7467, %v7098
        %v7702 = vmul.f32 %v7469, %v7099
        %v7703 = vmul.f32 %v7471, %v7100
        %v7704 = vmul.f32 %v7473, %v7101
        %v7705 = vmul.f32 %v7475, %v7102
        %v7706 = vmul.f32 %v7477, %v7103
        %v7707 = vmul.f32 %v7479, %v6981
        %v7708 = vmul.f32 %v7481, %v7104
        %v7709 = vmul.f32 %v7483, %v7105
        %v7710 = vmul.f32 %v7485, %v7106
        %v7711 = vmul.f32 %v7487, %v7107
        %v7712 = vmul.f32 %v7489, %v7108
        %v7713 = vmul.f32 %v7491, %v7109
        %v7714 = vmul.f32 %v7493, %v7110
        %v7715 = vmul.f32 %v7495, %v7111
        %v7716 = vmul.f32 %v7497, %v7004
        %v7717 = vmul.f32 %v7499, %v7112
        %v7718 = vmul.f32 %v7501, %v7113
        %v7719 = vmul.f32 %v7503, %v7114
        %v7720 = vmul.f32 %v7505, %v7115
        %v7721 = vmul.f32 %v7507, %v7116
        %v7722 = vmul.f32 %v7509, %v7117
        %v7723 = vmul.f32 %v7511, %v7118
        %v7724 = vmul.f32 %v7513, %v7119
        %v7725 = vmul.f32 %v7515, %v7027
        %v7726 = vmul.f32 %v7517, %v7120
        %v7727 = vmul.f32 %v7519, %v7121
        %v7728 = vmul.f32 %v7521, %v7122
        %v7729 = vmul.f32 %v7523, %v7123
        %v7730 = vmul.f32 %v7525, %v7124
        %v7731 = vmul.f32 %v7527, %v7125
        %v7732 = vmul.f32 %v7529, %v7126
        %v7733 = vmul.f32 %v7531, %v7127
        %v7734 = vmul.f32 %v7533, %v7050
        %v7735 = vmul.f32 %v7535, %v7128
        %v7736 = vmul.f32 %v7537, %v7129
        %v7737 = vmul.f32 %v7539, %v7130
        %v7738 = vmul.f32 %v7541, %v7131
        %v7739 = vmul.f32 %v7543, %v7132
        %v7740 = vmul.f32 %v7545, %v7133
        %v7741 = vmul.f32 %v7547, %v7134
        %v7742 = vmul.f32 %v7549, %v7135
        %v7743 = vmul.f32 %v7551, %v7641
        %v7744 = vmul.f32 %v7553, %v7663
        %v7745 = vmul.f32 %v7555, %v7664
        %v7746 = vmul.f32 %v7557, %v7665
        %v7747 = vmul.f32 %v7559, %v7666
        %v7748 = vmul.f32 %v7561, %v7667
        %v7749 = vmul.f32 %v7563, %v7668
        %v7750 = vmul.f32 %v7565, %v7669
        %v7751 = vmul.f32 %v7567, %v7670
        %v7752 = vadd.f32 %v7280, %v7680
        %v7753 = vadd.f32 %v7281, %v7681
        %v7754 = vadd.f32 %v7282, %v7682
        %v7755 = vadd.f32 %v7283, %v7683
        %v7756 = vadd.f32 %v7284, %v7684
        %v7757 = vadd.f32 %v7285, %v7685
        %v7758 = vadd.f32 %v7286, %v7686
        %v7759 = vadd.f32 %v7287, %v7687
        %v7760 = vadd.f32 %v7288, %v7688
        %v7761 = vadd.f32 %v7289, %v7689
        %v7762 = vadd.f32 %v7290, %v7690
        %v7763 = vadd.f32 %v7291, %v7691
        %v7764 = vadd.f32 %v7292, %v7692
        %v7765 = vadd.f32 %v7293, %v7693
        %v7766 = vadd.f32 %v7294, %v7694
        %v7767 = vadd.f32 %v7295, %v7695
        %v7768 = vadd.f32 %v7296, %v7696
        %v7769 = vadd.f32 %v7297, %v7697
        %v7770 = vadd.f32 %v7298, %v7698
        %v7771 = vadd.f32 %v7299, %v7699
        %v7772 = vadd.f32 %v7300, %v7700
        %v7773 = vadd.f32 %v7301, %v7701
        %v7774 = vadd.f32 %v7302, %v7702
        %v7775 = vadd.f32 %v7303, %v7703
        %v7776 = vadd.f32 %v7304, %v7704
        %v7777 = vadd.f32 %v7305, %v7705
        %v7778 = vadd.f32 %v7306, %v7706
        %v7779 = vadd.f32 %v7307, %v7707
        %v7780 = vadd.f32 %v7308, %v7708
        %v7781 = vadd.f32 %v7309, %v7709
        %v7782 = vadd.f32 %v7310, %v7710
        %v7783 = vadd.f32 %v7311, %v7711
        %v7784 = vadd.f32 %v7312, %v7712
        %v7785 = vadd.f32 %v7313, %v7713
        %v7786 = vadd.f32 %v7314, %v7714
        %v7787 = vadd.f32 %v7315, %v7715
        %v7788 = vadd.f32 %v7316, %v7716
        %v7789 = vadd.f32 %v7317, %v7717
        %v7790 = vadd.f32 %v7318, %v7718
        %v7791 = vadd.f32 %v7319, %v7719
        %v7792 = vadd.f32 %v7320, %v7720
        %v7793 = vadd.f32 %v7321, %v7721
        %v7794 = vadd.f32 %v7322, %v7722
        %v7795 = vadd.f32 %v7323, %v7723
        %v7796 = vadd.f32 %v7324, %v7724
        %v7797 = vadd.f32 %v7325, %v7725
        %v7798 = vadd.f32 %v7326, %v7726
        %v7799 = vadd.f32 %v7327, %v7727
        %v7800 = vadd.f32 %v7328, %v7728
        %v7801 = vadd.f32 %v7329, %v7729
        %v7802 = vadd.f32 %v7330, %v7730
        %v7803 = vadd.f32 %v7331, %v7731
        %v7804 = vadd.f32 %v7332, %v7732
        %v7805 = vadd.f32 %v7333, %v7733
        %v7806 = vadd.f32 %v7334, %v7734
        %v7807 = vadd.f32 %v7335, %v7735
        %v7808 = vadd.f32 %v7336, %v7736
        %v7809 = vadd.f32 %v7337, %v7737
        %v7810 = vadd.f32 %v7338, %v7738
        %v7811 = vadd.f32 %v7339, %v7739
        %v7812 = vadd.f32 %v7340, %v7740
        %v7813 = vadd.f32 %v7341, %v7741
        %v7814 = vadd.f32 %v7342, %v7742
        %v7815 = vadd.f32 %v7343, %v7743
        %v7816 = vadd.f32 %v7344, %v7744
        %v7817 = vadd.f32 %v7345, %v7745
        %v7818 = vadd.f32 %v7346, %v7746
        %v7819 = vadd.f32 %v7347, %v7747
        %v7820 = vadd.f32 %v7348, %v7748
        %v7821 = vadd.f32 %v7349, %v7749
        %v7822 = vadd.f32 %v7350, %v7750
        %v7823 = vadd.f32 %v7351, %v7751
        %v7824 = vsub.f32 %v4026, %v6528
        %v7825 = vsub.f32 %v4027, %v6529
        %v7826 = vsub.f32 %v4028, %v6530
        %v7827 = vsub.f32 %v4029, %v6531
        %v7828 = vsub.f32 %v4030, %v6532
        %v7829 = vsub.f32 %v4031, %v6533
        %v7830 = vsub.f32 %v4032, %v6534
        %v7831 = vsub.f32 %v4033, %v6535
        %v7832 = vsub.f32 %v4034, %v6536
        %v7833 = vsub.f32 %v4035, %v6537
        %v7834 = vsub.f32 %v4036, %v6538
        %v7835 = vsub.f32 %v4037, %v6539
        %v7836 = vsub.f32 %v4038, %v6540
        %v7837 = vsub.f32 %v4039, %v6541
        %v7838 = vsub.f32 %v4040, %v6542
        %v7839 = vsub.f32 %v4041, %v6543
        %v7840 = vsub.f32 %v4042, %v6544
        %v7841 = vsub.f32 %v4043, %v6545
        %v7842 = vsub.f32 %v4044, %v6546
        %v7843 = vsub.f32 %v4045, %v6547
        %v7844 = vsub.f32 %v4046, %v6548
        %v7845 = vsub.f32 %v4047, %v6549
        %v7846 = vsub.f32 %v4048, %v6550
        %v7847 = vsub.f32 %v4049, %v6551
        %v7848 = vsub.f32 %v4050, %v6552
        %v7849 = vsub.f32 %v4051, %v6553
        %v7850 = vsub.f32 %v4052, %v6554
        %v7851 = vsub.f32 %v4053, %v6555
        %v7852 = vsub.f32 %v4054, %v6556
        %v7853 = vsub.f32 %v4055, %v6557
        %v7854 = vsub.f32 %v4056, %v6558
        %v7855 = vsub.f32 %v4057, %v6559
        %v7856 = vsub.f32 %v4058, %v6560
        %v7857 = vsub.f32 %v4059, %v6561
        %v7858 = vsub.f32 %v4060, %v6562
        %v7859 = vsub.f32 %v4061, %v6563
        %v7860 = vsub.f32 %v4062, %v6564
        %v7861 = vsub.f32 %v4063, %v6565
        %v7862 = vsub.f32 %v4064, %v6566
        %v7863 = vsub.f32 %v4065, %v6567
        %v7864 = vsub.f32 %v4066, %v6568
        %v7865 = vsub.f32 %v4067, %v6569
        %v7866 = vsub.f32 %v4068, %v6570
        %v7867 = vsub.f32 %v4069, %v6571
        %v7868 = vsub.f32 %v4070, %v6572
        %v7869 = vsub.f32 %v4071, %v6573
        %v7870 = vsub.f32 %v4072, %v6574
        %v7871 = vsub.f32 %v4073, %v6575
        %v7872 = vsub.f32 %v4074, %v6576
        %v7873 = vsub.f32 %v4075, %v6577
        %v7874 = vsub.f32 %v4076, %v6578
        %v7875 = vsub.f32 %v4077, %v6579
        %v7876 = vsub.f32 %v4078, %v6580
        %v7877 = vsub.f32 %v4079, %v6581
        %v7878 = vsub.f32 %v4080, %v6582
        %v7879 = vsub.f32 %v4081, %v6583
        %v7880 = vsub.f32 %v4082, %v6584
        %v7881 = vsub.f32 %v4083, %v6585
        %v7882 = vsub.f32 %v4084, %v6586
        %v7883 = vsub.f32 %v4085, %v6587
        %v7884 = vsub.f32 %v4086, %v6588
        %v7885 = vsub.f32 %v4087, %v6589
        %v7886 = vsub.f32 %v4088, %v6590
        %v7887 = vsub.f32 %v4089, %v6591
        %v7888 = vsub.f32 %v4090, %v6592
        %v7889 = vsub.f32 %v4091, %v6593
        %v7890 = vsub.f32 %v4092, %v6594
        %v7891 = vsub.f32 %v4093, %v6595
        %v7892 = vsub.f32 %v4094, %v6596
        %v7893 = vsub.f32 %v4095, %v6597
        %v7894 = vsub.f32 %v4096, %v6598
        %v7895 = vsub.f32 %v4097, %v6599
        %v7896 = vmul.f32 %v7824, 1.442695
        %v7897 = vpow.pop %v7896
        %v7898 = vmul.f32 %v7825, 1.442695
        %v7899 = vpow.pop %v7898
        %v7900 = vmul.f32 %v7826, 1.442695
        %v7901 = vpow.pop %v7900
        %v7902 = vmul.f32 %v7827, 1.442695
        %v7903 = vpow.pop %v7902
        %v7904 = vmul.f32 %v7828, 1.442695
        %v7905 = vpow.pop %v7904
        %v7906 = vmul.f32 %v7829, 1.442695
        %v7907 = vpow.pop %v7906
        %v7908 = vmul.f32 %v7830, 1.442695
        %v7909 = vpow.pop %v7908
        %v7910 = vmul.f32 %v7831, 1.442695
        %v7911 = vpow.pop %v7910
        %v7912 = vmul.f32 %v7832, 1.442695
        %v7913 = vpow.pop %v7912
        %v7914 = vmul.f32 %v7833, 1.442695
        %v7915 = vpow.pop %v7914
        %v7916 = vmul.f32 %v7834, 1.442695
        %v7917 = vpow.pop %v7916
        %v7918 = vmul.f32 %v7835, 1.442695
        %v7919 = vpow.pop %v7918
        %v7920 = vmul.f32 %v7836, 1.442695
        %v7921 = vpow.pop %v7920
        %v7922 = vmul.f32 %v7837, 1.442695
        %v7923 = vpow.pop %v7922
        %v7924 = vmul.f32 %v7838, 1.442695
        %v7925 = vpow.pop %v7924
        %v7926 = vmul.f32 %v7839, 1.442695
        %v7927 = vpow.pop %v7926
        %v7928 = vmul.f32 %v7840, 1.442695
        %v7929 = vpow.pop %v7928
        %v7930 = vmul.f32 %v7841, 1.442695
        %v7931 = vpow.pop %v7930
        %v7932 = vmul.f32 %v7842, 1.442695
        %v7933 = vpow.pop %v7932
        %v7934 = vmul.f32 %v7843, 1.442695
        %v7935 = vpow.pop %v7934
        %v7936 = vmul.f32 %v7844, 1.442695
        %v7937 = vpow.pop %v7936
        %v7938 = vmul.f32 %v7845, 1.442695
        %v7939 = vpow.pop %v7938
        %v7940 = vmul.f32 %v7846, 1.442695
        %v7941 = vpow.pop %v7940
        %v7942 = vmul.f32 %v7847, 1.442695
        %v7943 = vpow.pop %v7942
        %v7944 = vmul.f32 %v7848, 1.442695
        %v7945 = vpow.pop %v7944
        %v7946 = vmul.f32 %v7849, 1.442695
        %v7947 = vpow.pop %v7946
        %v7948 = vmul.f32 %v7850, 1.442695
        %v7949 = vpow.pop %v7948
        %v7950 = vmul.f32 %v7851, 1.442695
        %v7951 = vpow.pop %v7950
        %v7952 = vmul.f32 %v7852, 1.442695
        %v7953 = vpow.pop %v7952
        %v7954 = vmul.f32 %v7853, 1.442695
        %v7955 = vpow.pop %v7954
        %v7956 = vmul.f32 %v7854, 1.442695
        %v7957 = vpow.pop %v7956
        %v7958 = vmul.f32 %v7855, 1.442695
        %v7959 = vpow.pop %v7958
        %v7960 = vmul.f32 %v7856, 1.442695
        %v7961 = vpow.pop %v7960
        %v7962 = vmul.f32 %v7857, 1.442695
        %v7963 = vpow.pop %v7962
        %v7964 = vmul.f32 %v7858, 1.442695
        %v7965 = vpow.pop %v7964
        %v7966 = vmul.f32 %v7859, 1.442695
        %v7967 = vpow.pop %v7966
        %v7968 = vmul.f32 %v7860, 1.442695
        %v7969 = vpow.pop %v7968
        %v7970 = vmul.f32 %v7861, 1.442695
        %v7971 = vpow.pop %v7970
        %v7972 = vmul.f32 %v7862, 1.442695
        %v7973 = vpow.pop %v7972
        %v7974 = vmul.f32 %v7863, 1.442695
        %v7975 = vpow.pop %v7974
        %v7976 = vmul.f32 %v7864, 1.442695
        %v7977 = vpow.pop %v7976
        %v7978 = vmul.f32 %v7865, 1.442695
        %v7979 = vpow.pop %v7978
        %v7980 = vmul.f32 %v7866, 1.442695
        %v7981 = vpow.pop %v7980
        %v7982 = vmul.f32 %v7867, 1.442695
        %v7983 = vpow.pop %v7982
        %v7984 = vmul.f32 %v7868, 1.442695
        %v7985 = vpow.pop %v7984
        %v7986 = vmul.f32 %v7869, 1.442695
        %v7987 = vpow.pop %v7986
        %v7988 = vmul.f32 %v7870, 1.442695
        %v7989 = vpow.pop %v7988
        %v7990 = vmul.f32 %v7871, 1.442695
        %v7991 = vpow.pop %v7990
        %v7992 = vmul.f32 %v7872, 1.442695
        %v7993 = vpow.pop %v7992
        %v7994 = vmul.f32 %v7873, 1.442695
        %v7995 = vpow.pop %v7994
        %v7996 = vmul.f32 %v7874, 1.442695
        %v7997 = vpow.pop %v7996
        %v7998 = vmul.f32 %v7875, 1.442695
        %v7999 = vpow.pop %v7998
        %v8000 = vmul.f32 %v7876, 1.442695
        %v8001 = vpow.pop %v8000
        %v8002 = vmul.f32 %v7877, 1.442695
        %v8003 = vpow.pop %v8002
        %v8004 = vmul.f32 %v7878, 1.442695
        %v8005 = vpow.pop %v8004
        %v8006 = vmul.f32 %v7879, 1.442695
        %v8007 = vpow.pop %v8006
        %v8008 = vmul.f32 %v7880, 1.442695
        %v8009 = vpow.pop %v8008
        %v8010 = vmul.f32 %v7881, 1.442695
        %v8011 = vpow.pop %v8010
        %v8012 = vmul.f32 %v7882, 1.442695
        %v8013 = vpow.pop %v8012
        %v8014 = vmul.f32 %v7883, 1.442695
        %v8015 = vpow.pop %v8014
        %v8016 = vmul.f32 %v7884, 1.442695
        %v8017 = vpow.pop %v8016
        %v8018 = vmul.f32 %v7885, 1.442695
        %v8019 = vpow.pop %v8018
        %v8020 = vmul.f32 %v7886, 1.442695
        %v8021 = vpow.pop %v8020
        %v8022 = vmul.f32 %v7887, 1.442695
        %v8023 = vpow.pop %v8022
        %v8024 = vmul.f32 %v7888, 1.442695
        %v8025 = vpow.pop %v8024
        %v8026 = vmul.f32 %v7889, 1.442695
        %v8027 = vpow.pop %v8026
        %v8028 = vmul.f32 %v7890, 1.442695
        %v8029 = vpow.pop %v8028
        %v8030 = vmul.f32 %v7891, 1.442695
        %v8031 = vpow.pop %v8030
        %v8032 = vmul.f32 %v7892, 1.442695
        %v8033 = vpow.pop %v8032
        %v8034 = vmul.f32 %v7893, 1.442695
        %v8035 = vpow.pop %v8034
        %v8036 = vmul.f32 %v7894, 1.442695
        %v8037 = vpow.pop %v8036
        %v8038 = vmul.f32 %v7895, 1.442695
        %v8039 = vpow.pop %v8038
        %v8040 = vadd.f32 %v7568, %v7897
        %v8041 = vadd.f32 %v7569, %v7899
        %v8042 = vadd.f32 %v7570, %v7901
        %v8043 = vadd.f32 %v7571, %v7903
        %v8044 = vadd.f32 %v7572, %v7905
        %v8045 = vadd.f32 %v7573, %v7907
        %v8046 = vadd.f32 %v7574, %v7909
        %v8047 = vadd.f32 %v7575, %v7911
        %v8048 = vadd.f32 %v7576, %v7913
        %v8049 = vadd.f32 %v7577, %v7915
        %v8050 = vadd.f32 %v7578, %v7917
        %v8051 = vadd.f32 %v7579, %v7919
        %v8052 = vadd.f32 %v7580, %v7921
        %v8053 = vadd.f32 %v7581, %v7923
        %v8054 = vadd.f32 %v7582, %v7925
        %v8055 = vadd.f32 %v7583, %v7927
        %v8056 = vadd.f32 %v7584, %v7929
        %v8057 = vadd.f32 %v7585, %v7931
        %v8058 = vadd.f32 %v7586, %v7933
        %v8059 = vadd.f32 %v7587, %v7935
        %v8060 = vadd.f32 %v7588, %v7937
        %v8061 = vadd.f32 %v7589, %v7939
        %v8062 = vadd.f32 %v7590, %v7941
        %v8063 = vadd.f32 %v7591, %v7943
        %v8064 = vadd.f32 %v7592, %v7945
        %v8065 = vadd.f32 %v7593, %v7947
        %v8066 = vadd.f32 %v7594, %v7949
        %v8067 = vadd.f32 %v7595, %v7951
        %v8068 = vadd.f32 %v7596, %v7953
        %v8069 = vadd.f32 %v7597, %v7955
        %v8070 = vadd.f32 %v7598, %v7957
        %v8071 = vadd.f32 %v7599, %v7959
        %v8072 = vadd.f32 %v7600, %v7961
        %v8073 = vadd.f32 %v7601, %v7963
        %v8074 = vadd.f32 %v7602, %v7965
        %v8075 = vadd.f32 %v7603, %v7967
        %v8076 = vadd.f32 %v7604, %v7969
        %v8077 = vadd.f32 %v7605, %v7971
        %v8078 = vadd.f32 %v7606, %v7973
        %v8079 = vadd.f32 %v7607, %v7975
        %v8080 = vadd.f32 %v7608, %v7977
        %v8081 = vadd.f32 %v7609, %v7979
        %v8082 = vadd.f32 %v7610, %v7981
        %v8083 = vadd.f32 %v7611, %v7983
        %v8084 = vadd.f32 %v7612, %v7985
        %v8085 = vadd.f32 %v7613, %v7987
        %v8086 = vadd.f32 %v7614, %v7989
        %v8087 = vadd.f32 %v7615, %v7991
        %v8088 = vadd.f32 %v7616, %v7993
        %v8089 = vadd.f32 %v7617, %v7995
        %v8090 = vadd.f32 %v7618, %v7997
        %v8091 = vadd.f32 %v7619, %v7999
        %v8092 = vadd.f32 %v7620, %v8001
        %v8093 = vadd.f32 %v7621, %v8003
        %v8094 = vadd.f32 %v7622, %v8005
        %v8095 = vadd.f32 %v7623, %v8007
        %v8096 = vadd.f32 %v7624, %v8009
        %v8097 = vadd.f32 %v7625, %v8011
        %v8098 = vadd.f32 %v7626, %v8013
        %v8099 = vadd.f32 %v7627, %v8015
        %v8100 = vadd.f32 %v7628, %v8017
        %v8101 = vadd.f32 %v7629, %v8019
        %v8102 = vadd.f32 %v7630, %v8021
        %v8103 = vadd.f32 %v7631, %v8023
        %v8104 = vadd.f32 %v7632, %v8025
        %v8105 = vadd.f32 %v7633, %v8027
        %v8106 = vadd.f32 %v7634, %v8029
        %v8107 = vadd.f32 %v7635, %v8031
        %v8108 = vadd.f32 %v7636, %v8033
        %v8109 = vadd.f32 %v7637, %v8035
        %v8110 = vadd.f32 %v7638, %v8037
        %v8111 = vadd.f32 %v7639, %v8039
        %v8112 = vrot.slane %v2282, 7
        %v8113 = vrot.slane %v8112, 2
        %v8114 = vrot.slane %v2283, 7
        %v8115 = vsel %vm2733, %v8113, %v8114
        %v8116 = vrot.slane %v8114, 2
        %v8117 = vrot.slane %v2284, 7
        %v8118 = vsel %vm2733, %v8116, %v8117
        %v8119 = vrot.slane %v8117, 2
        %v8120 = vrot.slane %v2316, 7
        %v8121 = vsel %vm2733, %v8119, %v8120
        %v8122 = vrot.slane %v8120, 2
        %v8123 = vrot.slane %v2317, 7
        %v8124 = vsel %vm2733, %v8122, %v8123
        %v8125 = vrot.slane %v8123, 2
        %v8126 = vrot.slane %v2318, 7
        %v8127 = vsel %vm2733, %v8125, %v8126
        %v8128 = vrot.slane %v8126, 2
        %v8129 = vrot.slane %v2319, 7
        %v8130 = vsel %vm2733, %v8128, %v8129
        %v8131 = vrot.slane %v8129, 2
        %v8132 = vrot.slane %v2335, 7
        %v8133 = vsel %vm2733, %v8131, %v8132
        %v8134 = vrot.slane %v8132, 2
        %v8135 = vrot.slane %v8115, 2
        %v8136 = vrot.slane %v8118, 2
        %v8137 = vrot.slane %v8121, 2
        %v8138 = vrot.slane %v8124, 2
        %v8139 = vrot.slane %v8127, 2
        %v8140 = vrot.slane %v8130, 2
        %v8141 = vrot.slane %v8133, 2
        %v8142 = vrot.slane %v8134, 2
        %v8152 = vmul.f32 %v7897, %v6935
        %v8153 = vmul.f32 %v7899, %v7088
        %v8154 = vmul.f32 %v7901, %v7089
        %v8155 = vmul.f32 %v7903, %v7090
        %v8156 = vmul.f32 %v7905, %v7091
        %v8157 = vmul.f32 %v7907, %v7092
        %v8158 = vmul.f32 %v7909, %v7093
        %v8159 = vmul.f32 %v7911, %v7094
        %v8160 = vmul.f32 %v7913, %v7095
        %v8161 = vmul.f32 %v7915, %v6958
        %v8162 = vmul.f32 %v7917, %v7096
        %v8163 = vmul.f32 %v7919, %v7097
        %v8164 = vmul.f32 %v7921, %v7098
        %v8165 = vmul.f32 %v7923, %v7099
        %v8166 = vmul.f32 %v7925, %v7100
        %v8167 = vmul.f32 %v7927, %v7101
        %v8168 = vmul.f32 %v7929, %v7102
        %v8169 = vmul.f32 %v7931, %v7103
        %v8170 = vmul.f32 %v7933, %v6981
        %v8171 = vmul.f32 %v7935, %v7104
        %v8172 = vmul.f32 %v7937, %v7105
        %v8173 = vmul.f32 %v7939, %v7106
        %v8174 = vmul.f32 %v7941, %v7107
        %v8175 = vmul.f32 %v7943, %v7108
        %v8176 = vmul.f32 %v7945, %v7109
        %v8177 = vmul.f32 %v7947, %v7110
        %v8178 = vmul.f32 %v7949, %v7111
        %v8179 = vmul.f32 %v7951, %v7004
        %v8180 = vmul.f32 %v7953, %v7112
        %v8181 = vmul.f32 %v7955, %v7113
        %v8182 = vmul.f32 %v7957, %v7114
        %v8183 = vmul.f32 %v7959, %v7115
        %v8184 = vmul.f32 %v7961, %v7116
        %v8185 = vmul.f32 %v7963, %v7117
        %v8186 = vmul.f32 %v7965, %v7118
        %v8187 = vmul.f32 %v7967, %v7119
        %v8188 = vmul.f32 %v7969, %v7027
        %v8189 = vmul.f32 %v7971, %v7120
        %v8190 = vmul.f32 %v7973, %v7121
        %v8191 = vmul.f32 %v7975, %v7122
        %v8192 = vmul.f32 %v7977, %v7123
        %v8193 = vmul.f32 %v7979, %v7124
        %v8194 = vmul.f32 %v7981, %v7125
        %v8195 = vmul.f32 %v7983, %v7126
        %v8196 = vmul.f32 %v7985, %v7127
        %v8197 = vmul.f32 %v7987, %v7050
        %v8198 = vmul.f32 %v7989, %v7128
        %v8199 = vmul.f32 %v7991, %v7129
        %v8200 = vmul.f32 %v7993, %v7130
        %v8201 = vmul.f32 %v7995, %v7131
        %v8202 = vmul.f32 %v7997, %v7132
        %v8203 = vmul.f32 %v7999, %v7133
        %v8204 = vmul.f32 %v8001, %v7134
        %v8205 = vmul.f32 %v8003, %v7135
        %v8206 = vmul.f32 %v8005, %v7641
        %v8207 = vmul.f32 %v8007, %v7663
        %v8208 = vmul.f32 %v8009, %v7664
        %v8209 = vmul.f32 %v8011, %v7665
        %v8210 = vmul.f32 %v8013, %v7666
        %v8211 = vmul.f32 %v8015, %v7667
        %v8212 = vmul.f32 %v8017, %v7668
        %v8213 = vmul.f32 %v8019, %v7669
        %v8214 = vmul.f32 %v8021, %v7670
        %v8215 = vmul.f32 %v8023, %v8113
        %v8216 = vmul.f32 %v8025, %v8135
        %v8217 = vmul.f32 %v8027, %v8136
        %v8218 = vmul.f32 %v8029, %v8137
        %v8219 = vmul.f32 %v8031, %v8138
        %v8220 = vmul.f32 %v8033, %v8139
        %v8221 = vmul.f32 %v8035, %v8140
        %v8222 = vmul.f32 %v8037, %v8141
        %v8223 = vmul.f32 %v8039, %v8142
        %v8224 = vadd.f32 %v7752, %v8152
        %v8225 = vadd.f32 %v7753, %v8153
        %v8226 = vadd.f32 %v7754, %v8154
        %v8227 = vadd.f32 %v7755, %v8155
        %v8228 = vadd.f32 %v7756, %v8156
        %v8229 = vadd.f32 %v7757, %v8157
        %v8230 = vadd.f32 %v7758, %v8158
        %v8231 = vadd.f32 %v7759, %v8159
        %v8232 = vadd.f32 %v7760, %v8160
        %v8233 = vadd.f32 %v7761, %v8161
        %v8234 = vadd.f32 %v7762, %v8162
        %v8235 = vadd.f32 %v7763, %v8163
        %v8236 = vadd.f32 %v7764, %v8164
        %v8237 = vadd.f32 %v7765, %v8165
        %v8238 = vadd.f32 %v7766, %v8166
        %v8239 = vadd.f32 %v7767, %v8167
        %v8240 = vadd.f32 %v7768, %v8168
        %v8241 = vadd.f32 %v7769, %v8169
        %v8242 = vadd.f32 %v7770, %v8170
        %v8243 = vadd.f32 %v7771, %v8171
        %v8244 = vadd.f32 %v7772, %v8172
        %v8245 = vadd.f32 %v7773, %v8173
        %v8246 = vadd.f32 %v7774, %v8174
        %v8247 = vadd.f32 %v7775, %v8175
        %v8248 = vadd.f32 %v7776, %v8176
        %v8249 = vadd.f32 %v7777, %v8177
        %v8250 = vadd.f32 %v7778, %v8178
        %v8251 = vadd.f32 %v7779, %v8179
        %v8252 = vadd.f32 %v7780, %v8180
        %v8253 = vadd.f32 %v7781, %v8181
        %v8254 = vadd.f32 %v7782, %v8182
        %v8255 = vadd.f32 %v7783, %v8183
        %v8256 = vadd.f32 %v7784, %v8184
        %v8257 = vadd.f32 %v7785, %v8185
        %v8258 = vadd.f32 %v7786, %v8186
        %v8259 = vadd.f32 %v7787, %v8187
        %v8260 = vadd.f32 %v7788, %v8188
        %v8261 = vadd.f32 %v7789, %v8189
        %v8262 = vadd.f32 %v7790, %v8190
        %v8263 = vadd.f32 %v7791, %v8191
        %v8264 = vadd.f32 %v7792, %v8192
        %v8265 = vadd.f32 %v7793, %v8193
        %v8266 = vadd.f32 %v7794, %v8194
        %v8267 = vadd.f32 %v7795, %v8195
        %v8268 = vadd.f32 %v7796, %v8196
        %v8269 = vadd.f32 %v7797, %v8197
        %v8270 = vadd.f32 %v7798, %v8198
        %v8271 = vadd.f32 %v7799, %v8199
        %v8272 = vadd.f32 %v7800, %v8200
        %v8273 = vadd.f32 %v7801, %v8201
        %v8274 = vadd.f32 %v7802, %v8202
        %v8275 = vadd.f32 %v7803, %v8203
        %v8276 = vadd.f32 %v7804, %v8204
        %v8277 = vadd.f32 %v7805, %v8205
        %v8278 = vadd.f32 %v7806, %v8206
        %v8279 = vadd.f32 %v7807, %v8207
        %v8280 = vadd.f32 %v7808, %v8208
        %v8281 = vadd.f32 %v7809, %v8209
        %v8282 = vadd.f32 %v7810, %v8210
        %v8283 = vadd.f32 %v7811, %v8211
        %v8284 = vadd.f32 %v7812, %v8212
        %v8285 = vadd.f32 %v7813, %v8213
        %v8286 = vadd.f32 %v7814, %v8214
        %v8287 = vadd.f32 %v7815, %v8215
        %v8288 = vadd.f32 %v7816, %v8216
        %v8289 = vadd.f32 %v7817, %v8217
        %v8290 = vadd.f32 %v7818, %v8218
        %v8291 = vadd.f32 %v7819, %v8219
        %v8292 = vadd.f32 %v7820, %v8220
        %v8293 = vadd.f32 %v7821, %v8221
        %v8294 = vadd.f32 %v7822, %v8222
        %v8295 = vadd.f32 %v7823, %v8223
        %v8296 = vsub.f32 %v4282, %v6528
        %v8297 = vsub.f32 %v4283, %v6529
        %v8298 = vsub.f32 %v4284, %v6530
        %v8299 = vsub.f32 %v4285, %v6531
        %v8300 = vsub.f32 %v4286, %v6532
        %v8301 = vsub.f32 %v4287, %v6533
        %v8302 = vsub.f32 %v4288, %v6534
        %v8303 = vsub.f32 %v4289, %v6535
        %v8304 = vsub.f32 %v4290, %v6536
        %v8305 = vsub.f32 %v4291, %v6537
        %v8306 = vsub.f32 %v4292, %v6538
        %v8307 = vsub.f32 %v4293, %v6539
        %v8308 = vsub.f32 %v4294, %v6540
        %v8309 = vsub.f32 %v4295, %v6541
        %v8310 = vsub.f32 %v4296, %v6542
        %v8311 = vsub.f32 %v4297, %v6543
        %v8312 = vsub.f32 %v4298, %v6544
        %v8313 = vsub.f32 %v4299, %v6545
        %v8314 = vsub.f32 %v4300, %v6546
        %v8315 = vsub.f32 %v4301, %v6547
        %v8316 = vsub.f32 %v4302, %v6548
        %v8317 = vsub.f32 %v4303, %v6549
        %v8318 = vsub.f32 %v4304, %v6550
        %v8319 = vsub.f32 %v4305, %v6551
        %v8320 = vsub.f32 %v4306, %v6552
        %v8321 = vsub.f32 %v4307, %v6553
        %v8322 = vsub.f32 %v4308, %v6554
        %v8323 = vsub.f32 %v4309, %v6555
        %v8324 = vsub.f32 %v4310, %v6556
        %v8325 = vsub.f32 %v4311, %v6557
        %v8326 = vsub.f32 %v4312, %v6558
        %v8327 = vsub.f32 %v4313, %v6559
        %v8328 = vsub.f32 %v4314, %v6560
        %v8329 = vsub.f32 %v4315, %v6561
        %v8330 = vsub.f32 %v4316, %v6562
        %v8331 = vsub.f32 %v4317, %v6563
        %v8332 = vsub.f32 %v4318, %v6564
        %v8333 = vsub.f32 %v4319, %v6565
        %v8334 = vsub.f32 %v4320, %v6566
        %v8335 = vsub.f32 %v4321, %v6567
        %v8336 = vsub.f32 %v4322, %v6568
        %v8337 = vsub.f32 %v4323, %v6569
        %v8338 = vsub.f32 %v4324, %v6570
        %v8339 = vsub.f32 %v4325, %v6571
        %v8340 = vsub.f32 %v4326, %v6572
        %v8341 = vsub.f32 %v4327, %v6573
        %v8342 = vsub.f32 %v4328, %v6574
        %v8343 = vsub.f32 %v4329, %v6575
        %v8344 = vsub.f32 %v4330, %v6576
        %v8345 = vsub.f32 %v4331, %v6577
        %v8346 = vsub.f32 %v4332, %v6578
        %v8347 = vsub.f32 %v4333, %v6579
        %v8348 = vsub.f32 %v4334, %v6580
        %v8349 = vsub.f32 %v4335, %v6581
        %v8350 = vsub.f32 %v4336, %v6582
        %v8351 = vsub.f32 %v4337, %v6583
        %v8352 = vsub.f32 %v4338, %v6584
        %v8353 = vsub.f32 %v4339, %v6585
        %v8354 = vsub.f32 %v4340, %v6586
        %v8355 = vsub.f32 %v4341, %v6587
        %v8356 = vsub.f32 %v4342, %v6588
        %v8357 = vsub.f32 %v4343, %v6589
        %v8358 = vsub.f32 %v4344, %v6590
        %v8359 = vsub.f32 %v4345, %v6591
        %v8360 = vsub.f32 %v4346, %v6592
        %v8361 = vsub.f32 %v4347, %v6593
        %v8362 = vsub.f32 %v4348, %v6594
        %v8363 = vsub.f32 %v4349, %v6595
        %v8364 = vsub.f32 %v4350, %v6596
        %v8365 = vsub.f32 %v4351, %v6597
        %v8366 = vsub.f32 %v4352, %v6598
        %v8367 = vsub.f32 %v4353, %v6599
        %v8368 = vmul.f32 %v8296, 1.442695
        %v8369 = vpow.pop %v8368
        %v8370 = vmul.f32 %v8297, 1.442695
        %v8371 = vpow.pop %v8370
        %v8372 = vmul.f32 %v8298, 1.442695
        %v8373 = vpow.pop %v8372
        %v8374 = vmul.f32 %v8299, 1.442695
        %v8375 = vpow.pop %v8374
        %v8376 = vmul.f32 %v8300, 1.442695
        %v8377 = vpow.pop %v8376
        %v8378 = vmul.f32 %v8301, 1.442695
        %v8379 = vpow.pop %v8378
        %v8380 = vmul.f32 %v8302, 1.442695
        %v8381 = vpow.pop %v8380
        %v8382 = vmul.f32 %v8303, 1.442695
        %v8383 = vpow.pop %v8382
        %v8384 = vmul.f32 %v8304, 1.442695
        %v8385 = vpow.pop %v8384
        %v8386 = vmul.f32 %v8305, 1.442695
        %v8387 = vpow.pop %v8386
        %v8388 = vmul.f32 %v8306, 1.442695
        %v8389 = vpow.pop %v8388
        %v8390 = vmul.f32 %v8307, 1.442695
        %v8391 = vpow.pop %v8390
        %v8392 = vmul.f32 %v8308, 1.442695
        %v8393 = vpow.pop %v8392
        %v8394 = vmul.f32 %v8309, 1.442695
        %v8395 = vpow.pop %v8394
        %v8396 = vmul.f32 %v8310, 1.442695
        %v8397 = vpow.pop %v8396
        %v8398 = vmul.f32 %v8311, 1.442695
        %v8399 = vpow.pop %v8398
        %v8400 = vmul.f32 %v8312, 1.442695
        %v8401 = vpow.pop %v8400
        %v8402 = vmul.f32 %v8313, 1.442695
        %v8403 = vpow.pop %v8402
        %v8404 = vmul.f32 %v8314, 1.442695
        %v8405 = vpow.pop %v8404
        %v8406 = vmul.f32 %v8315, 1.442695
        %v8407 = vpow.pop %v8406
        %v8408 = vmul.f32 %v8316, 1.442695
        %v8409 = vpow.pop %v8408
        %v8410 = vmul.f32 %v8317, 1.442695
        %v8411 = vpow.pop %v8410
        %v8412 = vmul.f32 %v8318, 1.442695
        %v8413 = vpow.pop %v8412
        %v8414 = vmul.f32 %v8319, 1.442695
        %v8415 = vpow.pop %v8414
        %v8416 = vmul.f32 %v8320, 1.442695
        %v8417 = vpow.pop %v8416
        %v8418 = vmul.f32 %v8321, 1.442695
        %v8419 = vpow.pop %v8418
        %v8420 = vmul.f32 %v8322, 1.442695
        %v8421 = vpow.pop %v8420
        %v8422 = vmul.f32 %v8323, 1.442695
        %v8423 = vpow.pop %v8422
        %v8424 = vmul.f32 %v8324, 1.442695
        %v8425 = vpow.pop %v8424
        %v8426 = vmul.f32 %v8325, 1.442695
        %v8427 = vpow.pop %v8426
        %v8428 = vmul.f32 %v8326, 1.442695
        %v8429 = vpow.pop %v8428
        %v8430 = vmul.f32 %v8327, 1.442695
        %v8431 = vpow.pop %v8430
        %v8432 = vmul.f32 %v8328, 1.442695
        %v8433 = vpow.pop %v8432
        %v8434 = vmul.f32 %v8329, 1.442695
        %v8435 = vpow.pop %v8434
        %v8436 = vmul.f32 %v8330, 1.442695
        %v8437 = vpow.pop %v8436
        %v8438 = vmul.f32 %v8331, 1.442695
        %v8439 = vpow.pop %v8438
        %v8440 = vmul.f32 %v8332, 1.442695
        %v8441 = vpow.pop %v8440
        %v8442 = vmul.f32 %v8333, 1.442695
        %v8443 = vpow.pop %v8442
        %v8444 = vmul.f32 %v8334, 1.442695
        %v8445 = vpow.pop %v8444
        %v8446 = vmul.f32 %v8335, 1.442695
        %v8447 = vpow.pop %v8446
        %v8448 = vmul.f32 %v8336, 1.442695
        %v8449 = vpow.pop %v8448
        %v8450 = vmul.f32 %v8337, 1.442695
        %v8451 = vpow.pop %v8450
        %v8452 = vmul.f32 %v8338, 1.442695
        %v8453 = vpow.pop %v8452
        %v8454 = vmul.f32 %v8339, 1.442695
        %v8455 = vpow.pop %v8454
        %v8456 = vmul.f32 %v8340, 1.442695
        %v8457 = vpow.pop %v8456
        %v8458 = vmul.f32 %v8341, 1.442695
        %v8459 = vpow.pop %v8458
        %v8460 = vmul.f32 %v8342, 1.442695
        %v8461 = vpow.pop %v8460
        %v8462 = vmul.f32 %v8343, 1.442695
        %v8463 = vpow.pop %v8462
        %v8464 = vmul.f32 %v8344, 1.442695
        %v8465 = vpow.pop %v8464
        %v8466 = vmul.f32 %v8345, 1.442695
        %v8467 = vpow.pop %v8466
        %v8468 = vmul.f32 %v8346, 1.442695
        %v8469 = vpow.pop %v8468
        %v8470 = vmul.f32 %v8347, 1.442695
        %v8471 = vpow.pop %v8470
        %v8472 = vmul.f32 %v8348, 1.442695
        %v8473 = vpow.pop %v8472
        %v8474 = vmul.f32 %v8349, 1.442695
        %v8475 = vpow.pop %v8474
        %v8476 = vmul.f32 %v8350, 1.442695
        %v8477 = vpow.pop %v8476
        %v8478 = vmul.f32 %v8351, 1.442695
        %v8479 = vpow.pop %v8478
        %v8480 = vmul.f32 %v8352, 1.442695
        %v8481 = vpow.pop %v8480
        %v8482 = vmul.f32 %v8353, 1.442695
        %v8483 = vpow.pop %v8482
        %v8484 = vmul.f32 %v8354, 1.442695
        %v8485 = vpow.pop %v8484
        %v8486 = vmul.f32 %v8355, 1.442695
        %v8487 = vpow.pop %v8486
        %v8488 = vmul.f32 %v8356, 1.442695
        %v8489 = vpow.pop %v8488
        %v8490 = vmul.f32 %v8357, 1.442695
        %v8491 = vpow.pop %v8490
        %v8492 = vmul.f32 %v8358, 1.442695
        %v8493 = vpow.pop %v8492
        %v8494 = vmul.f32 %v8359, 1.442695
        %v8495 = vpow.pop %v8494
        %v8496 = vmul.f32 %v8360, 1.442695
        %v8497 = vpow.pop %v8496
        %v8498 = vmul.f32 %v8361, 1.442695
        %v8499 = vpow.pop %v8498
        %v8500 = vmul.f32 %v8362, 1.442695
        %v8501 = vpow.pop %v8500
        %v8502 = vmul.f32 %v8363, 1.442695
        %v8503 = vpow.pop %v8502
        %v8504 = vmul.f32 %v8364, 1.442695
        %v8505 = vpow.pop %v8504
        %v8506 = vmul.f32 %v8365, 1.442695
        %v8507 = vpow.pop %v8506
        %v8508 = vmul.f32 %v8366, 1.442695
        %v8509 = vpow.pop %v8508
        %v8510 = vmul.f32 %v8367, 1.442695
        %v8511 = vpow.pop %v8510
        %v8512 = vadd.f32 %v8040, %v8369
        %v8513 = vadd.f32 %v8041, %v8371
        %v8514 = vadd.f32 %v8042, %v8373
        %v8515 = vadd.f32 %v8043, %v8375
        %v8516 = vadd.f32 %v8044, %v8377
        %v8517 = vadd.f32 %v8045, %v8379
        %v8518 = vadd.f32 %v8046, %v8381
        %v8519 = vadd.f32 %v8047, %v8383
        %v8520 = vadd.f32 %v8048, %v8385
        %v8521 = vadd.f32 %v8049, %v8387
        %v8522 = vadd.f32 %v8050, %v8389
        %v8523 = vadd.f32 %v8051, %v8391
        %v8524 = vadd.f32 %v8052, %v8393
        %v8525 = vadd.f32 %v8053, %v8395
        %v8526 = vadd.f32 %v8054, %v8397
        %v8527 = vadd.f32 %v8055, %v8399
        %v8528 = vadd.f32 %v8056, %v8401
        %v8529 = vadd.f32 %v8057, %v8403
        %v8530 = vadd.f32 %v8058, %v8405
        %v8531 = vadd.f32 %v8059, %v8407
        %v8532 = vadd.f32 %v8060, %v8409
        %v8533 = vadd.f32 %v8061, %v8411
        %v8534 = vadd.f32 %v8062, %v8413
        %v8535 = vadd.f32 %v8063, %v8415
        %v8536 = vadd.f32 %v8064, %v8417
        %v8537 = vadd.f32 %v8065, %v8419
        %v8538 = vadd.f32 %v8066, %v8421
        %v8539 = vadd.f32 %v8067, %v8423
        %v8540 = vadd.f32 %v8068, %v8425
        %v8541 = vadd.f32 %v8069, %v8427
        %v8542 = vadd.f32 %v8070, %v8429
        %v8543 = vadd.f32 %v8071, %v8431
        %v8544 = vadd.f32 %v8072, %v8433
        %v8545 = vadd.f32 %v8073, %v8435
        %v8546 = vadd.f32 %v8074, %v8437
        %v8547 = vadd.f32 %v8075, %v8439
        %v8548 = vadd.f32 %v8076, %v8441
        %v8549 = vadd.f32 %v8077, %v8443
        %v8550 = vadd.f32 %v8078, %v8445
        %v8551 = vadd.f32 %v8079, %v8447
        %v8552 = vadd.f32 %v8080, %v8449
        %v8553 = vadd.f32 %v8081, %v8451
        %v8554 = vadd.f32 %v8082, %v8453
        %v8555 = vadd.f32 %v8083, %v8455
        %v8556 = vadd.f32 %v8084, %v8457
        %v8557 = vadd.f32 %v8085, %v8459
        %v8558 = vadd.f32 %v8086, %v8461
        %v8559 = vadd.f32 %v8087, %v8463
        %v8560 = vadd.f32 %v8088, %v8465
        %v8561 = vadd.f32 %v8089, %v8467
        %v8562 = vadd.f32 %v8090, %v8469
        %v8563 = vadd.f32 %v8091, %v8471
        %v8564 = vadd.f32 %v8092, %v8473
        %v8565 = vadd.f32 %v8093, %v8475
        %v8566 = vadd.f32 %v8094, %v8477
        %v8567 = vadd.f32 %v8095, %v8479
        %v8568 = vadd.f32 %v8096, %v8481
        %v8569 = vadd.f32 %v8097, %v8483
        %v8570 = vadd.f32 %v8098, %v8485
        %v8571 = vadd.f32 %v8099, %v8487
        %v8572 = vadd.f32 %v8100, %v8489
        %v8573 = vadd.f32 %v8101, %v8491
        %v8574 = vadd.f32 %v8102, %v8493
        %v8575 = vadd.f32 %v8103, %v8495
        %v8576 = vadd.f32 %v8104, %v8497
        %v8577 = vadd.f32 %v8105, %v8499
        %v8578 = vadd.f32 %v8106, %v8501
        %v8579 = vadd.f32 %v8107, %v8503
        %v8580 = vadd.f32 %v8108, %v8505
        %v8581 = vadd.f32 %v8109, %v8507
        %v8582 = vadd.f32 %v8110, %v8509
        %v8583 = vadd.f32 %v8111, %v8511
        %v8584 = vrot.slane %v1581, 2
        %v8585 = vrot.slane %v1582, 2
        %v8586 = vrot.slane %v1583, 2
        %v8587 = vrot.slane %v1584, 2
        %v8588 = vrot.slane %v1616, 2
        %v8589 = vrot.slane %v1617, 2
        %v8590 = vrot.slane %v1618, 2
        %v8591 = vrot.slane %v1619, 2
        %v8592 = vrot.slane %v1651, 2
        %v8593 = vrot.slane %v1652, 2
        %v8594 = vrot.slane %v1653, 2
        %v8595 = vrot.slane %v1654, 2
        %v8596 = vrot.slane %v1686, 2
        %v8597 = vrot.slane %v1687, 2
        %v8598 = vrot.slane %v1688, 2
        %v8599 = vrot.slane %v1689, 2
        %v8600 = vrot.slane %v1721, 2
        %v8601 = vrot.slane %v1722, 2
        %v8602 = vrot.slane %v1723, 2
        %v8603 = vrot.slane %v1724, 2
        %v8604 = vrot.slane %v1756, 2
        %v8605 = vrot.slane %v1757, 2
        %v8606 = vrot.slane %v1758, 2
        %v8607 = vrot.slane %v1759, 2
        %v8608 = vrot.slane %v1791, 2
        %v8609 = vrot.slane %v1792, 2
        %v8610 = vrot.slane %v1793, 2
        %v8611 = vrot.slane %v1794, 2
        %v8612 = vrot.slane %v1826, 2
        %v8613 = vrot.slane %v1827, 2
        %v8614 = vrot.slane %v1828, 2
        %v8615 = vrot.slane %v1829, 2
        %v8616 = vrot.slane %v1861, 2
        %v8617 = vrot.slane %v1862, 2
        %v8618 = vrot.slane %v1863, 2
        %v8619 = vrot.slane %v1864, 2
        %v8620 = vrot.slane %v1896, 2
        %v8621 = vrot.slane %v1897, 2
        %v8622 = vrot.slane %v1898, 2
        %v8623 = vrot.slane %v1899, 2
        %v8624 = vrot.slane %v1931, 2
        %v8625 = vrot.slane %v1932, 2
        %v8626 = vrot.slane %v1933, 2
        %v8627 = vrot.slane %v1934, 2
        %v8628 = vrot.slane %v1966, 2
        %v8629 = vrot.slane %v1967, 2
        %v8630 = vrot.slane %v1968, 2
        %v8631 = vrot.slane %v1969, 2
        %v8632 = vrot.slane %v2001, 2
        %v8633 = vrot.slane %v2002, 2
        %v8634 = vrot.slane %v2003, 2
        %v8635 = vrot.slane %v2004, 2
        %v8636 = vrot.slane %v2036, 2
        %v8637 = vrot.slane %v2037, 2
        %v8638 = vrot.slane %v2038, 2
        %v8639 = vrot.slane %v2039, 2
        %v8640 = vrot.slane %v2071, 2
        %v8641 = vrot.slane %v2072, 2
        %v8642 = vrot.slane %v2073, 2
        %v8643 = vrot.slane %v2074, 2
        %v8644 = vrot.slane %v2106, 2
        %v8645 = vrot.slane %v2107, 2
        %v8646 = vrot.slane %v2108, 2
        %v8647 = vrot.slane %v2109, 2
        %v8648 = vrot.slane %v2141, 2
        %v8649 = vrot.slane %v2142, 2
        %v8650 = vrot.slane %v2143, 2
        %v8651 = vrot.slane %v2144, 2
        %v8652 = vrot.slane %v2176, 2
        %v8653 = vrot.slane %v2177, 2
        %v8654 = vrot.slane %v2178, 2
        %v8655 = vrot.slane %v2179, 2
        %v8728 = vmul.f32 %v8369, %v8584
        %v8729 = vmul.f32 %v8371, %v8585
        %v8730 = vmul.f32 %v8373, %v8586
        %v8731 = vmul.f32 %v8375, %v8587
        %v8732 = vmul.f32 %v8377, %v8588
        %v8733 = vmul.f32 %v8379, %v8589
        %v8734 = vmul.f32 %v8381, %v8590
        %v8735 = vmul.f32 %v8383, %v8591
        %v8736 = vmul.f32 %v8385, %v8592
        %v8737 = vmul.f32 %v8387, %v8593
        %v8738 = vmul.f32 %v8389, %v8594
        %v8739 = vmul.f32 %v8391, %v8595
        %v8740 = vmul.f32 %v8393, %v8596
        %v8741 = vmul.f32 %v8395, %v8597
        %v8742 = vmul.f32 %v8397, %v8598
        %v8743 = vmul.f32 %v8399, %v8599
        %v8744 = vmul.f32 %v8401, %v8600
        %v8745 = vmul.f32 %v8403, %v8601
        %v8746 = vmul.f32 %v8405, %v8602
        %v8747 = vmul.f32 %v8407, %v8603
        %v8748 = vmul.f32 %v8409, %v8604
        %v8749 = vmul.f32 %v8411, %v8605
        %v8750 = vmul.f32 %v8413, %v8606
        %v8751 = vmul.f32 %v8415, %v8607
        %v8752 = vmul.f32 %v8417, %v8608
        %v8753 = vmul.f32 %v8419, %v8609
        %v8754 = vmul.f32 %v8421, %v8610
        %v8755 = vmul.f32 %v8423, %v8611
        %v8756 = vmul.f32 %v8425, %v8612
        %v8757 = vmul.f32 %v8427, %v8613
        %v8758 = vmul.f32 %v8429, %v8614
        %v8759 = vmul.f32 %v8431, %v8615
        %v8760 = vmul.f32 %v8433, %v8616
        %v8761 = vmul.f32 %v8435, %v8617
        %v8762 = vmul.f32 %v8437, %v8618
        %v8763 = vmul.f32 %v8439, %v8619
        %v8764 = vmul.f32 %v8441, %v8620
        %v8765 = vmul.f32 %v8443, %v8621
        %v8766 = vmul.f32 %v8445, %v8622
        %v8767 = vmul.f32 %v8447, %v8623
        %v8768 = vmul.f32 %v8449, %v8624
        %v8769 = vmul.f32 %v8451, %v8625
        %v8770 = vmul.f32 %v8453, %v8626
        %v8771 = vmul.f32 %v8455, %v8627
        %v8772 = vmul.f32 %v8457, %v8628
        %v8773 = vmul.f32 %v8459, %v8629
        %v8774 = vmul.f32 %v8461, %v8630
        %v8775 = vmul.f32 %v8463, %v8631
        %v8776 = vmul.f32 %v8465, %v8632
        %v8777 = vmul.f32 %v8467, %v8633
        %v8778 = vmul.f32 %v8469, %v8634
        %v8779 = vmul.f32 %v8471, %v8635
        %v8780 = vmul.f32 %v8473, %v8636
        %v8781 = vmul.f32 %v8475, %v8637
        %v8782 = vmul.f32 %v8477, %v8638
        %v8783 = vmul.f32 %v8479, %v8639
        %v8784 = vmul.f32 %v8481, %v8640
        %v8785 = vmul.f32 %v8483, %v8641
        %v8786 = vmul.f32 %v8485, %v8642
        %v8787 = vmul.f32 %v8487, %v8643
        %v8788 = vmul.f32 %v8489, %v8644
        %v8789 = vmul.f32 %v8491, %v8645
        %v8790 = vmul.f32 %v8493, %v8646
        %v8791 = vmul.f32 %v8495, %v8647
        %v8792 = vmul.f32 %v8497, %v8648
        %v8793 = vmul.f32 %v8499, %v8649
        %v8794 = vmul.f32 %v8501, %v8650
        %v8795 = vmul.f32 %v8503, %v8651
        %v8796 = vmul.f32 %v8505, %v8652
        %v8797 = vmul.f32 %v8507, %v8653
        %v8798 = vmul.f32 %v8509, %v8654
        %v8799 = vmul.f32 %v8511, %v8655
        %v8800 = vadd.f32 %v8224, %v8728
        %v8801 = vadd.f32 %v8225, %v8729
        %v8802 = vadd.f32 %v8226, %v8730
        %v8803 = vadd.f32 %v8227, %v8731
        %v8804 = vadd.f32 %v8228, %v8732
        %v8805 = vadd.f32 %v8229, %v8733
        %v8806 = vadd.f32 %v8230, %v8734
        %v8807 = vadd.f32 %v8231, %v8735
        %v8808 = vadd.f32 %v8232, %v8736
        %v8809 = vadd.f32 %v8233, %v8737
        %v8810 = vadd.f32 %v8234, %v8738
        %v8811 = vadd.f32 %v8235, %v8739
        %v8812 = vadd.f32 %v8236, %v8740
        %v8813 = vadd.f32 %v8237, %v8741
        %v8814 = vadd.f32 %v8238, %v8742
        %v8815 = vadd.f32 %v8239, %v8743
        %v8816 = vadd.f32 %v8240, %v8744
        %v8817 = vadd.f32 %v8241, %v8745
        %v8818 = vadd.f32 %v8242, %v8746
        %v8819 = vadd.f32 %v8243, %v8747
        %v8820 = vadd.f32 %v8244, %v8748
        %v8821 = vadd.f32 %v8245, %v8749
        %v8822 = vadd.f32 %v8246, %v8750
        %v8823 = vadd.f32 %v8247, %v8751
        %v8824 = vadd.f32 %v8248, %v8752
        %v8825 = vadd.f32 %v8249, %v8753
        %v8826 = vadd.f32 %v8250, %v8754
        %v8827 = vadd.f32 %v8251, %v8755
        %v8828 = vadd.f32 %v8252, %v8756
        %v8829 = vadd.f32 %v8253, %v8757
        %v8830 = vadd.f32 %v8254, %v8758
        %v8831 = vadd.f32 %v8255, %v8759
        %v8832 = vadd.f32 %v8256, %v8760
        %v8833 = vadd.f32 %v8257, %v8761
        %v8834 = vadd.f32 %v8258, %v8762
        %v8835 = vadd.f32 %v8259, %v8763
        %v8836 = vadd.f32 %v8260, %v8764
        %v8837 = vadd.f32 %v8261, %v8765
        %v8838 = vadd.f32 %v8262, %v8766
        %v8839 = vadd.f32 %v8263, %v8767
        %v8840 = vadd.f32 %v8264, %v8768
        %v8841 = vadd.f32 %v8265, %v8769
        %v8842 = vadd.f32 %v8266, %v8770
        %v8843 = vadd.f32 %v8267, %v8771
        %v8844 = vadd.f32 %v8268, %v8772
        %v8845 = vadd.f32 %v8269, %v8773
        %v8846 = vadd.f32 %v8270, %v8774
        %v8847 = vadd.f32 %v8271, %v8775
        %v8848 = vadd.f32 %v8272, %v8776
        %v8849 = vadd.f32 %v8273, %v8777
        %v8850 = vadd.f32 %v8274, %v8778
        %v8851 = vadd.f32 %v8275, %v8779
        %v8852 = vadd.f32 %v8276, %v8780
        %v8853 = vadd.f32 %v8277, %v8781
        %v8854 = vadd.f32 %v8278, %v8782
        %v8855 = vadd.f32 %v8279, %v8783
        %v8856 = vadd.f32 %v8280, %v8784
        %v8857 = vadd.f32 %v8281, %v8785
        %v8858 = vadd.f32 %v8282, %v8786
        %v8859 = vadd.f32 %v8283, %v8787
        %v8860 = vadd.f32 %v8284, %v8788
        %v8861 = vadd.f32 %v8285, %v8789
        %v8862 = vadd.f32 %v8286, %v8790
        %v8863 = vadd.f32 %v8287, %v8791
        %v8864 = vadd.f32 %v8288, %v8792
        %v8865 = vadd.f32 %v8289, %v8793
        %v8866 = vadd.f32 %v8290, %v8794
        %v8867 = vadd.f32 %v8291, %v8795
        %v8868 = vadd.f32 %v8292, %v8796
        %v8869 = vadd.f32 %v8293, %v8797
        %v8870 = vadd.f32 %v8294, %v8798
        %v8871 = vadd.f32 %v8295, %v8799
        %v8872 = vsub.f32 %v4538, %v6528
        %v8873 = vsub.f32 %v4539, %v6529
        %v8874 = vsub.f32 %v4540, %v6530
        %v8875 = vsub.f32 %v4541, %v6531
        %v8876 = vsub.f32 %v4542, %v6532
        %v8877 = vsub.f32 %v4543, %v6533
        %v8878 = vsub.f32 %v4544, %v6534
        %v8879 = vsub.f32 %v4545, %v6535
        %v8880 = vsub.f32 %v4546, %v6536
        %v8881 = vsub.f32 %v4547, %v6537
        %v8882 = vsub.f32 %v4548, %v6538
        %v8883 = vsub.f32 %v4549, %v6539
        %v8884 = vsub.f32 %v4550, %v6540
        %v8885 = vsub.f32 %v4551, %v6541
        %v8886 = vsub.f32 %v4552, %v6542
        %v8887 = vsub.f32 %v4553, %v6543
        %v8888 = vsub.f32 %v4554, %v6544
        %v8889 = vsub.f32 %v4555, %v6545
        %v8890 = vsub.f32 %v4556, %v6546
        %v8891 = vsub.f32 %v4557, %v6547
        %v8892 = vsub.f32 %v4558, %v6548
        %v8893 = vsub.f32 %v4559, %v6549
        %v8894 = vsub.f32 %v4560, %v6550
        %v8895 = vsub.f32 %v4561, %v6551
        %v8896 = vsub.f32 %v4562, %v6552
        %v8897 = vsub.f32 %v4563, %v6553
        %v8898 = vsub.f32 %v4564, %v6554
        %v8899 = vsub.f32 %v4565, %v6555
        %v8900 = vsub.f32 %v4566, %v6556
        %v8901 = vsub.f32 %v4567, %v6557
        %v8902 = vsub.f32 %v4568, %v6558
        %v8903 = vsub.f32 %v4569, %v6559
        %v8904 = vsub.f32 %v4570, %v6560
        %v8905 = vsub.f32 %v4571, %v6561
        %v8906 = vsub.f32 %v4572, %v6562
        %v8907 = vsub.f32 %v4573, %v6563
        %v8908 = vsub.f32 %v4574, %v6564
        %v8909 = vsub.f32 %v4575, %v6565
        %v8910 = vsub.f32 %v4576, %v6566
        %v8911 = vsub.f32 %v4577, %v6567
        %v8912 = vsub.f32 %v4578, %v6568
        %v8913 = vsub.f32 %v4579, %v6569
        %v8914 = vsub.f32 %v4580, %v6570
        %v8915 = vsub.f32 %v4581, %v6571
        %v8916 = vsub.f32 %v4582, %v6572
        %v8917 = vsub.f32 %v4583, %v6573
        %v8918 = vsub.f32 %v4584, %v6574
        %v8919 = vsub.f32 %v4585, %v6575
        %v8920 = vsub.f32 %v4586, %v6576
        %v8921 = vsub.f32 %v4587, %v6577
        %v8922 = vsub.f32 %v4588, %v6578
        %v8923 = vsub.f32 %v4589, %v6579
        %v8924 = vsub.f32 %v4590, %v6580
        %v8925 = vsub.f32 %v4591, %v6581
        %v8926 = vsub.f32 %v4592, %v6582
        %v8927 = vsub.f32 %v4593, %v6583
        %v8928 = vsub.f32 %v4594, %v6584
        %v8929 = vsub.f32 %v4595, %v6585
        %v8930 = vsub.f32 %v4596, %v6586
        %v8931 = vsub.f32 %v4597, %v6587
        %v8932 = vsub.f32 %v4598, %v6588
        %v8933 = vsub.f32 %v4599, %v6589
        %v8934 = vsub.f32 %v4600, %v6590
        %v8935 = vsub.f32 %v4601, %v6591
        %v8936 = vsub.f32 %v4602, %v6592
        %v8937 = vsub.f32 %v4603, %v6593
        %v8938 = vsub.f32 %v4604, %v6594
        %v8939 = vsub.f32 %v4605, %v6595
        %v8940 = vsub.f32 %v4606, %v6596
        %v8941 = vsub.f32 %v4607, %v6597
        %v8942 = vsub.f32 %v4608, %v6598
        %v8943 = vsub.f32 %v4609, %v6599
        %v8944 = vmul.f32 %v8872, 1.442695
        %v8945 = vpow.pop %v8944
        %v8946 = vmul.f32 %v8873, 1.442695
        %v8947 = vpow.pop %v8946
        %v8948 = vmul.f32 %v8874, 1.442695
        %v8949 = vpow.pop %v8948
        %v8950 = vmul.f32 %v8875, 1.442695
        %v8951 = vpow.pop %v8950
        %v8952 = vmul.f32 %v8876, 1.442695
        %v8953 = vpow.pop %v8952
        %v8954 = vmul.f32 %v8877, 1.442695
        %v8955 = vpow.pop %v8954
        %v8956 = vmul.f32 %v8878, 1.442695
        %v8957 = vpow.pop %v8956
        %v8958 = vmul.f32 %v8879, 1.442695
        %v8959 = vpow.pop %v8958
        %v8960 = vmul.f32 %v8880, 1.442695
        %v8961 = vpow.pop %v8960
        %v8962 = vmul.f32 %v8881, 1.442695
        %v8963 = vpow.pop %v8962
        %v8964 = vmul.f32 %v8882, 1.442695
        %v8965 = vpow.pop %v8964
        %v8966 = vmul.f32 %v8883, 1.442695
        %v8967 = vpow.pop %v8966
        %v8968 = vmul.f32 %v8884, 1.442695
        %v8969 = vpow.pop %v8968
        %v8970 = vmul.f32 %v8885, 1.442695
        %v8971 = vpow.pop %v8970
        %v8972 = vmul.f32 %v8886, 1.442695
        %v8973 = vpow.pop %v8972
        %v8974 = vmul.f32 %v8887, 1.442695
        %v8975 = vpow.pop %v8974
        %v8976 = vmul.f32 %v8888, 1.442695
        %v8977 = vpow.pop %v8976
        %v8978 = vmul.f32 %v8889, 1.442695
        %v8979 = vpow.pop %v8978
        %v8980 = vmul.f32 %v8890, 1.442695
        %v8981 = vpow.pop %v8980
        %v8982 = vmul.f32 %v8891, 1.442695
        %v8983 = vpow.pop %v8982
        %v8984 = vmul.f32 %v8892, 1.442695
        %v8985 = vpow.pop %v8984
        %v8986 = vmul.f32 %v8893, 1.442695
        %v8987 = vpow.pop %v8986
        %v8988 = vmul.f32 %v8894, 1.442695
        %v8989 = vpow.pop %v8988
        %v8990 = vmul.f32 %v8895, 1.442695
        %v8991 = vpow.pop %v8990
        %v8992 = vmul.f32 %v8896, 1.442695
        %v8993 = vpow.pop %v8992
        %v8994 = vmul.f32 %v8897, 1.442695
        %v8995 = vpow.pop %v8994
        %v8996 = vmul.f32 %v8898, 1.442695
        %v8997 = vpow.pop %v8996
        %v8998 = vmul.f32 %v8899, 1.442695
        %v8999 = vpow.pop %v8998
        %v9000 = vmul.f32 %v8900, 1.442695
        %v9001 = vpow.pop %v9000
        %v9002 = vmul.f32 %v8901, 1.442695
        %v9003 = vpow.pop %v9002
        %v9004 = vmul.f32 %v8902, 1.442695
        %v9005 = vpow.pop %v9004
        %v9006 = vmul.f32 %v8903, 1.442695
        %v9007 = vpow.pop %v9006
        %v9008 = vmul.f32 %v8904, 1.442695
        %v9009 = vpow.pop %v9008
        %v9010 = vmul.f32 %v8905, 1.442695
        %v9011 = vpow.pop %v9010
        %v9012 = vmul.f32 %v8906, 1.442695
        %v9013 = vpow.pop %v9012
        %v9014 = vmul.f32 %v8907, 1.442695
        %v9015 = vpow.pop %v9014
        %v9016 = vmul.f32 %v8908, 1.442695
        %v9017 = vpow.pop %v9016
        %v9018 = vmul.f32 %v8909, 1.442695
        %v9019 = vpow.pop %v9018
        %v9020 = vmul.f32 %v8910, 1.442695
        %v9021 = vpow.pop %v9020
        %v9022 = vmul.f32 %v8911, 1.442695
        %v9023 = vpow.pop %v9022
        %v9024 = vmul.f32 %v8912, 1.442695
        %v9025 = vpow.pop %v9024
        %v9026 = vmul.f32 %v8913, 1.442695
        %v9027 = vpow.pop %v9026
        %v9028 = vmul.f32 %v8914, 1.442695
        %v9029 = vpow.pop %v9028
        %v9030 = vmul.f32 %v8915, 1.442695
        %v9031 = vpow.pop %v9030
        %v9032 = vmul.f32 %v8916, 1.442695
        %v9033 = vpow.pop %v9032
        %v9034 = vmul.f32 %v8917, 1.442695
        %v9035 = vpow.pop %v9034
        %v9036 = vmul.f32 %v8918, 1.442695
        %v9037 = vpow.pop %v9036
        %v9038 = vmul.f32 %v8919, 1.442695
        %v9039 = vpow.pop %v9038
        %v9040 = vmul.f32 %v8920, 1.442695
        %v9041 = vpow.pop %v9040
        %v9042 = vmul.f32 %v8921, 1.442695
        %v9043 = vpow.pop %v9042
        %v9044 = vmul.f32 %v8922, 1.442695
        %v9045 = vpow.pop %v9044
        %v9046 = vmul.f32 %v8923, 1.442695
        %v9047 = vpow.pop %v9046
        %v9048 = vmul.f32 %v8924, 1.442695
        %v9049 = vpow.pop %v9048
        %v9050 = vmul.f32 %v8925, 1.442695
        %v9051 = vpow.pop %v9050
        %v9052 = vmul.f32 %v8926, 1.442695
        %v9053 = vpow.pop %v9052
        %v9054 = vmul.f32 %v8927, 1.442695
        %v9055 = vpow.pop %v9054
        %v9056 = vmul.f32 %v8928, 1.442695
        %v9057 = vpow.pop %v9056
        %v9058 = vmul.f32 %v8929, 1.442695
        %v9059 = vpow.pop %v9058
        %v9060 = vmul.f32 %v8930, 1.442695
        %v9061 = vpow.pop %v9060
        %v9062 = vmul.f32 %v8931, 1.442695
        %v9063 = vpow.pop %v9062
        %v9064 = vmul.f32 %v8932, 1.442695
        %v9065 = vpow.pop %v9064
        %v9066 = vmul.f32 %v8933, 1.442695
        %v9067 = vpow.pop %v9066
        %v9068 = vmul.f32 %v8934, 1.442695
        %v9069 = vpow.pop %v9068
        %v9070 = vmul.f32 %v8935, 1.442695
        %v9071 = vpow.pop %v9070
        %v9072 = vmul.f32 %v8936, 1.442695
        %v9073 = vpow.pop %v9072
        %v9074 = vmul.f32 %v8937, 1.442695
        %v9075 = vpow.pop %v9074
        %v9076 = vmul.f32 %v8938, 1.442695
        %v9077 = vpow.pop %v9076
        %v9078 = vmul.f32 %v8939, 1.442695
        %v9079 = vpow.pop %v9078
        %v9080 = vmul.f32 %v8940, 1.442695
        %v9081 = vpow.pop %v9080
        %v9082 = vmul.f32 %v8941, 1.442695
        %v9083 = vpow.pop %v9082
        %v9084 = vmul.f32 %v8942, 1.442695
        %v9085 = vpow.pop %v9084
        %v9086 = vmul.f32 %v8943, 1.442695
        %v9087 = vpow.pop %v9086
        %v9088 = vadd.f32 %v8512, %v8945
        %v9089 = vadd.f32 %v8513, %v8947
        %v9090 = vadd.f32 %v8514, %v8949
        %v9091 = vadd.f32 %v8515, %v8951
        %v9092 = vadd.f32 %v8516, %v8953
        %v9093 = vadd.f32 %v8517, %v8955
        %v9094 = vadd.f32 %v8518, %v8957
        %v9095 = vadd.f32 %v8519, %v8959
        %v9096 = vadd.f32 %v8520, %v8961
        %v9097 = vadd.f32 %v8521, %v8963
        %v9098 = vadd.f32 %v8522, %v8965
        %v9099 = vadd.f32 %v8523, %v8967
        %v9100 = vadd.f32 %v8524, %v8969
        %v9101 = vadd.f32 %v8525, %v8971
        %v9102 = vadd.f32 %v8526, %v8973
        %v9103 = vadd.f32 %v8527, %v8975
        %v9104 = vadd.f32 %v8528, %v8977
        %v9105 = vadd.f32 %v8529, %v8979
        %v9106 = vadd.f32 %v8530, %v8981
        %v9107 = vadd.f32 %v8531, %v8983
        %v9108 = vadd.f32 %v8532, %v8985
        %v9109 = vadd.f32 %v8533, %v8987
        %v9110 = vadd.f32 %v8534, %v8989
        %v9111 = vadd.f32 %v8535, %v8991
        %v9112 = vadd.f32 %v8536, %v8993
        %v9113 = vadd.f32 %v8537, %v8995
        %v9114 = vadd.f32 %v8538, %v8997
        %v9115 = vadd.f32 %v8539, %v8999
        %v9116 = vadd.f32 %v8540, %v9001
        %v9117 = vadd.f32 %v8541, %v9003
        %v9118 = vadd.f32 %v8542, %v9005
        %v9119 = vadd.f32 %v8543, %v9007
        %v9120 = vadd.f32 %v8544, %v9009
        %v9121 = vadd.f32 %v8545, %v9011
        %v9122 = vadd.f32 %v8546, %v9013
        %v9123 = vadd.f32 %v8547, %v9015
        %v9124 = vadd.f32 %v8548, %v9017
        %v9125 = vadd.f32 %v8549, %v9019
        %v9126 = vadd.f32 %v8550, %v9021
        %v9127 = vadd.f32 %v8551, %v9023
        %v9128 = vadd.f32 %v8552, %v9025
        %v9129 = vadd.f32 %v8553, %v9027
        %v9130 = vadd.f32 %v8554, %v9029
        %v9131 = vadd.f32 %v8555, %v9031
        %v9132 = vadd.f32 %v8556, %v9033
        %v9133 = vadd.f32 %v8557, %v9035
        %v9134 = vadd.f32 %v8558, %v9037
        %v9135 = vadd.f32 %v8559, %v9039
        %v9136 = vadd.f32 %v8560, %v9041
        %v9137 = vadd.f32 %v8561, %v9043
        %v9138 = vadd.f32 %v8562, %v9045
        %v9139 = vadd.f32 %v8563, %v9047
        %v9140 = vadd.f32 %v8564, %v9049
        %v9141 = vadd.f32 %v8565, %v9051
        %v9142 = vadd.f32 %v8566, %v9053
        %v9143 = vadd.f32 %v8567, %v9055
        %v9144 = vadd.f32 %v8568, %v9057
        %v9145 = vadd.f32 %v8569, %v9059
        %v9146 = vadd.f32 %v8570, %v9061
        %v9147 = vadd.f32 %v8571, %v9063
        %v9148 = vadd.f32 %v8572, %v9065
        %v9149 = vadd.f32 %v8573, %v9067
        %v9150 = vadd.f32 %v8574, %v9069
        %v9151 = vadd.f32 %v8575, %v9071
        %v9152 = vadd.f32 %v8576, %v9073
        %v9153 = vadd.f32 %v8577, %v9075
        %v9154 = vadd.f32 %v8578, %v9077
        %v9155 = vadd.f32 %v8579, %v9079
        %v9156 = vadd.f32 %v8580, %v9081
        %v9157 = vadd.f32 %v8581, %v9083
        %v9158 = vadd.f32 %v8582, %v9085
        %v9159 = vadd.f32 %v8583, %v9087
        %v9160 = vrot.slane %v2211, 2
        %v9161 = vrot.slane %v2212, 2
        %v9162 = vrot.slane %v2213, 2
        %v9163 = vrot.slane %v2214, 2
        %v9164 = vrot.slane %v2246, 2
        %v9165 = vrot.slane %v2247, 2
        %v9166 = vrot.slane %v2248, 2
        %v9167 = vrot.slane %v2249, 2
        %v9168 = vrot.slane %v2281, 2
        %v9178 = vmul.f32 %v8945, %v8593
        %v9179 = vmul.f32 %v8947, %v8594
        %v9180 = vmul.f32 %v8949, %v8595
        %v9181 = vmul.f32 %v8951, %v8596
        %v9182 = vmul.f32 %v8953, %v8597
        %v9183 = vmul.f32 %v8955, %v8598
        %v9184 = vmul.f32 %v8957, %v8599
        %v9185 = vmul.f32 %v8959, %v8600
        %v9186 = vmul.f32 %v8961, %v8601
        %v9187 = vmul.f32 %v8963, %v8602
        %v9188 = vmul.f32 %v8965, %v8603
        %v9189 = vmul.f32 %v8967, %v8604
        %v9190 = vmul.f32 %v8969, %v8605
        %v9191 = vmul.f32 %v8971, %v8606
        %v9192 = vmul.f32 %v8973, %v8607
        %v9193 = vmul.f32 %v8975, %v8608
        %v9194 = vmul.f32 %v8977, %v8609
        %v9195 = vmul.f32 %v8979, %v8610
        %v9196 = vmul.f32 %v8981, %v8611
        %v9197 = vmul.f32 %v8983, %v8612
        %v9198 = vmul.f32 %v8985, %v8613
        %v9199 = vmul.f32 %v8987, %v8614
        %v9200 = vmul.f32 %v8989, %v8615
        %v9201 = vmul.f32 %v8991, %v8616
        %v9202 = vmul.f32 %v8993, %v8617
        %v9203 = vmul.f32 %v8995, %v8618
        %v9204 = vmul.f32 %v8997, %v8619
        %v9205 = vmul.f32 %v8999, %v8620
        %v9206 = vmul.f32 %v9001, %v8621
        %v9207 = vmul.f32 %v9003, %v8622
        %v9208 = vmul.f32 %v9005, %v8623
        %v9209 = vmul.f32 %v9007, %v8624
        %v9210 = vmul.f32 %v9009, %v8625
        %v9211 = vmul.f32 %v9011, %v8626
        %v9212 = vmul.f32 %v9013, %v8627
        %v9213 = vmul.f32 %v9015, %v8628
        %v9214 = vmul.f32 %v9017, %v8629
        %v9215 = vmul.f32 %v9019, %v8630
        %v9216 = vmul.f32 %v9021, %v8631
        %v9217 = vmul.f32 %v9023, %v8632
        %v9218 = vmul.f32 %v9025, %v8633
        %v9219 = vmul.f32 %v9027, %v8634
        %v9220 = vmul.f32 %v9029, %v8635
        %v9221 = vmul.f32 %v9031, %v8636
        %v9222 = vmul.f32 %v9033, %v8637
        %v9223 = vmul.f32 %v9035, %v8638
        %v9224 = vmul.f32 %v9037, %v8639
        %v9225 = vmul.f32 %v9039, %v8640
        %v9226 = vmul.f32 %v9041, %v8641
        %v9227 = vmul.f32 %v9043, %v8642
        %v9228 = vmul.f32 %v9045, %v8643
        %v9229 = vmul.f32 %v9047, %v8644
        %v9230 = vmul.f32 %v9049, %v8645
        %v9231 = vmul.f32 %v9051, %v8646
        %v9232 = vmul.f32 %v9053, %v8647
        %v9233 = vmul.f32 %v9055, %v8648
        %v9234 = vmul.f32 %v9057, %v8649
        %v9235 = vmul.f32 %v9059, %v8650
        %v9236 = vmul.f32 %v9061, %v8651
        %v9237 = vmul.f32 %v9063, %v8652
        %v9238 = vmul.f32 %v9065, %v8653
        %v9239 = vmul.f32 %v9067, %v8654
        %v9240 = vmul.f32 %v9069, %v8655
        %v9241 = vmul.f32 %v9071, %v9160
        %v9242 = vmul.f32 %v9073, %v9161
        %v9243 = vmul.f32 %v9075, %v9162
        %v9244 = vmul.f32 %v9077, %v9163
        %v9245 = vmul.f32 %v9079, %v9164
        %v9246 = vmul.f32 %v9081, %v9165
        %v9247 = vmul.f32 %v9083, %v9166
        %v9248 = vmul.f32 %v9085, %v9167
        %v9249 = vmul.f32 %v9087, %v9168
        %v9250 = vadd.f32 %v8800, %v9178
        %v9251 = vadd.f32 %v8801, %v9179
        %v9252 = vadd.f32 %v8802, %v9180
        %v9253 = vadd.f32 %v8803, %v9181
        %v9254 = vadd.f32 %v8804, %v9182
        %v9255 = vadd.f32 %v8805, %v9183
        %v9256 = vadd.f32 %v8806, %v9184
        %v9257 = vadd.f32 %v8807, %v9185
        %v9258 = vadd.f32 %v8808, %v9186
        %v9259 = vadd.f32 %v8809, %v9187
        %v9260 = vadd.f32 %v8810, %v9188
        %v9261 = vadd.f32 %v8811, %v9189
        %v9262 = vadd.f32 %v8812, %v9190
        %v9263 = vadd.f32 %v8813, %v9191
        %v9264 = vadd.f32 %v8814, %v9192
        %v9265 = vadd.f32 %v8815, %v9193
        %v9266 = vadd.f32 %v8816, %v9194
        %v9267 = vadd.f32 %v8817, %v9195
        %v9268 = vadd.f32 %v8818, %v9196
        %v9269 = vadd.f32 %v8819, %v9197
        %v9270 = vadd.f32 %v8820, %v9198
        %v9271 = vadd.f32 %v8821, %v9199
        %v9272 = vadd.f32 %v8822, %v9200
        %v9273 = vadd.f32 %v8823, %v9201
        %v9274 = vadd.f32 %v8824, %v9202
        %v9275 = vadd.f32 %v8825, %v9203
        %v9276 = vadd.f32 %v8826, %v9204
        %v9277 = vadd.f32 %v8827, %v9205
        %v9278 = vadd.f32 %v8828, %v9206
        %v9279 = vadd.f32 %v8829, %v9207
        %v9280 = vadd.f32 %v8830, %v9208
        %v9281 = vadd.f32 %v8831, %v9209
        %v9282 = vadd.f32 %v8832, %v9210
        %v9283 = vadd.f32 %v8833, %v9211
        %v9284 = vadd.f32 %v8834, %v9212
        %v9285 = vadd.f32 %v8835, %v9213
        %v9286 = vadd.f32 %v8836, %v9214
        %v9287 = vadd.f32 %v8837, %v9215
        %v9288 = vadd.f32 %v8838, %v9216
        %v9289 = vadd.f32 %v8839, %v9217
        %v9290 = vadd.f32 %v8840, %v9218
        %v9291 = vadd.f32 %v8841, %v9219
        %v9292 = vadd.f32 %v8842, %v9220
        %v9293 = vadd.f32 %v8843, %v9221
        %v9294 = vadd.f32 %v8844, %v9222
        %v9295 = vadd.f32 %v8845, %v9223
        %v9296 = vadd.f32 %v8846, %v9224
        %v9297 = vadd.f32 %v8847, %v9225
        %v9298 = vadd.f32 %v8848, %v9226
        %v9299 = vadd.f32 %v8849, %v9227
        %v9300 = vadd.f32 %v8850, %v9228
        %v9301 = vadd.f32 %v8851, %v9229
        %v9302 = vadd.f32 %v8852, %v9230
        %v9303 = vadd.f32 %v8853, %v9231
        %v9304 = vadd.f32 %v8854, %v9232
        %v9305 = vadd.f32 %v8855, %v9233
        %v9306 = vadd.f32 %v8856, %v9234
        %v9307 = vadd.f32 %v8857, %v9235
        %v9308 = vadd.f32 %v8858, %v9236
        %v9309 = vadd.f32 %v8859, %v9237
        %v9310 = vadd.f32 %v8860, %v9238
        %v9311 = vadd.f32 %v8861, %v9239
        %v9312 = vadd.f32 %v8862, %v9240
        %v9313 = vadd.f32 %v8863, %v9241
        %v9314 = vadd.f32 %v8864, %v9242
        %v9315 = vadd.f32 %v8865, %v9243
        %v9316 = vadd.f32 %v8866, %v9244
        %v9317 = vadd.f32 %v8867, %v9245
        %v9318 = vadd.f32 %v8868, %v9246
        %v9319 = vadd.f32 %v8869, %v9247
        %v9320 = vadd.f32 %v8870, %v9248
        %v9321 = vadd.f32 %v8871, %v9249
        %v9322 = vsub.f32 %v4794, %v6528
        %v9323 = vsub.f32 %v4795, %v6529
        %v9324 = vsub.f32 %v4796, %v6530
        %v9325 = vsub.f32 %v4797, %v6531
        %v9326 = vsub.f32 %v4798, %v6532
        %v9327 = vsub.f32 %v4799, %v6533
        %v9328 = vsub.f32 %v4800, %v6534
        %v9329 = vsub.f32 %v4801, %v6535
        %v9330 = vsub.f32 %v4802, %v6536
        %v9331 = vsub.f32 %v4803, %v6537
        %v9332 = vsub.f32 %v4804, %v6538
        %v9333 = vsub.f32 %v4805, %v6539
        %v9334 = vsub.f32 %v4806, %v6540
        %v9335 = vsub.f32 %v4807, %v6541
        %v9336 = vsub.f32 %v4808, %v6542
        %v9337 = vsub.f32 %v4809, %v6543
        %v9338 = vsub.f32 %v4810, %v6544
        %v9339 = vsub.f32 %v4811, %v6545
        %v9340 = vsub.f32 %v4812, %v6546
        %v9341 = vsub.f32 %v4813, %v6547
        %v9342 = vsub.f32 %v4814, %v6548
        %v9343 = vsub.f32 %v4815, %v6549
        %v9344 = vsub.f32 %v4816, %v6550
        %v9345 = vsub.f32 %v4817, %v6551
        %v9346 = vsub.f32 %v4818, %v6552
        %v9347 = vsub.f32 %v4819, %v6553
        %v9348 = vsub.f32 %v4820, %v6554
        %v9349 = vsub.f32 %v4821, %v6555
        %v9350 = vsub.f32 %v4822, %v6556
        %v9351 = vsub.f32 %v4823, %v6557
        %v9352 = vsub.f32 %v4824, %v6558
        %v9353 = vsub.f32 %v4825, %v6559
        %v9354 = vsub.f32 %v4826, %v6560
        %v9355 = vsub.f32 %v4827, %v6561
        %v9356 = vsub.f32 %v4828, %v6562
        %v9357 = vsub.f32 %v4829, %v6563
        %v9358 = vsub.f32 %v4830, %v6564
        %v9359 = vsub.f32 %v4831, %v6565
        %v9360 = vsub.f32 %v4832, %v6566
        %v9361 = vsub.f32 %v4833, %v6567
        %v9362 = vsub.f32 %v4834, %v6568
        %v9363 = vsub.f32 %v4835, %v6569
        %v9364 = vsub.f32 %v4836, %v6570
        %v9365 = vsub.f32 %v4837, %v6571
        %v9366 = vsub.f32 %v4838, %v6572
        %v9367 = vsub.f32 %v4839, %v6573
        %v9368 = vsub.f32 %v4840, %v6574
        %v9369 = vsub.f32 %v4841, %v6575
        %v9370 = vsub.f32 %v4842, %v6576
        %v9371 = vsub.f32 %v4843, %v6577
        %v9372 = vsub.f32 %v4844, %v6578
        %v9373 = vsub.f32 %v4845, %v6579
        %v9374 = vsub.f32 %v4846, %v6580
        %v9375 = vsub.f32 %v4847, %v6581
        %v9376 = vsub.f32 %v4848, %v6582
        %v9377 = vsub.f32 %v4849, %v6583
        %v9378 = vsub.f32 %v4850, %v6584
        %v9379 = vsub.f32 %v4851, %v6585
        %v9380 = vsub.f32 %v4852, %v6586
        %v9381 = vsub.f32 %v4853, %v6587
        %v9382 = vsub.f32 %v4854, %v6588
        %v9383 = vsub.f32 %v4855, %v6589
        %v9384 = vsub.f32 %v4856, %v6590
        %v9385 = vsub.f32 %v4857, %v6591
        %v9386 = vsub.f32 %v4858, %v6592
        %v9387 = vsub.f32 %v4859, %v6593
        %v9388 = vsub.f32 %v4860, %v6594
        %v9389 = vsub.f32 %v4861, %v6595
        %v9390 = vsub.f32 %v4862, %v6596
        %v9391 = vsub.f32 %v4863, %v6597
        %v9392 = vsub.f32 %v4864, %v6598
        %v9393 = vsub.f32 %v4865, %v6599
        %v9394 = vmul.f32 %v9322, 1.442695
        %v9395 = vpow.pop %v9394
        %v9396 = vmul.f32 %v9323, 1.442695
        %v9397 = vpow.pop %v9396
        %v9398 = vmul.f32 %v9324, 1.442695
        %v9399 = vpow.pop %v9398
        %v9400 = vmul.f32 %v9325, 1.442695
        %v9401 = vpow.pop %v9400
        %v9402 = vmul.f32 %v9326, 1.442695
        %v9403 = vpow.pop %v9402
        %v9404 = vmul.f32 %v9327, 1.442695
        %v9405 = vpow.pop %v9404
        %v9406 = vmul.f32 %v9328, 1.442695
        %v9407 = vpow.pop %v9406
        %v9408 = vmul.f32 %v9329, 1.442695
        %v9409 = vpow.pop %v9408
        %v9410 = vmul.f32 %v9330, 1.442695
        %v9411 = vpow.pop %v9410
        %v9412 = vmul.f32 %v9331, 1.442695
        %v9413 = vpow.pop %v9412
        %v9414 = vmul.f32 %v9332, 1.442695
        %v9415 = vpow.pop %v9414
        %v9416 = vmul.f32 %v9333, 1.442695
        %v9417 = vpow.pop %v9416
        %v9418 = vmul.f32 %v9334, 1.442695
        %v9419 = vpow.pop %v9418
        %v9420 = vmul.f32 %v9335, 1.442695
        %v9421 = vpow.pop %v9420
        %v9422 = vmul.f32 %v9336, 1.442695
        %v9423 = vpow.pop %v9422
        %v9424 = vmul.f32 %v9337, 1.442695
        %v9425 = vpow.pop %v9424
        %v9426 = vmul.f32 %v9338, 1.442695
        %v9427 = vpow.pop %v9426
        %v9428 = vmul.f32 %v9339, 1.442695
        %v9429 = vpow.pop %v9428
        %v9430 = vmul.f32 %v9340, 1.442695
        %v9431 = vpow.pop %v9430
        %v9432 = vmul.f32 %v9341, 1.442695
        %v9433 = vpow.pop %v9432
        %v9434 = vmul.f32 %v9342, 1.442695
        %v9435 = vpow.pop %v9434
        %v9436 = vmul.f32 %v9343, 1.442695
        %v9437 = vpow.pop %v9436
        %v9438 = vmul.f32 %v9344, 1.442695
        %v9439 = vpow.pop %v9438
        %v9440 = vmul.f32 %v9345, 1.442695
        %v9441 = vpow.pop %v9440
        %v9442 = vmul.f32 %v9346, 1.442695
        %v9443 = vpow.pop %v9442
        %v9444 = vmul.f32 %v9347, 1.442695
        %v9445 = vpow.pop %v9444
        %v9446 = vmul.f32 %v9348, 1.442695
        %v9447 = vpow.pop %v9446
        %v9448 = vmul.f32 %v9349, 1.442695
        %v9449 = vpow.pop %v9448
        %v9450 = vmul.f32 %v9350, 1.442695
        %v9451 = vpow.pop %v9450
        %v9452 = vmul.f32 %v9351, 1.442695
        %v9453 = vpow.pop %v9452
        %v9454 = vmul.f32 %v9352, 1.442695
        %v9455 = vpow.pop %v9454
        %v9456 = vmul.f32 %v9353, 1.442695
        %v9457 = vpow.pop %v9456
        %v9458 = vmul.f32 %v9354, 1.442695
        %v9459 = vpow.pop %v9458
        %v9460 = vmul.f32 %v9355, 1.442695
        %v9461 = vpow.pop %v9460
        %v9462 = vmul.f32 %v9356, 1.442695
        %v9463 = vpow.pop %v9462
        %v9464 = vmul.f32 %v9357, 1.442695
        %v9465 = vpow.pop %v9464
        %v9466 = vmul.f32 %v9358, 1.442695
        %v9467 = vpow.pop %v9466
        %v9468 = vmul.f32 %v9359, 1.442695
        %v9469 = vpow.pop %v9468
        %v9470 = vmul.f32 %v9360, 1.442695
        %v9471 = vpow.pop %v9470
        %v9472 = vmul.f32 %v9361, 1.442695
        %v9473 = vpow.pop %v9472
        %v9474 = vmul.f32 %v9362, 1.442695
        %v9475 = vpow.pop %v9474
        %v9476 = vmul.f32 %v9363, 1.442695
        %v9477 = vpow.pop %v9476
        %v9478 = vmul.f32 %v9364, 1.442695
        %v9479 = vpow.pop %v9478
        %v9480 = vmul.f32 %v9365, 1.442695
        %v9481 = vpow.pop %v9480
        %v9482 = vmul.f32 %v9366, 1.442695
        %v9483 = vpow.pop %v9482
        %v9484 = vmul.f32 %v9367, 1.442695
        %v9485 = vpow.pop %v9484
        %v9486 = vmul.f32 %v9368, 1.442695
        %v9487 = vpow.pop %v9486
        %v9488 = vmul.f32 %v9369, 1.442695
        %v9489 = vpow.pop %v9488
        %v9490 = vmul.f32 %v9370, 1.442695
        %v9491 = vpow.pop %v9490
        %v9492 = vmul.f32 %v9371, 1.442695
        %v9493 = vpow.pop %v9492
        %v9494 = vmul.f32 %v9372, 1.442695
        %v9495 = vpow.pop %v9494
        %v9496 = vmul.f32 %v9373, 1.442695
        %v9497 = vpow.pop %v9496
        %v9498 = vmul.f32 %v9374, 1.442695
        %v9499 = vpow.pop %v9498
        %v9500 = vmul.f32 %v9375, 1.442695
        %v9501 = vpow.pop %v9500
        %v9502 = vmul.f32 %v9376, 1.442695
        %v9503 = vpow.pop %v9502
        %v9504 = vmul.f32 %v9377, 1.442695
        %v9505 = vpow.pop %v9504
        %v9506 = vmul.f32 %v9378, 1.442695
        %v9507 = vpow.pop %v9506
        %v9508 = vmul.f32 %v9379, 1.442695
        %v9509 = vpow.pop %v9508
        %v9510 = vmul.f32 %v9380, 1.442695
        %v9511 = vpow.pop %v9510
        %v9512 = vmul.f32 %v9381, 1.442695
        %v9513 = vpow.pop %v9512
        %v9514 = vmul.f32 %v9382, 1.442695
        %v9515 = vpow.pop %v9514
        %v9516 = vmul.f32 %v9383, 1.442695
        %v9517 = vpow.pop %v9516
        %v9518 = vmul.f32 %v9384, 1.442695
        %v9519 = vpow.pop %v9518
        %v9520 = vmul.f32 %v9385, 1.442695
        %v9521 = vpow.pop %v9520
        %v9522 = vmul.f32 %v9386, 1.442695
        %v9523 = vpow.pop %v9522
        %v9524 = vmul.f32 %v9387, 1.442695
        %v9525 = vpow.pop %v9524
        %v9526 = vmul.f32 %v9388, 1.442695
        %v9527 = vpow.pop %v9526
        %v9528 = vmul.f32 %v9389, 1.442695
        %v9529 = vpow.pop %v9528
        %v9530 = vmul.f32 %v9390, 1.442695
        %v9531 = vpow.pop %v9530
        %v9532 = vmul.f32 %v9391, 1.442695
        %v9533 = vpow.pop %v9532
        %v9534 = vmul.f32 %v9392, 1.442695
        %v9535 = vpow.pop %v9534
        %v9536 = vmul.f32 %v9393, 1.442695
        %v9537 = vpow.pop %v9536
        %v9538 = vadd.f32 %v9088, %v9395
        %v9539 = vadd.f32 %v9089, %v9397
        %v9540 = vadd.f32 %v9090, %v9399
        %v9541 = vadd.f32 %v9091, %v9401
        %v9542 = vadd.f32 %v9092, %v9403
        %v9543 = vadd.f32 %v9093, %v9405
        %v9544 = vadd.f32 %v9094, %v9407
        %v9545 = vadd.f32 %v9095, %v9409
        %v9546 = vadd.f32 %v9096, %v9411
        %v9547 = vadd.f32 %v9097, %v9413
        %v9548 = vadd.f32 %v9098, %v9415
        %v9549 = vadd.f32 %v9099, %v9417
        %v9550 = vadd.f32 %v9100, %v9419
        %v9551 = vadd.f32 %v9101, %v9421
        %v9552 = vadd.f32 %v9102, %v9423
        %v9553 = vadd.f32 %v9103, %v9425
        %v9554 = vadd.f32 %v9104, %v9427
        %v9555 = vadd.f32 %v9105, %v9429
        %v9556 = vadd.f32 %v9106, %v9431
        %v9557 = vadd.f32 %v9107, %v9433
        %v9558 = vadd.f32 %v9108, %v9435
        %v9559 = vadd.f32 %v9109, %v9437
        %v9560 = vadd.f32 %v9110, %v9439
        %v9561 = vadd.f32 %v9111, %v9441
        %v9562 = vadd.f32 %v9112, %v9443
        %v9563 = vadd.f32 %v9113, %v9445
        %v9564 = vadd.f32 %v9114, %v9447
        %v9565 = vadd.f32 %v9115, %v9449
        %v9566 = vadd.f32 %v9116, %v9451
        %v9567 = vadd.f32 %v9117, %v9453
        %v9568 = vadd.f32 %v9118, %v9455
        %v9569 = vadd.f32 %v9119, %v9457
        %v9570 = vadd.f32 %v9120, %v9459
        %v9571 = vadd.f32 %v9121, %v9461
        %v9572 = vadd.f32 %v9122, %v9463
        %v9573 = vadd.f32 %v9123, %v9465
        %v9574 = vadd.f32 %v9124, %v9467
        %v9575 = vadd.f32 %v9125, %v9469
        %v9576 = vadd.f32 %v9126, %v9471
        %v9577 = vadd.f32 %v9127, %v9473
        %v9578 = vadd.f32 %v9128, %v9475
        %v9579 = vadd.f32 %v9129, %v9477
        %v9580 = vadd.f32 %v9130, %v9479
        %v9581 = vadd.f32 %v9131, %v9481
        %v9582 = vadd.f32 %v9132, %v9483
        %v9583 = vadd.f32 %v9133, %v9485
        %v9584 = vadd.f32 %v9134, %v9487
        %v9585 = vadd.f32 %v9135, %v9489
        %v9586 = vadd.f32 %v9136, %v9491
        %v9587 = vadd.f32 %v9137, %v9493
        %v9588 = vadd.f32 %v9138, %v9495
        %v9589 = vadd.f32 %v9139, %v9497
        %v9590 = vadd.f32 %v9140, %v9499
        %v9591 = vadd.f32 %v9141, %v9501
        %v9592 = vadd.f32 %v9142, %v9503
        %v9593 = vadd.f32 %v9143, %v9505
        %v9594 = vadd.f32 %v9144, %v9507
        %v9595 = vadd.f32 %v9145, %v9509
        %v9596 = vadd.f32 %v9146, %v9511
        %v9597 = vadd.f32 %v9147, %v9513
        %v9598 = vadd.f32 %v9148, %v9515
        %v9599 = vadd.f32 %v9149, %v9517
        %v9600 = vadd.f32 %v9150, %v9519
        %v9601 = vadd.f32 %v9151, %v9521
        %v9602 = vadd.f32 %v9152, %v9523
        %v9603 = vadd.f32 %v9153, %v9525
        %v9604 = vadd.f32 %v9154, %v9527
        %v9605 = vadd.f32 %v9155, %v9529
        %v9606 = vadd.f32 %v9156, %v9531
        %v9607 = vadd.f32 %v9157, %v9533
        %v9608 = vadd.f32 %v9158, %v9535
        %v9609 = vadd.f32 %v9159, %v9537
        %v9610 = vrot.slane %v2282, 2
        %v9611 = vrot.slane %v2283, 2
        %v9612 = vrot.slane %v2284, 2
        %v9613 = vrot.slane %v2316, 2
        %v9614 = vrot.slane %v2317, 2
        %v9615 = vrot.slane %v2318, 2
        %v9616 = vrot.slane %v2319, 2
        %v9617 = vrot.slane %v2335, 2
        %v9618 = vrot.slane %v2336, 2
        %v9628 = vmul.f32 %v9395, %v8602
        %v9629 = vmul.f32 %v9397, %v8603
        %v9630 = vmul.f32 %v9399, %v8604
        %v9631 = vmul.f32 %v9401, %v8605
        %v9632 = vmul.f32 %v9403, %v8606
        %v9633 = vmul.f32 %v9405, %v8607
        %v9634 = vmul.f32 %v9407, %v8608
        %v9635 = vmul.f32 %v9409, %v8609
        %v9636 = vmul.f32 %v9411, %v8610
        %v9637 = vmul.f32 %v9413, %v8611
        %v9638 = vmul.f32 %v9415, %v8612
        %v9639 = vmul.f32 %v9417, %v8613
        %v9640 = vmul.f32 %v9419, %v8614
        %v9641 = vmul.f32 %v9421, %v8615
        %v9642 = vmul.f32 %v9423, %v8616
        %v9643 = vmul.f32 %v9425, %v8617
        %v9644 = vmul.f32 %v9427, %v8618
        %v9645 = vmul.f32 %v9429, %v8619
        %v9646 = vmul.f32 %v9431, %v8620
        %v9647 = vmul.f32 %v9433, %v8621
        %v9648 = vmul.f32 %v9435, %v8622
        %v9649 = vmul.f32 %v9437, %v8623
        %v9650 = vmul.f32 %v9439, %v8624
        %v9651 = vmul.f32 %v9441, %v8625
        %v9652 = vmul.f32 %v9443, %v8626
        %v9653 = vmul.f32 %v9445, %v8627
        %v9654 = vmul.f32 %v9447, %v8628
        %v9655 = vmul.f32 %v9449, %v8629
        %v9656 = vmul.f32 %v9451, %v8630
        %v9657 = vmul.f32 %v9453, %v8631
        %v9658 = vmul.f32 %v9455, %v8632
        %v9659 = vmul.f32 %v9457, %v8633
        %v9660 = vmul.f32 %v9459, %v8634
        %v9661 = vmul.f32 %v9461, %v8635
        %v9662 = vmul.f32 %v9463, %v8636
        %v9663 = vmul.f32 %v9465, %v8637
        %v9664 = vmul.f32 %v9467, %v8638
        %v9665 = vmul.f32 %v9469, %v8639
        %v9666 = vmul.f32 %v9471, %v8640
        %v9667 = vmul.f32 %v9473, %v8641
        %v9668 = vmul.f32 %v9475, %v8642
        %v9669 = vmul.f32 %v9477, %v8643
        %v9670 = vmul.f32 %v9479, %v8644
        %v9671 = vmul.f32 %v9481, %v8645
        %v9672 = vmul.f32 %v9483, %v8646
        %v9673 = vmul.f32 %v9485, %v8647
        %v9674 = vmul.f32 %v9487, %v8648
        %v9675 = vmul.f32 %v9489, %v8649
        %v9676 = vmul.f32 %v9491, %v8650
        %v9677 = vmul.f32 %v9493, %v8651
        %v9678 = vmul.f32 %v9495, %v8652
        %v9679 = vmul.f32 %v9497, %v8653
        %v9680 = vmul.f32 %v9499, %v8654
        %v9681 = vmul.f32 %v9501, %v8655
        %v9682 = vmul.f32 %v9503, %v9160
        %v9683 = vmul.f32 %v9505, %v9161
        %v9684 = vmul.f32 %v9507, %v9162
        %v9685 = vmul.f32 %v9509, %v9163
        %v9686 = vmul.f32 %v9511, %v9164
        %v9687 = vmul.f32 %v9513, %v9165
        %v9688 = vmul.f32 %v9515, %v9166
        %v9689 = vmul.f32 %v9517, %v9167
        %v9690 = vmul.f32 %v9519, %v9168
        %v9691 = vmul.f32 %v9521, %v9610
        %v9692 = vmul.f32 %v9523, %v9611
        %v9693 = vmul.f32 %v9525, %v9612
        %v9694 = vmul.f32 %v9527, %v9613
        %v9695 = vmul.f32 %v9529, %v9614
        %v9696 = vmul.f32 %v9531, %v9615
        %v9697 = vmul.f32 %v9533, %v9616
        %v9698 = vmul.f32 %v9535, %v9617
        %v9699 = vmul.f32 %v9537, %v9618
        %v9700 = vadd.f32 %v9250, %v9628
        %v9701 = vadd.f32 %v9251, %v9629
        %v9702 = vadd.f32 %v9252, %v9630
        %v9703 = vadd.f32 %v9253, %v9631
        %v9704 = vadd.f32 %v9254, %v9632
        %v9705 = vadd.f32 %v9255, %v9633
        %v9706 = vadd.f32 %v9256, %v9634
        %v9707 = vadd.f32 %v9257, %v9635
        %v9708 = vadd.f32 %v9258, %v9636
        %v9709 = vadd.f32 %v9259, %v9637
        %v9710 = vadd.f32 %v9260, %v9638
        %v9711 = vadd.f32 %v9261, %v9639
        %v9712 = vadd.f32 %v9262, %v9640
        %v9713 = vadd.f32 %v9263, %v9641
        %v9714 = vadd.f32 %v9264, %v9642
        %v9715 = vadd.f32 %v9265, %v9643
        %v9716 = vadd.f32 %v9266, %v9644
        %v9717 = vadd.f32 %v9267, %v9645
        %v9718 = vadd.f32 %v9268, %v9646
        %v9719 = vadd.f32 %v9269, %v9647
        %v9720 = vadd.f32 %v9270, %v9648
        %v9721 = vadd.f32 %v9271, %v9649
        %v9722 = vadd.f32 %v9272, %v9650
        %v9723 = vadd.f32 %v9273, %v9651
        %v9724 = vadd.f32 %v9274, %v9652
        %v9725 = vadd.f32 %v9275, %v9653
        %v9726 = vadd.f32 %v9276, %v9654
        %v9727 = vadd.f32 %v9277, %v9655
        %v9728 = vadd.f32 %v9278, %v9656
        %v9729 = vadd.f32 %v9279, %v9657
        %v9730 = vadd.f32 %v9280, %v9658
        %v9731 = vadd.f32 %v9281, %v9659
        %v9732 = vadd.f32 %v9282, %v9660
        %v9733 = vadd.f32 %v9283, %v9661
        %v9734 = vadd.f32 %v9284, %v9662
        %v9735 = vadd.f32 %v9285, %v9663
        %v9736 = vadd.f32 %v9286, %v9664
        %v9737 = vadd.f32 %v9287, %v9665
        %v9738 = vadd.f32 %v9288, %v9666
        %v9739 = vadd.f32 %v9289, %v9667
        %v9740 = vadd.f32 %v9290, %v9668
        %v9741 = vadd.f32 %v9291, %v9669
        %v9742 = vadd.f32 %v9292, %v9670
        %v9743 = vadd.f32 %v9293, %v9671
        %v9744 = vadd.f32 %v9294, %v9672
        %v9745 = vadd.f32 %v9295, %v9673
        %v9746 = vadd.f32 %v9296, %v9674
        %v9747 = vadd.f32 %v9297, %v9675
        %v9748 = vadd.f32 %v9298, %v9676
        %v9749 = vadd.f32 %v9299, %v9677
        %v9750 = vadd.f32 %v9300, %v9678
        %v9751 = vadd.f32 %v9301, %v9679
        %v9752 = vadd.f32 %v9302, %v9680
        %v9753 = vadd.f32 %v9303, %v9681
        %v9754 = vadd.f32 %v9304, %v9682
        %v9755 = vadd.f32 %v9305, %v9683
        %v9756 = vadd.f32 %v9306, %v9684
        %v9757 = vadd.f32 %v9307, %v9685
        %v9758 = vadd.f32 %v9308, %v9686
        %v9759 = vadd.f32 %v9309, %v9687
        %v9760 = vadd.f32 %v9310, %v9688
        %v9761 = vadd.f32 %v9311, %v9689
        %v9762 = vadd.f32 %v9312, %v9690
        %v9763 = vadd.f32 %v9313, %v9691
        %v9764 = vadd.f32 %v9314, %v9692
        %v9765 = vadd.f32 %v9315, %v9693
        %v9766 = vadd.f32 %v9316, %v9694
        %v9767 = vadd.f32 %v9317, %v9695
        %v9768 = vadd.f32 %v9318, %v9696
        %v9769 = vadd.f32 %v9319, %v9697
        %v9770 = vadd.f32 %v9320, %v9698
        %v9771 = vadd.f32 %v9321, %v9699
        %v9772 = vsub.f32 %v5348, %v6528
        %v9773 = vsub.f32 %v5349, %v6529
        %v9774 = vsub.f32 %v5350, %v6530
        %v9775 = vsub.f32 %v5351, %v6531
        %v9776 = vsub.f32 %v5352, %v6532
        %v9777 = vsub.f32 %v5353, %v6533
        %v9778 = vsub.f32 %v5354, %v6534
        %v9779 = vsub.f32 %v5355, %v6535
        %v9780 = vsub.f32 %v5356, %v6536
        %v9781 = vsub.f32 %v5357, %v6537
        %v9782 = vsub.f32 %v5358, %v6538
        %v9783 = vsub.f32 %v5359, %v6539
        %v9784 = vsub.f32 %v5360, %v6540
        %v9785 = vsub.f32 %v5361, %v6541
        %v9786 = vsub.f32 %v5362, %v6542
        %v9787 = vsub.f32 %v5363, %v6543
        %v9788 = vsub.f32 %v5364, %v6544
        %v9789 = vsub.f32 %v5365, %v6545
        %v9790 = vsub.f32 %v5366, %v6546
        %v9791 = vsub.f32 %v5367, %v6547
        %v9792 = vsub.f32 %v5368, %v6548
        %v9793 = vsub.f32 %v5369, %v6549
        %v9794 = vsub.f32 %v5370, %v6550
        %v9795 = vsub.f32 %v5371, %v6551
        %v9796 = vsub.f32 %v5372, %v6552
        %v9797 = vsub.f32 %v5373, %v6553
        %v9798 = vsub.f32 %v5374, %v6554
        %v9799 = vsub.f32 %v5375, %v6555
        %v9800 = vsub.f32 %v5376, %v6556
        %v9801 = vsub.f32 %v5377, %v6557
        %v9802 = vsub.f32 %v5378, %v6558
        %v9803 = vsub.f32 %v5379, %v6559
        %v9804 = vsub.f32 %v5380, %v6560
        %v9805 = vsub.f32 %v5381, %v6561
        %v9806 = vsub.f32 %v5382, %v6562
        %v9807 = vsub.f32 %v5383, %v6563
        %v9808 = vsub.f32 %v5384, %v6564
        %v9809 = vsub.f32 %v5385, %v6565
        %v9810 = vsub.f32 %v5386, %v6566
        %v9811 = vsub.f32 %v5387, %v6567
        %v9812 = vsub.f32 %v5388, %v6568
        %v9813 = vsub.f32 %v5389, %v6569
        %v9814 = vsub.f32 %v5390, %v6570
        %v9815 = vsub.f32 %v5391, %v6571
        %v9816 = vsub.f32 %v5392, %v6572
        %v9817 = vsub.f32 %v5393, %v6573
        %v9818 = vsub.f32 %v5394, %v6574
        %v9819 = vsub.f32 %v5395, %v6575
        %v9820 = vsub.f32 %v5396, %v6576
        %v9821 = vsub.f32 %v5397, %v6577
        %v9822 = vsub.f32 %v5398, %v6578
        %v9823 = vsub.f32 %v5399, %v6579
        %v9824 = vsub.f32 %v5400, %v6580
        %v9825 = vsub.f32 %v5401, %v6581
        %v9826 = vsub.f32 %v5402, %v6582
        %v9827 = vsub.f32 %v5403, %v6583
        %v9828 = vsub.f32 %v5404, %v6584
        %v9829 = vsub.f32 %v5405, %v6585
        %v9830 = vsub.f32 %v5406, %v6586
        %v9831 = vsub.f32 %v5407, %v6587
        %v9832 = vsub.f32 %v5408, %v6588
        %v9833 = vsub.f32 %v5409, %v6589
        %v9834 = vsub.f32 %v5410, %v6590
        %v9835 = vsub.f32 %v5411, %v6591
        %v9836 = vsub.f32 %v5412, %v6592
        %v9837 = vsub.f32 %v5413, %v6593
        %v9838 = vsub.f32 %v5414, %v6594
        %v9839 = vsub.f32 %v5415, %v6595
        %v9840 = vsub.f32 %v5416, %v6596
        %v9841 = vsub.f32 %v5417, %v6597
        %v9842 = vsub.f32 %v5418, %v6598
        %v9843 = vsub.f32 %v5419, %v6599
        %v9844 = vmul.f32 %v9772, 1.442695
        %v9845 = vpow.pop %v9844
        %v9846 = vmul.f32 %v9773, 1.442695
        %v9847 = vpow.pop %v9846
        %v9848 = vmul.f32 %v9774, 1.442695
        %v9849 = vpow.pop %v9848
        %v9850 = vmul.f32 %v9775, 1.442695
        %v9851 = vpow.pop %v9850
        %v9852 = vmul.f32 %v9776, 1.442695
        %v9853 = vpow.pop %v9852
        %v9854 = vmul.f32 %v9777, 1.442695
        %v9855 = vpow.pop %v9854
        %v9856 = vmul.f32 %v9778, 1.442695
        %v9857 = vpow.pop %v9856
        %v9858 = vmul.f32 %v9779, 1.442695
        %v9859 = vpow.pop %v9858
        %v9860 = vmul.f32 %v9780, 1.442695
        %v9861 = vpow.pop %v9860
        %v9862 = vmul.f32 %v9781, 1.442695
        %v9863 = vpow.pop %v9862
        %v9864 = vmul.f32 %v9782, 1.442695
        %v9865 = vpow.pop %v9864
        %v9866 = vmul.f32 %v9783, 1.442695
        %v9867 = vpow.pop %v9866
        %v9868 = vmul.f32 %v9784, 1.442695
        %v9869 = vpow.pop %v9868
        %v9870 = vmul.f32 %v9785, 1.442695
        %v9871 = vpow.pop %v9870
        %v9872 = vmul.f32 %v9786, 1.442695
        %v9873 = vpow.pop %v9872
        %v9874 = vmul.f32 %v9787, 1.442695
        %v9875 = vpow.pop %v9874
        %v9876 = vmul.f32 %v9788, 1.442695
        %v9877 = vpow.pop %v9876
        %v9878 = vmul.f32 %v9789, 1.442695
        %v9879 = vpow.pop %v9878
        %v9880 = vmul.f32 %v9790, 1.442695
        %v9881 = vpow.pop %v9880
        %v9882 = vmul.f32 %v9791, 1.442695
        %v9883 = vpow.pop %v9882
        %v9884 = vmul.f32 %v9792, 1.442695
        %v9885 = vpow.pop %v9884
        %v9886 = vmul.f32 %v9793, 1.442695
        %v9887 = vpow.pop %v9886
        %v9888 = vmul.f32 %v9794, 1.442695
        %v9889 = vpow.pop %v9888
        %v9890 = vmul.f32 %v9795, 1.442695
        %v9891 = vpow.pop %v9890
        %v9892 = vmul.f32 %v9796, 1.442695
        %v9893 = vpow.pop %v9892
        %v9894 = vmul.f32 %v9797, 1.442695
        %v9895 = vpow.pop %v9894
        %v9896 = vmul.f32 %v9798, 1.442695
        %v9897 = vpow.pop %v9896
        %v9898 = vmul.f32 %v9799, 1.442695
        %v9899 = vpow.pop %v9898
        %v9900 = vmul.f32 %v9800, 1.442695
        %v9901 = vpow.pop %v9900
        %v9902 = vmul.f32 %v9801, 1.442695
        %v9903 = vpow.pop %v9902
        %v9904 = vmul.f32 %v9802, 1.442695
        %v9905 = vpow.pop %v9904
        %v9906 = vmul.f32 %v9803, 1.442695
        %v9907 = vpow.pop %v9906
        %v9908 = vmul.f32 %v9804, 1.442695
        %v9909 = vpow.pop %v9908
        %v9910 = vmul.f32 %v9805, 1.442695
        %v9911 = vpow.pop %v9910
        %v9912 = vmul.f32 %v9806, 1.442695
        %v9913 = vpow.pop %v9912
        %v9914 = vmul.f32 %v9807, 1.442695
        %v9915 = vpow.pop %v9914
        %v9916 = vmul.f32 %v9808, 1.442695
        %v9917 = vpow.pop %v9916
        %v9918 = vmul.f32 %v9809, 1.442695
        %v9919 = vpow.pop %v9918
        %v9920 = vmul.f32 %v9810, 1.442695
        %v9921 = vpow.pop %v9920
        %v9922 = vmul.f32 %v9811, 1.442695
        %v9923 = vpow.pop %v9922
        %v9924 = vmul.f32 %v9812, 1.442695
        %v9925 = vpow.pop %v9924
        %v9926 = vmul.f32 %v9813, 1.442695
        %v9927 = vpow.pop %v9926
        %v9928 = vmul.f32 %v9814, 1.442695
        %v9929 = vpow.pop %v9928
        %v9930 = vmul.f32 %v9815, 1.442695
        %v9931 = vpow.pop %v9930
        %v9932 = vmul.f32 %v9816, 1.442695
        %v9933 = vpow.pop %v9932
        %v9934 = vmul.f32 %v9817, 1.442695
        %v9935 = vpow.pop %v9934
        %v9936 = vmul.f32 %v9818, 1.442695
        %v9937 = vpow.pop %v9936
        %v9938 = vmul.f32 %v9819, 1.442695
        %v9939 = vpow.pop %v9938
        %v9940 = vmul.f32 %v9820, 1.442695
        %v9941 = vpow.pop %v9940
        %v9942 = vmul.f32 %v9821, 1.442695
        %v9943 = vpow.pop %v9942
        %v9944 = vmul.f32 %v9822, 1.442695
        %v9945 = vpow.pop %v9944
        %v9946 = vmul.f32 %v9823, 1.442695
        %v9947 = vpow.pop %v9946
        %v9948 = vmul.f32 %v9824, 1.442695
        %v9949 = vpow.pop %v9948
        %v9950 = vmul.f32 %v9825, 1.442695
        %v9951 = vpow.pop %v9950
        %v9952 = vmul.f32 %v9826, 1.442695
        %v9953 = vpow.pop %v9952
        %v9954 = vmul.f32 %v9827, 1.442695
        %v9955 = vpow.pop %v9954
        %v9956 = vmul.f32 %v9828, 1.442695
        %v9957 = vpow.pop %v9956
        %v9958 = vmul.f32 %v9829, 1.442695
        %v9959 = vpow.pop %v9958
        %v9960 = vmul.f32 %v9830, 1.442695
        %v9961 = vpow.pop %v9960
        %v9962 = vmul.f32 %v9831, 1.442695
        %v9963 = vpow.pop %v9962
        %v9964 = vmul.f32 %v9832, 1.442695
        %v9965 = vpow.pop %v9964
        %v9966 = vmul.f32 %v9833, 1.442695
        %v9967 = vpow.pop %v9966
        %v9968 = vmul.f32 %v9834, 1.442695
        %v9969 = vpow.pop %v9968
        %v9970 = vmul.f32 %v9835, 1.442695
        %v9971 = vpow.pop %v9970
        %v9972 = vmul.f32 %v9836, 1.442695
        %v9973 = vpow.pop %v9972
        %v9974 = vmul.f32 %v9837, 1.442695
        %v9975 = vpow.pop %v9974
        %v9976 = vmul.f32 %v9838, 1.442695
        %v9977 = vpow.pop %v9976
        %v9978 = vmul.f32 %v9839, 1.442695
        %v9979 = vpow.pop %v9978
        %v9980 = vmul.f32 %v9840, 1.442695
        %v9981 = vpow.pop %v9980
        %v9982 = vmul.f32 %v9841, 1.442695
        %v9983 = vpow.pop %v9982
        %v9984 = vmul.f32 %v9842, 1.442695
        %v9985 = vpow.pop %v9984
        %v9986 = vmul.f32 %v9843, 1.442695
        %v9987 = vpow.pop %v9986
        %v9988 = vadd.f32 %v9538, %v9845
        %v9989 = vadd.f32 %v9539, %v9847
        %v9990 = vadd.f32 %v9540, %v9849
        %v9991 = vadd.f32 %v9541, %v9851
        %v9992 = vadd.f32 %v9542, %v9853
        %v9993 = vadd.f32 %v9543, %v9855
        %v9994 = vadd.f32 %v9544, %v9857
        %v9995 = vadd.f32 %v9545, %v9859
        %v9996 = vadd.f32 %v9546, %v9861
        %v9997 = vadd.f32 %v9547, %v9863
        %v9998 = vadd.f32 %v9548, %v9865
        %v9999 = vadd.f32 %v9549, %v9867
        %v10000 = vadd.f32 %v9550, %v9869
        %v10001 = vadd.f32 %v9551, %v9871
        %v10002 = vadd.f32 %v9552, %v9873
        %v10003 = vadd.f32 %v9553, %v9875
        %v10004 = vadd.f32 %v9554, %v9877
        %v10005 = vadd.f32 %v9555, %v9879
        %v10006 = vadd.f32 %v9556, %v9881
        %v10007 = vadd.f32 %v9557, %v9883
        %v10008 = vadd.f32 %v9558, %v9885
        %v10009 = vadd.f32 %v9559, %v9887
        %v10010 = vadd.f32 %v9560, %v9889
        %v10011 = vadd.f32 %v9561, %v9891
        %v10012 = vadd.f32 %v9562, %v9893
        %v10013 = vadd.f32 %v9563, %v9895
        %v10014 = vadd.f32 %v9564, %v9897
        %v10015 = vadd.f32 %v9565, %v9899
        %v10016 = vadd.f32 %v9566, %v9901
        %v10017 = vadd.f32 %v9567, %v9903
        %v10018 = vadd.f32 %v9568, %v9905
        %v10019 = vadd.f32 %v9569, %v9907
        %v10020 = vadd.f32 %v9570, %v9909
        %v10021 = vadd.f32 %v9571, %v9911
        %v10022 = vadd.f32 %v9572, %v9913
        %v10023 = vadd.f32 %v9573, %v9915
        %v10024 = vadd.f32 %v9574, %v9917
        %v10025 = vadd.f32 %v9575, %v9919
        %v10026 = vadd.f32 %v9576, %v9921
        %v10027 = vadd.f32 %v9577, %v9923
        %v10028 = vadd.f32 %v9578, %v9925
        %v10029 = vadd.f32 %v9579, %v9927
        %v10030 = vadd.f32 %v9580, %v9929
        %v10031 = vadd.f32 %v9581, %v9931
        %v10032 = vadd.f32 %v9582, %v9933
        %v10033 = vadd.f32 %v9583, %v9935
        %v10034 = vadd.f32 %v9584, %v9937
        %v10035 = vadd.f32 %v9585, %v9939
        %v10036 = vadd.f32 %v9586, %v9941
        %v10037 = vadd.f32 %v9587, %v9943
        %v10038 = vadd.f32 %v9588, %v9945
        %v10039 = vadd.f32 %v9589, %v9947
        %v10040 = vadd.f32 %v9590, %v9949
        %v10041 = vadd.f32 %v9591, %v9951
        %v10042 = vadd.f32 %v9592, %v9953
        %v10043 = vadd.f32 %v9593, %v9955
        %v10044 = vadd.f32 %v9594, %v9957
        %v10045 = vadd.f32 %v9595, %v9959
        %v10046 = vadd.f32 %v9596, %v9961
        %v10047 = vadd.f32 %v9597, %v9963
        %v10048 = vadd.f32 %v9598, %v9965
        %v10049 = vadd.f32 %v9599, %v9967
        %v10050 = vadd.f32 %v9600, %v9969
        %v10051 = vadd.f32 %v9601, %v9971
        %v10052 = vadd.f32 %v9602, %v9973
        %v10053 = vadd.f32 %v9603, %v9975
        %v10054 = vadd.f32 %v9604, %v9977
        %v10055 = vadd.f32 %v9605, %v9979
        %v10056 = vadd.f32 %v9606, %v9981
        %v10057 = vadd.f32 %v9607, %v9983
        %v10058 = vadd.f32 %v9608, %v9985
        %v10059 = vadd.f32 %v9609, %v9987
        %v10060 = vrot.slane %v1651, 7
        %v10061 = vsel %vm2733, %v6910, %v10060
        %v10062 = vrot.slane %v10060, 2
        %v10063 = vrot.slane %v1722, 7
        %v10064 = vsel %vm2733, %v6933, %v10063
        %v10065 = vrot.slane %v10063, 2
        %v10066 = vrot.slane %v1793, 7
        %v10067 = vsel %vm2733, %v6956, %v10066
        %v10068 = vrot.slane %v10066, 2
        %v10069 = vrot.slane %v1864, 7
        %v10070 = vsel %vm2733, %v6979, %v10069
        %v10071 = vrot.slane %v10069, 2
        %v10072 = vrot.slane %v1966, 7
        %v10073 = vsel %vm2733, %v7002, %v10072
        %v10074 = vrot.slane %v10072, 2
        %v10075 = vrot.slane %v2037, 7
        %v10076 = vsel %vm2733, %v7025, %v10075
        %v10077 = vrot.slane %v10075, 2
        %v10078 = vrot.slane %v2108, 7
        %v10079 = vsel %vm2733, %v7048, %v10078
        %v10080 = vrot.slane %v10078, 2
        %v10081 = vrot.slane %v2179, 7
        %v10082 = vsel %vm2733, %v7071, %v10081
        %v10083 = vrot.slane %v10081, 2
        %v10084 = vrot.slane %v10061, 2
        %v10085 = vrot.slane %v10062, 2
        %v10086 = vrot.slane %v10064, 2
        %v10087 = vrot.slane %v10065, 2
        %v10088 = vrot.slane %v10067, 2
        %v10089 = vrot.slane %v10068, 2
        %v10090 = vrot.slane %v10070, 2
        %v10091 = vrot.slane %v10071, 2
        %v10092 = vrot.slane %v10073, 2
        %v10093 = vrot.slane %v10074, 2
        %v10094 = vrot.slane %v10076, 2
        %v10095 = vrot.slane %v10077, 2
        %v10096 = vrot.slane %v10079, 2
        %v10097 = vrot.slane %v10080, 2
        %v10098 = vrot.slane %v10082, 2
        %v10099 = vrot.slane %v10083, 2
        %v10124 = vmul.f32 %v9845, %v6892
        %v10125 = vmul.f32 %v9847, %v7073
        %v10126 = vmul.f32 %v9849, %v7074
        %v10127 = vmul.f32 %v9851, %v7075
        %v10128 = vmul.f32 %v9853, %v7076
        %v10129 = vmul.f32 %v9855, %v7077
        %v10130 = vmul.f32 %v9857, %v7078
        %v10131 = vmul.f32 %v9859, %v10084
        %v10132 = vmul.f32 %v9861, %v10085
        %v10133 = vmul.f32 %v9863, %v6915
        %v10134 = vmul.f32 %v9865, %v7081
        %v10135 = vmul.f32 %v9867, %v7082
        %v10136 = vmul.f32 %v9869, %v7083
        %v10137 = vmul.f32 %v9871, %v7084
        %v10138 = vmul.f32 %v9873, %v7085
        %v10139 = vmul.f32 %v9875, %v7086
        %v10140 = vmul.f32 %v9877, %v10086
        %v10141 = vmul.f32 %v9879, %v10087
        %v10142 = vmul.f32 %v9881, %v6938
        %v10143 = vmul.f32 %v9883, %v7089
        %v10144 = vmul.f32 %v9885, %v7090
        %v10145 = vmul.f32 %v9887, %v7091
        %v10146 = vmul.f32 %v9889, %v7092
        %v10147 = vmul.f32 %v9891, %v7093
        %v10148 = vmul.f32 %v9893, %v7094
        %v10149 = vmul.f32 %v9895, %v10088
        %v10150 = vmul.f32 %v9897, %v10089
        %v10151 = vmul.f32 %v9899, %v6961
        %v10152 = vmul.f32 %v9901, %v7097
        %v10153 = vmul.f32 %v9903, %v7098
        %v10154 = vmul.f32 %v9905, %v7099
        %v10155 = vmul.f32 %v9907, %v7100
        %v10156 = vmul.f32 %v9909, %v7101
        %v10157 = vmul.f32 %v9911, %v7102
        %v10158 = vmul.f32 %v9913, %v10090
        %v10159 = vmul.f32 %v9915, %v10091
        %v10160 = vmul.f32 %v9917, %v6984
        %v10161 = vmul.f32 %v9919, %v7105
        %v10162 = vmul.f32 %v9921, %v7106
        %v10163 = vmul.f32 %v9923, %v7107
        %v10164 = vmul.f32 %v9925, %v7108
        %v10165 = vmul.f32 %v9927, %v7109
        %v10166 = vmul.f32 %v9929, %v7110
        %v10167 = vmul.f32 %v9931, %v10092
        %v10168 = vmul.f32 %v9933, %v10093
        %v10169 = vmul.f32 %v9935, %v7007
        %v10170 = vmul.f32 %v9937, %v7113
        %v10171 = vmul.f32 %v9939, %v7114
        %v10172 = vmul.f32 %v9941, %v7115
        %v10173 = vmul.f32 %v9943, %v7116
        %v10174 = vmul.f32 %v9945, %v7117
        %v10175 = vmul.f32 %v9947, %v7118
        %v10176 = vmul.f32 %v9949, %v10094
        %v10177 = vmul.f32 %v9951, %v10095
        %v10178 = vmul.f32 %v9953, %v7030
        %v10179 = vmul.f32 %v9955, %v7121
        %v10180 = vmul.f32 %v9957, %v7122
        %v10181 = vmul.f32 %v9959, %v7123
        %v10182 = vmul.f32 %v9961, %v7124
        %v10183 = vmul.f32 %v9963, %v7125
        %v10184 = vmul.f32 %v9965, %v7126
        %v10185 = vmul.f32 %v9967, %v10096
        %v10186 = vmul.f32 %v9969, %v10097
        %v10187 = vmul.f32 %v9971, %v7053
        %v10188 = vmul.f32 %v9973, %v7129
        %v10189 = vmul.f32 %v9975, %v7130
        %v10190 = vmul.f32 %v9977, %v7131
        %v10191 = vmul.f32 %v9979, %v7132
        %v10192 = vmul.f32 %v9981, %v7133
        %v10193 = vmul.f32 %v9983, %v7134
        %v10194 = vmul.f32 %v9985, %v10098
        %v10195 = vmul.f32 %v9987, %v10099
        %v10196 = vadd.f32 %v9700, %v10124
        %v10197 = vadd.f32 %v9701, %v10125
        %v10198 = vadd.f32 %v9702, %v10126
        %v10199 = vadd.f32 %v9703, %v10127
        %v10200 = vadd.f32 %v9704, %v10128
        %v10201 = vadd.f32 %v9705, %v10129
        %v10202 = vadd.f32 %v9706, %v10130
        %v10203 = vadd.f32 %v9707, %v10131
        %v10204 = vadd.f32 %v9708, %v10132
        %v10205 = vadd.f32 %v9709, %v10133
        %v10206 = vadd.f32 %v9710, %v10134
        %v10207 = vadd.f32 %v9711, %v10135
        %v10208 = vadd.f32 %v9712, %v10136
        %v10209 = vadd.f32 %v9713, %v10137
        %v10210 = vadd.f32 %v9714, %v10138
        %v10211 = vadd.f32 %v9715, %v10139
        %v10212 = vadd.f32 %v9716, %v10140
        %v10213 = vadd.f32 %v9717, %v10141
        %v10214 = vadd.f32 %v9718, %v10142
        %v10215 = vadd.f32 %v9719, %v10143
        %v10216 = vadd.f32 %v9720, %v10144
        %v10217 = vadd.f32 %v9721, %v10145
        %v10218 = vadd.f32 %v9722, %v10146
        %v10219 = vadd.f32 %v9723, %v10147
        %v10220 = vadd.f32 %v9724, %v10148
        %v10221 = vadd.f32 %v9725, %v10149
        %v10222 = vadd.f32 %v9726, %v10150
        %v10223 = vadd.f32 %v9727, %v10151
        %v10224 = vadd.f32 %v9728, %v10152
        %v10225 = vadd.f32 %v9729, %v10153
        %v10226 = vadd.f32 %v9730, %v10154
        %v10227 = vadd.f32 %v9731, %v10155
        %v10228 = vadd.f32 %v9732, %v10156
        %v10229 = vadd.f32 %v9733, %v10157
        %v10230 = vadd.f32 %v9734, %v10158
        %v10231 = vadd.f32 %v9735, %v10159
        %v10232 = vadd.f32 %v9736, %v10160
        %v10233 = vadd.f32 %v9737, %v10161
        %v10234 = vadd.f32 %v9738, %v10162
        %v10235 = vadd.f32 %v9739, %v10163
        %v10236 = vadd.f32 %v9740, %v10164
        %v10237 = vadd.f32 %v9741, %v10165
        %v10238 = vadd.f32 %v9742, %v10166
        %v10239 = vadd.f32 %v9743, %v10167
        %v10240 = vadd.f32 %v9744, %v10168
        %v10241 = vadd.f32 %v9745, %v10169
        %v10242 = vadd.f32 %v9746, %v10170
        %v10243 = vadd.f32 %v9747, %v10171
        %v10244 = vadd.f32 %v9748, %v10172
        %v10245 = vadd.f32 %v9749, %v10173
        %v10246 = vadd.f32 %v9750, %v10174
        %v10247 = vadd.f32 %v9751, %v10175
        %v10248 = vadd.f32 %v9752, %v10176
        %v10249 = vadd.f32 %v9753, %v10177
        %v10250 = vadd.f32 %v9754, %v10178
        %v10251 = vadd.f32 %v9755, %v10179
        %v10252 = vadd.f32 %v9756, %v10180
        %v10253 = vadd.f32 %v9757, %v10181
        %v10254 = vadd.f32 %v9758, %v10182
        %v10255 = vadd.f32 %v9759, %v10183
        %v10256 = vadd.f32 %v9760, %v10184
        %v10257 = vadd.f32 %v9761, %v10185
        %v10258 = vadd.f32 %v9762, %v10186
        %v10259 = vadd.f32 %v9763, %v10187
        %v10260 = vadd.f32 %v9764, %v10188
        %v10261 = vadd.f32 %v9765, %v10189
        %v10262 = vadd.f32 %v9766, %v10190
        %v10263 = vadd.f32 %v9767, %v10191
        %v10264 = vadd.f32 %v9768, %v10192
        %v10265 = vadd.f32 %v9769, %v10193
        %v10266 = vadd.f32 %v9770, %v10194
        %v10267 = vadd.f32 %v9771, %v10195
        %v10268 = vsub.f32 %v5902, %v6528
        %v10269 = vsub.f32 %v5903, %v6529
        %v10270 = vsub.f32 %v5904, %v6530
        %v10271 = vsub.f32 %v5905, %v6531
        %v10272 = vsub.f32 %v5906, %v6532
        %v10273 = vsub.f32 %v5907, %v6533
        %v10274 = vsub.f32 %v5908, %v6534
        %v10275 = vsub.f32 %v5909, %v6535
        %v10276 = vsub.f32 %v5910, %v6536
        %v10277 = vsub.f32 %v5911, %v6537
        %v10278 = vsub.f32 %v5912, %v6538
        %v10279 = vsub.f32 %v5913, %v6539
        %v10280 = vsub.f32 %v5914, %v6540
        %v10281 = vsub.f32 %v5915, %v6541
        %v10282 = vsub.f32 %v5916, %v6542
        %v10283 = vsub.f32 %v5917, %v6543
        %v10284 = vsub.f32 %v5918, %v6544
        %v10285 = vsub.f32 %v5919, %v6545
        %v10286 = vsub.f32 %v5920, %v6546
        %v10287 = vsub.f32 %v5921, %v6547
        %v10288 = vsub.f32 %v5922, %v6548
        %v10289 = vsub.f32 %v5923, %v6549
        %v10290 = vsub.f32 %v5924, %v6550
        %v10291 = vsub.f32 %v5925, %v6551
        %v10292 = vsub.f32 %v5926, %v6552
        %v10293 = vsub.f32 %v5927, %v6553
        %v10294 = vsub.f32 %v5928, %v6554
        %v10295 = vsub.f32 %v5929, %v6555
        %v10296 = vsub.f32 %v5930, %v6556
        %v10297 = vsub.f32 %v5931, %v6557
        %v10298 = vsub.f32 %v5932, %v6558
        %v10299 = vsub.f32 %v5933, %v6559
        %v10300 = vsub.f32 %v5934, %v6560
        %v10301 = vsub.f32 %v5935, %v6561
        %v10302 = vsub.f32 %v5936, %v6562
        %v10303 = vsub.f32 %v5937, %v6563
        %v10304 = vsub.f32 %v5938, %v6564
        %v10305 = vsub.f32 %v5939, %v6565
        %v10306 = vsub.f32 %v5940, %v6566
        %v10307 = vsub.f32 %v5941, %v6567
        %v10308 = vsub.f32 %v5942, %v6568
        %v10309 = vsub.f32 %v5943, %v6569
        %v10310 = vsub.f32 %v5944, %v6570
        %v10311 = vsub.f32 %v5945, %v6571
        %v10312 = vsub.f32 %v5946, %v6572
        %v10313 = vsub.f32 %v5947, %v6573
        %v10314 = vsub.f32 %v5948, %v6574
        %v10315 = vsub.f32 %v5949, %v6575
        %v10316 = vsub.f32 %v5950, %v6576
        %v10317 = vsub.f32 %v5951, %v6577
        %v10318 = vsub.f32 %v5952, %v6578
        %v10319 = vsub.f32 %v5953, %v6579
        %v10320 = vsub.f32 %v5954, %v6580
        %v10321 = vsub.f32 %v5955, %v6581
        %v10322 = vsub.f32 %v5956, %v6582
        %v10323 = vsub.f32 %v5957, %v6583
        %v10324 = vsub.f32 %v5958, %v6584
        %v10325 = vsub.f32 %v5959, %v6585
        %v10326 = vsub.f32 %v5960, %v6586
        %v10327 = vsub.f32 %v5961, %v6587
        %v10328 = vsub.f32 %v5962, %v6588
        %v10329 = vsub.f32 %v5963, %v6589
        %v10330 = vsub.f32 %v5964, %v6590
        %v10331 = vsub.f32 %v5965, %v6591
        %v10332 = vsub.f32 %v5966, %v6592
        %v10333 = vsub.f32 %v5967, %v6593
        %v10334 = vsub.f32 %v5968, %v6594
        %v10335 = vsub.f32 %v5969, %v6595
        %v10336 = vsub.f32 %v5970, %v6596
        %v10337 = vsub.f32 %v5971, %v6597
        %v10338 = vsub.f32 %v5972, %v6598
        %v10339 = vsub.f32 %v5973, %v6599
        %v10340 = vmul.f32 %v10268, 1.442695
        %v10341 = vpow.pop %v10340
        %v10342 = vmul.f32 %v10269, 1.442695
        %v10343 = vpow.pop %v10342
        %v10344 = vmul.f32 %v10270, 1.442695
        %v10345 = vpow.pop %v10344
        %v10346 = vmul.f32 %v10271, 1.442695
        %v10347 = vpow.pop %v10346
        %v10348 = vmul.f32 %v10272, 1.442695
        %v10349 = vpow.pop %v10348
        %v10350 = vmul.f32 %v10273, 1.442695
        %v10351 = vpow.pop %v10350
        %v10352 = vmul.f32 %v10274, 1.442695
        %v10353 = vpow.pop %v10352
        %v10354 = vmul.f32 %v10275, 1.442695
        %v10355 = vpow.pop %v10354
        %v10356 = vmul.f32 %v10276, 1.442695
        %v10357 = vpow.pop %v10356
        %v10358 = vmul.f32 %v10277, 1.442695
        %v10359 = vpow.pop %v10358
        %v10360 = vmul.f32 %v10278, 1.442695
        %v10361 = vpow.pop %v10360
        %v10362 = vmul.f32 %v10279, 1.442695
        %v10363 = vpow.pop %v10362
        %v10364 = vmul.f32 %v10280, 1.442695
        %v10365 = vpow.pop %v10364
        %v10366 = vmul.f32 %v10281, 1.442695
        %v10367 = vpow.pop %v10366
        %v10368 = vmul.f32 %v10282, 1.442695
        %v10369 = vpow.pop %v10368
        %v10370 = vmul.f32 %v10283, 1.442695
        %v10371 = vpow.pop %v10370
        %v10372 = vmul.f32 %v10284, 1.442695
        %v10373 = vpow.pop %v10372
        %v10374 = vmul.f32 %v10285, 1.442695
        %v10375 = vpow.pop %v10374
        %v10376 = vmul.f32 %v10286, 1.442695
        %v10377 = vpow.pop %v10376
        %v10378 = vmul.f32 %v10287, 1.442695
        %v10379 = vpow.pop %v10378
        %v10380 = vmul.f32 %v10288, 1.442695
        %v10381 = vpow.pop %v10380
        %v10382 = vmul.f32 %v10289, 1.442695
        %v10383 = vpow.pop %v10382
        %v10384 = vmul.f32 %v10290, 1.442695
        %v10385 = vpow.pop %v10384
        %v10386 = vmul.f32 %v10291, 1.442695
        %v10387 = vpow.pop %v10386
        %v10388 = vmul.f32 %v10292, 1.442695
        %v10389 = vpow.pop %v10388
        %v10390 = vmul.f32 %v10293, 1.442695
        %v10391 = vpow.pop %v10390
        %v10392 = vmul.f32 %v10294, 1.442695
        %v10393 = vpow.pop %v10392
        %v10394 = vmul.f32 %v10295, 1.442695
        %v10395 = vpow.pop %v10394
        %v10396 = vmul.f32 %v10296, 1.442695
        %v10397 = vpow.pop %v10396
        %v10398 = vmul.f32 %v10297, 1.442695
        %v10399 = vpow.pop %v10398
        %v10400 = vmul.f32 %v10298, 1.442695
        %v10401 = vpow.pop %v10400
        %v10402 = vmul.f32 %v10299, 1.442695
        %v10403 = vpow.pop %v10402
        %v10404 = vmul.f32 %v10300, 1.442695
        %v10405 = vpow.pop %v10404
        %v10406 = vmul.f32 %v10301, 1.442695
        %v10407 = vpow.pop %v10406
        %v10408 = vmul.f32 %v10302, 1.442695
        %v10409 = vpow.pop %v10408
        %v10410 = vmul.f32 %v10303, 1.442695
        %v10411 = vpow.pop %v10410
        %v10412 = vmul.f32 %v10304, 1.442695
        %v10413 = vpow.pop %v10412
        %v10414 = vmul.f32 %v10305, 1.442695
        %v10415 = vpow.pop %v10414
        %v10416 = vmul.f32 %v10306, 1.442695
        %v10417 = vpow.pop %v10416
        %v10418 = vmul.f32 %v10307, 1.442695
        %v10419 = vpow.pop %v10418
        %v10420 = vmul.f32 %v10308, 1.442695
        %v10421 = vpow.pop %v10420
        %v10422 = vmul.f32 %v10309, 1.442695
        %v10423 = vpow.pop %v10422
        %v10424 = vmul.f32 %v10310, 1.442695
        %v10425 = vpow.pop %v10424
        %v10426 = vmul.f32 %v10311, 1.442695
        %v10427 = vpow.pop %v10426
        %v10428 = vmul.f32 %v10312, 1.442695
        %v10429 = vpow.pop %v10428
        %v10430 = vmul.f32 %v10313, 1.442695
        %v10431 = vpow.pop %v10430
        %v10432 = vmul.f32 %v10314, 1.442695
        %v10433 = vpow.pop %v10432
        %v10434 = vmul.f32 %v10315, 1.442695
        %v10435 = vpow.pop %v10434
        %v10436 = vmul.f32 %v10316, 1.442695
        %v10437 = vpow.pop %v10436
        %v10438 = vmul.f32 %v10317, 1.442695
        %v10439 = vpow.pop %v10438
        %v10440 = vmul.f32 %v10318, 1.442695
        %v10441 = vpow.pop %v10440
        %v10442 = vmul.f32 %v10319, 1.442695
        %v10443 = vpow.pop %v10442
        %v10444 = vmul.f32 %v10320, 1.442695
        %v10445 = vpow.pop %v10444
        %v10446 = vmul.f32 %v10321, 1.442695
        %v10447 = vpow.pop %v10446
        %v10448 = vmul.f32 %v10322, 1.442695
        %v10449 = vpow.pop %v10448
        %v10450 = vmul.f32 %v10323, 1.442695
        %v10451 = vpow.pop %v10450
        %v10452 = vmul.f32 %v10324, 1.442695
        %v10453 = vpow.pop %v10452
        %v10454 = vmul.f32 %v10325, 1.442695
        %v10455 = vpow.pop %v10454
        %v10456 = vmul.f32 %v10326, 1.442695
        %v10457 = vpow.pop %v10456
        %v10458 = vmul.f32 %v10327, 1.442695
        %v10459 = vpow.pop %v10458
        %v10460 = vmul.f32 %v10328, 1.442695
        %v10461 = vpow.pop %v10460
        %v10462 = vmul.f32 %v10329, 1.442695
        %v10463 = vpow.pop %v10462
        %v10464 = vmul.f32 %v10330, 1.442695
        %v10465 = vpow.pop %v10464
        %v10466 = vmul.f32 %v10331, 1.442695
        %v10467 = vpow.pop %v10466
        %v10468 = vmul.f32 %v10332, 1.442695
        %v10469 = vpow.pop %v10468
        %v10470 = vmul.f32 %v10333, 1.442695
        %v10471 = vpow.pop %v10470
        %v10472 = vmul.f32 %v10334, 1.442695
        %v10473 = vpow.pop %v10472
        %v10474 = vmul.f32 %v10335, 1.442695
        %v10475 = vpow.pop %v10474
        %v10476 = vmul.f32 %v10336, 1.442695
        %v10477 = vpow.pop %v10476
        %v10478 = vmul.f32 %v10337, 1.442695
        %v10479 = vpow.pop %v10478
        %v10480 = vmul.f32 %v10338, 1.442695
        %v10481 = vpow.pop %v10480
        %v10482 = vmul.f32 %v10339, 1.442695
        %v10483 = vpow.pop %v10482
        %v10484 = vadd.f32 %v9988, %v10341
        %v10485 = vadd.f32 %v9989, %v10343
        %v10486 = vadd.f32 %v9990, %v10345
        %v10487 = vadd.f32 %v9991, %v10347
        %v10488 = vadd.f32 %v9992, %v10349
        %v10489 = vadd.f32 %v9993, %v10351
        %v10490 = vadd.f32 %v9994, %v10353
        %v10491 = vadd.f32 %v9995, %v10355
        %v10492 = vadd.f32 %v9996, %v10357
        %v10493 = vadd.f32 %v9997, %v10359
        %v10494 = vadd.f32 %v9998, %v10361
        %v10495 = vadd.f32 %v9999, %v10363
        %v10496 = vadd.f32 %v10000, %v10365
        %v10497 = vadd.f32 %v10001, %v10367
        %v10498 = vadd.f32 %v10002, %v10369
        %v10499 = vadd.f32 %v10003, %v10371
        %v10500 = vadd.f32 %v10004, %v10373
        %v10501 = vadd.f32 %v10005, %v10375
        %v10502 = vadd.f32 %v10006, %v10377
        %v10503 = vadd.f32 %v10007, %v10379
        %v10504 = vadd.f32 %v10008, %v10381
        %v10505 = vadd.f32 %v10009, %v10383
        %v10506 = vadd.f32 %v10010, %v10385
        %v10507 = vadd.f32 %v10011, %v10387
        %v10508 = vadd.f32 %v10012, %v10389
        %v10509 = vadd.f32 %v10013, %v10391
        %v10510 = vadd.f32 %v10014, %v10393
        %v10511 = vadd.f32 %v10015, %v10395
        %v10512 = vadd.f32 %v10016, %v10397
        %v10513 = vadd.f32 %v10017, %v10399
        %v10514 = vadd.f32 %v10018, %v10401
        %v10515 = vadd.f32 %v10019, %v10403
        %v10516 = vadd.f32 %v10020, %v10405
        %v10517 = vadd.f32 %v10021, %v10407
        %v10518 = vadd.f32 %v10022, %v10409
        %v10519 = vadd.f32 %v10023, %v10411
        %v10520 = vadd.f32 %v10024, %v10413
        %v10521 = vadd.f32 %v10025, %v10415
        %v10522 = vadd.f32 %v10026, %v10417
        %v10523 = vadd.f32 %v10027, %v10419
        %v10524 = vadd.f32 %v10028, %v10421
        %v10525 = vadd.f32 %v10029, %v10423
        %v10526 = vadd.f32 %v10030, %v10425
        %v10527 = vadd.f32 %v10031, %v10427
        %v10528 = vadd.f32 %v10032, %v10429
        %v10529 = vadd.f32 %v10033, %v10431
        %v10530 = vadd.f32 %v10034, %v10433
        %v10531 = vadd.f32 %v10035, %v10435
        %v10532 = vadd.f32 %v10036, %v10437
        %v10533 = vadd.f32 %v10037, %v10439
        %v10534 = vadd.f32 %v10038, %v10441
        %v10535 = vadd.f32 %v10039, %v10443
        %v10536 = vadd.f32 %v10040, %v10445
        %v10537 = vadd.f32 %v10041, %v10447
        %v10538 = vadd.f32 %v10042, %v10449
        %v10539 = vadd.f32 %v10043, %v10451
        %v10540 = vadd.f32 %v10044, %v10453
        %v10541 = vadd.f32 %v10045, %v10455
        %v10542 = vadd.f32 %v10046, %v10457
        %v10543 = vadd.f32 %v10047, %v10459
        %v10544 = vadd.f32 %v10048, %v10461
        %v10545 = vadd.f32 %v10049, %v10463
        %v10546 = vadd.f32 %v10050, %v10465
        %v10547 = vadd.f32 %v10051, %v10467
        %v10548 = vadd.f32 %v10052, %v10469
        %v10549 = vadd.f32 %v10053, %v10471
        %v10550 = vadd.f32 %v10054, %v10473
        %v10551 = vadd.f32 %v10055, %v10475
        %v10552 = vadd.f32 %v10056, %v10477
        %v10553 = vadd.f32 %v10057, %v10479
        %v10554 = vadd.f32 %v10058, %v10481
        %v10555 = vadd.f32 %v10059, %v10483
        %v10556 = vrot.slane %v2281, 7
        %v10557 = vsel %vm2733, %v7662, %v10556
        %v10558 = vrot.slane %v10556, 2
        %v10559 = vrot.slane %v10557, 2
        %v10560 = vrot.slane %v10558, 2
        %v10564 = vmul.f32 %v10341, %v6915
        %v10565 = vmul.f32 %v10343, %v7081
        %v10566 = vmul.f32 %v10345, %v7082
        %v10567 = vmul.f32 %v10347, %v7083
        %v10568 = vmul.f32 %v10349, %v7084
        %v10569 = vmul.f32 %v10351, %v7085
        %v10570 = vmul.f32 %v10353, %v7086
        %v10571 = vmul.f32 %v10355, %v10086
        %v10572 = vmul.f32 %v10357, %v10087
        %v10573 = vmul.f32 %v10359, %v6938
        %v10574 = vmul.f32 %v10361, %v7089
        %v10575 = vmul.f32 %v10363, %v7090
        %v10576 = vmul.f32 %v10365, %v7091
        %v10577 = vmul.f32 %v10367, %v7092
        %v10578 = vmul.f32 %v10369, %v7093
        %v10579 = vmul.f32 %v10371, %v7094
        %v10580 = vmul.f32 %v10373, %v10088
        %v10581 = vmul.f32 %v10375, %v10089
        %v10582 = vmul.f32 %v10377, %v6961
        %v10583 = vmul.f32 %v10379, %v7097
        %v10584 = vmul.f32 %v10381, %v7098
        %v10585 = vmul.f32 %v10383, %v7099
        %v10586 = vmul.f32 %v10385, %v7100
        %v10587 = vmul.f32 %v10387, %v7101
        %v10588 = vmul.f32 %v10389, %v7102
        %v10589 = vmul.f32 %v10391, %v10090
        %v10590 = vmul.f32 %v10393, %v10091
        %v10591 = vmul.f32 %v10395, %v6984
        %v10592 = vmul.f32 %v10397, %v7105
        %v10593 = vmul.f32 %v10399, %v7106
        %v10594 = vmul.f32 %v10401, %v7107
        %v10595 = vmul.f32 %v10403, %v7108
        %v10596 = vmul.f32 %v10405, %v7109
        %v10597 = vmul.f32 %v10407, %v7110
        %v10598 = vmul.f32 %v10409, %v10092
        %v10599 = vmul.f32 %v10411, %v10093
        %v10600 = vmul.f32 %v10413, %v7007
        %v10601 = vmul.f32 %v10415, %v7113
        %v10602 = vmul.f32 %v10417, %v7114
        %v10603 = vmul.f32 %v10419, %v7115
        %v10604 = vmul.f32 %v10421, %v7116
        %v10605 = vmul.f32 %v10423, %v7117
        %v10606 = vmul.f32 %v10425, %v7118
        %v10607 = vmul.f32 %v10427, %v10094
        %v10608 = vmul.f32 %v10429, %v10095
        %v10609 = vmul.f32 %v10431, %v7030
        %v10610 = vmul.f32 %v10433, %v7121
        %v10611 = vmul.f32 %v10435, %v7122
        %v10612 = vmul.f32 %v10437, %v7123
        %v10613 = vmul.f32 %v10439, %v7124
        %v10614 = vmul.f32 %v10441, %v7125
        %v10615 = vmul.f32 %v10443, %v7126
        %v10616 = vmul.f32 %v10445, %v10096
        %v10617 = vmul.f32 %v10447, %v10097
        %v10618 = vmul.f32 %v10449, %v7053
        %v10619 = vmul.f32 %v10451, %v7129
        %v10620 = vmul.f32 %v10453, %v7130
        %v10621 = vmul.f32 %v10455, %v7131
        %v10622 = vmul.f32 %v10457, %v7132
        %v10623 = vmul.f32 %v10459, %v7133
        %v10624 = vmul.f32 %v10461, %v7134
        %v10625 = vmul.f32 %v10463, %v10098
        %v10626 = vmul.f32 %v10465, %v10099
        %v10627 = vmul.f32 %v10467, %v7644
        %v10628 = vmul.f32 %v10469, %v7664
        %v10629 = vmul.f32 %v10471, %v7665
        %v10630 = vmul.f32 %v10473, %v7666
        %v10631 = vmul.f32 %v10475, %v7667
        %v10632 = vmul.f32 %v10477, %v7668
        %v10633 = vmul.f32 %v10479, %v7669
        %v10634 = vmul.f32 %v10481, %v10559
        %v10635 = vmul.f32 %v10483, %v10560
        %v10636 = vadd.f32 %v10196, %v10564
        %v10637 = vadd.f32 %v10197, %v10565
        %v10638 = vadd.f32 %v10198, %v10566
        %v10639 = vadd.f32 %v10199, %v10567
        %v10640 = vadd.f32 %v10200, %v10568
        %v10641 = vadd.f32 %v10201, %v10569
        %v10642 = vadd.f32 %v10202, %v10570
        %v10643 = vadd.f32 %v10203, %v10571
        %v10644 = vadd.f32 %v10204, %v10572
        %v10645 = vadd.f32 %v10205, %v10573
        %v10646 = vadd.f32 %v10206, %v10574
        %v10647 = vadd.f32 %v10207, %v10575
        %v10648 = vadd.f32 %v10208, %v10576
        %v10649 = vadd.f32 %v10209, %v10577
        %v10650 = vadd.f32 %v10210, %v10578
        %v10651 = vadd.f32 %v10211, %v10579
        %v10652 = vadd.f32 %v10212, %v10580
        %v10653 = vadd.f32 %v10213, %v10581
        %v10654 = vadd.f32 %v10214, %v10582
        %v10655 = vadd.f32 %v10215, %v10583
        %v10656 = vadd.f32 %v10216, %v10584
        %v10657 = vadd.f32 %v10217, %v10585
        %v10658 = vadd.f32 %v10218, %v10586
        %v10659 = vadd.f32 %v10219, %v10587
        %v10660 = vadd.f32 %v10220, %v10588
        %v10661 = vadd.f32 %v10221, %v10589
        %v10662 = vadd.f32 %v10222, %v10590
        %v10663 = vadd.f32 %v10223, %v10591
        %v10664 = vadd.f32 %v10224, %v10592
        %v10665 = vadd.f32 %v10225, %v10593
        %v10666 = vadd.f32 %v10226, %v10594
        %v10667 = vadd.f32 %v10227, %v10595
        %v10668 = vadd.f32 %v10228, %v10596
        %v10669 = vadd.f32 %v10229, %v10597
        %v10670 = vadd.f32 %v10230, %v10598
        %v10671 = vadd.f32 %v10231, %v10599
        %v10672 = vadd.f32 %v10232, %v10600
        %v10673 = vadd.f32 %v10233, %v10601
        %v10674 = vadd.f32 %v10234, %v10602
        %v10675 = vadd.f32 %v10235, %v10603
        %v10676 = vadd.f32 %v10236, %v10604
        %v10677 = vadd.f32 %v10237, %v10605
        %v10678 = vadd.f32 %v10238, %v10606
        %v10679 = vadd.f32 %v10239, %v10607
        %v10680 = vadd.f32 %v10240, %v10608
        %v10681 = vadd.f32 %v10241, %v10609
        %v10682 = vadd.f32 %v10242, %v10610
        %v10683 = vadd.f32 %v10243, %v10611
        %v10684 = vadd.f32 %v10244, %v10612
        %v10685 = vadd.f32 %v10245, %v10613
        %v10686 = vadd.f32 %v10246, %v10614
        %v10687 = vadd.f32 %v10247, %v10615
        %v10688 = vadd.f32 %v10248, %v10616
        %v10689 = vadd.f32 %v10249, %v10617
        %v10690 = vadd.f32 %v10250, %v10618
        %v10691 = vadd.f32 %v10251, %v10619
        %v10692 = vadd.f32 %v10252, %v10620
        %v10693 = vadd.f32 %v10253, %v10621
        %v10694 = vadd.f32 %v10254, %v10622
        %v10695 = vadd.f32 %v10255, %v10623
        %v10696 = vadd.f32 %v10256, %v10624
        %v10697 = vadd.f32 %v10257, %v10625
        %v10698 = vadd.f32 %v10258, %v10626
        %v10699 = vadd.f32 %v10259, %v10627
        %v10700 = vadd.f32 %v10260, %v10628
        %v10701 = vadd.f32 %v10261, %v10629
        %v10702 = vadd.f32 %v10262, %v10630
        %v10703 = vadd.f32 %v10263, %v10631
        %v10704 = vadd.f32 %v10264, %v10632
        %v10705 = vadd.f32 %v10265, %v10633
        %v10706 = vadd.f32 %v10266, %v10634
        %v10707 = vadd.f32 %v10267, %v10635
        %v10708 = vsub.f32 %v6456, %v6528
        %v10709 = vsub.f32 %v6457, %v6529
        %v10710 = vsub.f32 %v6458, %v6530
        %v10711 = vsub.f32 %v6459, %v6531
        %v10712 = vsub.f32 %v6460, %v6532
        %v10713 = vsub.f32 %v6461, %v6533
        %v10714 = vsub.f32 %v6462, %v6534
        %v10715 = vsub.f32 %v6463, %v6535
        %v10716 = vsub.f32 %v6464, %v6536
        %v10717 = vsub.f32 %v6465, %v6537
        %v10718 = vsub.f32 %v6466, %v6538
        %v10719 = vsub.f32 %v6467, %v6539
        %v10720 = vsub.f32 %v6468, %v6540
        %v10721 = vsub.f32 %v6469, %v6541
        %v10722 = vsub.f32 %v6470, %v6542
        %v10723 = vsub.f32 %v6471, %v6543
        %v10724 = vsub.f32 %v6472, %v6544
        %v10725 = vsub.f32 %v6473, %v6545
        %v10726 = vsub.f32 %v6474, %v6546
        %v10727 = vsub.f32 %v6475, %v6547
        %v10728 = vsub.f32 %v6476, %v6548
        %v10729 = vsub.f32 %v6477, %v6549
        %v10730 = vsub.f32 %v6478, %v6550
        %v10731 = vsub.f32 %v6479, %v6551
        %v10732 = vsub.f32 %v6480, %v6552
        %v10733 = vsub.f32 %v6481, %v6553
        %v10734 = vsub.f32 %v6482, %v6554
        %v10735 = vsub.f32 %v6483, %v6555
        %v10736 = vsub.f32 %v6484, %v6556
        %v10737 = vsub.f32 %v6485, %v6557
        %v10738 = vsub.f32 %v6486, %v6558
        %v10739 = vsub.f32 %v6487, %v6559
        %v10740 = vsub.f32 %v6488, %v6560
        %v10741 = vsub.f32 %v6489, %v6561
        %v10742 = vsub.f32 %v6490, %v6562
        %v10743 = vsub.f32 %v6491, %v6563
        %v10744 = vsub.f32 %v6492, %v6564
        %v10745 = vsub.f32 %v6493, %v6565
        %v10746 = vsub.f32 %v6494, %v6566
        %v10747 = vsub.f32 %v6495, %v6567
        %v10748 = vsub.f32 %v6496, %v6568
        %v10749 = vsub.f32 %v6497, %v6569
        %v10750 = vsub.f32 %v6498, %v6570
        %v10751 = vsub.f32 %v6499, %v6571
        %v10752 = vsub.f32 %v6500, %v6572
        %v10753 = vsub.f32 %v6501, %v6573
        %v10754 = vsub.f32 %v6502, %v6574
        %v10755 = vsub.f32 %v6503, %v6575
        %v10756 = vsub.f32 %v6504, %v6576
        %v10757 = vsub.f32 %v6505, %v6577
        %v10758 = vsub.f32 %v6506, %v6578
        %v10759 = vsub.f32 %v6507, %v6579
        %v10760 = vsub.f32 %v6508, %v6580
        %v10761 = vsub.f32 %v6509, %v6581
        %v10762 = vsub.f32 %v6510, %v6582
        %v10763 = vsub.f32 %v6511, %v6583
        %v10764 = vsub.f32 %v6512, %v6584
        %v10765 = vsub.f32 %v6513, %v6585
        %v10766 = vsub.f32 %v6514, %v6586
        %v10767 = vsub.f32 %v6515, %v6587
        %v10768 = vsub.f32 %v6516, %v6588
        %v10769 = vsub.f32 %v6517, %v6589
        %v10770 = vsub.f32 %v6518, %v6590
        %v10771 = vsub.f32 %v6519, %v6591
        %v10772 = vsub.f32 %v6520, %v6592
        %v10773 = vsub.f32 %v6521, %v6593
        %v10774 = vsub.f32 %v6522, %v6594
        %v10775 = vsub.f32 %v6523, %v6595
        %v10776 = vsub.f32 %v6524, %v6596
        %v10777 = vsub.f32 %v6525, %v6597
        %v10778 = vsub.f32 %v6526, %v6598
        %v10779 = vsub.f32 %v6527, %v6599
        %v10780 = vmul.f32 %v10708, 1.442695
        %v10781 = vpow.pop %v10780
        %v10782 = vmul.f32 %v10709, 1.442695
        %v10783 = vpow.pop %v10782
        %v10784 = vmul.f32 %v10710, 1.442695
        %v10785 = vpow.pop %v10784
        %v10786 = vmul.f32 %v10711, 1.442695
        %v10787 = vpow.pop %v10786
        %v10788 = vmul.f32 %v10712, 1.442695
        %v10789 = vpow.pop %v10788
        %v10790 = vmul.f32 %v10713, 1.442695
        %v10791 = vpow.pop %v10790
        %v10792 = vmul.f32 %v10714, 1.442695
        %v10793 = vpow.pop %v10792
        %v10794 = vmul.f32 %v10715, 1.442695
        %v10795 = vpow.pop %v10794
        %v10796 = vmul.f32 %v10716, 1.442695
        %v10797 = vpow.pop %v10796
        %v10798 = vmul.f32 %v10717, 1.442695
        %v10799 = vpow.pop %v10798
        %v10800 = vmul.f32 %v10718, 1.442695
        %v10801 = vpow.pop %v10800
        %v10802 = vmul.f32 %v10719, 1.442695
        %v10803 = vpow.pop %v10802
        %v10804 = vmul.f32 %v10720, 1.442695
        %v10805 = vpow.pop %v10804
        %v10806 = vmul.f32 %v10721, 1.442695
        %v10807 = vpow.pop %v10806
        %v10808 = vmul.f32 %v10722, 1.442695
        %v10809 = vpow.pop %v10808
        %v10810 = vmul.f32 %v10723, 1.442695
        %v10811 = vpow.pop %v10810
        %v10812 = vmul.f32 %v10724, 1.442695
        %v10813 = vpow.pop %v10812
        %v10814 = vmul.f32 %v10725, 1.442695
        %v10815 = vpow.pop %v10814
        %v10816 = vmul.f32 %v10726, 1.442695
        %v10817 = vpow.pop %v10816
        %v10818 = vmul.f32 %v10727, 1.442695
        %v10819 = vpow.pop %v10818
        %v10820 = vmul.f32 %v10728, 1.442695
        %v10821 = vpow.pop %v10820
        %v10822 = vmul.f32 %v10729, 1.442695
        %v10823 = vpow.pop %v10822
        %v10824 = vmul.f32 %v10730, 1.442695
        %v10825 = vpow.pop %v10824
        %v10826 = vmul.f32 %v10731, 1.442695
        %v10827 = vpow.pop %v10826
        %v10828 = vmul.f32 %v10732, 1.442695
        %v10829 = vpow.pop %v10828
        %v10830 = vmul.f32 %v10733, 1.442695
        %v10831 = vpow.pop %v10830
        %v10832 = vmul.f32 %v10734, 1.442695
        %v10833 = vpow.pop %v10832
        %v10834 = vmul.f32 %v10735, 1.442695
        %v10835 = vpow.pop %v10834
        %v10836 = vmul.f32 %v10736, 1.442695
        %v10837 = vpow.pop %v10836
        %v10838 = vmul.f32 %v10737, 1.442695
        %v10839 = vpow.pop %v10838
        %v10840 = vmul.f32 %v10738, 1.442695
        %v10841 = vpow.pop %v10840
        %v10842 = vmul.f32 %v10739, 1.442695
        %v10843 = vpow.pop %v10842
        %v10844 = vmul.f32 %v10740, 1.442695
        %v10845 = vpow.pop %v10844
        %v10846 = vmul.f32 %v10741, 1.442695
        %v10847 = vpow.pop %v10846
        %v10848 = vmul.f32 %v10742, 1.442695
        %v10849 = vpow.pop %v10848
        %v10850 = vmul.f32 %v10743, 1.442695
        %v10851 = vpow.pop %v10850
        %v10852 = vmul.f32 %v10744, 1.442695
        %v10853 = vpow.pop %v10852
        %v10854 = vmul.f32 %v10745, 1.442695
        %v10855 = vpow.pop %v10854
        %v10856 = vmul.f32 %v10746, 1.442695
        %v10857 = vpow.pop %v10856
        %v10858 = vmul.f32 %v10747, 1.442695
        %v10859 = vpow.pop %v10858
        %v10860 = vmul.f32 %v10748, 1.442695
        %v10861 = vpow.pop %v10860
        %v10862 = vmul.f32 %v10749, 1.442695
        %v10863 = vpow.pop %v10862
        %v10864 = vmul.f32 %v10750, 1.442695
        %v10865 = vpow.pop %v10864
        %v10866 = vmul.f32 %v10751, 1.442695
        %v10867 = vpow.pop %v10866
        %v10868 = vmul.f32 %v10752, 1.442695
        %v10869 = vpow.pop %v10868
        %v10870 = vmul.f32 %v10753, 1.442695
        %v10871 = vpow.pop %v10870
        %v10872 = vmul.f32 %v10754, 1.442695
        %v10873 = vpow.pop %v10872
        %v10874 = vmul.f32 %v10755, 1.442695
        %v10875 = vpow.pop %v10874
        %v10876 = vmul.f32 %v10756, 1.442695
        %v10877 = vpow.pop %v10876
        %v10878 = vmul.f32 %v10757, 1.442695
        %v10879 = vpow.pop %v10878
        %v10880 = vmul.f32 %v10758, 1.442695
        %v10881 = vpow.pop %v10880
        %v10882 = vmul.f32 %v10759, 1.442695
        %v10883 = vpow.pop %v10882
        %v10884 = vmul.f32 %v10760, 1.442695
        %v10885 = vpow.pop %v10884
        %v10886 = vmul.f32 %v10761, 1.442695
        %v10887 = vpow.pop %v10886
        %v10888 = vmul.f32 %v10762, 1.442695
        %v10889 = vpow.pop %v10888
        %v10890 = vmul.f32 %v10763, 1.442695
        %v10891 = vpow.pop %v10890
        %v10892 = vmul.f32 %v10764, 1.442695
        %v10893 = vpow.pop %v10892
        %v10894 = vmul.f32 %v10765, 1.442695
        %v10895 = vpow.pop %v10894
        %v10896 = vmul.f32 %v10766, 1.442695
        %v10897 = vpow.pop %v10896
        %v10898 = vmul.f32 %v10767, 1.442695
        %v10899 = vpow.pop %v10898
        %v10900 = vmul.f32 %v10768, 1.442695
        %v10901 = vpow.pop %v10900
        %v10902 = vmul.f32 %v10769, 1.442695
        %v10903 = vpow.pop %v10902
        %v10904 = vmul.f32 %v10770, 1.442695
        %v10905 = vpow.pop %v10904
        %v10906 = vmul.f32 %v10771, 1.442695
        %v10907 = vpow.pop %v10906
        %v10908 = vmul.f32 %v10772, 1.442695
        %v10909 = vpow.pop %v10908
        %v10910 = vmul.f32 %v10773, 1.442695
        %v10911 = vpow.pop %v10910
        %v10912 = vmul.f32 %v10774, 1.442695
        %v10913 = vpow.pop %v10912
        %v10914 = vmul.f32 %v10775, 1.442695
        %v10915 = vpow.pop %v10914
        %v10916 = vmul.f32 %v10776, 1.442695
        %v10917 = vpow.pop %v10916
        %v10918 = vmul.f32 %v10777, 1.442695
        %v10919 = vpow.pop %v10918
        %v10920 = vmul.f32 %v10778, 1.442695
        %v10921 = vpow.pop %v10920
        %v10922 = vmul.f32 %v10779, 1.442695
        %v10923 = vpow.pop %v10922
        %v10924 = vadd.f32 %v10484, %v10781
        %v10925 = vadd.f32 %v10485, %v10783
        %v10926 = vadd.f32 %v10486, %v10785
        %v10927 = vadd.f32 %v10487, %v10787
        %v10928 = vadd.f32 %v10488, %v10789
        %v10929 = vadd.f32 %v10489, %v10791
        %v10930 = vadd.f32 %v10490, %v10793
        %v10931 = vadd.f32 %v10491, %v10795
        %v10932 = vadd.f32 %v10492, %v10797
        %v10933 = vadd.f32 %v10493, %v10799
        %v10934 = vadd.f32 %v10494, %v10801
        %v10935 = vadd.f32 %v10495, %v10803
        %v10936 = vadd.f32 %v10496, %v10805
        %v10937 = vadd.f32 %v10497, %v10807
        %v10938 = vadd.f32 %v10498, %v10809
        %v10939 = vadd.f32 %v10499, %v10811
        %v10940 = vadd.f32 %v10500, %v10813
        %v10941 = vadd.f32 %v10501, %v10815
        %v10942 = vadd.f32 %v10502, %v10817
        %v10943 = vadd.f32 %v10503, %v10819
        %v10944 = vadd.f32 %v10504, %v10821
        %v10945 = vadd.f32 %v10505, %v10823
        %v10946 = vadd.f32 %v10506, %v10825
        %v10947 = vadd.f32 %v10507, %v10827
        %v10948 = vadd.f32 %v10508, %v10829
        %v10949 = vadd.f32 %v10509, %v10831
        %v10950 = vadd.f32 %v10510, %v10833
        %v10951 = vadd.f32 %v10511, %v10835
        %v10952 = vadd.f32 %v10512, %v10837
        %v10953 = vadd.f32 %v10513, %v10839
        %v10954 = vadd.f32 %v10514, %v10841
        %v10955 = vadd.f32 %v10515, %v10843
        %v10956 = vadd.f32 %v10516, %v10845
        %v10957 = vadd.f32 %v10517, %v10847
        %v10958 = vadd.f32 %v10518, %v10849
        %v10959 = vadd.f32 %v10519, %v10851
        %v10960 = vadd.f32 %v10520, %v10853
        %v10961 = vadd.f32 %v10521, %v10855
        %v10962 = vadd.f32 %v10522, %v10857
        %v10963 = vadd.f32 %v10523, %v10859
        %v10964 = vadd.f32 %v10524, %v10861
        %v10965 = vadd.f32 %v10525, %v10863
        %v10966 = vadd.f32 %v10526, %v10865
        %v10967 = vadd.f32 %v10527, %v10867
        %v10968 = vadd.f32 %v10528, %v10869
        %v10969 = vadd.f32 %v10529, %v10871
        %v10970 = vadd.f32 %v10530, %v10873
        %v10971 = vadd.f32 %v10531, %v10875
        %v10972 = vadd.f32 %v10532, %v10877
        %v10973 = vadd.f32 %v10533, %v10879
        %v10974 = vadd.f32 %v10534, %v10881
        %v10975 = vadd.f32 %v10535, %v10883
        %v10976 = vadd.f32 %v10536, %v10885
        %v10977 = vadd.f32 %v10537, %v10887
        %v10978 = vadd.f32 %v10538, %v10889
        %v10979 = vadd.f32 %v10539, %v10891
        %v10980 = vadd.f32 %v10540, %v10893
        %v10981 = vadd.f32 %v10541, %v10895
        %v10982 = vadd.f32 %v10542, %v10897
        %v10983 = vadd.f32 %v10543, %v10899
        %v10984 = vadd.f32 %v10544, %v10901
        %v10985 = vadd.f32 %v10545, %v10903
        %v10986 = vadd.f32 %v10546, %v10905
        %v10987 = vadd.f32 %v10547, %v10907
        %v10988 = vadd.f32 %v10548, %v10909
        %v10989 = vadd.f32 %v10549, %v10911
        %v10990 = vadd.f32 %v10550, %v10913
        %v10991 = vadd.f32 %v10551, %v10915
        %v10992 = vadd.f32 %v10552, %v10917
        %v10993 = vadd.f32 %v10553, %v10919
        %v10994 = vadd.f32 %v10554, %v10921
        %v10995 = vadd.f32 %v10555, %v10923
        %v10996 = vrot.slane %v2336, 7
        %v10997 = vsel %vm2733, %v8134, %v10996
        %v10998 = vrot.slane %v10996, 2
        %v10999 = vrot.slane %v10997, 2
        %v11000 = vrot.slane %v10998, 2
        %v11004 = vmul.f32 %v10781, %v6938
        %v11005 = vmul.f32 %v10783, %v7089
        %v11006 = vmul.f32 %v10785, %v7090
        %v11007 = vmul.f32 %v10787, %v7091
        %v11008 = vmul.f32 %v10789, %v7092
        %v11009 = vmul.f32 %v10791, %v7093
        %v11010 = vmul.f32 %v10793, %v7094
        %v11011 = vmul.f32 %v10795, %v10088
        %v11012 = vmul.f32 %v10797, %v10089
        %v11013 = vmul.f32 %v10799, %v6961
        %v11014 = vmul.f32 %v10801, %v7097
        %v11015 = vmul.f32 %v10803, %v7098
        %v11016 = vmul.f32 %v10805, %v7099
        %v11017 = vmul.f32 %v10807, %v7100
        %v11018 = vmul.f32 %v10809, %v7101
        %v11019 = vmul.f32 %v10811, %v7102
        %v11020 = vmul.f32 %v10813, %v10090
        %v11021 = vmul.f32 %v10815, %v10091
        %v11022 = vmul.f32 %v10817, %v6984
        %v11023 = vmul.f32 %v10819, %v7105
        %v11024 = vmul.f32 %v10821, %v7106
        %v11025 = vmul.f32 %v10823, %v7107
        %v11026 = vmul.f32 %v10825, %v7108
        %v11027 = vmul.f32 %v10827, %v7109
        %v11028 = vmul.f32 %v10829, %v7110
        %v11029 = vmul.f32 %v10831, %v10092
        %v11030 = vmul.f32 %v10833, %v10093
        %v11031 = vmul.f32 %v10835, %v7007
        %v11032 = vmul.f32 %v10837, %v7113
        %v11033 = vmul.f32 %v10839, %v7114
        %v11034 = vmul.f32 %v10841, %v7115
        %v11035 = vmul.f32 %v10843, %v7116
        %v11036 = vmul.f32 %v10845, %v7117
        %v11037 = vmul.f32 %v10847, %v7118
        %v11038 = vmul.f32 %v10849, %v10094
        %v11039 = vmul.f32 %v10851, %v10095
        %v11040 = vmul.f32 %v10853, %v7030
        %v11041 = vmul.f32 %v10855, %v7121
        %v11042 = vmul.f32 %v10857, %v7122
        %v11043 = vmul.f32 %v10859, %v7123
        %v11044 = vmul.f32 %v10861, %v7124
        %v11045 = vmul.f32 %v10863, %v7125
        %v11046 = vmul.f32 %v10865, %v7126
        %v11047 = vmul.f32 %v10867, %v10096
        %v11048 = vmul.f32 %v10869, %v10097
        %v11049 = vmul.f32 %v10871, %v7053
        %v11050 = vmul.f32 %v10873, %v7129
        %v11051 = vmul.f32 %v10875, %v7130
        %v11052 = vmul.f32 %v10877, %v7131
        %v11053 = vmul.f32 %v10879, %v7132
        %v11054 = vmul.f32 %v10881, %v7133
        %v11055 = vmul.f32 %v10883, %v7134
        %v11056 = vmul.f32 %v10885, %v10098
        %v11057 = vmul.f32 %v10887, %v10099
        %v11058 = vmul.f32 %v10889, %v7644
        %v11059 = vmul.f32 %v10891, %v7664
        %v11060 = vmul.f32 %v10893, %v7665
        %v11061 = vmul.f32 %v10895, %v7666
        %v11062 = vmul.f32 %v10897, %v7667
        %v11063 = vmul.f32 %v10899, %v7668
        %v11064 = vmul.f32 %v10901, %v7669
        %v11065 = vmul.f32 %v10903, %v10559
        %v11066 = vmul.f32 %v10905, %v10560
        %v11067 = vmul.f32 %v10907, %v8116
        %v11068 = vmul.f32 %v10909, %v8136
        %v11069 = vmul.f32 %v10911, %v8137
        %v11070 = vmul.f32 %v10913, %v8138
        %v11071 = vmul.f32 %v10915, %v8139
        %v11072 = vmul.f32 %v10917, %v8140
        %v11073 = vmul.f32 %v10919, %v8141
        %v11074 = vmul.f32 %v10921, %v10999
        %v11075 = vmul.f32 %v10923, %v11000
        %v11076 = vadd.f32 %v10636, %v11004
        %v11077 = vadd.f32 %v10637, %v11005
        %v11078 = vadd.f32 %v10638, %v11006
        %v11079 = vadd.f32 %v10639, %v11007
        %v11080 = vadd.f32 %v10640, %v11008
        %v11081 = vadd.f32 %v10641, %v11009
        %v11082 = vadd.f32 %v10642, %v11010
        %v11083 = vadd.f32 %v10643, %v11011
        %v11084 = vadd.f32 %v10644, %v11012
        %v11085 = vadd.f32 %v10645, %v11013
        %v11086 = vadd.f32 %v10646, %v11014
        %v11087 = vadd.f32 %v10647, %v11015
        %v11088 = vadd.f32 %v10648, %v11016
        %v11089 = vadd.f32 %v10649, %v11017
        %v11090 = vadd.f32 %v10650, %v11018
        %v11091 = vadd.f32 %v10651, %v11019
        %v11092 = vadd.f32 %v10652, %v11020
        %v11093 = vadd.f32 %v10653, %v11021
        %v11094 = vadd.f32 %v10654, %v11022
        %v11095 = vadd.f32 %v10655, %v11023
        %v11096 = vadd.f32 %v10656, %v11024
        %v11097 = vadd.f32 %v10657, %v11025
        %v11098 = vadd.f32 %v10658, %v11026
        %v11099 = vadd.f32 %v10659, %v11027
        %v11100 = vadd.f32 %v10660, %v11028
        %v11101 = vadd.f32 %v10661, %v11029
        %v11102 = vadd.f32 %v10662, %v11030
        %v11103 = vadd.f32 %v10663, %v11031
        %v11104 = vadd.f32 %v10664, %v11032
        %v11105 = vadd.f32 %v10665, %v11033
        %v11106 = vadd.f32 %v10666, %v11034
        %v11107 = vadd.f32 %v10667, %v11035
        %v11108 = vadd.f32 %v10668, %v11036
        %v11109 = vadd.f32 %v10669, %v11037
        %v11110 = vadd.f32 %v10670, %v11038
        %v11111 = vadd.f32 %v10671, %v11039
        %v11112 = vadd.f32 %v10672, %v11040
        %v11113 = vadd.f32 %v10673, %v11041
        %v11114 = vadd.f32 %v10674, %v11042
        %v11115 = vadd.f32 %v10675, %v11043
        %v11116 = vadd.f32 %v10676, %v11044
        %v11117 = vadd.f32 %v10677, %v11045
        %v11118 = vadd.f32 %v10678, %v11046
        %v11119 = vadd.f32 %v10679, %v11047
        %v11120 = vadd.f32 %v10680, %v11048
        %v11121 = vadd.f32 %v10681, %v11049
        %v11122 = vadd.f32 %v10682, %v11050
        %v11123 = vadd.f32 %v10683, %v11051
        %v11124 = vadd.f32 %v10684, %v11052
        %v11125 = vadd.f32 %v10685, %v11053
        %v11126 = vadd.f32 %v10686, %v11054
        %v11127 = vadd.f32 %v10687, %v11055
        %v11128 = vadd.f32 %v10688, %v11056
        %v11129 = vadd.f32 %v10689, %v11057
        %v11130 = vadd.f32 %v10690, %v11058
        %v11131 = vadd.f32 %v10691, %v11059
        %v11132 = vadd.f32 %v10692, %v11060
        %v11133 = vadd.f32 %v10693, %v11061
        %v11134 = vadd.f32 %v10694, %v11062
        %v11135 = vadd.f32 %v10695, %v11063
        %v11136 = vadd.f32 %v10696, %v11064
        %v11137 = vadd.f32 %v10697, %v11065
        %v11138 = vadd.f32 %v10698, %v11066
        %v11139 = vadd.f32 %v10699, %v11067
        %v11140 = vadd.f32 %v10700, %v11068
        %v11141 = vadd.f32 %v10701, %v11069
        %v11142 = vadd.f32 %v10702, %v11070
        %v11143 = vadd.f32 %v10703, %v11071
        %v11144 = vadd.f32 %v10704, %v11072
        %v11145 = vadd.f32 %v10705, %v11073
        %v11146 = vadd.f32 %v10706, %v11074
        %v11147 = vadd.f32 %v10707, %v11075
        %v11148 = vrcp.pop %v10924
        %v11149 = vrcp.pop %v10925
        %v11150 = vrcp.pop %v10926
        %v11151 = vrcp.pop %v10927
        %v11152 = vrcp.pop %v10928
        %v11153 = vrcp.pop %v10929
        %v11154 = vrcp.pop %v10930
        %v11155 = vrcp.pop %v10931
        %v11156 = vrcp.pop %v10932
        %v11157 = vrcp.pop %v10933
        %v11158 = vrcp.pop %v10934
        %v11159 = vrcp.pop %v10935
        %v11160 = vrcp.pop %v10936
        %v11161 = vrcp.pop %v10937
        %v11162 = vrcp.pop %v10938
        %v11163 = vrcp.pop %v10939
        %v11164 = vrcp.pop %v10940
        %v11165 = vrcp.pop %v10941
        %v11166 = vrcp.pop %v10942
        %v11167 = vrcp.pop %v10943
        %v11168 = vrcp.pop %v10944
        %v11169 = vrcp.pop %v10945
        %v11170 = vrcp.pop %v10946
        %v11171 = vrcp.pop %v10947
        %v11172 = vrcp.pop %v10948
        %v11173 = vrcp.pop %v10949
        %v11174 = vrcp.pop %v10950
        %v11175 = vrcp.pop %v10951
        %v11176 = vrcp.pop %v10952
        %v11177 = vrcp.pop %v10953
        %v11178 = vrcp.pop %v10954
        %v11179 = vrcp.pop %v10955
        %v11180 = vrcp.pop %v10956
        %v11181 = vrcp.pop %v10957
        %v11182 = vrcp.pop %v10958
        %v11183 = vrcp.pop %v10959
        %v11184 = vrcp.pop %v10960
        %v11185 = vrcp.pop %v10961
        %v11186 = vrcp.pop %v10962
        %v11187 = vrcp.pop %v10963
        %v11188 = vrcp.pop %v10964
        %v11189 = vrcp.pop %v10965
        %v11190 = vrcp.pop %v10966
        %v11191 = vrcp.pop %v10967
        %v11192 = vrcp.pop %v10968
        %v11193 = vrcp.pop %v10969
        %v11194 = vrcp.pop %v10970
        %v11195 = vrcp.pop %v10971
        %v11196 = vrcp.pop %v10972
        %v11197 = vrcp.pop %v10973
        %v11198 = vrcp.pop %v10974
        %v11199 = vrcp.pop %v10975
        %v11200 = vrcp.pop %v10976
        %v11201 = vrcp.pop %v10977
        %v11202 = vrcp.pop %v10978
        %v11203 = vrcp.pop %v10979
        %v11204 = vrcp.pop %v10980
        %v11205 = vrcp.pop %v10981
        %v11206 = vrcp.pop %v10982
        %v11207 = vrcp.pop %v10983
        %v11208 = vrcp.pop %v10984
        %v11209 = vrcp.pop %v10985
        %v11210 = vrcp.pop %v10986
        %v11211 = vrcp.pop %v10987
        %v11212 = vrcp.pop %v10988
        %v11213 = vrcp.pop %v10989
        %v11214 = vrcp.pop %v10990
        %v11215 = vrcp.pop %v10991
        %v11216 = vrcp.pop %v10992
        %v11217 = vrcp.pop %v10993
        %v11218 = vrcp.pop %v10994
        %v11219 = vrcp.pop %v10995
        %v11220 = vmul.f32 %v10924, %v11148
        %v11221 = vmul.f32 %v10925, %v11149
        %v11222 = vmul.f32 %v10926, %v11150
        %v11223 = vmul.f32 %v10927, %v11151
        %v11224 = vmul.f32 %v10928, %v11152
        %v11225 = vmul.f32 %v10929, %v11153
        %v11226 = vmul.f32 %v10930, %v11154
        %v11227 = vmul.f32 %v10931, %v11155
        %v11228 = vmul.f32 %v10932, %v11156
        %v11229 = vmul.f32 %v10933, %v11157
        %v11230 = vmul.f32 %v10934, %v11158
        %v11231 = vmul.f32 %v10935, %v11159
        %v11232 = vmul.f32 %v10936, %v11160
        %v11233 = vmul.f32 %v10937, %v11161
        %v11234 = vmul.f32 %v10938, %v11162
        %v11235 = vmul.f32 %v10939, %v11163
        %v11236 = vmul.f32 %v10940, %v11164
        %v11237 = vmul.f32 %v10941, %v11165
        %v11238 = vmul.f32 %v10942, %v11166
        %v11239 = vmul.f32 %v10943, %v11167
        %v11240 = vmul.f32 %v10944, %v11168
        %v11241 = vmul.f32 %v10945, %v11169
        %v11242 = vmul.f32 %v10946, %v11170
        %v11243 = vmul.f32 %v10947, %v11171
        %v11244 = vmul.f32 %v10948, %v11172
        %v11245 = vmul.f32 %v10949, %v11173
        %v11246 = vmul.f32 %v10950, %v11174
        %v11247 = vmul.f32 %v10951, %v11175
        %v11248 = vmul.f32 %v10952, %v11176
        %v11249 = vmul.f32 %v10953, %v11177
        %v11250 = vmul.f32 %v10954, %v11178
        %v11251 = vmul.f32 %v10955, %v11179
        %v11252 = vmul.f32 %v10956, %v11180
        %v11253 = vmul.f32 %v10957, %v11181
        %v11254 = vmul.f32 %v10958, %v11182
        %v11255 = vmul.f32 %v10959, %v11183
        %v11256 = vmul.f32 %v10960, %v11184
        %v11257 = vmul.f32 %v10961, %v11185
        %v11258 = vmul.f32 %v10962, %v11186
        %v11259 = vmul.f32 %v10963, %v11187
        %v11260 = vmul.f32 %v10964, %v11188
        %v11261 = vmul.f32 %v10965, %v11189
        %v11262 = vmul.f32 %v10966, %v11190
        %v11263 = vmul.f32 %v10967, %v11191
        %v11264 = vmul.f32 %v10968, %v11192
        %v11265 = vmul.f32 %v10969, %v11193
        %v11266 = vmul.f32 %v10970, %v11194
        %v11267 = vmul.f32 %v10971, %v11195
        %v11268 = vmul.f32 %v10972, %v11196
        %v11269 = vmul.f32 %v10973, %v11197
        %v11270 = vmul.f32 %v10974, %v11198
        %v11271 = vmul.f32 %v10975, %v11199
        %v11272 = vmul.f32 %v10976, %v11200
        %v11273 = vmul.f32 %v10977, %v11201
        %v11274 = vmul.f32 %v10978, %v11202
        %v11275 = vmul.f32 %v10979, %v11203
        %v11276 = vmul.f32 %v10980, %v11204
        %v11277 = vmul.f32 %v10981, %v11205
        %v11278 = vmul.f32 %v10982, %v11206
        %v11279 = vmul.f32 %v10983, %v11207
        %v11280 = vmul.f32 %v10984, %v11208
        %v11281 = vmul.f32 %v10985, %v11209
        %v11282 = vmul.f32 %v10986, %v11210
        %v11283 = vmul.f32 %v10987, %v11211
        %v11284 = vmul.f32 %v10988, %v11212
        %v11285 = vmul.f32 %v10989, %v11213
        %v11286 = vmul.f32 %v10990, %v11214
        %v11287 = vmul.f32 %v10991, %v11215
        %v11288 = vmul.f32 %v10992, %v11216
        %v11289 = vmul.f32 %v10993, %v11217
        %v11290 = vmul.f32 %v10994, %v11218
        %v11291 = vmul.f32 %v10995, %v11219
        %v11292 = vsub.f32 2.0, %v11220
        %v11293 = vsub.f32 2.0, %v11221
        %v11294 = vsub.f32 2.0, %v11222
        %v11295 = vsub.f32 2.0, %v11223
        %v11296 = vsub.f32 2.0, %v11224
        %v11297 = vsub.f32 2.0, %v11225
        %v11298 = vsub.f32 2.0, %v11226
        %v11299 = vsub.f32 2.0, %v11227
        %v11300 = vsub.f32 2.0, %v11228
        %v11301 = vsub.f32 2.0, %v11229
        %v11302 = vsub.f32 2.0, %v11230
        %v11303 = vsub.f32 2.0, %v11231
        %v11304 = vsub.f32 2.0, %v11232
        %v11305 = vsub.f32 2.0, %v11233
        %v11306 = vsub.f32 2.0, %v11234
        %v11307 = vsub.f32 2.0, %v11235
        %v11308 = vsub.f32 2.0, %v11236
        %v11309 = vsub.f32 2.0, %v11237
        %v11310 = vsub.f32 2.0, %v11238
        %v11311 = vsub.f32 2.0, %v11239
        %v11312 = vsub.f32 2.0, %v11240
        %v11313 = vsub.f32 2.0, %v11241
        %v11314 = vsub.f32 2.0, %v11242
        %v11315 = vsub.f32 2.0, %v11243
        %v11316 = vsub.f32 2.0, %v11244
        %v11317 = vsub.f32 2.0, %v11245
        %v11318 = vsub.f32 2.0, %v11246
        %v11319 = vsub.f32 2.0, %v11247
        %v11320 = vsub.f32 2.0, %v11248
        %v11321 = vsub.f32 2.0, %v11249
        %v11322 = vsub.f32 2.0, %v11250
        %v11323 = vsub.f32 2.0, %v11251
        %v11324 = vsub.f32 2.0, %v11252
        %v11325 = vsub.f32 2.0, %v11253
        %v11326 = vsub.f32 2.0, %v11254
        %v11327 = vsub.f32 2.0, %v11255
        %v11328 = vsub.f32 2.0, %v11256
        %v11329 = vsub.f32 2.0, %v11257
        %v11330 = vsub.f32 2.0, %v11258
        %v11331 = vsub.f32 2.0, %v11259
        %v11332 = vsub.f32 2.0, %v11260
        %v11333 = vsub.f32 2.0, %v11261
        %v11334 = vsub.f32 2.0, %v11262
        %v11335 = vsub.f32 2.0, %v11263
        %v11336 = vsub.f32 2.0, %v11264
        %v11337 = vsub.f32 2.0, %v11265
        %v11338 = vsub.f32 2.0, %v11266
        %v11339 = vsub.f32 2.0, %v11267
        %v11340 = vsub.f32 2.0, %v11268
        %v11341 = vsub.f32 2.0, %v11269
        %v11342 = vsub.f32 2.0, %v11270
        %v11343 = vsub.f32 2.0, %v11271
        %v11344 = vsub.f32 2.0, %v11272
        %v11345 = vsub.f32 2.0, %v11273
        %v11346 = vsub.f32 2.0, %v11274
        %v11347 = vsub.f32 2.0, %v11275
        %v11348 = vsub.f32 2.0, %v11276
        %v11349 = vsub.f32 2.0, %v11277
        %v11350 = vsub.f32 2.0, %v11278
        %v11351 = vsub.f32 2.0, %v11279
        %v11352 = vsub.f32 2.0, %v11280
        %v11353 = vsub.f32 2.0, %v11281
        %v11354 = vsub.f32 2.0, %v11282
        %v11355 = vsub.f32 2.0, %v11283
        %v11356 = vsub.f32 2.0, %v11284
        %v11357 = vsub.f32 2.0, %v11285
        %v11358 = vsub.f32 2.0, %v11286
        %v11359 = vsub.f32 2.0, %v11287
        %v11360 = vsub.f32 2.0, %v11288
        %v11361 = vsub.f32 2.0, %v11289
        %v11362 = vsub.f32 2.0, %v11290
        %v11363 = vsub.f32 2.0, %v11291
        %v11364 = vmul.f32 %v11148, %v11292
        %v11365 = vmul.f32 %v11149, %v11293
        %v11366 = vmul.f32 %v11150, %v11294
        %v11367 = vmul.f32 %v11151, %v11295
        %v11368 = vmul.f32 %v11152, %v11296
        %v11369 = vmul.f32 %v11153, %v11297
        %v11370 = vmul.f32 %v11154, %v11298
        %v11371 = vmul.f32 %v11155, %v11299
        %v11372 = vmul.f32 %v11156, %v11300
        %v11373 = vmul.f32 %v11157, %v11301
        %v11374 = vmul.f32 %v11158, %v11302
        %v11375 = vmul.f32 %v11159, %v11303
        %v11376 = vmul.f32 %v11160, %v11304
        %v11377 = vmul.f32 %v11161, %v11305
        %v11378 = vmul.f32 %v11162, %v11306
        %v11379 = vmul.f32 %v11163, %v11307
        %v11380 = vmul.f32 %v11164, %v11308
        %v11381 = vmul.f32 %v11165, %v11309
        %v11382 = vmul.f32 %v11166, %v11310
        %v11383 = vmul.f32 %v11167, %v11311
        %v11384 = vmul.f32 %v11168, %v11312
        %v11385 = vmul.f32 %v11169, %v11313
        %v11386 = vmul.f32 %v11170, %v11314
        %v11387 = vmul.f32 %v11171, %v11315
        %v11388 = vmul.f32 %v11172, %v11316
        %v11389 = vmul.f32 %v11173, %v11317
        %v11390 = vmul.f32 %v11174, %v11318
        %v11391 = vmul.f32 %v11175, %v11319
        %v11392 = vmul.f32 %v11176, %v11320
        %v11393 = vmul.f32 %v11177, %v11321
        %v11394 = vmul.f32 %v11178, %v11322
        %v11395 = vmul.f32 %v11179, %v11323
        %v11396 = vmul.f32 %v11180, %v11324
        %v11397 = vmul.f32 %v11181, %v11325
        %v11398 = vmul.f32 %v11182, %v11326
        %v11399 = vmul.f32 %v11183, %v11327
        %v11400 = vmul.f32 %v11184, %v11328
        %v11401 = vmul.f32 %v11185, %v11329
        %v11402 = vmul.f32 %v11186, %v11330
        %v11403 = vmul.f32 %v11187, %v11331
        %v11404 = vmul.f32 %v11188, %v11332
        %v11405 = vmul.f32 %v11189, %v11333
        %v11406 = vmul.f32 %v11190, %v11334
        %v11407 = vmul.f32 %v11191, %v11335
        %v11408 = vmul.f32 %v11192, %v11336
        %v11409 = vmul.f32 %v11193, %v11337
        %v11410 = vmul.f32 %v11194, %v11338
        %v11411 = vmul.f32 %v11195, %v11339
        %v11412 = vmul.f32 %v11196, %v11340
        %v11413 = vmul.f32 %v11197, %v11341
        %v11414 = vmul.f32 %v11198, %v11342
        %v11415 = vmul.f32 %v11199, %v11343
        %v11416 = vmul.f32 %v11200, %v11344
        %v11417 = vmul.f32 %v11201, %v11345
        %v11418 = vmul.f32 %v11202, %v11346
        %v11419 = vmul.f32 %v11203, %v11347
        %v11420 = vmul.f32 %v11204, %v11348
        %v11421 = vmul.f32 %v11205, %v11349
        %v11422 = vmul.f32 %v11206, %v11350
        %v11423 = vmul.f32 %v11207, %v11351
        %v11424 = vmul.f32 %v11208, %v11352
        %v11425 = vmul.f32 %v11209, %v11353
        %v11426 = vmul.f32 %v11210, %v11354
        %v11427 = vmul.f32 %v11211, %v11355
        %v11428 = vmul.f32 %v11212, %v11356
        %v11429 = vmul.f32 %v11213, %v11357
        %v11430 = vmul.f32 %v11214, %v11358
        %v11431 = vmul.f32 %v11215, %v11359
        %v11432 = vmul.f32 %v11216, %v11360
        %v11433 = vmul.f32 %v11217, %v11361
        %v11434 = vmul.f32 %v11218, %v11362
        %v11435 = vmul.f32 %v11219, %v11363
        %v11436 = vmul.f32 %v11076, %v11364
        %v11437 = vmul.f32 %v11077, %v11365
        %v11438 = vmul.f32 %v11078, %v11366
        %v11439 = vmul.f32 %v11079, %v11367
        %v11440 = vmul.f32 %v11080, %v11368
        %v11441 = vmul.f32 %v11081, %v11369
        %v11442 = vmul.f32 %v11082, %v11370
        %v11443 = vmul.f32 %v11083, %v11371
        %v11444 = vmul.f32 %v11084, %v11372
        %v11445 = vmul.f32 %v11085, %v11373
        %v11446 = vmul.f32 %v11086, %v11374
        %v11447 = vmul.f32 %v11087, %v11375
        %v11448 = vmul.f32 %v11088, %v11376
        %v11449 = vmul.f32 %v11089, %v11377
        %v11450 = vmul.f32 %v11090, %v11378
        %v11451 = vmul.f32 %v11091, %v11379
        %v11452 = vmul.f32 %v11092, %v11380
        %v11453 = vmul.f32 %v11093, %v11381
        %v11454 = vmul.f32 %v11094, %v11382
        %v11455 = vmul.f32 %v11095, %v11383
        %v11456 = vmul.f32 %v11096, %v11384
        %v11457 = vmul.f32 %v11097, %v11385
        %v11458 = vmul.f32 %v11098, %v11386
        %v11459 = vmul.f32 %v11099, %v11387
        %v11460 = vmul.f32 %v11100, %v11388
        %v11461 = vmul.f32 %v11101, %v11389
        %v11462 = vmul.f32 %v11102, %v11390
        %v11463 = vmul.f32 %v11103, %v11391
        %v11464 = vmul.f32 %v11104, %v11392
        %v11465 = vmul.f32 %v11105, %v11393
        %v11466 = vmul.f32 %v11106, %v11394
        %v11467 = vmul.f32 %v11107, %v11395
        %v11468 = vmul.f32 %v11108, %v11396
        %v11469 = vmul.f32 %v11109, %v11397
        %v11470 = vmul.f32 %v11110, %v11398
        %v11471 = vmul.f32 %v11111, %v11399
        %v11472 = vmul.f32 %v11112, %v11400
        %v11473 = vmul.f32 %v11113, %v11401
        %v11474 = vmul.f32 %v11114, %v11402
        %v11475 = vmul.f32 %v11115, %v11403
        %v11476 = vmul.f32 %v11116, %v11404
        %v11477 = vmul.f32 %v11117, %v11405
        %v11478 = vmul.f32 %v11118, %v11406
        %v11479 = vmul.f32 %v11119, %v11407
        %v11480 = vmul.f32 %v11120, %v11408
        %v11481 = vmul.f32 %v11121, %v11409
        %v11482 = vmul.f32 %v11122, %v11410
        %v11483 = vmul.f32 %v11123, %v11411
        %v11484 = vmul.f32 %v11124, %v11412
        %v11485 = vmul.f32 %v11125, %v11413
        %v11486 = vmul.f32 %v11126, %v11414
        %v11487 = vmul.f32 %v11127, %v11415
        %v11488 = vmul.f32 %v11128, %v11416
        %v11489 = vmul.f32 %v11129, %v11417
        %v11490 = vmul.f32 %v11130, %v11418
        %v11491 = vmul.f32 %v11131, %v11419
        %v11492 = vmul.f32 %v11132, %v11420
        %v11493 = vmul.f32 %v11133, %v11421
        %v11494 = vmul.f32 %v11134, %v11422
        %v11495 = vmul.f32 %v11135, %v11423
        %v11496 = vmul.f32 %v11136, %v11424
        %v11497 = vmul.f32 %v11137, %v11425
        %v11498 = vmul.f32 %v11138, %v11426
        %v11499 = vmul.f32 %v11139, %v11427
        %v11500 = vmul.f32 %v11140, %v11428
        %v11501 = vmul.f32 %v11141, %v11429
        %v11502 = vmul.f32 %v11142, %v11430
        %v11503 = vmul.f32 %v11143, %v11431
        %v11504 = vmul.f32 %v11144, %v11432
        %v11505 = vmul.f32 %v11145, %v11433
        %v11506 = vmul.f32 %v11146, %v11434
        %v11507 = vmul.f32 %v11147, %v11435
        %v11580 = vcombine.low %v11436, %v11437
        %v11581 = vcombine.low %v11438, %v11439
        %v11583 = vunpack.c.l.s4 1983009808
        %v11584 = vunpack.c.0.s8 %v11583
        %v11585 = vlaneseq
        %v11586 = vshrl.u32 %v11585, 7
        %v11587 = vsub.s32 %v11584, %v11586
        %v11588 = vrot.slane %v11580, %v11587
        %v11590 = vunpack.c.l.s4 1983009808
        %v11591 = vunpack.c.0.s8 %v11590
        %v11592 = vlaneseq
        %v11593 = vshrl.u32 %v11592, 7
        %v11594 = vsub.s32 %v11591, %v11593
        %v11595 = vrot.slane %v11581, %v11594
        %v11596 = vcombine.low %v11588, %v11595
        %v11597 = vcombine.low %v11440, %v11441
        %v11598 = vcombine.low %v11442, %v11443
        %v11600 = vunpack.c.l.s4 1983009808
        %v11601 = vunpack.c.0.s8 %v11600
        %v11602 = vlaneseq
        %v11603 = vshrl.u32 %v11602, 7
        %v11604 = vsub.s32 %v11601, %v11603
        %v11605 = vrot.slane %v11597, %v11604
        %v11607 = vunpack.c.l.s4 1983009808
        %v11608 = vunpack.c.0.s8 %v11607
        %v11609 = vlaneseq
        %v11610 = vshrl.u32 %v11609, 7
        %v11611 = vsub.s32 %v11608, %v11610
        %v11612 = vrot.slane %v11598, %v11611
        %v11613 = vcombine.low %v11605, %v11612
        %v11615 = vunpack.c.l.s4 1983009808
        %v11616 = vunpack.c.0.s8 %v11615
        %v11617 = vlaneseq
        %v11618 = vshrl.u32 %v11617, 7
        %v11619 = vsub.s32 %v11616, %v11618
        %v11620 = vrot.slane %v11444, %v11619
        %v11621 = vcombine.low %v11445, %v11446
        %v11622 = vcombine.low %v11447, %v11448
        %v11624 = vunpack.c.l.s4 1983009808
        %v11625 = vunpack.c.0.s8 %v11624
        %v11626 = vlaneseq
        %v11627 = vshrl.u32 %v11626, 7
        %v11628 = vsub.s32 %v11625, %v11627
        %v11629 = vrot.slane %v11621, %v11628
        %v11631 = vunpack.c.l.s4 1983009808
        %v11632 = vunpack.c.0.s8 %v11631
        %v11633 = vlaneseq
        %v11634 = vshrl.u32 %v11633, 7
        %v11635 = vsub.s32 %v11632, %v11634
        %v11636 = vrot.slane %v11622, %v11635
        %v11637 = vcombine.low %v11629, %v11636
        %v11638 = vcombine.low %v11449, %v11450
        %v11639 = vcombine.low %v11451, %v11452
        %v11641 = vunpack.c.l.s4 1983009808
        %v11642 = vunpack.c.0.s8 %v11641
        %v11643 = vlaneseq
        %v11644 = vshrl.u32 %v11643, 7
        %v11645 = vsub.s32 %v11642, %v11644
        %v11646 = vrot.slane %v11638, %v11645
        %v11648 = vunpack.c.l.s4 1983009808
        %v11649 = vunpack.c.0.s8 %v11648
        %v11650 = vlaneseq
        %v11651 = vshrl.u32 %v11650, 7
        %v11652 = vsub.s32 %v11649, %v11651
        %v11653 = vrot.slane %v11639, %v11652
        %v11654 = vcombine.low %v11646, %v11653
        %v11656 = vunpack.c.l.s4 1983009808
        %v11657 = vunpack.c.0.s8 %v11656
        %v11658 = vlaneseq
        %v11659 = vshrl.u32 %v11658, 7
        %v11660 = vsub.s32 %v11657, %v11659
        %v11661 = vrot.slane %v11453, %v11660
        %v11662 = vcombine.low %v11454, %v11455
        %v11663 = vcombine.low %v11456, %v11457
        %v11665 = vunpack.c.l.s4 1983009808
        %v11666 = vunpack.c.0.s8 %v11665
        %v11667 = vlaneseq
        %v11668 = vshrl.u32 %v11667, 7
        %v11669 = vsub.s32 %v11666, %v11668
        %v11670 = vrot.slane %v11662, %v11669
        %v11672 = vunpack.c.l.s4 1983009808
        %v11673 = vunpack.c.0.s8 %v11672
        %v11674 = vlaneseq
        %v11675 = vshrl.u32 %v11674, 7
        %v11676 = vsub.s32 %v11673, %v11675
        %v11677 = vrot.slane %v11663, %v11676
        %v11678 = vcombine.low %v11670, %v11677
        %v11679 = vcombine.low %v11458, %v11459
        %v11680 = vcombine.low %v11460, %v11461
        %v11682 = vunpack.c.l.s4 1983009808
        %v11683 = vunpack.c.0.s8 %v11682
        %v11684 = vlaneseq
        %v11685 = vshrl.u32 %v11684, 7
        %v11686 = vsub.s32 %v11683, %v11685
        %v11687 = vrot.slane %v11679, %v11686
        %v11689 = vunpack.c.l.s4 1983009808
        %v11690 = vunpack.c.0.s8 %v11689
        %v11691 = vlaneseq
        %v11692 = vshrl.u32 %v11691, 7
        %v11693 = vsub.s32 %v11690, %v11692
        %v11694 = vrot.slane %v11680, %v11693
        %v11695 = vcombine.low %v11687, %v11694
        %v11697 = vunpack.c.l.s4 1983009808
        %v11698 = vunpack.c.0.s8 %v11697
        %v11699 = vlaneseq
        %v11700 = vshrl.u32 %v11699, 7
        %v11701 = vsub.s32 %v11698, %v11700
        %v11702 = vrot.slane %v11462, %v11701
        %v11703 = vcombine.low %v11463, %v11464
        %v11704 = vcombine.low %v11465, %v11466
        %v11706 = vunpack.c.l.s4 1983009808
        %v11707 = vunpack.c.0.s8 %v11706
        %v11708 = vlaneseq
        %v11709 = vshrl.u32 %v11708, 7
        %v11710 = vsub.s32 %v11707, %v11709
        %v11711 = vrot.slane %v11703, %v11710
        %v11713 = vunpack.c.l.s4 1983009808
        %v11714 = vunpack.c.0.s8 %v11713
        %v11715 = vlaneseq
        %v11716 = vshrl.u32 %v11715, 7
        %v11717 = vsub.s32 %v11714, %v11716
        %v11718 = vrot.slane %v11704, %v11717
        %v11719 = vcombine.low %v11711, %v11718
        %v11720 = vcombine.low %v11467, %v11468
        %v11721 = vcombine.low %v11469, %v11470
        %v11723 = vunpack.c.l.s4 1983009808
        %v11724 = vunpack.c.0.s8 %v11723
        %v11725 = vlaneseq
        %v11726 = vshrl.u32 %v11725, 7
        %v11727 = vsub.s32 %v11724, %v11726
        %v11728 = vrot.slane %v11720, %v11727
        %v11730 = vunpack.c.l.s4 1983009808
        %v11731 = vunpack.c.0.s8 %v11730
        %v11732 = vlaneseq
        %v11733 = vshrl.u32 %v11732, 7
        %v11734 = vsub.s32 %v11731, %v11733
        %v11735 = vrot.slane %v11721, %v11734
        %v11736 = vcombine.low %v11728, %v11735
        %v11738 = vunpack.c.l.s4 1983009808
        %v11739 = vunpack.c.0.s8 %v11738
        %v11740 = vlaneseq
        %v11741 = vshrl.u32 %v11740, 7
        %v11742 = vsub.s32 %v11739, %v11741
        %v11743 = vrot.slane %v11471, %v11742
        %v11744 = vcombine.low %v11472, %v11473
        %v11745 = vcombine.low %v11474, %v11475
        %v11747 = vunpack.c.l.s4 1983009808
        %v11748 = vunpack.c.0.s8 %v11747
        %v11749 = vlaneseq
        %v11750 = vshrl.u32 %v11749, 7
        %v11751 = vsub.s32 %v11748, %v11750
        %v11752 = vrot.slane %v11744, %v11751
        %v11754 = vunpack.c.l.s4 1983009808
        %v11755 = vunpack.c.0.s8 %v11754
        %v11756 = vlaneseq
        %v11757 = vshrl.u32 %v11756, 7
        %v11758 = vsub.s32 %v11755, %v11757
        %v11759 = vrot.slane %v11745, %v11758
        %v11760 = vcombine.low %v11752, %v11759
        %v11761 = vcombine.low %v11476, %v11477
        %v11762 = vcombine.low %v11478, %v11479
        %v11764 = vunpack.c.l.s4 1983009808
        %v11765 = vunpack.c.0.s8 %v11764
        %v11766 = vlaneseq
        %v11767 = vshrl.u32 %v11766, 7
        %v11768 = vsub.s32 %v11765, %v11767
        %v11769 = vrot.slane %v11761, %v11768
        %v11771 = vunpack.c.l.s4 1983009808
        %v11772 = vunpack.c.0.s8 %v11771
        %v11773 = vlaneseq
        %v11774 = vshrl.u32 %v11773, 7
        %v11775 = vsub.s32 %v11772, %v11774
        %v11776 = vrot.slane %v11762, %v11775
        %v11777 = vcombine.low %v11769, %v11776
        %v11779 = vunpack.c.l.s4 1983009808
        %v11780 = vunpack.c.0.s8 %v11779
        %v11781 = vlaneseq
        %v11782 = vshrl.u32 %v11781, 7
        %v11783 = vsub.s32 %v11780, %v11782
        %v11784 = vrot.slane %v11480, %v11783
        %v11785 = vcombine.low %v11481, %v11482
        %v11786 = vcombine.low %v11483, %v11484
        %v11788 = vunpack.c.l.s4 1983009808
        %v11789 = vunpack.c.0.s8 %v11788
        %v11790 = vlaneseq
        %v11791 = vshrl.u32 %v11790, 7
        %v11792 = vsub.s32 %v11789, %v11791
        %v11793 = vrot.slane %v11785, %v11792
        %v11795 = vunpack.c.l.s4 1983009808
        %v11796 = vunpack.c.0.s8 %v11795
        %v11797 = vlaneseq
        %v11798 = vshrl.u32 %v11797, 7
        %v11799 = vsub.s32 %v11796, %v11798
        %v11800 = vrot.slane %v11786, %v11799
        %v11801 = vcombine.low %v11793, %v11800
        %v11802 = vcombine.low %v11485, %v11486
        %v11803 = vcombine.low %v11487, %v11488
        %v11805 = vunpack.c.l.s4 1983009808
        %v11806 = vunpack.c.0.s8 %v11805
        %v11807 = vlaneseq
        %v11808 = vshrl.u32 %v11807, 7
        %v11809 = vsub.s32 %v11806, %v11808
        %v11810 = vrot.slane %v11802, %v11809
        %v11812 = vunpack.c.l.s4 1983009808
        %v11813 = vunpack.c.0.s8 %v11812
        %v11814 = vlaneseq
        %v11815 = vshrl.u32 %v11814, 7
        %v11816 = vsub.s32 %v11813, %v11815
        %v11817 = vrot.slane %v11803, %v11816
        %v11818 = vcombine.low %v11810, %v11817
        %v11820 = vunpack.c.l.s4 1983009808
        %v11821 = vunpack.c.0.s8 %v11820
        %v11822 = vlaneseq
        %v11823 = vshrl.u32 %v11822, 7
        %v11824 = vsub.s32 %v11821, %v11823
        %v11825 = vrot.slane %v11489, %v11824
        %v11826 = vcombine.low %v11490, %v11491
        %v11827 = vcombine.low %v11492, %v11493
        %v11829 = vunpack.c.l.s4 1983009808
        %v11830 = vunpack.c.0.s8 %v11829
        %v11831 = vlaneseq
        %v11832 = vshrl.u32 %v11831, 7
        %v11833 = vsub.s32 %v11830, %v11832
        %v11834 = vrot.slane %v11826, %v11833
        %v11836 = vunpack.c.l.s4 1983009808
        %v11837 = vunpack.c.0.s8 %v11836
        %v11838 = vlaneseq
        %v11839 = vshrl.u32 %v11838, 7
        %v11840 = vsub.s32 %v11837, %v11839
        %v11841 = vrot.slane %v11827, %v11840
        %v11842 = vcombine.low %v11834, %v11841
        %v11843 = vcombine.low %v11494, %v11495
        %v11844 = vcombine.low %v11496, %v11497
        %v11846 = vunpack.c.l.s4 1983009808
        %v11847 = vunpack.c.0.s8 %v11846
        %v11848 = vlaneseq
        %v11849 = vshrl.u32 %v11848, 7
        %v11850 = vsub.s32 %v11847, %v11849
        %v11851 = vrot.slane %v11843, %v11850
        %v11853 = vunpack.c.l.s4 1983009808
        %v11854 = vunpack.c.0.s8 %v11853
        %v11855 = vlaneseq
        %v11856 = vshrl.u32 %v11855, 7
        %v11857 = vsub.s32 %v11854, %v11856
        %v11858 = vrot.slane %v11844, %v11857
        %v11859 = vcombine.low %v11851, %v11858
        %v11861 = vunpack.c.l.s4 1983009808
        %v11862 = vunpack.c.0.s8 %v11861
        %v11863 = vlaneseq
        %v11864 = vshrl.u32 %v11863, 7
        %v11865 = vsub.s32 %v11862, %v11864
        %v11866 = vrot.slane %v11498, %v11865
        %v11867 = vcombine.low %v11499, %v11500
        %v11868 = vcombine.low %v11501, %v11502
        %v11870 = vunpack.c.l.s4 1983009808
        %v11871 = vunpack.c.0.s8 %v11870
        %v11872 = vlaneseq
        %v11873 = vshrl.u32 %v11872, 7
        %v11874 = vsub.s32 %v11871, %v11873
        %v11875 = vrot.slane %v11867, %v11874
        %v11877 = vunpack.c.l.s4 1983009808
        %v11878 = vunpack.c.0.s8 %v11877
        %v11879 = vlaneseq
        %v11880 = vshrl.u32 %v11879, 7
        %v11881 = vsub.s32 %v11878, %v11880
        %v11882 = vrot.slane %v11868, %v11881
        %v11883 = vcombine.low %v11875, %v11882
        %v11884 = vcombine.low %v11503, %v11504
        %v11885 = vcombine.low %v11505, %v11506
        %v11887 = vunpack.c.l.s4 1983009808
        %v11888 = vunpack.c.0.s8 %v11887
        %v11889 = vlaneseq
        %v11890 = vshrl.u32 %v11889, 7
        %v11891 = vsub.s32 %v11888, %v11890
        %v11892 = vrot.slane %v11884, %v11891
        %v11894 = vunpack.c.l.s4 1983009808
        %v11895 = vunpack.c.0.s8 %v11894
        %v11896 = vlaneseq
        %v11897 = vshrl.u32 %v11896, 7
        %v11898 = vsub.s32 %v11895, %v11897
        %v11899 = vrot.slane %v11885, %v11898
        %v11900 = vcombine.low %v11892, %v11899
        %v11902 = vunpack.c.l.s4 1983009808
        %v11903 = vunpack.c.0.s8 %v11902
        %v11904 = vlaneseq
        %v11905 = vshrl.u32 %v11904, 7
        %v11906 = vsub.s32 %v11903, %v11905
        %v11907 = vrot.slane %v11507, %v11906
        %11932 = vst [vmem:[%s177 - $0x1] sm:$0xfe] %v11596
        %11933 = vst [vmem:[%s177 + $0x7] sm:$0xff] %v11613
        %11934 = vst [vmem:[%s177 + $0xf] sm:$0x1] %v11620
        %11935 = vst [vmem:[%s177 + $0xf] sm:$0xfe] %v11637
        %11936 = vst [vmem:[%s177 + $0x17] sm:$0xff] %v11654
        %11937 = vst [vmem:[%s177 + $0x1f] sm:$0x1] %v11661
        %11938 = vst [vmem:[%s177 + $0x1f] sm:$0xfe] %v11678
        %11939 = vst [vmem:[%s177 + $0x27] sm:$0xff] %v11695
        %11940 = vst [vmem:[%s177 + $0x2f] sm:$0x1] %v11702
        %11941 = vst [vmem:[%s177 + $0x2f] sm:$0xfe] %v11719
        %11942 = vst [vmem:[%s177 + $0x37] sm:$0xff] %v11736
        %11943 = vst [vmem:[%s177 + $0x3f] sm:$0x1] %v11743
        %11944 = vst [vmem:[%s177 + $0x3f] sm:$0xfe] %v11760
        %11945 = vst [vmem:[%s177 + $0x47] sm:$0xff] %v11777
        %11946 = vst [vmem:[%s177 + $0x4f] sm:$0x1] %v11784
        %11947 = vst [vmem:[%s177 + $0x4f] sm:$0xfe] %v11801
        %11948 = vst [vmem:[%s177 + $0x57] sm:$0xff] %v11818
        %11949 = vst [vmem:[%s177 + $0x5f] sm:$0x1] %v11825
        %11950 = vst [vmem:[%s177 + $0x5f] sm:$0xfe] %v11842
        %11951 = vst [vmem:[%s177 + $0x67] sm:$0xff] %v11859
        %11952 = vst [vmem:[%s177 + $0x6f] sm:$0x1] %v11866
        %11953 = vst [vmem:[%s177 + $0x6f] sm:$0xfe] %v11883
        %11954 = vst [vmem:[%s177 + $0x77] sm:$0xff] %v11900
        %11955 = vst [vmem:[%s177 + $0x7f] sm:$0x1] %v11907
        %s11956 = sand.u32 %s107, 1
        %s11957 = scalar_lea.sflag [#allocation3], %s11956
        %s11958 = sand.u32 %s107, 1
        %s11959 = smul.addr %s11958, 128
        %s11960 = scalar_lea.vmem [#allocation2], %s11959
        // Predicated region
        $region33: #{tpu_custom_call.1} parent=31 // pred_check
          %p11961 = pneg %p117
        $region34: #{tpu_custom_call.1} parent=31 // pred_check_branch
          %11963 = sbr.rel (%p11961) target = $region36
        $region35: #{tpu_custom_call.1} parent=31 // pred_region
          %s11964 = smul.u32 8, %s22
          %s11966 = ssub.s32 2048, 2048
          %11967 = vsyncadd %s11957, %s11966
          %s11968 = smul.addr %s11964, 2
          %s11969 = smul.addr %s21, 32
          %s11970 = sadd.s32 %s11968, %s11969
          %s11971 = smul.addr %s11970, 128
          %s11972 = scalar_lea.hbm %s3, %s11971
          %s11973 = sshll.u32 %s11960, 4
          %s11974 = int_to_ptr.vmem [resolvable:$true] %s11973
          %11979 = dma.vmem_to_hbm [thread:$0]  %s11974, 2048, %s11972, %s11957, 128, 128, 8
        $region36: #{tpu_custom_call.1} parent=31 // pred_fallthru
          _
      $region32: #{tpu_custom_call.1} parent=5 // pred_fallthru
        _
      %p11980 = scmp.le.s32.totalorder 2, %s12
      // Predicated region
      $region37: #{tpu_custom_call.1} parent=5 // pred_check
        %p11981 = pneg %p11980
      $region38: #{tpu_custom_call.1} parent=5 // pred_check_branch
        %11983 = sbr.rel (%p11981) target = $region40
      $region39: #{tpu_custom_call.1} parent=5 // pred_region
        %s11984 = ssub.s32 %s12, 2
        // Predicated region
        $region41: #{tpu_custom_call.1} parent=39 // pred_check
          %p11985 = pneg %p123
        $region42: #{tpu_custom_call.1} parent=39 // pred_check_branch
          %11987 = sbr.rel (%p11985) target = $region44
        $region43: #{tpu_custom_call.1} parent=39 // pred_region
          %s11988 = sand.u32 %s108, 1
          %s11989 = scalar_lea.sflag [#allocation3], %s11988
          %s11990 = sand.u32 %s108, 1
          %s11991 = smul.addr %s11990, 128
          %s11992 = scalar_lea.vmem [#allocation2], %s11991
          %11993 = dma.done %s11989, 2048
        $region44: #{tpu_custom_call.1} parent=39 // pred_fallthru
          _
      $region40: #{tpu_custom_call.1} parent=5 // pred_fallthru
        _
    $region6: #{tpu_custom_call.1} parent=1 // loop_footer
      %s16 = sadd.s32 1, %s12
    $region7: #{tpu_custom_call.1} parent=1 // loop_footer_branch
      %11 = sbr.rel target = $region3
    $region8: #{tpu_custom_call.1} parent=1 // loop_exit
      _
    %11994 = vsyncpa [#allocation3], 1
    %s11995 = scalar_lea.sflag [#allocation3], 1
    %11996 = vsyncpa %s11995, 1

</llo_original>
